<compile_context>
chip_gen: v5e
topology: v5e:2x2
jax: 0.10.0
libtpu: 0.0.40
codegen_flags: <defaults>
</compile_context>

<pallas_src>
from functools import partial

import numpy as np
import jax
import jax.numpy as jnp
from jax.experimental import pallas as pl
from jax.experimental.pallas import tpu as pltpu

Nc = 3                      # SU(3)
NPL = 2 * Nc * Nc           # 18 float32 planes per complex 3x3 field
LANES = 128


# -----------------------------------------------------------------------------
# plane-layout helpers:
#   complex (...,3,3)  <->  float32 (nblk, 18, block_rows, 128)
# (block index outermost -> each grid block is one contiguous DMA)
# -----------------------------------------------------------------------------
def _choose_block_rows(S):
    """Largest block (<=32 sublane rows, v7x-VMEM friendly) that still leaves
    >=2 grid blocks so the 'parallel' axis can split across TensorCores."""
    rows = -(-S // LANES)
    for br in (32, 16):
        if rows >= 2 * br:
            return br
    return 8


def mat_to_planes(X, nblk, block_rows):
    """(..., 3, 3) complex -> (nblk, 18, block_rows, 128) float32."""
    prefix = X.shape[:-2]
    S = int(np.prod(prefix)) if prefix else 1
    Sp = nblk * block_rows * LANES
    Xf = X.reshape(S, Nc * Nc)
    Xf = jnp.pad(Xf, ((0, Sp - S), (0, 0)))
    Xf = Xf.reshape(nblk, block_rows, LANES, Nc * Nc)
    Xf = jnp.moveaxis(Xf, -1, 1)                       # (nblk, 9, br, 128)
    return jnp.concatenate([jnp.real(Xf), jnp.imag(Xf)], axis=1).astype(jnp.float32)


def planes_to_mat(P, prefix):
    """(nblk, 18, block_rows, 128) float32 -> (..., 3, 3) complex64."""
    nblk, _, br, _ = P.shape
    C = jax.lax.complex(P[:, :Nc * Nc], P[:, Nc * Nc:])  # (nblk, 9, br, 128)
    C = jnp.moveaxis(C, 1, -1).reshape(nblk * br * LANES, Nc * Nc)
    S = int(np.prod(prefix)) if prefix else 1
    return C[:S].reshape(tuple(prefix) + (Nc, Nc))


def fcoef_to_planes(f0, f1, f2, nblk, block_rows):
    """Three complex scalar fields -> (nblk, 6, block_rows, 128) float32
    (planes 0..2 = re(f0,f1,f2); 3..5 = im)."""
    prefix = f0.shape
    S = int(np.prod(prefix)) if prefix else 1
    Sp = nblk * block_rows * LANES
    F = jnp.stack([f0.reshape(S), f1.reshape(S), f2.reshape(S)], axis=-1)
    F = jnp.pad(F, ((0, Sp - S), (0, 0)))
    F = F.reshape(nblk, block_rows, LANES, 3)
    F = jnp.moveaxis(F, -1, 1)                         # (nblk, 3, br, 128)
    return jnp.concatenate([jnp.real(F), jnp.imag(F)], axis=1).astype(jnp.float32)


# -----------------------------------------------------------------------------
# Pallas kernels
# -----------------------------------------------------------------------------
def _make_staple_q_kernel(T, block_rows):
    """Fused: C = sum_t rho_t*(A1 A2 A3^dag + B1^dag B2 B3);
              omega = C U^dag; Q; Q2 = Q Q.
    Daggers folded into the product formulas (no negations, no transposed
    copies); rho read from SMEM; row-streamed to bound live vregs; loops over
    (8,128) sub-tiles of the block."""
    SUB = block_rows // 8

    def kernel(rho_ref, *refs):
        field = refs[:6 * T]
        u_ref = refs[6 * T]
        c_ref, q_ref, q2_ref = refs[6 * T + 1], refs[6 * T + 2], refs[6 * T + 3]

        for sub in range(SUB):
            r0 = sub * 8
            r1 = r0 + 8

            def ld(ref, e):
                return ref[e, r0:r1, :], ref[Nc * Nc + e, r0:r1, :]

            accR = [None] * (Nc * Nc)
            accI = [None] * (Nc * Nc)

            for t in range(T):
                rho_t = rho_ref[t]
                a1, a2, a3, b1, b2, b3 = field[6 * t:6 * t + 6]

                # P = A1 @ A2 @ A3^dag  (row-streamed)
                for i in range(Nc):
                    Mr, Mi = [], []
                    for j in range(Nc):
                        mr = mi = None
                        for k in range(Nc):
                            ar, ai = ld(a1, i * Nc + k)
                            br, bi = ld(a2, k * Nc + j)
                            tr = ar * br - ai * bi
                            ti = ar * bi + ai * br
                            mr = tr if mr is None else mr + tr
                            mi = ti if mi is None else mi + ti
                        Mr.append(mr)
                        Mi.append(mi)
                    for j in range(Nc):
                        pr = pi = None
                        for k in range(Nc):
                            cr3, ci3 = ld(a3, j * Nc + k)    # conj folded in
                            tr = Mr[k] * cr3 + Mi[k] * ci3
                            ti = Mi[k] * cr3 - Mr[k] * ci3
                            pr = tr if pr is None else pr + tr
                            pi = ti if pi is None else pi + ti
                        e = i * Nc + j
                        pr = rho_t * pr
                        pi = rho_t * pi
                        accR[e] = pr if accR[e] is None else accR[e] + pr
                        accI[e] = pi if accI[e] is None else accI[e] + pi

                # N = B1^dag @ B2 @ B3  (row-streamed)
                for i in range(Nc):
                    Mr, Mi = [], []
                    for j in range(Nc):
                        mr = mi = None
                        for k in range(Nc):
                            ar, ai = ld(b1, k * Nc + i)      # conj folded in
                            br, bi = ld(b2, k * Nc + j)
                            tr = ar * br + ai * bi
                            ti = ar * bi - ai * br
                            mr = tr if mr is None else mr + tr
                            mi = ti if mi is None else mi + ti
                        Mr.append(mr)
                        Mi.append(mi)
                    for j in range(Nc):
                        nr = ni = None
                        for k in range(Nc):
                            br, bi = ld(b3, k * Nc + j)
                            tr = Mr[k] * br - Mi[k] * bi
                            ti = Mr[k] * bi + Mi[k] * br
                            nr = tr if nr is None else nr + tr
                            ni = ti if ni is None else ni + ti
                        e = i * Nc + j
                        accR[e] = accR[e] + rho_t * nr
                        accI[e] = accI[e] + rho_t * ni

            # store C
            for e in range(Nc * Nc):
                c_ref[e, r0:r1, :] = accR[e]
                c_ref[Nc * Nc + e, r0:r1, :] = accI[e]

            # omega = C @ U^dag
            OmR = [None] * (Nc * Nc)
            OmI = [None] * (Nc * Nc)
            for i in range(Nc):
                for j in range(Nc):
                    orr = oii = None
                    for k in range(Nc):
                        ur, ui = ld(u_ref, j * Nc + k)       # conj folded in
                        cr = accR[i * Nc + k]
                        ci = accI[i * Nc + k]
                        tr = cr * ur + ci * ui
                        ti = ci * ur - cr * ui
                        orr = tr if orr is None else orr + tr
                        oii = ti if oii is None else oii + ti
                    OmR[i * Nc + j] = orr
                    OmI[i * Nc + j] = oii

            # diff = omega^dag - omega ; Q = 0.5j*diff - (0.5j/N)*tr(diff)
            # (literal torch semantics: trace term broadcasts over all elems)
            dR = [OmR[j * Nc + i] - OmR[i * Nc + j] for i in range(Nc) for j in range(Nc)]
            dI = [-OmI[j * Nc + i] - OmI[i * Nc + j] for i in range(Nc) for j in range(Nc)]
            ctR = (0.5 / Nc) * (dR[0] + dR[4] + dR[8])       # hoisted
            ctI = (0.5 / Nc) * (dI[0] + dI[4] + dI[8])
            QR = [-0.5 * dI[e] + ctI for e in range(Nc * Nc)]
            QI = [0.5 * dR[e] - ctR for e in range(Nc * Nc)]
            for e in range(Nc * Nc):
                q_ref[e, r0:r1, :] = QR[e]
                q_ref[Nc * Nc + e, r0:r1, :] = QI[e]

            # Q2 = Q @ Q (store each element as soon as it is ready)
            for i in range(Nc):
                for j in range(Nc):
                    sr = si = None
                    for k in range(Nc):
                        ar, ai = QR[i * Nc + k], QI[i * Nc + k]
                        br, bi = QR[k * Nc + j], QI[k * Nc + j]
                        tr = ar * br - ai * bi
                        ti = ar * bi + ai * br
                        sr = tr if sr is None else sr + tr
                        si = ti if si is None else si + ti
                    q2_ref[i * Nc + j, r0:r1, :] = sr
                    q2_ref[Nc * Nc + i * Nc + j, r0:r1, :] = si

    return kernel


def _make_expu_kernel(block_rows):
    """expQ = f0 I + f1 Q + f2 Q^2 ; new link = expQ @ U (fused, row-streamed)."""
    SUB = block_rows // 8

    def kernel(q_ref, q2_ref, u_ref, f_ref, o_ref):
        for sub in range(SUB):
            r0 = sub * 8
            r1 = r0 + 8
            a0r = f_ref[0, r0:r1, :]
            a1r = f_ref[1, r0:r1, :]
            a2r = f_ref[2, r0:r1, :]
            a0i = f_ref[3, r0:r1, :]
            a1i = f_ref[4, r0:r1, :]
            a2i = f_ref[5, r0:r1, :]
            Ur = [u_ref[e, r0:r1, :] for e in range(Nc * Nc)]
            Ui = [u_ref[Nc * Nc + e, r0:r1, :] for e in range(Nc * Nc)]

            for i in range(Nc):
                Er, Ei = [], []
                for j in range(Nc):
                    e = i * Nc + j
                    qr = q_ref[e, r0:r1, :]
                    qi = q_ref[Nc * Nc + e, r0:r1, :]
                    q2r = q2_ref[e, r0:r1, :]
                    q2i = q2_ref[Nc * Nc + e, r0:r1, :]
                    er = a1r * qr - a1i * qi + a2r * q2r - a2i * q2i
                    ei = a1r * qi + a1i * qr + a2r * q2i + a2i * q2r
                    if i == j:
                        er = er + a0r
                        ei = ei + a0i
                    Er.append(er)
                    Ei.append(ei)
                for j in range(Nc):
                    sr = si = None
                    for k in range(Nc):
                        ur, ui = Ur[k * Nc + j], Ui[k * Nc + j]
                        tr = Er[k] * ur - Ei[k] * ui
                        ti = Er[k] * ui + Ei[k] * ur
                        sr = tr if sr is None else sr + tr
                        si = ti if si is None else si + ti
                    o_ref[i * Nc + j, r0:r1, :] = sr
                    o_ref[Nc * Nc + i * Nc + j, r0:r1, :] = si

    return kernel


# -----------------------------------------------------------------------------
# pallas_call wrappers
# -----------------------------------------------------------------------------
def _staple_q_call(rho_vec, field_planes, u_planes, T, nblk, block_rows):
    mspec = pl.BlockSpec((None, NPL, block_rows, LANES), lambda s, rho: (s, 0, 0, 0))
    sites = nblk * block_rows * LANES
    cost = pl.CostEstimate(
        flops=int(sites * (950 * T + 500)),
        transcendentals=0,
        bytes_accessed=int((6 * T + 4) * NPL * 4 * sites + 4 * T))
    return pl.pallas_call(
        _make_staple_q_kernel(T, block_rows),
        out_shape=tuple(jax.ShapeDtypeStruct((nblk, NPL, block_rows, LANES), jnp.float32)
                        for _ in range(3)),
        grid_spec=pltpu.PrefetchScalarGridSpec(
            num_scalar_prefetch=1,
            grid=(nblk,),
            in_specs=[mspec] * (6 * T + 1),
            out_specs=tuple(mspec for _ in range(3))),
        compiler_params=pltpu.CompilerParams(dimension_semantics=("parallel",)),
        cost_estimate=cost,
    )(rho_vec, *field_planes, u_planes)


def _expu_call(q_planes, q2_planes, u_planes, f_planes, nblk, block_rows):
    mspec = pl.BlockSpec((None, NPL, block_rows, LANES), lambda s: (s, 0, 0, 0))
    fspec = pl.BlockSpec((None, 6, block_rows, LANES), lambda s: (s, 0, 0, 0))
    sites = nblk * block_rows * LANES
    cost = pl.CostEstimate(
        flops=int(sites * 330),
        transcendentals=0,
        bytes_accessed=int(sites * (4 * NPL * 4 + 6 * 4)))
    return pl.pallas_call(
        _make_expu_kernel(block_rows),
        out_shape=jax.ShapeDtypeStruct((nblk, NPL, block_rows, LANES), jnp.float32),
        grid=(nblk,),
        in_specs=[mspec, mspec, mspec, fspec],
        out_specs=mspec,
        compiler_params=pltpu.CompilerParams(dimension_semantics=("parallel",)),
        cost_estimate=cost,
    )(q_planes, q2_planes, u_planes, f_planes)


# -----------------------------------------------------------------------------
# SU(N) helpers used by the plain-JAX Jacobian path
# -----------------------------------------------------------------------------
def SUN_dagger(A):
    return jnp.conjugate(jnp.swapaxes(A, -1, -2))


def SUN_trace(A):
    return jnp.trace(A, axis1=-2, axis2=-1)


def SUN_identity(shape):  # shape = (..., N)
    n = shape[-1]
    return jnp.broadcast_to(jnp.eye(n, dtype=jnp.complex64),
                            tuple(shape[:-1]) + (n, n))


def SUN_determinant(A):  # explicit 3x3 determinant
    a, b, c = A[..., 0, 0], A[..., 0, 1], A[..., 0, 2]
    d, e, f = A[..., 1, 0], A[..., 1, 1], A[..., 1, 2]
    g, h, i = A[..., 2, 0], A[..., 2, 1], A[..., 2, 2]
    return a * (e * i - f * h) - b * (d * i - f * g) + c * (d * h - e * g)


def _shift(U, axis, sign):
    # U: (bs, *lat, N, N); sign=+1 -> U(x+e_axis), sign=-1 -> U(x-e_axis)
    # TODO(synk): replace the XLA-side roll with in-grid shifted reads
    # (lattice-blocked planes + halo DMA) to cut staple-stage HBM traffic.
    return jnp.roll(U, shift=-sign, axis=1 + axis)


# -----------------------------------------------------------------------------
# stout-smearing algebra (plain JAX glue, same semantics as the torch source)
# -----------------------------------------------------------------------------
def Jacobian_reshape(jac, jac_shape):
    return jnp.einsum('...ijkl->...iljk', jac).reshape(jac_shape)


def det_Jac_abs(J):
    # |det(J)| for complex J via slogdet of the 2Nx2N real representation
    # (det_R = |det_C|^2); avoids complex LU on TPU and f32 under/overflow.
    A = jnp.real(J)
    B = jnp.imag(J)
    R = jnp.concatenate(
        [jnp.concatenate([A, -B], axis=-1),
         jnp.concatenate([B, A], axis=-1)], axis=-2)
    _, logabs = jnp.linalg.slogdet(R)
    return jnp.exp(0.5 * logabs)


def matstarprod(A, B):
    return jnp.einsum('...in,...njkl->...ijkl', A, B)


def starprodmat(A, B):
    return jnp.einsum('...ijkn,...nl->...ijkl', A, B)


def generate_Jacobian_U(dexpQdU, U, expQ, oidid):
    return starprodmat(dexpQdU, U) + matstarprod(expQ, oidid)


def xi0(w, w2):
    return jnp.where(jnp.abs(w) > 0.005, jnp.sin(w) / w,
                     1.0 - 1.0 / 6.0 * w2 * (1.0 - 1.0 / 20.0 * w2 * (1.0 - 1.0 / 42.0 * w2)))


def xi1(w, w2):
    return jnp.where(jnp.abs(w) > 0.005, jnp.cos(w) / w2 - jnp.sin(w) / w ** 3,
                     -1.0 / 3.0 + w2 * (1.0 / 30.0 + w2 * (-1.0 / 840 + 1.0 / 45360.0 * w2)))


def generate_coefficients(Q, Q2, idm, oidid, oidQ):
    c0c = SUN_determinant(Q)
    # trace(Q^2) is real for Hermitian Q; drop fp-noise imaginary part so the
    # transcendentals run on real f32.
    c1 = jnp.real(0.5 * SUN_trace(Q2))
    c0max = 2.0 * (c1 / 3.0) ** 1.5
    absc0 = jnp.abs(c0c)
    sgnc0 = jnp.where(absc0 > 0, jnp.real(c0c) / absc0, 0.0)  # real(sgn(c0))
    c0 = absc0
    # guard the c0max == 0 (Q == 0) degenerate case and fp round-off > 1
    ratio = jnp.where(c0max > 0, c0 / jnp.where(c0max > 0, c0max, 1.0), 1.0)
    theta = jnp.arccos(jnp.minimum(ratio, 1.0))
    u = jnp.sqrt(c1 / 3.0) * jnp.cos(theta / 3.0)
    w = jnp.sqrt(c1) * jnp.sin(theta / 3.0)
    u2 = u ** 2
    w2 = w ** 2
    cw = jnp.cos(w)
    eu = jax.lax.complex(jnp.cos(u), jnp.sin(u))
    eu2 = eu * eu
    eum = 1.0 / eu
    xizero = xi0(w, w2)
    xione = xi1(w, w2)
    h0 = (u2 - w2) * eu2 + eum * (8.0 * u2 * cw + 2j * u * (3.0 * u2 + w2) * xizero)
    h1 = 2.0 * u * eu2 - eum * (2.0 * u * cw - 1j * (3.0 * u2 - w2) * xizero)
    h2 = eu2 - eum * (cw + 3j * u * xizero)
    r10 = (2.0 * (u + 1j * (u2 - w2)) * eu2
           + 2.0 * eum * (4.0 * u * (2.0 - 1j * u) * cw
                          + 1j * (9.0 * u2 + w2 - 1j * u * (3.0 * u2 + w2)) * xizero))
    r11 = (2.0 * (1.0 + 2j * u) * eu2
           + eum * (-2.0 * (1.0 - 1j * u) * cw
                    + 1j * (6.0 * u + 1j * (w2 - 3.0 * u2)) * xizero))
    r12 = 2j * eu2 + 1j * eum * (cw - 3.0 * (1.0 - 1j * u) * xizero)
    r20 = -2.0 * eu2 + 2j * u * eum * (cw + (1.0 + 4j * u) * xizero + 3.0 * u2 * xione)
    r21 = -1j * eum * (cw + (1.0 + 2j * u) * xizero - 3.0 * u2 * xione)
    r22 = eum * (xizero - 3j * u * xione)
    den = 9.0 * u2 - w2
    den2 = 2.0 * den ** 2
    v3u2mw2 = 3.0 * u2 - w2
    v15u2pw2 = 15.0 * u2 + w2
    f0 = h0 / den
    f1 = h1 / den
    f2 = h2 / den
    b10 = (2.0 * u * r10 + v3u2mw2 * r20 - 2.0 * v15u2pw2 * f0) / den2
    b11 = (2.0 * u * r11 + v3u2mw2 * r21 - 2.0 * v15u2pw2 * f1) / den2
    b12 = (2.0 * u * r12 + v3u2mw2 * r22 - 2.0 * v15u2pw2 * f2) / den2
    b20 = (r10 - 3.0 * u * r20 - 24.0 * u * f0) / den2
    b21 = (r11 - 3.0 * u * r21 - 24.0 * u * f1) / den2
    b22 = (r12 - 3.0 * u * r22 - 24.0 * u * f2) / den2
    pos = sgnc0 > 0
    f0 = jnp.where(pos, f0, jnp.conj(f0))
    f1 = jnp.where(pos, f1, -jnp.conj(f1))
    f2 = jnp.where(pos, f2, jnp.conj(f2))
    b10 = jnp.where(pos, b10, jnp.conj(b10))
    b11 = jnp.where(pos, b11, -jnp.conj(b11))
    b12 = jnp.where(pos, b12, jnp.conj(b12))
    b20 = jnp.where(pos, b20, -jnp.conj(b20))
    b21 = jnp.where(pos, b21, jnp.conj(b21))
    b22 = jnp.where(pos, b22, -jnp.conj(b22))
    B1 = (b10[..., None, None] * idm + b11[..., None, None] * Q
          + b12[..., None, None] * Q2)
    B2 = (b20[..., None, None] * idm + b21[..., None, None] * Q
          + b22[..., None, None] * Q2)
    return (f0[..., None, None], f1[..., None, None], f2[..., None, None], B1, B2)


def otimes(A, B):
    return jnp.einsum('...ij,...kl->...ijkl', A, B)


def generate_domega_dU(C, idm):
    return -otimes(idm, SUN_dagger(C))


def starprod(A, B):
    return jnp.einsum('...inml,...njkm->...ijkl', A, B)


def generate_dQ_dU(dQdomega, idm, C):
    B = generate_domega_dU(C, idm)
    return starprod(dQdomega, B)


def oplus(A, B):
    return jnp.einsum('...kj,...il->...ijkl', A, B)


def generate_dQ_domega(N, oidid, idm):
    A = oidid
    B = oplus(idm, idm)
    return -1j * (0.5 * A - 0.5 / N * B)


def generate_dexpQ_dQ(Q, Q2, B1, B2, f1, f2, idm, oidid, oidQ):
    M = oplus(Q, B1)
    M = M + oplus(Q2, B2)
    M = M + f1[..., None, None] * oidid
    M = M + f2[..., None, None] * oidQ
    return M


def generate_dexpQ_dU(dexpQdQ, dQ_dU):
    return starprod(dexpQdQ, dQ_dU)


def generate_expQ(Q, Q2, idm, f0, f1, f2):
    return f0 * idm + f1 * Q + f2 * Q2


# -----------------------------------------------------------------------------
# stout smearing of one direction (jitted; Pallas kernels + XLA Jacobian glue)
# -----------------------------------------------------------------------------
@partial(jax.jit, static_argnums=(1, 2, 4))
def stout_smearing(cfgs, mu, D, rho, jac_shape):
    U = cfgs[:, mu]
    prefix = U.shape[:-2]
    S = int(np.prod(prefix))
    block_rows = _choose_block_rows(S)
    rows = -(-S // LANES)
    nblk = -(-rows // block_rows)

    u_planes = mat_to_planes(U, nblk, block_rows)

    # staple inputs: unscaled links (rho goes into SMEM and is applied in-kernel)
    field_planes = []
    rho_list = []
    T = 0
    for nu in range(D):
        if nu == mu:
            continue
        rho_list.append(rho[0] if rho.shape[0] == 1 else rho[nu])
        U_nu = cfgs[:, nu]
        # dagger(pstaple) = U_nu(x) U_mu(x+nu) U_nu(x+mu)^dag
        A1 = U_nu
        A2 = _shift(U, nu, +1)
        A3 = _shift(U_nu, mu, +1)
        # dagger(nstaple) = U_nu(x-nu)^dag U_mu(x-nu) U_nu(x-nu+mu)
        Un_back = _shift(U_nu, nu, -1)
        B1 = Un_back
        B2 = _shift(U, nu, -1)
        B3 = _shift(Un_back, mu, +1)
        for M in (A1, A2, A3, B1, B2, B3):
            field_planes.append(mat_to_planes(M, nblk, block_rows))
        T += 1

    if T == 0:
        cp = jnp.zeros((nblk, NPL, block_rows, LANES), jnp.float32)
        qp = jnp.zeros_like(cp)
        q2p = jnp.zeros_like(cp)
    else:
        rho_vec = jnp.stack(rho_list).astype(jnp.float32).reshape(T)
        cp, qp, q2p = _staple_q_call(rho_vec, field_planes, u_planes,
                                     T, nblk, block_rows)

    C = planes_to_mat(cp, prefix)       # complex C/Q/Q2 for the Jacobian path
    Q = planes_to_mat(qp, prefix)
    Q2 = planes_to_mat(q2p, prefix)

    idm = SUN_identity(U.shape[:-1])
    N = U.shape[-1]
    oidid = otimes(idm, idm)
    oidQ = otimes(idm, Q) + otimes(Q, idm)
    f0, f1, f2, B1c, B2c = generate_coefficients(Q, Q2, idm, oidid, oidQ)
    expQ = generate_expQ(Q, Q2, idm, f0, f1, f2)

    # fused expQ and new link expQ @ U (Q, Q2, U planes reused, no reconversion)
    f_planes = fcoef_to_planes(f0[..., 0, 0], f1[..., 0, 0], f2[..., 0, 0],
                               nblk, block_rows)
    new_planes = _expu_call(qp, q2p, u_planes, f_planes, nblk, block_rows)
    U_new = planes_to_mat(new_planes, prefix)

    # --- Jacobian algebra (rank-6 tensors + 18x18 log-det) in plain XLA ------
    # TODO(synk): this einsum chain + per-site 18x18 slogdet moves ~9x more
    # data per site than the Pallas kernels; porting it to the plane layout is
    # the next optimization step.
    dexpQdQ = generate_dexpQ_dQ(Q, Q2, B1c, B2c, f1, f2, idm, oidid, oidQ)
    dQdomega = generate_dQ_domega(N, oidid, idm)
    dQdU = generate_dQ_dU(dQdomega, idm, C)
    dexpQdU = generate_dexpQ_dU(dexpQdQ, dQdU)
    Jacobian_U = generate_Jacobian_U(dexpQdU, U, expQ, oidid)
    detjac = det_Jac_abs(Jacobian_reshape(Jacobian_U, jac_shape))
    return U_new[:, None], detjac[:, None]


# -----------------------------------------------------------------------------
# Smearing "module"
# -----------------------------------------------------------------------------
class Smearing:
    def __init__(self, N, mask, D, jac_shape, scale_fac, rho_shape,
                 rho_root=None, smearing_steps=1, key=None):
        self.N = N
        self.mask = mask
        self.D = D
        self.smearing_steps = smearing_steps
        if rho_root is None:
            self.rho_root = jax.random.uniform(key, rho_shape, dtype=jnp.float32) * scale_fac
        else:
            self.rho_root = rho_root
        self.jac_shape = tuple(jac_shape)

    def forward(self, cfgs):
        ones = jnp.ones(self.mask[0].shape, dtype=jnp.float32)[..., 0, 0]
        bs = cfgs.shape[0]
        dlogJ = jnp.zeros((bs,), dtype=jnp.float32)
        dims = tuple(range(1, self.D + 2))
        for sm in range(self.smearing_steps):
            for mu in range(self.D):
                for eo in range(2):
                    current_mask = self.mask[eo + mu * 2]
                    rho = self.rho_root[sm, eo + mu * 2, :] ** 2
                    cfgs_new, jac = stout_smearing(cfgs, mu, self.D, rho, self.jac_shape)
                    cfgs = current_mask * cfgs_new + (1 - current_mask) * cfgs
                    msk = current_mask[..., 0, 0]
                    jac = jnp.log(msk * jac + (1 - msk) * ones)
                    dlogJ = dlogJ + jnp.sum(jac, axis=dims)
        return cfgs, 0, dlogJ


# -----------------------------------------------------------------------------
# deterministic inputs + run
# -----------------------------------------------------------------------------
def random_su3(key, prefix):
    """Deterministic random SU(3) links: complex Gaussian -> QR -> unit det."""
    k1, k2 = jax.random.split(key)
    gr = np.asarray(jax.random.normal(k1, prefix + (Nc, Nc), dtype=jnp.float32))
    gi = np.asarray(jax.random.normal(k2, prefix + (Nc, Nc), dtype=jnp.float32))
    G = (gr.astype(np.float64) + 1j * gi.astype(np.float64)).reshape(-1, Nc, Nc)
    out = np.empty_like(G)
    for n in range(G.shape[0]):
        q, r = np.linalg.qr(G[n])
        d = np.diagonal(r)
        q = q * (d / np.abs(d))[None, :]
        q = q / np.linalg.det(q) ** (1.0 / 3.0)
        out[n] = q
    return jnp.asarray(out.reshape(prefix + (Nc, Nc)), dtype=jnp.complex64)


if __name__ == "__main__":
    # layout: cfgs is (batch, D, L, L, N, N) complex64 (links for each direction)
    bs, D, L = 2, 2, 4
    key = jax.random.PRNGKey(0)
    k_cfg, k_rho = jax.random.split(key)

    cfgs = random_su3(k_cfg, (bs, D, L, L))

    # even/odd masks per direction: mask[eo + 2*mu, d] == 1 on parity-eo sites
    # of the direction slice d == mu, zero elsewhere.  Shape (2D, D, L, L, 1, 1).
    parity = np.indices((L,) * D).sum(axis=0) % 2
    mask_np = np.zeros((2 * D, D) + (L,) * D + (1, 1), dtype=np.float32)
    for mu in range(D):
        for eo in range(2):
            mask_np[eo + mu * 2, mu] = (parity == eo).astype(np.float32)[..., None, None]
    mask = jnp.asarray(mask_np)

    jac_shape = (bs, L, L, Nc * Nc, Nc * Nc)
    rho_shape = (1, 2 * D, D)     # (smearing_steps, 2*D, D)

    model = Smearing(Nc, mask, D, jac_shape, scale_fac=0.3,
                     rho_shape=rho_shape, smearing_steps=1, key=k_rho)

    cfgs_out, _, dlogJ = model.forward(cfgs)
    cfgs_out, dlogJ = jax.block_until_ready((cfgs_out, dlogJ))

    assert cfgs_out.shape == (bs, D, L, L, Nc, Nc) and cfgs_out.dtype == jnp.complex64
    assert dlogJ.shape == (bs,)
    assert bool(jnp.all(jnp.isfinite(dlogJ)))
    print("KERNEL_OK")
</pallas_src>

<mosaic_0001>
module attributes {stable_mosaic.version = 11 : i64} {
  func.func @kernel(%arg0: i32, %arg1: memref<1xf32, #tpu.memory_space<smem>>, %arg2: memref<1x18x8x128xf32, #tpu.memory_space<vmem>>, %arg3: memref<1x18x8x128xf32, #tpu.memory_space<vmem>>, %arg4: memref<1x18x8x128xf32, #tpu.memory_space<vmem>>, %arg5: memref<1x18x8x128xf32, #tpu.memory_space<vmem>>, %arg6: memref<1x18x8x128xf32, #tpu.memory_space<vmem>>, %arg7: memref<1x18x8x128xf32, #tpu.memory_space<vmem>>, %arg8: memref<1x18x8x128xf32, #tpu.memory_space<vmem>>, %arg9: memref<1x18x8x128xf32, #tpu.memory_space<vmem>>, %arg10: memref<1x18x8x128xf32, #tpu.memory_space<vmem>>, %arg11: memref<1x18x8x128xf32, #tpu.memory_space<vmem>>) attributes {dimension_semantics = [#tpu.dimension_semantics<parallel>], iteration_bounds = array<i64: 1>, scalar_prefetch = 1 : i64, scratch_operands = 0 : i64, tpu.core_type = #tpu.core_type<tc>, window_params = [{transform_indices = @transform_0, window_bounds = array<i64: 1, 18, 8, 128>}, {transform_indices = @transform_1, window_bounds = array<i64: 1, 18, 8, 128>}, {transform_indices = @transform_2, window_bounds = array<i64: 1, 18, 8, 128>}, {transform_indices = @transform_3, window_bounds = array<i64: 1, 18, 8, 128>}, {transform_indices = @transform_4, window_bounds = array<i64: 1, 18, 8, 128>}, {transform_indices = @transform_5, window_bounds = array<i64: 1, 18, 8, 128>}, {transform_indices = @transform_6, window_bounds = array<i64: 1, 18, 8, 128>}, {transform_indices = @transform_7, window_bounds = array<i64: 1, 18, 8, 128>}, {transform_indices = @transform_8, window_bounds = array<i64: 1, 18, 8, 128>}, {transform_indices = @transform_9, window_bounds = array<i64: 1, 18, 8, 128>}]} {
    %c0 = arith.constant 0 : index
    %0 = memref.load %arg1[%c0] : memref<1xf32, #tpu.memory_space<smem>>
    %c0_0 = arith.constant 0 : index
    %c0_1 = arith.constant 0 : index
    %c0_2 = arith.constant 0 : index
    %c0_3 = arith.constant 0 : index
    %1 = vector.load %arg2[%c0_0, %c0_1, %c0_2, %c0_3] : memref<1x18x8x128xf32, #tpu.memory_space<vmem>>, vector<1x1x8x128xf32>
    %2 = vector.shape_cast %1 : vector<1x1x8x128xf32> to vector<8x128xf32>
    %c0_4 = arith.constant 0 : index
    %c9 = arith.constant 9 : index
    %c0_5 = arith.constant 0 : index
    %c0_6 = arith.constant 0 : index
    %3 = vector.load %arg2[%c0_4, %c9, %c0_5, %c0_6] : memref<1x18x8x128xf32, #tpu.memory_space<vmem>>, vector<1x1x8x128xf32>
    %4 = vector.shape_cast %3 : vector<1x1x8x128xf32> to vector<8x128xf32>
    %c0_7 = arith.constant 0 : index
    %c0_8 = arith.constant 0 : index
    %c0_9 = arith.constant 0 : index
    %c0_10 = arith.constant 0 : index
    %5 = vector.load %arg3[%c0_7, %c0_8, %c0_9, %c0_10] : memref<1x18x8x128xf32, #tpu.memory_space<vmem>>, vector<1x1x8x128xf32>
    %6 = vector.shape_cast %5 : vector<1x1x8x128xf32> to vector<8x128xf32>
    %c0_11 = arith.constant 0 : index
    %c9_12 = arith.constant 9 : index
    %c0_13 = arith.constant 0 : index
    %c0_14 = arith.constant 0 : index
    %7 = vector.load %arg3[%c0_11, %c9_12, %c0_13, %c0_14] : memref<1x18x8x128xf32, #tpu.memory_space<vmem>>, vector<1x1x8x128xf32>
    %8 = vector.shape_cast %7 : vector<1x1x8x128xf32> to vector<8x128xf32>
    %9 = arith.mulf %2, %6 : vector<8x128xf32>
    %10 = arith.mulf %4, %8 : vector<8x128xf32>
    %11 = arith.subf %9, %10 : vector<8x128xf32>
    %12 = arith.mulf %2, %8 : vector<8x128xf32>
    %13 = arith.mulf %4, %6 : vector<8x128xf32>
    %14 = arith.addf %12, %13 : vector<8x128xf32>
    %c0_15 = arith.constant 0 : index
    %c1 = arith.constant 1 : index
    %c0_16 = arith.constant 0 : index
    %c0_17 = arith.constant 0 : index
    %15 = vector.load %arg2[%c0_15, %c1, %c0_16, %c0_17] : memref<1x18x8x128xf32, #tpu.memory_space<vmem>>, vector<1x1x8x128xf32>
    %16 = vector.shape_cast %15 : vector<1x1x8x128xf32> to vector<8x128xf32>
    %c0_18 = arith.constant 0 : index
    %c10 = arith.constant 10 : index
    %c0_19 = arith.constant 0 : index
    %c0_20 = arith.constant 0 : index
    %17 = vector.load %arg2[%c0_18, %c10, %c0_19, %c0_20] : memref<1x18x8x128xf32, #tpu.memory_space<vmem>>, vector<1x1x8x128xf32>
    %18 = vector.shape_cast %17 : vector<1x1x8x128xf32> to vector<8x128xf32>
    %c0_21 = arith.constant 0 : index
    %c3 = arith.constant 3 : index
    %c0_22 = arith.constant 0 : index
    %c0_23 = arith.constant 0 : index
    %19 = vector.load %arg3[%c0_21, %c3, %c0_22, %c0_23] : memref<1x18x8x128xf32, #tpu.memory_space<vmem>>, vector<1x1x8x128xf32>
    %20 = vector.shape_cast %19 : vector<1x1x8x128xf32> to vector<8x128xf32>
    %c0_24 = arith.constant 0 : index
    %c12 = arith.constant 12 : index
    %c0_25 = arith.constant 0 : index
    %c0_26 = arith.constant 0 : index
    %21 = vector.load %arg3[%c0_24, %c12, %c0_25, %c0_26] : memref<1x18x8x128xf32, #tpu.memory_space<vmem>>, vector<1x1x8x128xf32>
    %22 = vector.shape_cast %21 : vector<1x1x8x128xf32> to vector<8x128xf32>
    %23 = arith.mulf %16, %20 : vector<8x128xf32>
    %24 = arith.mulf %18, %22 : vector<8x128xf32>
    %25 = arith.subf %23, %24 : vector<8x128xf32>
    %26 = arith.mulf %16, %22 : vector<8x128xf32>
    %27 = arith.mulf %18, %20 : vector<8x128xf32>
    %28 = arith.addf %26, %27 : vector<8x128xf32>
    %29 = arith.addf %11, %25 : vector<8x128xf32>
    %30 = arith.addf %14, %28 : vector<8x128xf32>
    %c0_27 = arith.constant 0 : index
    %c2 = arith.constant 2 : index
    %c0_28 = arith.constant 0 : index
    %c0_29 = arith.constant 0 : index
    %31 = vector.load %arg2[%c0_27, %c2, %c0_28, %c0_29] : memref<1x18x8x128xf32, #tpu.memory_space<vmem>>, vector<1x1x8x128xf32>
    %32 = vector.shape_cast %31 : vector<1x1x8x128xf32> to vector<8x128xf32>
    %c0_30 = arith.constant 0 : index
    %c11 = arith.constant 11 : index
    %c0_31 = arith.constant 0 : index
    %c0_32 = arith.constant 0 : index
    %33 = vector.load %arg2[%c0_30, %c11, %c0_31, %c0_32] : memref<1x18x8x128xf32, #tpu.memory_space<vmem>>, vector<1x1x8x128xf32>
    %34 = vector.shape_cast %33 : vector<1x1x8x128xf32> to vector<8x128xf32>
    %c0_33 = arith.constant 0 : index
    %c6 = arith.constant 6 : index
    %c0_34 = arith.constant 0 : index
    %c0_35 = arith.constant 0 : index
    %35 = vector.load %arg3[%c0_33, %c6, %c0_34, %c0_35] : memref<1x18x8x128xf32, #tpu.memory_space<vmem>>, vector<1x1x8x128xf32>
    %36 = vector.shape_cast %35 : vector<1x1x8x128xf32> to vector<8x128xf32>
    %c0_36 = arith.constant 0 : index
    %c15 = arith.constant 15 : index
    %c0_37 = arith.constant 0 : index
    %c0_38 = arith.constant 0 : index
    %37 = vector.load %arg3[%c0_36, %c15, %c0_37, %c0_38] : memref<1x18x8x128xf32, #tpu.memory_space<vmem>>, vector<1x1x8x128xf32>
    %38 = vector.shape_cast %37 : vector<1x1x8x128xf32> to vector<8x128xf32>
    %39 = arith.mulf %32, %36 : vector<8x128xf32>
    %40 = arith.mulf %34, %38 : vector<8x128xf32>
    %41 = arith.subf %39, %40 : vector<8x128xf32>
    %42 = arith.mulf %32, %38 : vector<8x128xf32>
    %43 = arith.mulf %34, %36 : vector<8x128xf32>
    %44 = arith.addf %42, %43 : vector<8x128xf32>
    %45 = arith.addf %29, %41 : vector<8x128xf32>
    %46 = arith.addf %30, %44 : vector<8x128xf32>
    %c0_39 = arith.constant 0 : index
    %c0_40 = arith.constant 0 : index
    %c0_41 = arith.constant 0 : index
    %c0_42 = arith.constant 0 : index
    %47 = vector.load %arg2[%c0_39, %c0_40, %c0_41, %c0_42] : memref<1x18x8x128xf32, #tpu.memory_space<vmem>>, vector<1x1x8x128xf32>
    %48 = vector.shape_cast %47 : vector<1x1x8x128xf32> to vector<8x128xf32>
    %c0_43 = arith.constant 0 : index
    %c9_44 = arith.constant 9 : index
    %c0_45 = arith.constant 0 : index
    %c0_46 = arith.constant 0 : index
    %49 = vector.load %arg2[%c0_43, %c9_44, %c0_45, %c0_46] : memref<1x18x8x128xf32, #tpu.memory_space<vmem>>, vector<1x1x8x128xf32>
    %50 = vector.shape_cast %49 : vector<1x1x8x128xf32> to vector<8x128xf32>
    %c0_47 = arith.constant 0 : index
    %c1_48 = arith.constant 1 : index
    %c0_49 = arith.constant 0 : index
    %c0_50 = arith.constant 0 : index
    %51 = vector.load %arg3[%c0_47, %c1_48, %c0_49, %c0_50] : memref<1x18x8x128xf32, #tpu.memory_space<vmem>>, vector<1x1x8x128xf32>
    %52 = vector.shape_cast %51 : vector<1x1x8x128xf32> to vector<8x128xf32>
    %c0_51 = arith.constant 0 : index
    %c10_52 = arith.constant 10 : index
    %c0_53 = arith.constant 0 : index
    %c0_54 = arith.constant 0 : index
    %53 = vector.load %arg3[%c0_51, %c10_52, %c0_53, %c0_54] : memref<1x18x8x128xf32, #tpu.memory_space<vmem>>, vector<1x1x8x128xf32>
    %54 = vector.shape_cast %53 : vector<1x1x8x128xf32> to vector<8x128xf32>
    %55 = arith.mulf %48, %52 : vector<8x128xf32>
    %56 = arith.mulf %50, %54 : vector<8x128xf32>
    %57 = arith.subf %55, %56 : vector<8x128xf32>
    %58 = arith.mulf %48, %54 : vector<8x128xf32>
    %59 = arith.mulf %50, %52 : vector<8x128xf32>
    %60 = arith.addf %58, %59 : vector<8x128xf32>
    %c0_55 = arith.constant 0 : index
    %c1_56 = arith.constant 1 : index
    %c0_57 = arith.constant 0 : index
    %c0_58 = arith.constant 0 : index
    %61 = vector.load %arg2[%c0_55, %c1_56, %c0_57, %c0_58] : memref<1x18x8x128xf32, #tpu.memory_space<vmem>>, vector<1x1x8x128xf32>
    %62 = vector.shape_cast %61 : vector<1x1x8x128xf32> to vector<8x128xf32>
    %c0_59 = arith.constant 0 : index
    %c10_60 = arith.constant 10 : index
    %c0_61 = arith.constant 0 : index
    %c0_62 = arith.constant 0 : index
    %63 = vector.load %arg2[%c0_59, %c10_60, %c0_61, %c0_62] : memref<1x18x8x128xf32, #tpu.memory_space<vmem>>, vector<1x1x8x128xf32>
    %64 = vector.shape_cast %63 : vector<1x1x8x128xf32> to vector<8x128xf32>
    %c0_63 = arith.constant 0 : index
    %c4 = arith.constant 4 : index
    %c0_64 = arith.constant 0 : index
    %c0_65 = arith.constant 0 : index
    %65 = vector.load %arg3[%c0_63, %c4, %c0_64, %c0_65] : memref<1x18x8x128xf32, #tpu.memory_space<vmem>>, vector<1x1x8x128xf32>
    %66 = vector.shape_cast %65 : vector<1x1x8x128xf32> to vector<8x128xf32>
    %c0_66 = arith.constant 0 : index
    %c13 = arith.constant 13 : index
    %c0_67 = arith.constant 0 : index
    %c0_68 = arith.constant 0 : index
    %67 = vector.load %arg3[%c0_66, %c13, %c0_67, %c0_68] : memref<1x18x8x128xf32, #tpu.memory_space<vmem>>, vector<1x1x8x128xf32>
    %68 = vector.shape_cast %67 : vector<1x1x8x128xf32> to vector<8x128xf32>
    %69 = arith.mulf %62, %66 : vector<8x128xf32>
    %70 = arith.mulf %64, %68 : vector<8x128xf32>
    %71 = arith.subf %69, %70 : vector<8x128xf32>
    %72 = arith.mulf %62, %68 : vector<8x128xf32>
    %73 = arith.mulf %64, %66 : vector<8x128xf32>
    %74 = arith.addf %72, %73 : vector<8x128xf32>
    %75 = arith.addf %57, %71 : vector<8x128xf32>
    %76 = arith.addf %60, %74 : vector<8x128xf32>
    %c0_69 = arith.constant 0 : index
    %c2_70 = arith.constant 2 : index
    %c0_71 = arith.constant 0 : index
    %c0_72 = arith.constant 0 : index
    %77 = vector.load %arg2[%c0_69, %c2_70, %c0_71, %c0_72] : memref<1x18x8x128xf32, #tpu.memory_space<vmem>>, vector<1x1x8x128xf32>
    %78 = vector.shape_cast %77 : vector<1x1x8x128xf32> to vector<8x128xf32>
    %c0_73 = arith.constant 0 : index
    %c11_74 = arith.constant 11 : index
    %c0_75 = arith.constant 0 : index
    %c0_76 = arith.constant 0 : index
    %79 = vector.load %arg2[%c0_73, %c11_74, %c0_75, %c0_76] : memref<1x18x8x128xf32, #tpu.memory_space<vmem>>, vector<1x1x8x128xf32>
    %80 = vector.shape_cast %79 : vector<1x1x8x128xf32> to vector<8x128xf32>
    %c0_77 = arith.constant 0 : index
    %c7 = arith.constant 7 : index
    %c0_78 = arith.constant 0 : index
    %c0_79 = arith.constant 0 : index
    %81 = vector.load %arg3[%c0_77, %c7, %c0_78, %c0_79] : memref<1x18x8x128xf32, #tpu.memory_space<vmem>>, vector<1x1x8x128xf32>
    %82 = vector.shape_cast %81 : vector<1x1x8x128xf32> to vector<8x128xf32>
    %c0_80 = arith.constant 0 : index
    %c16 = arith.constant 16 : index
    %c0_81 = arith.constant 0 : index
    %c0_82 = arith.constant 0 : index
    %83 = vector.load %arg3[%c0_80, %c16, %c0_81, %c0_82] : memref<1x18x8x128xf32, #tpu.memory_space<vmem>>, vector<1x1x8x128xf32>
    %84 = vector.shape_cast %83 : vector<1x1x8x128xf32> to vector<8x128xf32>
    %85 = arith.mulf %78, %82 : vector<8x128xf32>
    %86 = arith.mulf %80, %84 : vector<8x128xf32>
    %87 = arith.subf %85, %86 : vector<8x128xf32>
    %88 = arith.mulf %78, %84 : vector<8x128xf32>
    %89 = arith.mulf %80, %82 : vector<8x128xf32>
    %90 = arith.addf %88, %89 : vector<8x128xf32>
    %91 = arith.addf %75, %87 : vector<8x128xf32>
    %92 = arith.addf %76, %90 : vector<8x128xf32>
    %c0_83 = arith.constant 0 : index
    %c0_84 = arith.constant 0 : index
    %c0_85 = arith.constant 0 : index
    %c0_86 = arith.constant 0 : index
    %93 = vector.load %arg2[%c0_83, %c0_84, %c0_85, %c0_86] : memref<1x18x8x128xf32, #tpu.memory_space<vmem>>, vector<1x1x8x128xf32>
    %94 = vector.shape_cast %93 : vector<1x1x8x128xf32> to vector<8x128xf32>
    %c0_87 = arith.constant 0 : index
    %c9_88 = arith.constant 9 : index
    %c0_89 = arith.constant 0 : index
    %c0_90 = arith.constant 0 : index
    %95 = vector.load %arg2[%c0_87, %c9_88, %c0_89, %c0_90] : memref<1x18x8x128xf32, #tpu.memory_space<vmem>>, vector<1x1x8x128xf32>
    %96 = vector.shape_cast %95 : vector<1x1x8x128xf32> to vector<8x128xf32>
    %c0_91 = arith.constant 0 : index
    %c2_92 = arith.constant 2 : index
    %c0_93 = arith.constant 0 : index
    %c0_94 = arith.constant 0 : index
    %97 = vector.load %arg3[%c0_91, %c2_92, %c0_93, %c0_94] : memref<1x18x8x128xf32, #tpu.memory_space<vmem>>, vector<1x1x8x128xf32>
    %98 = vector.shape_cast %97 : vector<1x1x8x128xf32> to vector<8x128xf32>
    %c0_95 = arith.constant 0 : index
    %c11_96 = arith.constant 11 : index
    %c0_97 = arith.constant 0 : index
    %c0_98 = arith.constant 0 : index
    %99 = vector.load %arg3[%c0_95, %c11_96, %c0_97, %c0_98] : memref<1x18x8x128xf32, #tpu.memory_space<vmem>>, vector<1x1x8x128xf32>
    %100 = vector.shape_cast %99 : vector<1x1x8x128xf32> to vector<8x128xf32>
    %101 = arith.mulf %94, %98 : vector<8x128xf32>
    %102 = arith.mulf %96, %100 : vector<8x128xf32>
    %103 = arith.subf %101, %102 : vector<8x128xf32>
    %104 = arith.mulf %94, %100 : vector<8x128xf32>
    %105 = arith.mulf %96, %98 : vector<8x128xf32>
    %106 = arith.addf %104, %105 : vector<8x128xf32>
    %c0_99 = arith.constant 0 : index
    %c1_100 = arith.constant 1 : index
    %c0_101 = arith.constant 0 : index
    %c0_102 = arith.constant 0 : index
    %107 = vector.load %arg2[%c0_99, %c1_100, %c0_101, %c0_102] : memref<1x18x8x128xf32, #tpu.memory_space<vmem>>, vector<1x1x8x128xf32>
    %108 = vector.shape_cast %107 : vector<1x1x8x128xf32> to vector<8x128xf32>
    %c0_103 = arith.constant 0 : index
    %c10_104 = arith.constant 10 : index
    %c0_105 = arith.constant 0 : index
    %c0_106 = arith.constant 0 : index
    %109 = vector.load %arg2[%c0_103, %c10_104, %c0_105, %c0_106] : memref<1x18x8x128xf32, #tpu.memory_space<vmem>>, vector<1x1x8x128xf32>
    %110 = vector.shape_cast %109 : vector<1x1x8x128xf32> to vector<8x128xf32>
    %c0_107 = arith.constant 0 : index
    %c5 = arith.constant 5 : index
    %c0_108 = arith.constant 0 : index
    %c0_109 = arith.constant 0 : index
    %111 = vector.load %arg3[%c0_107, %c5, %c0_108, %c0_109] : memref<1x18x8x128xf32, #tpu.memory_space<vmem>>, vector<1x1x8x128xf32>
    %112 = vector.shape_cast %111 : vector<1x1x8x128xf32> to vector<8x128xf32>
    %c0_110 = arith.constant 0 : index
    %c14 = arith.constant 14 : index
    %c0_111 = arith.constant 0 : index
    %c0_112 = arith.constant 0 : index
    %113 = vector.load %arg3[%c0_110, %c14, %c0_111, %c0_112] : memref<1x18x8x128xf32, #tpu.memory_space<vmem>>, vector<1x1x8x128xf32>
    %114 = vector.shape_cast %113 : vector<1x1x8x128xf32> to vector<8x128xf32>
    %115 = arith.mulf %108, %112 : vector<8x128xf32>
    %116 = arith.mulf %110, %114 : vector<8x128xf32>
    %117 = arith.subf %115, %116 : vector<8x128xf32>
    %118 = arith.mulf %108, %114 : vector<8x128xf32>
    %119 = arith.mulf %110, %112 : vector<8x128xf32>
    %120 = arith.addf %118, %119 : vector<8x128xf32>
    %121 = arith.addf %103, %117 : vector<8x128xf32>
    %122 = arith.addf %106, %120 : vector<8x128xf32>
    %c0_113 = arith.constant 0 : index
    %c2_114 = arith.constant 2 : index
    %c0_115 = arith.constant 0 : index
    %c0_116 = arith.constant 0 : index
    %123 = vector.load %arg2[%c0_113, %c2_114, %c0_115, %c0_116] : memref<1x18x8x128xf32, #tpu.memory_space<vmem>>, vector<1x1x8x128xf32>
    %124 = vector.shape_cast %123 : vector<1x1x8x128xf32> to vector<8x128xf32>
    %c0_117 = arith.constant 0 : index
    %c11_118 = arith.constant 11 : index
    %c0_119 = arith.constant 0 : index
    %c0_120 = arith.constant 0 : index
    %125 = vector.load %arg2[%c0_117, %c11_118, %c0_119, %c0_120] : memref<1x18x8x128xf32, #tpu.memory_space<vmem>>, vector<1x1x8x128xf32>
    %126 = vector.shape_cast %125 : vector<1x1x8x128xf32> to vector<8x128xf32>
    %c0_121 = arith.constant 0 : index
    %c8 = arith.constant 8 : index
    %c0_122 = arith.constant 0 : index
    %c0_123 = arith.constant 0 : index
    %127 = vector.load %arg3[%c0_121, %c8, %c0_122, %c0_123] : memref<1x18x8x128xf32, #tpu.memory_space<vmem>>, vector<1x1x8x128xf32>
    %128 = vector.shape_cast %127 : vector<1x1x8x128xf32> to vector<8x128xf32>
    %c0_124 = arith.constant 0 : index
    %c17 = arith.constant 17 : index
    %c0_125 = arith.constant 0 : index
    %c0_126 = arith.constant 0 : index
    %129 = vector.load %arg3[%c0_124, %c17, %c0_125, %c0_126] : memref<1x18x8x128xf32, #tpu.memory_space<vmem>>, vector<1x1x8x128xf32>
    %130 = vector.shape_cast %129 : vector<1x1x8x128xf32> to vector<8x128xf32>
    %131 = arith.mulf %124, %128 : vector<8x128xf32>
    %132 = arith.mulf %126, %130 : vector<8x128xf32>
    %133 = arith.subf %131, %132 : vector<8x128xf32>
    %134 = arith.mulf %124, %130 : vector<8x128xf32>
    %135 = arith.mulf %126, %128 : vector<8x128xf32>
    %136 = arith.addf %134, %135 : vector<8x128xf32>
    %137 = arith.addf %121, %133 : vector<8x128xf32>
    %138 = arith.addf %122, %136 : vector<8x128xf32>
    %c0_127 = arith.constant 0 : index
    %c0_128 = arith.constant 0 : index
    %c0_129 = arith.constant 0 : index
    %c0_130 = arith.constant 0 : index
    %139 = vector.load %arg4[%c0_127, %c0_128, %c0_129, %c0_130] : memref<1x18x8x128xf32, #tpu.memory_space<vmem>>, vector<1x1x8x128xf32>
    %140 = vector.shape_cast %139 : vector<1x1x8x128xf32> to vector<8x128xf32>
    %c0_131 = arith.constant 0 : index
    %c9_132 = arith.constant 9 : index
    %c0_133 = arith.constant 0 : index
    %c0_134 = arith.constant 0 : index
    %141 = vector.load %arg4[%c0_131, %c9_132, %c0_133, %c0_134] : memref<1x18x8x128xf32, #tpu.memory_space<vmem>>, vector<1x1x8x128xf32>
    %142 = vector.shape_cast %141 : vector<1x1x8x128xf32> to vector<8x128xf32>
    %143 = arith.mulf %45, %140 : vector<8x128xf32>
    %144 = arith.mulf %46, %142 : vector<8x128xf32>
    %145 = arith.addf %143, %144 : vector<8x128xf32>
    %146 = arith.mulf %46, %140 : vector<8x128xf32>
    %147 = arith.mulf %45, %142 : vector<8x128xf32>
    %148 = arith.subf %146, %147 : vector<8x128xf32>
    %c0_135 = arith.constant 0 : index
    %c1_136 = arith.constant 1 : index
    %c0_137 = arith.constant 0 : index
    %c0_138 = arith.constant 0 : index
    %149 = vector.load %arg4[%c0_135, %c1_136, %c0_137, %c0_138] : memref<1x18x8x128xf32, #tpu.memory_space<vmem>>, vector<1x1x8x128xf32>
    %150 = vector.shape_cast %149 : vector<1x1x8x128xf32> to vector<8x128xf32>
    %c0_139 = arith.constant 0 : index
    %c10_140 = arith.constant 10 : index
    %c0_141 = arith.constant 0 : index
    %c0_142 = arith.constant 0 : index
    %151 = vector.load %arg4[%c0_139, %c10_140, %c0_141, %c0_142] : memref<1x18x8x128xf32, #tpu.memory_space<vmem>>, vector<1x1x8x128xf32>
    %152 = vector.shape_cast %151 : vector<1x1x8x128xf32> to vector<8x128xf32>
    %153 = arith.mulf %91, %150 : vector<8x128xf32>
    %154 = arith.mulf %92, %152 : vector<8x128xf32>
    %155 = arith.addf %153, %154 : vector<8x128xf32>
    %156 = arith.mulf %92, %150 : vector<8x128xf32>
    %157 = arith.mulf %91, %152 : vector<8x128xf32>
    %158 = arith.subf %156, %157 : vector<8x128xf32>
    %159 = arith.addf %145, %155 : vector<8x128xf32>
    %160 = arith.addf %148, %158 : vector<8x128xf32>
    %c0_143 = arith.constant 0 : index
    %c2_144 = arith.constant 2 : index
    %c0_145 = arith.constant 0 : index
    %c0_146 = arith.constant 0 : index
    %161 = vector.load %arg4[%c0_143, %c2_144, %c0_145, %c0_146] : memref<1x18x8x128xf32, #tpu.memory_space<vmem>>, vector<1x1x8x128xf32>
    %162 = vector.shape_cast %161 : vector<1x1x8x128xf32> to vector<8x128xf32>
    %c0_147 = arith.constant 0 : index
    %c11_148 = arith.constant 11 : index
    %c0_149 = arith.constant 0 : index
    %c0_150 = arith.constant 0 : index
    %163 = vector.load %arg4[%c0_147, %c11_148, %c0_149, %c0_150] : memref<1x18x8x128xf32, #tpu.memory_space<vmem>>, vector<1x1x8x128xf32>
    %164 = vector.shape_cast %163 : vector<1x1x8x128xf32> to vector<8x128xf32>
    %165 = arith.mulf %137, %162 : vector<8x128xf32>
    %166 = arith.mulf %138, %164 : vector<8x128xf32>
    %167 = arith.addf %165, %166 : vector<8x128xf32>
    %168 = arith.mulf %138, %162 : vector<8x128xf32>
    %169 = arith.mulf %137, %164 : vector<8x128xf32>
    %170 = arith.subf %168, %169 : vector<8x128xf32>
    %171 = arith.addf %159, %167 : vector<8x128xf32>
    %172 = arith.addf %160, %170 : vector<8x128xf32>
    %173 = vector.broadcast %0 : f32 to vector<8x128xf32>
    %174 = arith.mulf %173, %171 : vector<8x128xf32>
    %175 = vector.broadcast %0 : f32 to vector<8x128xf32>
    %176 = arith.mulf %175, %172 : vector<8x128xf32>
    %c0_151 = arith.constant 0 : index
    %c3_152 = arith.constant 3 : index
    %c0_153 = arith.constant 0 : index
    %c0_154 = arith.constant 0 : index
    %177 = vector.load %arg4[%c0_151, %c3_152, %c0_153, %c0_154] : memref<1x18x8x128xf32, #tpu.memory_space<vmem>>, vector<1x1x8x128xf32>
    %178 = vector.shape_cast %177 : vector<1x1x8x128xf32> to vector<8x128xf32>
    %c0_155 = arith.constant 0 : index
    %c12_156 = arith.constant 12 : index
    %c0_157 = arith.constant 0 : index
    %c0_158 = arith.constant 0 : index
    %179 = vector.load %arg4[%c0_155, %c12_156, %c0_157, %c0_158] : memref<1x18x8x128xf32, #tpu.memory_space<vmem>>, vector<1x1x8x128xf32>
    %180 = vector.shape_cast %179 : vector<1x1x8x128xf32> to vector<8x128xf32>
    %181 = arith.mulf %45, %178 : vector<8x128xf32>
    %182 = arith.mulf %46, %180 : vector<8x128xf32>
    %183 = arith.addf %181, %182 : vector<8x128xf32>
    %184 = arith.mulf %46, %178 : vector<8x128xf32>
    %185 = arith.mulf %45, %180 : vector<8x128xf32>
    %186 = arith.subf %184, %185 : vector<8x128xf32>
    %c0_159 = arith.constant 0 : index
    %c4_160 = arith.constant 4 : index
    %c0_161 = arith.constant 0 : index
    %c0_162 = arith.constant 0 : index
    %187 = vector.load %arg4[%c0_159, %c4_160, %c0_161, %c0_162] : memref<1x18x8x128xf32, #tpu.memory_space<vmem>>, vector<1x1x8x128xf32>
    %188 = vector.shape_cast %187 : vector<1x1x8x128xf32> to vector<8x128xf32>
    %c0_163 = arith.constant 0 : index
    %c13_164 = arith.constant 13 : index
    %c0_165 = arith.constant 0 : index
    %c0_166 = arith.constant 0 : index
    %189 = vector.load %arg4[%c0_163, %c13_164, %c0_165, %c0_166] : memref<1x18x8x128xf32, #tpu.memory_space<vmem>>, vector<1x1x8x128xf32>
    %190 = vector.shape_cast %189 : vector<1x1x8x128xf32> to vector<8x128xf32>
    %191 = arith.mulf %91, %188 : vector<8x128xf32>
    %192 = arith.mulf %92, %190 : vector<8x128xf32>
    %193 = arith.addf %191, %192 : vector<8x128xf32>
    %194 = arith.mulf %92, %188 : vector<8x128xf32>
    %195 = arith.mulf %91, %190 : vector<8x128xf32>
    %196 = arith.subf %194, %195 : vector<8x128xf32>
    %197 = arith.addf %183, %193 : vector<8x128xf32>
    %198 = arith.addf %186, %196 : vector<8x128xf32>
    %c0_167 = arith.constant 0 : index
    %c5_168 = arith.constant 5 : index
    %c0_169 = arith.constant 0 : index
    %c0_170 = arith.constant 0 : index
    %199 = vector.load %arg4[%c0_167, %c5_168, %c0_169, %c0_170] : memref<1x18x8x128xf32, #tpu.memory_space<vmem>>, vector<1x1x8x128xf32>
    %200 = vector.shape_cast %199 : vector<1x1x8x128xf32> to vector<8x128xf32>
    %c0_171 = arith.constant 0 : index
    %c14_172 = arith.constant 14 : index
    %c0_173 = arith.constant 0 : index
    %c0_174 = arith.constant 0 : index
    %201 = vector.load %arg4[%c0_171, %c14_172, %c0_173, %c0_174] : memref<1x18x8x128xf32, #tpu.memory_space<vmem>>, vector<1x1x8x128xf32>
    %202 = vector.shape_cast %201 : vector<1x1x8x128xf32> to vector<8x128xf32>
    %203 = arith.mulf %137, %200 : vector<8x128xf32>
    %204 = arith.mulf %138, %202 : vector<8x128xf32>
    %205 = arith.addf %203, %204 : vector<8x128xf32>
    %206 = arith.mulf %138, %200 : vector<8x128xf32>
    %207 = arith.mulf %137, %202 : vector<8x128xf32>
    %208 = arith.subf %206, %207 : vector<8x128xf32>
    %209 = arith.addf %197, %205 : vector<8x128xf32>
    %210 = arith.addf %198, %208 : vector<8x128xf32>
    %211 = vector.broadcast %0 : f32 to vector<8x128xf32>
    %212 = arith.mulf %211, %209 : vector<8x128xf32>
    %213 = vector.broadcast %0 : f32 to vector<8x128xf32>
    %214 = arith.mulf %213, %210 : vector<8x128xf32>
    %c0_175 = arith.constant 0 : index
    %c6_176 = arith.constant 6 : index
    %c0_177 = arith.constant 0 : index
    %c0_178 = arith.constant 0 : index
    %215 = vector.load %arg4[%c0_175, %c6_176, %c0_177, %c0_178] : memref<1x18x8x128xf32, #tpu.memory_space<vmem>>, vector<1x1x8x128xf32>
    %216 = vector.shape_cast %215 : vector<1x1x8x128xf32> to vector<8x128xf32>
    %c0_179 = arith.constant 0 : index
    %c15_180 = arith.constant 15 : index
    %c0_181 = arith.constant 0 : index
    %c0_182 = arith.constant 0 : index
    %217 = vector.load %arg4[%c0_179, %c15_180, %c0_181, %c0_182] : memref<1x18x8x128xf32, #tpu.memory_space<vmem>>, vector<1x1x8x128xf32>
    %218 = vector.shape_cast %217 : vector<1x1x8x128xf32> to vector<8x128xf32>
    %219 = arith.mulf %45, %216 : vector<8x128xf32>
    %220 = arith.mulf %46, %218 : vector<8x128xf32>
    %221 = arith.addf %219, %220 : vector<8x128xf32>
    %222 = arith.mulf %46, %216 : vector<8x128xf32>
    %223 = arith.mulf %45, %218 : vector<8x128xf32>
    %224 = arith.subf %222, %223 : vector<8x128xf32>
    %c0_183 = arith.constant 0 : index
    %c7_184 = arith.constant 7 : index
    %c0_185 = arith.constant 0 : index
    %c0_186 = arith.constant 0 : index
    %225 = vector.load %arg4[%c0_183, %c7_184, %c0_185, %c0_186] : memref<1x18x8x128xf32, #tpu.memory_space<vmem>>, vector<1x1x8x128xf32>
    %226 = vector.shape_cast %225 : vector<1x1x8x128xf32> to vector<8x128xf32>
    %c0_187 = arith.constant 0 : index
    %c16_188 = arith.constant 16 : index
    %c0_189 = arith.constant 0 : index
    %c0_190 = arith.constant 0 : index
    %227 = vector.load %arg4[%c0_187, %c16_188, %c0_189, %c0_190] : memref<1x18x8x128xf32, #tpu.memory_space<vmem>>, vector<1x1x8x128xf32>
    %228 = vector.shape_cast %227 : vector<1x1x8x128xf32> to vector<8x128xf32>
    %229 = arith.mulf %91, %226 : vector<8x128xf32>
    %230 = arith.mulf %92, %228 : vector<8x128xf32>
    %231 = arith.addf %229, %230 : vector<8x128xf32>
    %232 = arith.mulf %92, %226 : vector<8x128xf32>
    %233 = arith.mulf %91, %228 : vector<8x128xf32>
    %234 = arith.subf %232, %233 : vector<8x128xf32>
    %235 = arith.addf %221, %231 : vector<8x128xf32>
    %236 = arith.addf %224, %234 : vector<8x128xf32>
    %c0_191 = arith.constant 0 : index
    %c8_192 = arith.constant 8 : index
    %c0_193 = arith.constant 0 : index
    %c0_194 = arith.constant 0 : index
    %237 = vector.load %arg4[%c0_191, %c8_192, %c0_193, %c0_194] : memref<1x18x8x128xf32, #tpu.memory_space<vmem>>, vector<1x1x8x128xf32>
    %238 = vector.shape_cast %237 : vector<1x1x8x128xf32> to vector<8x128xf32>
    %c0_195 = arith.constant 0 : index
    %c17_196 = arith.constant 17 : index
    %c0_197 = arith.constant 0 : index
    %c0_198 = arith.constant 0 : index
    %239 = vector.load %arg4[%c0_195, %c17_196, %c0_197, %c0_198] : memref<1x18x8x128xf32, #tpu.memory_space<vmem>>, vector<1x1x8x128xf32>
    %240 = vector.shape_cast %239 : vector<1x1x8x128xf32> to vector<8x128xf32>
    %241 = arith.mulf %137, %238 : vector<8x128xf32>
    %242 = arith.mulf %138, %240 : vector<8x128xf32>
    %243 = arith.addf %241, %242 : vector<8x128xf32>
    %244 = arith.mulf %138, %238 : vector<8x128xf32>
    %245 = arith.mulf %137, %240 : vector<8x128xf32>
    %246 = arith.subf %244, %245 : vector<8x128xf32>
    %247 = arith.addf %235, %243 : vector<8x128xf32>
    %248 = arith.addf %236, %246 : vector<8x128xf32>
    %249 = vector.broadcast %0 : f32 to vector<8x128xf32>
    %250 = arith.mulf %249, %247 : vector<8x128xf32>
    %251 = vector.broadcast %0 : f32 to vector<8x128xf32>
    %252 = arith.mulf %251, %248 : vector<8x128xf32>
    %c0_199 = arith.constant 0 : index
    %c3_200 = arith.constant 3 : index
    %c0_201 = arith.constant 0 : index
    %c0_202 = arith.constant 0 : index
    %253 = vector.load %arg2[%c0_199, %c3_200, %c0_201, %c0_202] : memref<1x18x8x128xf32, #tpu.memory_space<vmem>>, vector<1x1x8x128xf32>
    %254 = vector.shape_cast %253 : vector<1x1x8x128xf32> to vector<8x128xf32>
    %c0_203 = arith.constant 0 : index
    %c12_204 = arith.constant 12 : index
    %c0_205 = arith.constant 0 : index
    %c0_206 = arith.constant 0 : index
    %255 = vector.load %arg2[%c0_203, %c12_204, %c0_205, %c0_206] : memref<1x18x8x128xf32, #tpu.memory_space<vmem>>, vector<1x1x8x128xf32>
    %256 = vector.shape_cast %255 : vector<1x1x8x128xf32> to vector<8x128xf32>
    %c0_207 = arith.constant 0 : index
    %c0_208 = arith.constant 0 : index
    %c0_209 = arith.constant 0 : index
    %c0_210 = arith.constant 0 : index
    %257 = vector.load %arg3[%c0_207, %c0_208, %c0_209, %c0_210] : memref<1x18x8x128xf32, #tpu.memory_space<vmem>>, vector<1x1x8x128xf32>
    %258 = vector.shape_cast %257 : vector<1x1x8x128xf32> to vector<8x128xf32>
    %c0_211 = arith.constant 0 : index
    %c9_212 = arith.constant 9 : index
    %c0_213 = arith.constant 0 : index
    %c0_214 = arith.constant 0 : index
    %259 = vector.load %arg3[%c0_211, %c9_212, %c0_213, %c0_214] : memref<1x18x8x128xf32, #tpu.memory_space<vmem>>, vector<1x1x8x128xf32>
    %260 = vector.shape_cast %259 : vector<1x1x8x128xf32> to vector<8x128xf32>
    %261 = arith.mulf %254, %258 : vector<8x128xf32>
    %262 = arith.mulf %256, %260 : vector<8x128xf32>
    %263 = arith.subf %261, %262 : vector<8x128xf32>
    %264 = arith.mulf %254, %260 : vector<8x128xf32>
    %265 = arith.mulf %256, %258 : vector<8x128xf32>
    %266 = arith.addf %264, %265 : vector<8x128xf32>
    %c0_215 = arith.constant 0 : index
    %c4_216 = arith.constant 4 : index
    %c0_217 = arith.constant 0 : index
    %c0_218 = arith.constant 0 : index
    %267 = vector.load %arg2[%c0_215, %c4_216, %c0_217, %c0_218] : memref<1x18x8x128xf32, #tpu.memory_space<vmem>>, vector<1x1x8x128xf32>
    %268 = vector.shape_cast %267 : vector<1x1x8x128xf32> to vector<8x128xf32>
    %c0_219 = arith.constant 0 : index
    %c13_220 = arith.constant 13 : index
    %c0_221 = arith.constant 0 : index
    %c0_222 = arith.constant 0 : index
    %269 = vector.load %arg2[%c0_219, %c13_220, %c0_221, %c0_222] : memref<1x18x8x128xf32, #tpu.memory_space<vmem>>, vector<1x1x8x128xf32>
    %270 = vector.shape_cast %269 : vector<1x1x8x128xf32> to vector<8x128xf32>
    %c0_223 = arith.constant 0 : index
    %c3_224 = arith.constant 3 : index
    %c0_225 = arith.constant 0 : index
    %c0_226 = arith.constant 0 : index
    %271 = vector.load %arg3[%c0_223, %c3_224, %c0_225, %c0_226] : memref<1x18x8x128xf32, #tpu.memory_space<vmem>>, vector<1x1x8x128xf32>
    %272 = vector.shape_cast %271 : vector<1x1x8x128xf32> to vector<8x128xf32>
    %c0_227 = arith.constant 0 : index
    %c12_228 = arith.constant 12 : index
    %c0_229 = arith.constant 0 : index
    %c0_230 = arith.constant 0 : index
    %273 = vector.load %arg3[%c0_227, %c12_228, %c0_229, %c0_230] : memref<1x18x8x128xf32, #tpu.memory_space<vmem>>, vector<1x1x8x128xf32>
    %274 = vector.shape_cast %273 : vector<1x1x8x128xf32> to vector<8x128xf32>
    %275 = arith.mulf %268, %272 : vector<8x128xf32>
    %276 = arith.mulf %270, %274 : vector<8x128xf32>
    %277 = arith.subf %275, %276 : vector<8x128xf32>
    %278 = arith.mulf %268, %274 : vector<8x128xf32>
    %279 = arith.mulf %270, %272 : vector<8x128xf32>
    %280 = arith.addf %278, %279 : vector<8x128xf32>
    %281 = arith.addf %263, %277 : vector<8x128xf32>
    %282 = arith.addf %266, %280 : vector<8x128xf32>
    %c0_231 = arith.constant 0 : index
    %c5_232 = arith.constant 5 : index
    %c0_233 = arith.constant 0 : index
    %c0_234 = arith.constant 0 : index
    %283 = vector.load %arg2[%c0_231, %c5_232, %c0_233, %c0_234] : memref<1x18x8x128xf32, #tpu.memory_space<vmem>>, vector<1x1x8x128xf32>
    %284 = vector.shape_cast %283 : vector<1x1x8x128xf32> to vector<8x128xf32>
    %c0_235 = arith.constant 0 : index
    %c14_236 = arith.constant 14 : index
    %c0_237 = arith.constant 0 : index
    %c0_238 = arith.constant 0 : index
    %285 = vector.load %arg2[%c0_235, %c14_236, %c0_237, %c0_238] : memref<1x18x8x128xf32, #tpu.memory_space<vmem>>, vector<1x1x8x128xf32>
    %286 = vector.shape_cast %285 : vector<1x1x8x128xf32> to vector<8x128xf32>
    %c0_239 = arith.constant 0 : index
    %c6_240 = arith.constant 6 : index
    %c0_241 = arith.constant 0 : index
    %c0_242 = arith.constant 0 : index
    %287 = vector.load %arg3[%c0_239, %c6_240, %c0_241, %c0_242] : memref<1x18x8x128xf32, #tpu.memory_space<vmem>>, vector<1x1x8x128xf32>
    %288 = vector.shape_cast %287 : vector<1x1x8x128xf32> to vector<8x128xf32>
    %c0_243 = arith.constant 0 : index
    %c15_244 = arith.constant 15 : index
    %c0_245 = arith.constant 0 : index
    %c0_246 = arith.constant 0 : index
    %289 = vector.load %arg3[%c0_243, %c15_244, %c0_245, %c0_246] : memref<1x18x8x128xf32, #tpu.memory_space<vmem>>, vector<1x1x8x128xf32>
    %290 = vector.shape_cast %289 : vector<1x1x8x128xf32> to vector<8x128xf32>
    %291 = arith.mulf %284, %288 : vector<8x128xf32>
    %292 = arith.mulf %286, %290 : vector<8x128xf32>
    %293 = arith.subf %291, %292 : vector<8x128xf32>
    %294 = arith.mulf %284, %290 : vector<8x128xf32>
    %295 = arith.mulf %286, %288 : vector<8x128xf32>
    %296 = arith.addf %294, %295 : vector<8x128xf32>
    %297 = arith.addf %281, %293 : vector<8x128xf32>
    %298 = arith.addf %282, %296 : vector<8x128xf32>
    %c0_247 = arith.constant 0 : index
    %c3_248 = arith.constant 3 : index
    %c0_249 = arith.constant 0 : index
    %c0_250 = arith.constant 0 : index
    %299 = vector.load %arg2[%c0_247, %c3_248, %c0_249, %c0_250] : memref<1x18x8x128xf32, #tpu.memory_space<vmem>>, vector<1x1x8x128xf32>
    %300 = vector.shape_cast %299 : vector<1x1x8x128xf32> to vector<8x128xf32>
    %c0_251 = arith.constant 0 : index
    %c12_252 = arith.constant 12 : index
    %c0_253 = arith.constant 0 : index
    %c0_254 = arith.constant 0 : index
    %301 = vector.load %arg2[%c0_251, %c12_252, %c0_253, %c0_254] : memref<1x18x8x128xf32, #tpu.memory_space<vmem>>, vector<1x1x8x128xf32>
    %302 = vector.shape_cast %301 : vector<1x1x8x128xf32> to vector<8x128xf32>
    %c0_255 = arith.constant 0 : index
    %c1_256 = arith.constant 1 : index
    %c0_257 = arith.constant 0 : index
    %c0_258 = arith.constant 0 : index
    %303 = vector.load %arg3[%c0_255, %c1_256, %c0_257, %c0_258] : memref<1x18x8x128xf32, #tpu.memory_space<vmem>>, vector<1x1x8x128xf32>
    %304 = vector.shape_cast %303 : vector<1x1x8x128xf32> to vector<8x128xf32>
    %c0_259 = arith.constant 0 : index
    %c10_260 = arith.constant 10 : index
    %c0_261 = arith.constant 0 : index
    %c0_262 = arith.constant 0 : index
    %305 = vector.load %arg3[%c0_259, %c10_260, %c0_261, %c0_262] : memref<1x18x8x128xf32, #tpu.memory_space<vmem>>, vector<1x1x8x128xf32>
    %306 = vector.shape_cast %305 : vector<1x1x8x128xf32> to vector<8x128xf32>
    %307 = arith.mulf %300, %304 : vector<8x128xf32>
    %308 = arith.mulf %302, %306 : vector<8x128xf32>
    %309 = arith.subf %307, %308 : vector<8x128xf32>
    %310 = arith.mulf %300, %306 : vector<8x128xf32>
    %311 = arith.mulf %302, %304 : vector<8x128xf32>
    %312 = arith.addf %310, %311 : vector<8x128xf32>
    %c0_263 = arith.constant 0 : index
    %c4_264 = arith.constant 4 : index
    %c0_265 = arith.constant 0 : index
    %c0_266 = arith.constant 0 : index
    %313 = vector.load %arg2[%c0_263, %c4_264, %c0_265, %c0_266] : memref<1x18x8x128xf32, #tpu.memory_space<vmem>>, vector<1x1x8x128xf32>
    %314 = vector.shape_cast %313 : vector<1x1x8x128xf32> to vector<8x128xf32>
    %c0_267 = arith.constant 0 : index
    %c13_268 = arith.constant 13 : index
    %c0_269 = arith.constant 0 : index
    %c0_270 = arith.constant 0 : index
    %315 = vector.load %arg2[%c0_267, %c13_268, %c0_269, %c0_270] : memref<1x18x8x128xf32, #tpu.memory_space<vmem>>, vector<1x1x8x128xf32>
    %316 = vector.shape_cast %315 : vector<1x1x8x128xf32> to vector<8x128xf32>
    %c0_271 = arith.constant 0 : index
    %c4_272 = arith.constant 4 : index
    %c0_273 = arith.constant 0 : index
    %c0_274 = arith.constant 0 : index
    %317 = vector.load %arg3[%c0_271, %c4_272, %c0_273, %c0_274] : memref<1x18x8x128xf32, #tpu.memory_space<vmem>>, vector<1x1x8x128xf32>
    %318 = vector.shape_cast %317 : vector<1x1x8x128xf32> to vector<8x128xf32>
    %c0_275 = arith.constant 0 : index
    %c13_276 = arith.constant 13 : index
    %c0_277 = arith.constant 0 : index
    %c0_278 = arith.constant 0 : index
    %319 = vector.load %arg3[%c0_275, %c13_276, %c0_277, %c0_278] : memref<1x18x8x128xf32, #tpu.memory_space<vmem>>, vector<1x1x8x128xf32>
    %320 = vector.shape_cast %319 : vector<1x1x8x128xf32> to vector<8x128xf32>
    %321 = arith.mulf %314, %318 : vector<8x128xf32>
    %322 = arith.mulf %316, %320 : vector<8x128xf32>
    %323 = arith.subf %321, %322 : vector<8x128xf32>
    %324 = arith.mulf %314, %320 : vector<8x128xf32>
    %325 = arith.mulf %316, %318 : vector<8x128xf32>
    %326 = arith.addf %324, %325 : vector<8x128xf32>
    %327 = arith.addf %309, %323 : vector<8x128xf32>
    %328 = arith.addf %312, %326 : vector<8x128xf32>
    %c0_279 = arith.constant 0 : index
    %c5_280 = arith.constant 5 : index
    %c0_281 = arith.constant 0 : index
    %c0_282 = arith.constant 0 : index
    %329 = vector.load %arg2[%c0_279, %c5_280, %c0_281, %c0_282] : memref<1x18x8x128xf32, #tpu.memory_space<vmem>>, vector<1x1x8x128xf32>
    %330 = vector.shape_cast %329 : vector<1x1x8x128xf32> to vector<8x128xf32>
    %c0_283 = arith.constant 0 : index
    %c14_284 = arith.constant 14 : index
    %c0_285 = arith.constant 0 : index
    %c0_286 = arith.constant 0 : index
    %331 = vector.load %arg2[%c0_283, %c14_284, %c0_285, %c0_286] : memref<1x18x8x128xf32, #tpu.memory_space<vmem>>, vector<1x1x8x128xf32>
    %332 = vector.shape_cast %331 : vector<1x1x8x128xf32> to vector<8x128xf32>
    %c0_287 = arith.constant 0 : index
    %c7_288 = arith.constant 7 : index
    %c0_289 = arith.constant 0 : index
    %c0_290 = arith.constant 0 : index
    %333 = vector.load %arg3[%c0_287, %c7_288, %c0_289, %c0_290] : memref<1x18x8x128xf32, #tpu.memory_space<vmem>>, vector<1x1x8x128xf32>
    %334 = vector.shape_cast %333 : vector<1x1x8x128xf32> to vector<8x128xf32>
    %c0_291 = arith.constant 0 : index
    %c16_292 = arith.constant 16 : index
    %c0_293 = arith.constant 0 : index
    %c0_294 = arith.constant 0 : index
    %335 = vector.load %arg3[%c0_291, %c16_292, %c0_293, %c0_294] : memref<1x18x8x128xf32, #tpu.memory_space<vmem>>, vector<1x1x8x128xf32>
    %336 = vector.shape_cast %335 : vector<1x1x8x128xf32> to vector<8x128xf32>
    %337 = arith.mulf %330, %334 : vector<8x128xf32>
    %338 = arith.mulf %332, %336 : vector<8x128xf32>
    %339 = arith.subf %337, %338 : vector<8x128xf32>
    %340 = arith.mulf %330, %336 : vector<8x128xf32>
    %341 = arith.mulf %332, %334 : vector<8x128xf32>
    %342 = arith.addf %340, %341 : vector<8x128xf32>
    %343 = arith.addf %327, %339 : vector<8x128xf32>
    %344 = arith.addf %328, %342 : vector<8x128xf32>
    %c0_295 = arith.constant 0 : index
    %c3_296 = arith.constant 3 : index
    %c0_297 = arith.constant 0 : index
    %c0_298 = arith.constant 0 : index
    %345 = vector.load %arg2[%c0_295, %c3_296, %c0_297, %c0_298] : memref<1x18x8x128xf32, #tpu.memory_space<vmem>>, vector<1x1x8x128xf32>
    %346 = vector.shape_cast %345 : vector<1x1x8x128xf32> to vector<8x128xf32>
    %c0_299 = arith.constant 0 : index
    %c12_300 = arith.constant 12 : index
    %c0_301 = arith.constant 0 : index
    %c0_302 = arith.constant 0 : index
    %347 = vector.load %arg2[%c0_299, %c12_300, %c0_301, %c0_302] : memref<1x18x8x128xf32, #tpu.memory_space<vmem>>, vector<1x1x8x128xf32>
    %348 = vector.shape_cast %347 : vector<1x1x8x128xf32> to vector<8x128xf32>
    %c0_303 = arith.constant 0 : index
    %c2_304 = arith.constant 2 : index
    %c0_305 = arith.constant 0 : index
    %c0_306 = arith.constant 0 : index
    %349 = vector.load %arg3[%c0_303, %c2_304, %c0_305, %c0_306] : memref<1x18x8x128xf32, #tpu.memory_space<vmem>>, vector<1x1x8x128xf32>
    %350 = vector.shape_cast %349 : vector<1x1x8x128xf32> to vector<8x128xf32>
    %c0_307 = arith.constant 0 : index
    %c11_308 = arith.constant 11 : index
    %c0_309 = arith.constant 0 : index
    %c0_310 = arith.constant 0 : index
    %351 = vector.load %arg3[%c0_307, %c11_308, %c0_309, %c0_310] : memref<1x18x8x128xf32, #tpu.memory_space<vmem>>, vector<1x1x8x128xf32>
    %352 = vector.shape_cast %351 : vector<1x1x8x128xf32> to vector<8x128xf32>
    %353 = arith.mulf %346, %350 : vector<8x128xf32>
    %354 = arith.mulf %348, %352 : vector<8x128xf32>
    %355 = arith.subf %353, %354 : vector<8x128xf32>
    %356 = arith.mulf %346, %352 : vector<8x128xf32>
    %357 = arith.mulf %348, %350 : vector<8x128xf32>
    %358 = arith.addf %356, %357 : vector<8x128xf32>
    %c0_311 = arith.constant 0 : index
    %c4_312 = arith.constant 4 : index
    %c0_313 = arith.constant 0 : index
    %c0_314 = arith.constant 0 : index
    %359 = vector.load %arg2[%c0_311, %c4_312, %c0_313, %c0_314] : memref<1x18x8x128xf32, #tpu.memory_space<vmem>>, vector<1x1x8x128xf32>
    %360 = vector.shape_cast %359 : vector<1x1x8x128xf32> to vector<8x128xf32>
    %c0_315 = arith.constant 0 : index
    %c13_316 = arith.constant 13 : index
    %c0_317 = arith.constant 0 : index
    %c0_318 = arith.constant 0 : index
    %361 = vector.load %arg2[%c0_315, %c13_316, %c0_317, %c0_318] : memref<1x18x8x128xf32, #tpu.memory_space<vmem>>, vector<1x1x8x128xf32>
    %362 = vector.shape_cast %361 : vector<1x1x8x128xf32> to vector<8x128xf32>
    %c0_319 = arith.constant 0 : index
    %c5_320 = arith.constant 5 : index
    %c0_321 = arith.constant 0 : index
    %c0_322 = arith.constant 0 : index
    %363 = vector.load %arg3[%c0_319, %c5_320, %c0_321, %c0_322] : memref<1x18x8x128xf32, #tpu.memory_space<vmem>>, vector<1x1x8x128xf32>
    %364 = vector.shape_cast %363 : vector<1x1x8x128xf32> to vector<8x128xf32>
    %c0_323 = arith.constant 0 : index
    %c14_324 = arith.constant 14 : index
    %c0_325 = arith.constant 0 : index
    %c0_326 = arith.constant 0 : index
    %365 = vector.load %arg3[%c0_323, %c14_324, %c0_325, %c0_326] : memref<1x18x8x128xf32, #tpu.memory_space<vmem>>, vector<1x1x8x128xf32>
    %366 = vector.shape_cast %365 : vector<1x1x8x128xf32> to vector<8x128xf32>
    %367 = arith.mulf %360, %364 : vector<8x128xf32>
    %368 = arith.mulf %362, %366 : vector<8x128xf32>
    %369 = arith.subf %367, %368 : vector<8x128xf32>
    %370 = arith.mulf %360, %366 : vector<8x128xf32>
    %371 = arith.mulf %362, %364 : vector<8x128xf32>
    %372 = arith.addf %370, %371 : vector<8x128xf32>
    %373 = arith.addf %355, %369 : vector<8x128xf32>
    %374 = arith.addf %358, %372 : vector<8x128xf32>
    %c0_327 = arith.constant 0 : index
    %c5_328 = arith.constant 5 : index
    %c0_329 = arith.constant 0 : index
    %c0_330 = arith.constant 0 : index
    %375 = vector.load %arg2[%c0_327, %c5_328, %c0_329, %c0_330] : memref<1x18x8x128xf32, #tpu.memory_space<vmem>>, vector<1x1x8x128xf32>
    %376 = vector.shape_cast %375 : vector<1x1x8x128xf32> to vector<8x128xf32>
    %c0_331 = arith.constant 0 : index
    %c14_332 = arith.constant 14 : index
    %c0_333 = arith.constant 0 : index
    %c0_334 = arith.constant 0 : index
    %377 = vector.load %arg2[%c0_331, %c14_332, %c0_333, %c0_334] : memref<1x18x8x128xf32, #tpu.memory_space<vmem>>, vector<1x1x8x128xf32>
    %378 = vector.shape_cast %377 : vector<1x1x8x128xf32> to vector<8x128xf32>
    %c0_335 = arith.constant 0 : index
    %c8_336 = arith.constant 8 : index
    %c0_337 = arith.constant 0 : index
    %c0_338 = arith.constant 0 : index
    %379 = vector.load %arg3[%c0_335, %c8_336, %c0_337, %c0_338] : memref<1x18x8x128xf32, #tpu.memory_space<vmem>>, vector<1x1x8x128xf32>
    %380 = vector.shape_cast %379 : vector<1x1x8x128xf32> to vector<8x128xf32>
    %c0_339 = arith.constant 0 : index
    %c17_340 = arith.constant 17 : index
    %c0_341 = arith.constant 0 : index
    %c0_342 = arith.constant 0 : index
    %381 = vector.load %arg3[%c0_339, %c17_340, %c0_341, %c0_342] : memref<1x18x8x128xf32, #tpu.memory_space<vmem>>, vector<1x1x8x128xf32>
    %382 = vector.shape_cast %381 : vector<1x1x8x128xf32> to vector<8x128xf32>
    %383 = arith.mulf %376, %380 : vector<8x128xf32>
    %384 = arith.mulf %378, %382 : vector<8x128xf32>
    %385 = arith.subf %383, %384 : vector<8x128xf32>
    %386 = arith.mulf %376, %382 : vector<8x128xf32>
    %387 = arith.mulf %378, %380 : vector<8x128xf32>
    %388 = arith.addf %386, %387 : vector<8x128xf32>
    %389 = arith.addf %373, %385 : vector<8x128xf32>
    %390 = arith.addf %374, %388 : vector<8x128xf32>
    %c0_343 = arith.constant 0 : index
    %c0_344 = arith.constant 0 : index
    %c0_345 = arith.constant 0 : index
    %c0_346 = arith.constant 0 : index
    %391 = vector.load %arg4[%c0_343, %c0_344, %c0_345, %c0_346] : memref<1x18x8x128xf32, #tpu.memory_space<vmem>>, vector<1x1x8x128xf32>
    %392 = vector.shape_cast %391 : vector<1x1x8x128xf32> to vector<8x128xf32>
    %c0_347 = arith.constant 0 : index
    %c9_348 = arith.constant 9 : index
    %c0_349 = arith.constant 0 : index
    %c0_350 = arith.constant 0 : index
    %393 = vector.load %arg4[%c0_347, %c9_348, %c0_349, %c0_350] : memref<1x18x8x128xf32, #tpu.memory_space<vmem>>, vector<1x1x8x128xf32>
    %394 = vector.shape_cast %393 : vector<1x1x8x128xf32> to vector<8x128xf32>
    %395 = arith.mulf %297, %392 : vector<8x128xf32>
    %396 = arith.mulf %298, %394 : vector<8x128xf32>
    %397 = arith.addf %395, %396 : vector<8x128xf32>
    %398 = arith.mulf %298, %392 : vector<8x128xf32>
    %399 = arith.mulf %297, %394 : vector<8x128xf32>
    %400 = arith.subf %398, %399 : vector<8x128xf32>
    %c0_351 = arith.constant 0 : index
    %c1_352 = arith.constant 1 : index
    %c0_353 = arith.constant 0 : index
    %c0_354 = arith.constant 0 : index
    %401 = vector.load %arg4[%c0_351, %c1_352, %c0_353, %c0_354] : memref<1x18x8x128xf32, #tpu.memory_space<vmem>>, vector<1x1x8x128xf32>
    %402 = vector.shape_cast %401 : vector<1x1x8x128xf32> to vector<8x128xf32>
    %c0_355 = arith.constant 0 : index
    %c10_356 = arith.constant 10 : index
    %c0_357 = arith.constant 0 : index
    %c0_358 = arith.constant 0 : index
    %403 = vector.load %arg4[%c0_355, %c10_356, %c0_357, %c0_358] : memref<1x18x8x128xf32, #tpu.memory_space<vmem>>, vector<1x1x8x128xf32>
    %404 = vector.shape_cast %403 : vector<1x1x8x128xf32> to vector<8x128xf32>
    %405 = arith.mulf %343, %402 : vector<8x128xf32>
    %406 = arith.mulf %344, %404 : vector<8x128xf32>
    %407 = arith.addf %405, %406 : vector<8x128xf32>
    %408 = arith.mulf %344, %402 : vector<8x128xf32>
    %409 = arith.mulf %343, %404 : vector<8x128xf32>
    %410 = arith.subf %408, %409 : vector<8x128xf32>
    %411 = arith.addf %397, %407 : vector<8x128xf32>
    %412 = arith.addf %400, %410 : vector<8x128xf32>
    %c0_359 = arith.constant 0 : index
    %c2_360 = arith.constant 2 : index
    %c0_361 = arith.constant 0 : index
    %c0_362 = arith.constant 0 : index
    %413 = vector.load %arg4[%c0_359, %c2_360, %c0_361, %c0_362] : memref<1x18x8x128xf32, #tpu.memory_space<vmem>>, vector<1x1x8x128xf32>
    %414 = vector.shape_cast %413 : vector<1x1x8x128xf32> to vector<8x128xf32>
    %c0_363 = arith.constant 0 : index
    %c11_364 = arith.constant 11 : index
    %c0_365 = arith.constant 0 : index
    %c0_366 = arith.constant 0 : index
    %415 = vector.load %arg4[%c0_363, %c11_364, %c0_365, %c0_366] : memref<1x18x8x128xf32, #tpu.memory_space<vmem>>, vector<1x1x8x128xf32>
    %416 = vector.shape_cast %415 : vector<1x1x8x128xf32> to vector<8x128xf32>
    %417 = arith.mulf %389, %414 : vector<8x128xf32>
    %418 = arith.mulf %390, %416 : vector<8x128xf32>
    %419 = arith.addf %417, %418 : vector<8x128xf32>
    %420 = arith.mulf %390, %414 : vector<8x128xf32>
    %421 = arith.mulf %389, %416 : vector<8x128xf32>
    %422 = arith.subf %420, %421 : vector<8x128xf32>
    %423 = arith.addf %411, %419 : vector<8x128xf32>
    %424 = arith.addf %412, %422 : vector<8x128xf32>
    %425 = vector.broadcast %0 : f32 to vector<8x128xf32>
    %426 = arith.mulf %425, %423 : vector<8x128xf32>
    %427 = vector.broadcast %0 : f32 to vector<8x128xf32>
    %428 = arith.mulf %427, %424 : vector<8x128xf32>
    %c0_367 = arith.constant 0 : index
    %c3_368 = arith.constant 3 : index
    %c0_369 = arith.constant 0 : index
    %c0_370 = arith.constant 0 : index
    %429 = vector.load %arg4[%c0_367, %c3_368, %c0_369, %c0_370] : memref<1x18x8x128xf32, #tpu.memory_space<vmem>>, vector<1x1x8x128xf32>
    %430 = vector.shape_cast %429 : vector<1x1x8x128xf32> to vector<8x128xf32>
    %c0_371 = arith.constant 0 : index
    %c12_372 = arith.constant 12 : index
    %c0_373 = arith.constant 0 : index
    %c0_374 = arith.constant 0 : index
    %431 = vector.load %arg4[%c0_371, %c12_372, %c0_373, %c0_374] : memref<1x18x8x128xf32, #tpu.memory_space<vmem>>, vector<1x1x8x128xf32>
    %432 = vector.shape_cast %431 : vector<1x1x8x128xf32> to vector<8x128xf32>
    %433 = arith.mulf %297, %430 : vector<8x128xf32>
    %434 = arith.mulf %298, %432 : vector<8x128xf32>
    %435 = arith.addf %433, %434 : vector<8x128xf32>
    %436 = arith.mulf %298, %430 : vector<8x128xf32>
    %437 = arith.mulf %297, %432 : vector<8x128xf32>
    %438 = arith.subf %436, %437 : vector<8x128xf32>
    %c0_375 = arith.constant 0 : index
    %c4_376 = arith.constant 4 : index
    %c0_377 = arith.constant 0 : index
    %c0_378 = arith.constant 0 : index
    %439 = vector.load %arg4[%c0_375, %c4_376, %c0_377, %c0_378] : memref<1x18x8x128xf32, #tpu.memory_space<vmem>>, vector<1x1x8x128xf32>
    %440 = vector.shape_cast %439 : vector<1x1x8x128xf32> to vector<8x128xf32>
    %c0_379 = arith.constant 0 : index
    %c13_380 = arith.constant 13 : index
    %c0_381 = arith.constant 0 : index
    %c0_382 = arith.constant 0 : index
    %441 = vector.load %arg4[%c0_379, %c13_380, %c0_381, %c0_382] : memref<1x18x8x128xf32, #tpu.memory_space<vmem>>, vector<1x1x8x128xf32>
    %442 = vector.shape_cast %441 : vector<1x1x8x128xf32> to vector<8x128xf32>
    %443 = arith.mulf %343, %440 : vector<8x128xf32>
    %444 = arith.mulf %344, %442 : vector<8x128xf32>
    %445 = arith.addf %443, %444 : vector<8x128xf32>
    %446 = arith.mulf %344, %440 : vector<8x128xf32>
    %447 = arith.mulf %343, %442 : vector<8x128xf32>
    %448 = arith.subf %446, %447 : vector<8x128xf32>
    %449 = arith.addf %435, %445 : vector<8x128xf32>
    %450 = arith.addf %438, %448 : vector<8x128xf32>
    %c0_383 = arith.constant 0 : index
    %c5_384 = arith.constant 5 : index
    %c0_385 = arith.constant 0 : index
    %c0_386 = arith.constant 0 : index
    %451 = vector.load %arg4[%c0_383, %c5_384, %c0_385, %c0_386] : memref<1x18x8x128xf32, #tpu.memory_space<vmem>>, vector<1x1x8x128xf32>
    %452 = vector.shape_cast %451 : vector<1x1x8x128xf32> to vector<8x128xf32>
    %c0_387 = arith.constant 0 : index
    %c14_388 = arith.constant 14 : index
    %c0_389 = arith.constant 0 : index
    %c0_390 = arith.constant 0 : index
    %453 = vector.load %arg4[%c0_387, %c14_388, %c0_389, %c0_390] : memref<1x18x8x128xf32, #tpu.memory_space<vmem>>, vector<1x1x8x128xf32>
    %454 = vector.shape_cast %453 : vector<1x1x8x128xf32> to vector<8x128xf32>
    %455 = arith.mulf %389, %452 : vector<8x128xf32>
    %456 = arith.mulf %390, %454 : vector<8x128xf32>
    %457 = arith.addf %455, %456 : vector<8x128xf32>
    %458 = arith.mulf %390, %452 : vector<8x128xf32>
    %459 = arith.mulf %389, %454 : vector<8x128xf32>
    %460 = arith.subf %458, %459 : vector<8x128xf32>
    %461 = arith.addf %449, %457 : vector<8x128xf32>
    %462 = arith.addf %450, %460 : vector<8x128xf32>
    %463 = vector.broadcast %0 : f32 to vector<8x128xf32>
    %464 = arith.mulf %463, %461 : vector<8x128xf32>
    %465 = vector.broadcast %0 : f32 to vector<8x128xf32>
    %466 = arith.mulf %465, %462 : vector<8x128xf32>
    %c0_391 = arith.constant 0 : index
    %c6_392 = arith.constant 6 : index
    %c0_393 = arith.constant 0 : index
    %c0_394 = arith.constant 0 : index
    %467 = vector.load %arg4[%c0_391, %c6_392, %c0_393, %c0_394] : memref<1x18x8x128xf32, #tpu.memory_space<vmem>>, vector<1x1x8x128xf32>
    %468 = vector.shape_cast %467 : vector<1x1x8x128xf32> to vector<8x128xf32>
    %c0_395 = arith.constant 0 : index
    %c15_396 = arith.constant 15 : index
    %c0_397 = arith.constant 0 : index
    %c0_398 = arith.constant 0 : index
    %469 = vector.load %arg4[%c0_395, %c15_396, %c0_397, %c0_398] : memref<1x18x8x128xf32, #tpu.memory_space<vmem>>, vector<1x1x8x128xf32>
    %470 = vector.shape_cast %469 : vector<1x1x8x128xf32> to vector<8x128xf32>
    %471 = arith.mulf %297, %468 : vector<8x128xf32>
    %472 = arith.mulf %298, %470 : vector<8x128xf32>
    %473 = arith.addf %471, %472 : vector<8x128xf32>
    %474 = arith.mulf %298, %468 : vector<8x128xf32>
    %475 = arith.mulf %297, %470 : vector<8x128xf32>
    %476 = arith.subf %474, %475 : vector<8x128xf32>
    %c0_399 = arith.constant 0 : index
    %c7_400 = arith.constant 7 : index
    %c0_401 = arith.constant 0 : index
    %c0_402 = arith.constant 0 : index
    %477 = vector.load %arg4[%c0_399, %c7_400, %c0_401, %c0_402] : memref<1x18x8x128xf32, #tpu.memory_space<vmem>>, vector<1x1x8x128xf32>
    %478 = vector.shape_cast %477 : vector<1x1x8x128xf32> to vector<8x128xf32>
    %c0_403 = arith.constant 0 : index
    %c16_404 = arith.constant 16 : index
    %c0_405 = arith.constant 0 : index
    %c0_406 = arith.constant 0 : index
    %479 = vector.load %arg4[%c0_403, %c16_404, %c0_405, %c0_406] : memref<1x18x8x128xf32, #tpu.memory_space<vmem>>, vector<1x1x8x128xf32>
    %480 = vector.shape_cast %479 : vector<1x1x8x128xf32> to vector<8x128xf32>
    %481 = arith.mulf %343, %478 : vector<8x128xf32>
    %482 = arith.mulf %344, %480 : vector<8x128xf32>
    %483 = arith.addf %481, %482 : vector<8x128xf32>
    %484 = arith.mulf %344, %478 : vector<8x128xf32>
    %485 = arith.mulf %343, %480 : vector<8x128xf32>
    %486 = arith.subf %484, %485 : vector<8x128xf32>
    %487 = arith.addf %473, %483 : vector<8x128xf32>
    %488 = arith.addf %476, %486 : vector<8x128xf32>
    %c0_407 = arith.constant 0 : index
    %c8_408 = arith.constant 8 : index
    %c0_409 = arith.constant 0 : index
    %c0_410 = arith.constant 0 : index
    %489 = vector.load %arg4[%c0_407, %c8_408, %c0_409, %c0_410] : memref<1x18x8x128xf32, #tpu.memory_space<vmem>>, vector<1x1x8x128xf32>
    %490 = vector.shape_cast %489 : vector<1x1x8x128xf32> to vector<8x128xf32>
    %c0_411 = arith.constant 0 : index
    %c17_412 = arith.constant 17 : index
    %c0_413 = arith.constant 0 : index
    %c0_414 = arith.constant 0 : index
    %491 = vector.load %arg4[%c0_411, %c17_412, %c0_413, %c0_414] : memref<1x18x8x128xf32, #tpu.memory_space<vmem>>, vector<1x1x8x128xf32>
    %492 = vector.shape_cast %491 : vector<1x1x8x128xf32> to vector<8x128xf32>
    %493 = arith.mulf %389, %490 : vector<8x128xf32>
    %494 = arith.mulf %390, %492 : vector<8x128xf32>
    %495 = arith.addf %493, %494 : vector<8x128xf32>
    %496 = arith.mulf %390, %490 : vector<8x128xf32>
    %497 = arith.mulf %389, %492 : vector<8x128xf32>
    %498 = arith.subf %496, %497 : vector<8x128xf32>
    %499 = arith.addf %487, %495 : vector<8x128xf32>
    %500 = arith.addf %488, %498 : vector<8x128xf32>
    %501 = vector.broadcast %0 : f32 to vector<8x128xf32>
    %502 = arith.mulf %501, %499 : vector<8x128xf32>
    %503 = vector.broadcast %0 : f32 to vector<8x128xf32>
    %504 = arith.mulf %503, %500 : vector<8x128xf32>
    %c0_415 = arith.constant 0 : index
    %c6_416 = arith.constant 6 : index
    %c0_417 = arith.constant 0 : index
    %c0_418 = arith.constant 0 : index
    %505 = vector.load %arg2[%c0_415, %c6_416, %c0_417, %c0_418] : memref<1x18x8x128xf32, #tpu.memory_space<vmem>>, vector<1x1x8x128xf32>
    %506 = vector.shape_cast %505 : vector<1x1x8x128xf32> to vector<8x128xf32>
    %c0_419 = arith.constant 0 : index
    %c15_420 = arith.constant 15 : index
    %c0_421 = arith.constant 0 : index
    %c0_422 = arith.constant 0 : index
    %507 = vector.load %arg2[%c0_419, %c15_420, %c0_421, %c0_422] : memref<1x18x8x128xf32, #tpu.memory_space<vmem>>, vector<1x1x8x128xf32>
    %508 = vector.shape_cast %507 : vector<1x1x8x128xf32> to vector<8x128xf32>
    %c0_423 = arith.constant 0 : index
    %c0_424 = arith.constant 0 : index
    %c0_425 = arith.constant 0 : index
    %c0_426 = arith.constant 0 : index
    %509 = vector.load %arg3[%c0_423, %c0_424, %c0_425, %c0_426] : memref<1x18x8x128xf32, #tpu.memory_space<vmem>>, vector<1x1x8x128xf32>
    %510 = vector.shape_cast %509 : vector<1x1x8x128xf32> to vector<8x128xf32>
    %c0_427 = arith.constant 0 : index
    %c9_428 = arith.constant 9 : index
    %c0_429 = arith.constant 0 : index
    %c0_430 = arith.constant 0 : index
    %511 = vector.load %arg3[%c0_427, %c9_428, %c0_429, %c0_430] : memref<1x18x8x128xf32, #tpu.memory_space<vmem>>, vector<1x1x8x128xf32>
    %512 = vector.shape_cast %511 : vector<1x1x8x128xf32> to vector<8x128xf32>
    %513 = arith.mulf %506, %510 : vector<8x128xf32>
    %514 = arith.mulf %508, %512 : vector<8x128xf32>
    %515 = arith.subf %513, %514 : vector<8x128xf32>
    %516 = arith.mulf %506, %512 : vector<8x128xf32>
    %517 = arith.mulf %508, %510 : vector<8x128xf32>
    %518 = arith.addf %516, %517 : vector<8x128xf32>
    %c0_431 = arith.constant 0 : index
    %c7_432 = arith.constant 7 : index
    %c0_433 = arith.constant 0 : index
    %c0_434 = arith.constant 0 : index
    %519 = vector.load %arg2[%c0_431, %c7_432, %c0_433, %c0_434] : memref<1x18x8x128xf32, #tpu.memory_space<vmem>>, vector<1x1x8x128xf32>
    %520 = vector.shape_cast %519 : vector<1x1x8x128xf32> to vector<8x128xf32>
    %c0_435 = arith.constant 0 : index
    %c16_436 = arith.constant 16 : index
    %c0_437 = arith.constant 0 : index
    %c0_438 = arith.constant 0 : index
    %521 = vector.load %arg2[%c0_435, %c16_436, %c0_437, %c0_438] : memref<1x18x8x128xf32, #tpu.memory_space<vmem>>, vector<1x1x8x128xf32>
    %522 = vector.shape_cast %521 : vector<1x1x8x128xf32> to vector<8x128xf32>
    %c0_439 = arith.constant 0 : index
    %c3_440 = arith.constant 3 : index
    %c0_441 = arith.constant 0 : index
    %c0_442 = arith.constant 0 : index
    %523 = vector.load %arg3[%c0_439, %c3_440, %c0_441, %c0_442] : memref<1x18x8x128xf32, #tpu.memory_space<vmem>>, vector<1x1x8x128xf32>
    %524 = vector.shape_cast %523 : vector<1x1x8x128xf32> to vector<8x128xf32>
    %c0_443 = arith.constant 0 : index
    %c12_444 = arith.constant 12 : index
    %c0_445 = arith.constant 0 : index
    %c0_446 = arith.constant 0 : index
    %525 = vector.load %arg3[%c0_443, %c12_444, %c0_445, %c0_446] : memref<1x18x8x128xf32, #tpu.memory_space<vmem>>, vector<1x1x8x128xf32>
    %526 = vector.shape_cast %525 : vector<1x1x8x128xf32> to vector<8x128xf32>
    %527 = arith.mulf %520, %524 : vector<8x128xf32>
    %528 = arith.mulf %522, %526 : vector<8x128xf32>
    %529 = arith.subf %527, %528 : vector<8x128xf32>
    %530 = arith.mulf %520, %526 : vector<8x128xf32>
    %531 = arith.mulf %522, %524 : vector<8x128xf32>
    %532 = arith.addf %530, %531 : vector<8x128xf32>
    %533 = arith.addf %515, %529 : vector<8x128xf32>
    %534 = arith.addf %518, %532 : vector<8x128xf32>
    %c0_447 = arith.constant 0 : index
    %c8_448 = arith.constant 8 : index
    %c0_449 = arith.constant 0 : index
    %c0_450 = arith.constant 0 : index
    %535 = vector.load %arg2[%c0_447, %c8_448, %c0_449, %c0_450] : memref<1x18x8x128xf32, #tpu.memory_space<vmem>>, vector<1x1x8x128xf32>
    %536 = vector.shape_cast %535 : vector<1x1x8x128xf32> to vector<8x128xf32>
    %c0_451 = arith.constant 0 : index
    %c17_452 = arith.constant 17 : index
    %c0_453 = arith.constant 0 : index
    %c0_454 = arith.constant 0 : index
    %537 = vector.load %arg2[%c0_451, %c17_452, %c0_453, %c0_454] : memref<1x18x8x128xf32, #tpu.memory_space<vmem>>, vector<1x1x8x128xf32>
    %538 = vector.shape_cast %537 : vector<1x1x8x128xf32> to vector<8x128xf32>
    %c0_455 = arith.constant 0 : index
    %c6_456 = arith.constant 6 : index
    %c0_457 = arith.constant 0 : index
    %c0_458 = arith.constant 0 : index
    %539 = vector.load %arg3[%c0_455, %c6_456, %c0_457, %c0_458] : memref<1x18x8x128xf32, #tpu.memory_space<vmem>>, vector<1x1x8x128xf32>
    %540 = vector.shape_cast %539 : vector<1x1x8x128xf32> to vector<8x128xf32>
    %c0_459 = arith.constant 0 : index
    %c15_460 = arith.constant 15 : index
    %c0_461 = arith.constant 0 : index
    %c0_462 = arith.constant 0 : index
    %541 = vector.load %arg3[%c0_459, %c15_460, %c0_461, %c0_462] : memref<1x18x8x128xf32, #tpu.memory_space<vmem>>, vector<1x1x8x128xf32>
    %542 = vector.shape_cast %541 : vector<1x1x8x128xf32> to vector<8x128xf32>
    %543 = arith.mulf %536, %540 : vector<8x128xf32>
    %544 = arith.mulf %538, %542 : vector<8x128xf32>
    %545 = arith.subf %543, %544 : vector<8x128xf32>
    %546 = arith.mulf %536, %542 : vector<8x128xf32>
    %547 = arith.mulf %538, %540 : vector<8x128xf32>
    %548 = arith.addf %546, %547 : vector<8x128xf32>
    %549 = arith.addf %533, %545 : vector<8x128xf32>
    %550 = arith.addf %534, %548 : vector<8x128xf32>
    %c0_463 = arith.constant 0 : index
    %c6_464 = arith.constant 6 : index
    %c0_465 = arith.constant 0 : index
    %c0_466 = arith.constant 0 : index
    %551 = vector.load %arg2[%c0_463, %c6_464, %c0_465, %c0_466] : memref<1x18x8x128xf32, #tpu.memory_space<vmem>>, vector<1x1x8x128xf32>
    %552 = vector.shape_cast %551 : vector<1x1x8x128xf32> to vector<8x128xf32>
    %c0_467 = arith.constant 0 : index
    %c15_468 = arith.constant 15 : index
    %c0_469 = arith.constant 0 : index
    %c0_470 = arith.constant 0 : index
    %553 = vector.load %arg2[%c0_467, %c15_468, %c0_469, %c0_470] : memref<1x18x8x128xf32, #tpu.memory_space<vmem>>, vector<1x1x8x128xf32>
    %554 = vector.shape_cast %553 : vector<1x1x8x128xf32> to vector<8x128xf32>
    %c0_471 = arith.constant 0 : index
    %c1_472 = arith.constant 1 : index
    %c0_473 = arith.constant 0 : index
    %c0_474 = arith.constant 0 : index
    %555 = vector.load %arg3[%c0_471, %c1_472, %c0_473, %c0_474] : memref<1x18x8x128xf32, #tpu.memory_space<vmem>>, vector<1x1x8x128xf32>
    %556 = vector.shape_cast %555 : vector<1x1x8x128xf32> to vector<8x128xf32>
    %c0_475 = arith.constant 0 : index
    %c10_476 = arith.constant 10 : index
    %c0_477 = arith.constant 0 : index
    %c0_478 = arith.constant 0 : index
    %557 = vector.load %arg3[%c0_475, %c10_476, %c0_477, %c0_478] : memref<1x18x8x128xf32, #tpu.memory_space<vmem>>, vector<1x1x8x128xf32>
    %558 = vector.shape_cast %557 : vector<1x1x8x128xf32> to vector<8x128xf32>
    %559 = arith.mulf %552, %556 : vector<8x128xf32>
    %560 = arith.mulf %554, %558 : vector<8x128xf32>
    %561 = arith.subf %559, %560 : vector<8x128xf32>
    %562 = arith.mulf %552, %558 : vector<8x128xf32>
    %563 = arith.mulf %554, %556 : vector<8x128xf32>
    %564 = arith.addf %562, %563 : vector<8x128xf32>
    %c0_479 = arith.constant 0 : index
    %c7_480 = arith.constant 7 : index
    %c0_481 = arith.constant 0 : index
    %c0_482 = arith.constant 0 : index
    %565 = vector.load %arg2[%c0_479, %c7_480, %c0_481, %c0_482] : memref<1x18x8x128xf32, #tpu.memory_space<vmem>>, vector<1x1x8x128xf32>
    %566 = vector.shape_cast %565 : vector<1x1x8x128xf32> to vector<8x128xf32>
    %c0_483 = arith.constant 0 : index
    %c16_484 = arith.constant 16 : index
    %c0_485 = arith.constant 0 : index
    %c0_486 = arith.constant 0 : index
    %567 = vector.load %arg2[%c0_483, %c16_484, %c0_485, %c0_486] : memref<1x18x8x128xf32, #tpu.memory_space<vmem>>, vector<1x1x8x128xf32>
    %568 = vector.shape_cast %567 : vector<1x1x8x128xf32> to vector<8x128xf32>
    %c0_487 = arith.constant 0 : index
    %c4_488 = arith.constant 4 : index
    %c0_489 = arith.constant 0 : index
    %c0_490 = arith.constant 0 : index
    %569 = vector.load %arg3[%c0_487, %c4_488, %c0_489, %c0_490] : memref<1x18x8x128xf32, #tpu.memory_space<vmem>>, vector<1x1x8x128xf32>
    %570 = vector.shape_cast %569 : vector<1x1x8x128xf32> to vector<8x128xf32>
    %c0_491 = arith.constant 0 : index
    %c13_492 = arith.constant 13 : index
    %c0_493 = arith.constant 0 : index
    %c0_494 = arith.constant 0 : index
    %571 = vector.load %arg3[%c0_491, %c13_492, %c0_493, %c0_494] : memref<1x18x8x128xf32, #tpu.memory_space<vmem>>, vector<1x1x8x128xf32>
    %572 = vector.shape_cast %571 : vector<1x1x8x128xf32> to vector<8x128xf32>
    %573 = arith.mulf %566, %570 : vector<8x128xf32>
    %574 = arith.mulf %568, %572 : vector<8x128xf32>
    %575 = arith.subf %573, %574 : vector<8x128xf32>
    %576 = arith.mulf %566, %572 : vector<8x128xf32>
    %577 = arith.mulf %568, %570 : vector<8x128xf32>
    %578 = arith.addf %576, %577 : vector<8x128xf32>
    %579 = arith.addf %561, %575 : vector<8x128xf32>
    %580 = arith.addf %564, %578 : vector<8x128xf32>
    %c0_495 = arith.constant 0 : index
    %c8_496 = arith.constant 8 : index
    %c0_497 = arith.constant 0 : index
    %c0_498 = arith.constant 0 : index
    %581 = vector.load %arg2[%c0_495, %c8_496, %c0_497, %c0_498] : memref<1x18x8x128xf32, #tpu.memory_space<vmem>>, vector<1x1x8x128xf32>
    %582 = vector.shape_cast %581 : vector<1x1x8x128xf32> to vector<8x128xf32>
    %c0_499 = arith.constant 0 : index
    %c17_500 = arith.constant 17 : index
    %c0_501 = arith.constant 0 : index
    %c0_502 = arith.constant 0 : index
    %583 = vector.load %arg2[%c0_499, %c17_500, %c0_501, %c0_502] : memref<1x18x8x128xf32, #tpu.memory_space<vmem>>, vector<1x1x8x128xf32>
    %584 = vector.shape_cast %583 : vector<1x1x8x128xf32> to vector<8x128xf32>
    %c0_503 = arith.constant 0 : index
    %c7_504 = arith.constant 7 : index
    %c0_505 = arith.constant 0 : index
    %c0_506 = arith.constant 0 : index
    %585 = vector.load %arg3[%c0_503, %c7_504, %c0_505, %c0_506] : memref<1x18x8x128xf32, #tpu.memory_space<vmem>>, vector<1x1x8x128xf32>
    %586 = vector.shape_cast %585 : vector<1x1x8x128xf32> to vector<8x128xf32>
    %c0_507 = arith.constant 0 : index
    %c16_508 = arith.constant 16 : index
    %c0_509 = arith.constant 0 : index
    %c0_510 = arith.constant 0 : index
    %587 = vector.load %arg3[%c0_507, %c16_508, %c0_509, %c0_510] : memref<1x18x8x128xf32, #tpu.memory_space<vmem>>, vector<1x1x8x128xf32>
    %588 = vector.shape_cast %587 : vector<1x1x8x128xf32> to vector<8x128xf32>
    %589 = arith.mulf %582, %586 : vector<8x128xf32>
    %590 = arith.mulf %584, %588 : vector<8x128xf32>
    %591 = arith.subf %589, %590 : vector<8x128xf32>
    %592 = arith.mulf %582, %588 : vector<8x128xf32>
    %593 = arith.mulf %584, %586 : vector<8x128xf32>
    %594 = arith.addf %592, %593 : vector<8x128xf32>
    %595 = arith.addf %579, %591 : vector<8x128xf32>
    %596 = arith.addf %580, %594 : vector<8x128xf32>
    %c0_511 = arith.constant 0 : index
    %c6_512 = arith.constant 6 : index
    %c0_513 = arith.constant 0 : index
    %c0_514 = arith.constant 0 : index
    %597 = vector.load %arg2[%c0_511, %c6_512, %c0_513, %c0_514] : memref<1x18x8x128xf32, #tpu.memory_space<vmem>>, vector<1x1x8x128xf32>
    %598 = vector.shape_cast %597 : vector<1x1x8x128xf32> to vector<8x128xf32>
    %c0_515 = arith.constant 0 : index
    %c15_516 = arith.constant 15 : index
    %c0_517 = arith.constant 0 : index
    %c0_518 = arith.constant 0 : index
    %599 = vector.load %arg2[%c0_515, %c15_516, %c0_517, %c0_518] : memref<1x18x8x128xf32, #tpu.memory_space<vmem>>, vector<1x1x8x128xf32>
    %600 = vector.shape_cast %599 : vector<1x1x8x128xf32> to vector<8x128xf32>
    %c0_519 = arith.constant 0 : index
    %c2_520 = arith.constant 2 : index
    %c0_521 = arith.constant 0 : index
    %c0_522 = arith.constant 0 : index
    %601 = vector.load %arg3[%c0_519, %c2_520, %c0_521, %c0_522] : memref<1x18x8x128xf32, #tpu.memory_space<vmem>>, vector<1x1x8x128xf32>
    %602 = vector.shape_cast %601 : vector<1x1x8x128xf32> to vector<8x128xf32>
    %c0_523 = arith.constant 0 : index
    %c11_524 = arith.constant 11 : index
    %c0_525 = arith.constant 0 : index
    %c0_526 = arith.constant 0 : index
    %603 = vector.load %arg3[%c0_523, %c11_524, %c0_525, %c0_526] : memref<1x18x8x128xf32, #tpu.memory_space<vmem>>, vector<1x1x8x128xf32>
    %604 = vector.shape_cast %603 : vector<1x1x8x128xf32> to vector<8x128xf32>
    %605 = arith.mulf %598, %602 : vector<8x128xf32>
    %606 = arith.mulf %600, %604 : vector<8x128xf32>
    %607 = arith.subf %605, %606 : vector<8x128xf32>
    %608 = arith.mulf %598, %604 : vector<8x128xf32>
    %609 = arith.mulf %600, %602 : vector<8x128xf32>
    %610 = arith.addf %608, %609 : vector<8x128xf32>
    %c0_527 = arith.constant 0 : index
    %c7_528 = arith.constant 7 : index
    %c0_529 = arith.constant 0 : index
    %c0_530 = arith.constant 0 : index
    %611 = vector.load %arg2[%c0_527, %c7_528, %c0_529, %c0_530] : memref<1x18x8x128xf32, #tpu.memory_space<vmem>>, vector<1x1x8x128xf32>
    %612 = vector.shape_cast %611 : vector<1x1x8x128xf32> to vector<8x128xf32>
    %c0_531 = arith.constant 0 : index
    %c16_532 = arith.constant 16 : index
    %c0_533 = arith.constant 0 : index
    %c0_534 = arith.constant 0 : index
    %613 = vector.load %arg2[%c0_531, %c16_532, %c0_533, %c0_534] : memref<1x18x8x128xf32, #tpu.memory_space<vmem>>, vector<1x1x8x128xf32>
    %614 = vector.shape_cast %613 : vector<1x1x8x128xf32> to vector<8x128xf32>
    %c0_535 = arith.constant 0 : index
    %c5_536 = arith.constant 5 : index
    %c0_537 = arith.constant 0 : index
    %c0_538 = arith.constant 0 : index
    %615 = vector.load %arg3[%c0_535, %c5_536, %c0_537, %c0_538] : memref<1x18x8x128xf32, #tpu.memory_space<vmem>>, vector<1x1x8x128xf32>
    %616 = vector.shape_cast %615 : vector<1x1x8x128xf32> to vector<8x128xf32>
    %c0_539 = arith.constant 0 : index
    %c14_540 = arith.constant 14 : index
    %c0_541 = arith.constant 0 : index
    %c0_542 = arith.constant 0 : index
    %617 = vector.load %arg3[%c0_539, %c14_540, %c0_541, %c0_542] : memref<1x18x8x128xf32, #tpu.memory_space<vmem>>, vector<1x1x8x128xf32>
    %618 = vector.shape_cast %617 : vector<1x1x8x128xf32> to vector<8x128xf32>
    %619 = arith.mulf %612, %616 : vector<8x128xf32>
    %620 = arith.mulf %614, %618 : vector<8x128xf32>
    %621 = arith.subf %619, %620 : vector<8x128xf32>
    %622 = arith.mulf %612, %618 : vector<8x128xf32>
    %623 = arith.mulf %614, %616 : vector<8x128xf32>
    %624 = arith.addf %622, %623 : vector<8x128xf32>
    %625 = arith.addf %607, %621 : vector<8x128xf32>
    %626 = arith.addf %610, %624 : vector<8x128xf32>
    %c0_543 = arith.constant 0 : index
    %c8_544 = arith.constant 8 : index
    %c0_545 = arith.constant 0 : index
    %c0_546 = arith.constant 0 : index
    %627 = vector.load %arg2[%c0_543, %c8_544, %c0_545, %c0_546] : memref<1x18x8x128xf32, #tpu.memory_space<vmem>>, vector<1x1x8x128xf32>
    %628 = vector.shape_cast %627 : vector<1x1x8x128xf32> to vector<8x128xf32>
    %c0_547 = arith.constant 0 : index
    %c17_548 = arith.constant 17 : index
    %c0_549 = arith.constant 0 : index
    %c0_550 = arith.constant 0 : index
    %629 = vector.load %arg2[%c0_547, %c17_548, %c0_549, %c0_550] : memref<1x18x8x128xf32, #tpu.memory_space<vmem>>, vector<1x1x8x128xf32>
    %630 = vector.shape_cast %629 : vector<1x1x8x128xf32> to vector<8x128xf32>
    %c0_551 = arith.constant 0 : index
    %c8_552 = arith.constant 8 : index
    %c0_553 = arith.constant 0 : index
    %c0_554 = arith.constant 0 : index
    %631 = vector.load %arg3[%c0_551, %c8_552, %c0_553, %c0_554] : memref<1x18x8x128xf32, #tpu.memory_space<vmem>>, vector<1x1x8x128xf32>
    %632 = vector.shape_cast %631 : vector<1x1x8x128xf32> to vector<8x128xf32>
    %c0_555 = arith.constant 0 : index
    %c17_556 = arith.constant 17 : index
    %c0_557 = arith.constant 0 : index
    %c0_558 = arith.constant 0 : index
    %633 = vector.load %arg3[%c0_555, %c17_556, %c0_557, %c0_558] : memref<1x18x8x128xf32, #tpu.memory_space<vmem>>, vector<1x1x8x128xf32>
    %634 = vector.shape_cast %633 : vector<1x1x8x128xf32> to vector<8x128xf32>
    %635 = arith.mulf %628, %632 : vector<8x128xf32>
    %636 = arith.mulf %630, %634 : vector<8x128xf32>
    %637 = arith.subf %635, %636 : vector<8x128xf32>
    %638 = arith.mulf %628, %634 : vector<8x128xf32>
    %639 = arith.mulf %630, %632 : vector<8x128xf32>
    %640 = arith.addf %638, %639 : vector<8x128xf32>
    %641 = arith.addf %625, %637 : vector<8x128xf32>
    %642 = arith.addf %626, %640 : vector<8x128xf32>
    %c0_559 = arith.constant 0 : index
    %c0_560 = arith.constant 0 : index
    %c0_561 = arith.constant 0 : index
    %c0_562 = arith.constant 0 : index
    %643 = vector.load %arg4[%c0_559, %c0_560, %c0_561, %c0_562] : memref<1x18x8x128xf32, #tpu.memory_space<vmem>>, vector<1x1x8x128xf32>
    %644 = vector.shape_cast %643 : vector<1x1x8x128xf32> to vector<8x128xf32>
    %c0_563 = arith.constant 0 : index
    %c9_564 = arith.constant 9 : index
    %c0_565 = arith.constant 0 : index
    %c0_566 = arith.constant 0 : index
    %645 = vector.load %arg4[%c0_563, %c9_564, %c0_565, %c0_566] : memref<1x18x8x128xf32, #tpu.memory_space<vmem>>, vector<1x1x8x128xf32>
    %646 = vector.shape_cast %645 : vector<1x1x8x128xf32> to vector<8x128xf32>
    %647 = arith.mulf %549, %644 : vector<8x128xf32>
    %648 = arith.mulf %550, %646 : vector<8x128xf32>
    %649 = arith.addf %647, %648 : vector<8x128xf32>
    %650 = arith.mulf %550, %644 : vector<8x128xf32>
    %651 = arith.mulf %549, %646 : vector<8x128xf32>
    %652 = arith.subf %650, %651 : vector<8x128xf32>
    %c0_567 = arith.constant 0 : index
    %c1_568 = arith.constant 1 : index
    %c0_569 = arith.constant 0 : index
    %c0_570 = arith.constant 0 : index
    %653 = vector.load %arg4[%c0_567, %c1_568, %c0_569, %c0_570] : memref<1x18x8x128xf32, #tpu.memory_space<vmem>>, vector<1x1x8x128xf32>
    %654 = vector.shape_cast %653 : vector<1x1x8x128xf32> to vector<8x128xf32>
    %c0_571 = arith.constant 0 : index
    %c10_572 = arith.constant 10 : index
    %c0_573 = arith.constant 0 : index
    %c0_574 = arith.constant 0 : index
    %655 = vector.load %arg4[%c0_571, %c10_572, %c0_573, %c0_574] : memref<1x18x8x128xf32, #tpu.memory_space<vmem>>, vector<1x1x8x128xf32>
    %656 = vector.shape_cast %655 : vector<1x1x8x128xf32> to vector<8x128xf32>
    %657 = arith.mulf %595, %654 : vector<8x128xf32>
    %658 = arith.mulf %596, %656 : vector<8x128xf32>
    %659 = arith.addf %657, %658 : vector<8x128xf32>
    %660 = arith.mulf %596, %654 : vector<8x128xf32>
    %661 = arith.mulf %595, %656 : vector<8x128xf32>
    %662 = arith.subf %660, %661 : vector<8x128xf32>
    %663 = arith.addf %649, %659 : vector<8x128xf32>
    %664 = arith.addf %652, %662 : vector<8x128xf32>
    %c0_575 = arith.constant 0 : index
    %c2_576 = arith.constant 2 : index
    %c0_577 = arith.constant 0 : index
    %c0_578 = arith.constant 0 : index
    %665 = vector.load %arg4[%c0_575, %c2_576, %c0_577, %c0_578] : memref<1x18x8x128xf32, #tpu.memory_space<vmem>>, vector<1x1x8x128xf32>
    %666 = vector.shape_cast %665 : vector<1x1x8x128xf32> to vector<8x128xf32>
    %c0_579 = arith.constant 0 : index
    %c11_580 = arith.constant 11 : index
    %c0_581 = arith.constant 0 : index
    %c0_582 = arith.constant 0 : index
    %667 = vector.load %arg4[%c0_579, %c11_580, %c0_581, %c0_582] : memref<1x18x8x128xf32, #tpu.memory_space<vmem>>, vector<1x1x8x128xf32>
    %668 = vector.shape_cast %667 : vector<1x1x8x128xf32> to vector<8x128xf32>
    %669 = arith.mulf %641, %666 : vector<8x128xf32>
    %670 = arith.mulf %642, %668 : vector<8x128xf32>
    %671 = arith.addf %669, %670 : vector<8x128xf32>
    %672 = arith.mulf %642, %666 : vector<8x128xf32>
    %673 = arith.mulf %641, %668 : vector<8x128xf32>
    %674 = arith.subf %672, %673 : vector<8x128xf32>
    %675 = arith.addf %663, %671 : vector<8x128xf32>
    %676 = arith.addf %664, %674 : vector<8x128xf32>
    %677 = vector.broadcast %0 : f32 to vector<8x128xf32>
    %678 = arith.mulf %677, %675 : vector<8x128xf32>
    %679 = vector.broadcast %0 : f32 to vector<8x128xf32>
    %680 = arith.mulf %679, %676 : vector<8x128xf32>
    %c0_583 = arith.constant 0 : index
    %c3_584 = arith.constant 3 : index
    %c0_585 = arith.constant 0 : index
    %c0_586 = arith.constant 0 : index
    %681 = vector.load %arg4[%c0_583, %c3_584, %c0_585, %c0_586] : memref<1x18x8x128xf32, #tpu.memory_space<vmem>>, vector<1x1x8x128xf32>
    %682 = vector.shape_cast %681 : vector<1x1x8x128xf32> to vector<8x128xf32>
    %c0_587 = arith.constant 0 : index
    %c12_588 = arith.constant 12 : index
    %c0_589 = arith.constant 0 : index
    %c0_590 = arith.constant 0 : index
    %683 = vector.load %arg4[%c0_587, %c12_588, %c0_589, %c0_590] : memref<1x18x8x128xf32, #tpu.memory_space<vmem>>, vector<1x1x8x128xf32>
    %684 = vector.shape_cast %683 : vector<1x1x8x128xf32> to vector<8x128xf32>
    %685 = arith.mulf %549, %682 : vector<8x128xf32>
    %686 = arith.mulf %550, %684 : vector<8x128xf32>
    %687 = arith.addf %685, %686 : vector<8x128xf32>
    %688 = arith.mulf %550, %682 : vector<8x128xf32>
    %689 = arith.mulf %549, %684 : vector<8x128xf32>
    %690 = arith.subf %688, %689 : vector<8x128xf32>
    %c0_591 = arith.constant 0 : index
    %c4_592 = arith.constant 4 : index
    %c0_593 = arith.constant 0 : index
    %c0_594 = arith.constant 0 : index
    %691 = vector.load %arg4[%c0_591, %c4_592, %c0_593, %c0_594] : memref<1x18x8x128xf32, #tpu.memory_space<vmem>>, vector<1x1x8x128xf32>
    %692 = vector.shape_cast %691 : vector<1x1x8x128xf32> to vector<8x128xf32>
    %c0_595 = arith.constant 0 : index
    %c13_596 = arith.constant 13 : index
    %c0_597 = arith.constant 0 : index
    %c0_598 = arith.constant 0 : index
    %693 = vector.load %arg4[%c0_595, %c13_596, %c0_597, %c0_598] : memref<1x18x8x128xf32, #tpu.memory_space<vmem>>, vector<1x1x8x128xf32>
    %694 = vector.shape_cast %693 : vector<1x1x8x128xf32> to vector<8x128xf32>
    %695 = arith.mulf %595, %692 : vector<8x128xf32>
    %696 = arith.mulf %596, %694 : vector<8x128xf32>
    %697 = arith.addf %695, %696 : vector<8x128xf32>
    %698 = arith.mulf %596, %692 : vector<8x128xf32>
    %699 = arith.mulf %595, %694 : vector<8x128xf32>
    %700 = arith.subf %698, %699 : vector<8x128xf32>
    %701 = arith.addf %687, %697 : vector<8x128xf32>
    %702 = arith.addf %690, %700 : vector<8x128xf32>
    %c0_599 = arith.constant 0 : index
    %c5_600 = arith.constant 5 : index
    %c0_601 = arith.constant 0 : index
    %c0_602 = arith.constant 0 : index
    %703 = vector.load %arg4[%c0_599, %c5_600, %c0_601, %c0_602] : memref<1x18x8x128xf32, #tpu.memory_space<vmem>>, vector<1x1x8x128xf32>
    %704 = vector.shape_cast %703 : vector<1x1x8x128xf32> to vector<8x128xf32>
    %c0_603 = arith.constant 0 : index
    %c14_604 = arith.constant 14 : index
    %c0_605 = arith.constant 0 : index
    %c0_606 = arith.constant 0 : index
    %705 = vector.load %arg4[%c0_603, %c14_604, %c0_605, %c0_606] : memref<1x18x8x128xf32, #tpu.memory_space<vmem>>, vector<1x1x8x128xf32>
    %706 = vector.shape_cast %705 : vector<1x1x8x128xf32> to vector<8x128xf32>
    %707 = arith.mulf %641, %704 : vector<8x128xf32>
    %708 = arith.mulf %642, %706 : vector<8x128xf32>
    %709 = arith.addf %707, %708 : vector<8x128xf32>
    %710 = arith.mulf %642, %704 : vector<8x128xf32>
    %711 = arith.mulf %641, %706 : vector<8x128xf32>
    %712 = arith.subf %710, %711 : vector<8x128xf32>
    %713 = arith.addf %701, %709 : vector<8x128xf32>
    %714 = arith.addf %702, %712 : vector<8x128xf32>
    %715 = vector.broadcast %0 : f32 to vector<8x128xf32>
    %716 = arith.mulf %715, %713 : vector<8x128xf32>
    %717 = vector.broadcast %0 : f32 to vector<8x128xf32>
    %718 = arith.mulf %717, %714 : vector<8x128xf32>
    %c0_607 = arith.constant 0 : index
    %c6_608 = arith.constant 6 : index
    %c0_609 = arith.constant 0 : index
    %c0_610 = arith.constant 0 : index
    %719 = vector.load %arg4[%c0_607, %c6_608, %c0_609, %c0_610] : memref<1x18x8x128xf32, #tpu.memory_space<vmem>>, vector<1x1x8x128xf32>
    %720 = vector.shape_cast %719 : vector<1x1x8x128xf32> to vector<8x128xf32>
    %c0_611 = arith.constant 0 : index
    %c15_612 = arith.constant 15 : index
    %c0_613 = arith.constant 0 : index
    %c0_614 = arith.constant 0 : index
    %721 = vector.load %arg4[%c0_611, %c15_612, %c0_613, %c0_614] : memref<1x18x8x128xf32, #tpu.memory_space<vmem>>, vector<1x1x8x128xf32>
    %722 = vector.shape_cast %721 : vector<1x1x8x128xf32> to vector<8x128xf32>
    %723 = arith.mulf %549, %720 : vector<8x128xf32>
    %724 = arith.mulf %550, %722 : vector<8x128xf32>
    %725 = arith.addf %723, %724 : vector<8x128xf32>
    %726 = arith.mulf %550, %720 : vector<8x128xf32>
    %727 = arith.mulf %549, %722 : vector<8x128xf32>
    %728 = arith.subf %726, %727 : vector<8x128xf32>
    %c0_615 = arith.constant 0 : index
    %c7_616 = arith.constant 7 : index
    %c0_617 = arith.constant 0 : index
    %c0_618 = arith.constant 0 : index
    %729 = vector.load %arg4[%c0_615, %c7_616, %c0_617, %c0_618] : memref<1x18x8x128xf32, #tpu.memory_space<vmem>>, vector<1x1x8x128xf32>
    %730 = vector.shape_cast %729 : vector<1x1x8x128xf32> to vector<8x128xf32>
    %c0_619 = arith.constant 0 : index
    %c16_620 = arith.constant 16 : index
    %c0_621 = arith.constant 0 : index
    %c0_622 = arith.constant 0 : index
    %731 = vector.load %arg4[%c0_619, %c16_620, %c0_621, %c0_622] : memref<1x18x8x128xf32, #tpu.memory_space<vmem>>, vector<1x1x8x128xf32>
    %732 = vector.shape_cast %731 : vector<1x1x8x128xf32> to vector<8x128xf32>
    %733 = arith.mulf %595, %730 : vector<8x128xf32>
    %734 = arith.mulf %596, %732 : vector<8x128xf32>
    %735 = arith.addf %733, %734 : vector<8x128xf32>
    %736 = arith.mulf %596, %730 : vector<8x128xf32>
    %737 = arith.mulf %595, %732 : vector<8x128xf32>
    %738 = arith.subf %736, %737 : vector<8x128xf32>
    %739 = arith.addf %725, %735 : vector<8x128xf32>
    %740 = arith.addf %728, %738 : vector<8x128xf32>
    %c0_623 = arith.constant 0 : index
    %c8_624 = arith.constant 8 : index
    %c0_625 = arith.constant 0 : index
    %c0_626 = arith.constant 0 : index
    %741 = vector.load %arg4[%c0_623, %c8_624, %c0_625, %c0_626] : memref<1x18x8x128xf32, #tpu.memory_space<vmem>>, vector<1x1x8x128xf32>
    %742 = vector.shape_cast %741 : vector<1x1x8x128xf32> to vector<8x128xf32>
    %c0_627 = arith.constant 0 : index
    %c17_628 = arith.constant 17 : index
    %c0_629 = arith.constant 0 : index
    %c0_630 = arith.constant 0 : index
    %743 = vector.load %arg4[%c0_627, %c17_628, %c0_629, %c0_630] : memref<1x18x8x128xf32, #tpu.memory_space<vmem>>, vector<1x1x8x128xf32>
    %744 = vector.shape_cast %743 : vector<1x1x8x128xf32> to vector<8x128xf32>
    %745 = arith.mulf %641, %742 : vector<8x128xf32>
    %746 = arith.mulf %642, %744 : vector<8x128xf32>
    %747 = arith.addf %745, %746 : vector<8x128xf32>
    %748 = arith.mulf %642, %742 : vector<8x128xf32>
    %749 = arith.mulf %641, %744 : vector<8x128xf32>
    %750 = arith.subf %748, %749 : vector<8x128xf32>
    %751 = arith.addf %739, %747 : vector<8x128xf32>
    %752 = arith.addf %740, %750 : vector<8x128xf32>
    %753 = vector.broadcast %0 : f32 to vector<8x128xf32>
    %754 = arith.mulf %753, %751 : vector<8x128xf32>
    %755 = vector.broadcast %0 : f32 to vector<8x128xf32>
    %756 = arith.mulf %755, %752 : vector<8x128xf32>
    %c0_631 = arith.constant 0 : index
    %c0_632 = arith.constant 0 : index
    %c0_633 = arith.constant 0 : index
    %c0_634 = arith.constant 0 : index
    %757 = vector.load %arg5[%c0_631, %c0_632, %c0_633, %c0_634] : memref<1x18x8x128xf32, #tpu.memory_space<vmem>>, vector<1x1x8x128xf32>
    %758 = vector.shape_cast %757 : vector<1x1x8x128xf32> to vector<8x128xf32>
    %c0_635 = arith.constant 0 : index
    %c9_636 = arith.constant 9 : index
    %c0_637 = arith.constant 0 : index
    %c0_638 = arith.constant 0 : index
    %759 = vector.load %arg5[%c0_635, %c9_636, %c0_637, %c0_638] : memref<1x18x8x128xf32, #tpu.memory_space<vmem>>, vector<1x1x8x128xf32>
    %760 = vector.shape_cast %759 : vector<1x1x8x128xf32> to vector<8x128xf32>
    %c0_639 = arith.constant 0 : index
    %c0_640 = arith.constant 0 : index
    %c0_641 = arith.constant 0 : index
    %c0_642 = arith.constant 0 : index
    %761 = vector.load %arg6[%c0_639, %c0_640, %c0_641, %c0_642] : memref<1x18x8x128xf32, #tpu.memory_space<vmem>>, vector<1x1x8x128xf32>
    %762 = vector.shape_cast %761 : vector<1x1x8x128xf32> to vector<8x128xf32>
    %c0_643 = arith.constant 0 : index
    %c9_644 = arith.constant 9 : index
    %c0_645 = arith.constant 0 : index
    %c0_646 = arith.constant 0 : index
    %763 = vector.load %arg6[%c0_643, %c9_644, %c0_645, %c0_646] : memref<1x18x8x128xf32, #tpu.memory_space<vmem>>, vector<1x1x8x128xf32>
    %764 = vector.shape_cast %763 : vector<1x1x8x128xf32> to vector<8x128xf32>
    %765 = arith.mulf %758, %762 : vector<8x128xf32>
    %766 = arith.mulf %760, %764 : vector<8x128xf32>
    %767 = arith.addf %765, %766 : vector<8x128xf32>
    %768 = arith.mulf %758, %764 : vector<8x128xf32>
    %769 = arith.mulf %760, %762 : vector<8x128xf32>
    %770 = arith.subf %768, %769 : vector<8x128xf32>
    %c0_647 = arith.constant 0 : index
    %c3_648 = arith.constant 3 : index
    %c0_649 = arith.constant 0 : index
    %c0_650 = arith.constant 0 : index
    %771 = vector.load %arg5[%c0_647, %c3_648, %c0_649, %c0_650] : memref<1x18x8x128xf32, #tpu.memory_space<vmem>>, vector<1x1x8x128xf32>
    %772 = vector.shape_cast %771 : vector<1x1x8x128xf32> to vector<8x128xf32>
    %c0_651 = arith.constant 0 : index
    %c12_652 = arith.constant 12 : index
    %c0_653 = arith.constant 0 : index
    %c0_654 = arith.constant 0 : index
    %773 = vector.load %arg5[%c0_651, %c12_652, %c0_653, %c0_654] : memref<1x18x8x128xf32, #tpu.memory_space<vmem>>, vector<1x1x8x128xf32>
    %774 = vector.shape_cast %773 : vector<1x1x8x128xf32> to vector<8x128xf32>
    %c0_655 = arith.constant 0 : index
    %c3_656 = arith.constant 3 : index
    %c0_657 = arith.constant 0 : index
    %c0_658 = arith.constant 0 : index
    %775 = vector.load %arg6[%c0_655, %c3_656, %c0_657, %c0_658] : memref<1x18x8x128xf32, #tpu.memory_space<vmem>>, vector<1x1x8x128xf32>
    %776 = vector.shape_cast %775 : vector<1x1x8x128xf32> to vector<8x128xf32>
    %c0_659 = arith.constant 0 : index
    %c12_660 = arith.constant 12 : index
    %c0_661 = arith.constant 0 : index
    %c0_662 = arith.constant 0 : index
    %777 = vector.load %arg6[%c0_659, %c12_660, %c0_661, %c0_662] : memref<1x18x8x128xf32, #tpu.memory_space<vmem>>, vector<1x1x8x128xf32>
    %778 = vector.shape_cast %777 : vector<1x1x8x128xf32> to vector<8x128xf32>
    %779 = arith.mulf %772, %776 : vector<8x128xf32>
    %780 = arith.mulf %774, %778 : vector<8x128xf32>
    %781 = arith.addf %779, %780 : vector<8x128xf32>
    %782 = arith.mulf %772, %778 : vector<8x128xf32>
    %783 = arith.mulf %774, %776 : vector<8x128xf32>
    %784 = arith.subf %782, %783 : vector<8x128xf32>
    %785 = arith.addf %767, %781 : vector<8x128xf32>
    %786 = arith.addf %770, %784 : vector<8x128xf32>
    %c0_663 = arith.constant 0 : index
    %c6_664 = arith.constant 6 : index
    %c0_665 = arith.constant 0 : index
    %c0_666 = arith.constant 0 : index
    %787 = vector.load %arg5[%c0_663, %c6_664, %c0_665, %c0_666] : memref<1x18x8x128xf32, #tpu.memory_space<vmem>>, vector<1x1x8x128xf32>
    %788 = vector.shape_cast %787 : vector<1x1x8x128xf32> to vector<8x128xf32>
    %c0_667 = arith.constant 0 : index
    %c15_668 = arith.constant 15 : index
    %c0_669 = arith.constant 0 : index
    %c0_670 = arith.constant 0 : index
    %789 = vector.load %arg5[%c0_667, %c15_668, %c0_669, %c0_670] : memref<1x18x8x128xf32, #tpu.memory_space<vmem>>, vector<1x1x8x128xf32>
    %790 = vector.shape_cast %789 : vector<1x1x8x128xf32> to vector<8x128xf32>
    %c0_671 = arith.constant 0 : index
    %c6_672 = arith.constant 6 : index
    %c0_673 = arith.constant 0 : index
    %c0_674 = arith.constant 0 : index
    %791 = vector.load %arg6[%c0_671, %c6_672, %c0_673, %c0_674] : memref<1x18x8x128xf32, #tpu.memory_space<vmem>>, vector<1x1x8x128xf32>
    %792 = vector.shape_cast %791 : vector<1x1x8x128xf32> to vector<8x128xf32>
    %c0_675 = arith.constant 0 : index
    %c15_676 = arith.constant 15 : index
    %c0_677 = arith.constant 0 : index
    %c0_678 = arith.constant 0 : index
    %793 = vector.load %arg6[%c0_675, %c15_676, %c0_677, %c0_678] : memref<1x18x8x128xf32, #tpu.memory_space<vmem>>, vector<1x1x8x128xf32>
    %794 = vector.shape_cast %793 : vector<1x1x8x128xf32> to vector<8x128xf32>
    %795 = arith.mulf %788, %792 : vector<8x128xf32>
    %796 = arith.mulf %790, %794 : vector<8x128xf32>
    %797 = arith.addf %795, %796 : vector<8x128xf32>
    %798 = arith.mulf %788, %794 : vector<8x128xf32>
    %799 = arith.mulf %790, %792 : vector<8x128xf32>
    %800 = arith.subf %798, %799 : vector<8x128xf32>
    %801 = arith.addf %785, %797 : vector<8x128xf32>
    %802 = arith.addf %786, %800 : vector<8x128xf32>
    %c0_679 = arith.constant 0 : index
    %c0_680 = arith.constant 0 : index
    %c0_681 = arith.constant 0 : index
    %c0_682 = arith.constant 0 : index
    %803 = vector.load %arg5[%c0_679, %c0_680, %c0_681, %c0_682] : memref<1x18x8x128xf32, #tpu.memory_space<vmem>>, vector<1x1x8x128xf32>
    %804 = vector.shape_cast %803 : vector<1x1x8x128xf32> to vector<8x128xf32>
    %c0_683 = arith.constant 0 : index
    %c9_684 = arith.constant 9 : index
    %c0_685 = arith.constant 0 : index
    %c0_686 = arith.constant 0 : index
    %805 = vector.load %arg5[%c0_683, %c9_684, %c0_685, %c0_686] : memref<1x18x8x128xf32, #tpu.memory_space<vmem>>, vector<1x1x8x128xf32>
    %806 = vector.shape_cast %805 : vector<1x1x8x128xf32> to vector<8x128xf32>
    %c0_687 = arith.constant 0 : index
    %c1_688 = arith.constant 1 : index
    %c0_689 = arith.constant 0 : index
    %c0_690 = arith.constant 0 : index
    %807 = vector.load %arg6[%c0_687, %c1_688, %c0_689, %c0_690] : memref<1x18x8x128xf32, #tpu.memory_space<vmem>>, vector<1x1x8x128xf32>
    %808 = vector.shape_cast %807 : vector<1x1x8x128xf32> to vector<8x128xf32>
    %c0_691 = arith.constant 0 : index
    %c10_692 = arith.constant 10 : index
    %c0_693 = arith.constant 0 : index
    %c0_694 = arith.constant 0 : index
    %809 = vector.load %arg6[%c0_691, %c10_692, %c0_693, %c0_694] : memref<1x18x8x128xf32, #tpu.memory_space<vmem>>, vector<1x1x8x128xf32>
    %810 = vector.shape_cast %809 : vector<1x1x8x128xf32> to vector<8x128xf32>
    %811 = arith.mulf %804, %808 : vector<8x128xf32>
    %812 = arith.mulf %806, %810 : vector<8x128xf32>
    %813 = arith.addf %811, %812 : vector<8x128xf32>
    %814 = arith.mulf %804, %810 : vector<8x128xf32>
    %815 = arith.mulf %806, %808 : vector<8x128xf32>
    %816 = arith.subf %814, %815 : vector<8x128xf32>
    %c0_695 = arith.constant 0 : index
    %c3_696 = arith.constant 3 : index
    %c0_697 = arith.constant 0 : index
    %c0_698 = arith.constant 0 : index
    %817 = vector.load %arg5[%c0_695, %c3_696, %c0_697, %c0_698] : memref<1x18x8x128xf32, #tpu.memory_space<vmem>>, vector<1x1x8x128xf32>
    %818 = vector.shape_cast %817 : vector<1x1x8x128xf32> to vector<8x128xf32>
    %c0_699 = arith.constant 0 : index
    %c12_700 = arith.constant 12 : index
    %c0_701 = arith.constant 0 : index
    %c0_702 = arith.constant 0 : index
    %819 = vector.load %arg5[%c0_699, %c12_700, %c0_701, %c0_702] : memref<1x18x8x128xf32, #tpu.memory_space<vmem>>, vector<1x1x8x128xf32>
    %820 = vector.shape_cast %819 : vector<1x1x8x128xf32> to vector<8x128xf32>
    %c0_703 = arith.constant 0 : index
    %c4_704 = arith.constant 4 : index
    %c0_705 = arith.constant 0 : index
    %c0_706 = arith.constant 0 : index
    %821 = vector.load %arg6[%c0_703, %c4_704, %c0_705, %c0_706] : memref<1x18x8x128xf32, #tpu.memory_space<vmem>>, vector<1x1x8x128xf32>
    %822 = vector.shape_cast %821 : vector<1x1x8x128xf32> to vector<8x128xf32>
    %c0_707 = arith.constant 0 : index
    %c13_708 = arith.constant 13 : index
    %c0_709 = arith.constant 0 : index
    %c0_710 = arith.constant 0 : index
    %823 = vector.load %arg6[%c0_707, %c13_708, %c0_709, %c0_710] : memref<1x18x8x128xf32, #tpu.memory_space<vmem>>, vector<1x1x8x128xf32>
    %824 = vector.shape_cast %823 : vector<1x1x8x128xf32> to vector<8x128xf32>
    %825 = arith.mulf %818, %822 : vector<8x128xf32>
    %826 = arith.mulf %820, %824 : vector<8x128xf32>
    %827 = arith.addf %825, %826 : vector<8x128xf32>
    %828 = arith.mulf %818, %824 : vector<8x128xf32>
    %829 = arith.mulf %820, %822 : vector<8x128xf32>
    %830 = arith.subf %828, %829 : vector<8x128xf32>
    %831 = arith.addf %813, %827 : vector<8x128xf32>
    %832 = arith.addf %816, %830 : vector<8x128xf32>
    %c0_711 = arith.constant 0 : index
    %c6_712 = arith.constant 6 : index
    %c0_713 = arith.constant 0 : index
    %c0_714 = arith.constant 0 : index
    %833 = vector.load %arg5[%c0_711, %c6_712, %c0_713, %c0_714] : memref<1x18x8x128xf32, #tpu.memory_space<vmem>>, vector<1x1x8x128xf32>
    %834 = vector.shape_cast %833 : vector<1x1x8x128xf32> to vector<8x128xf32>
    %c0_715 = arith.constant 0 : index
    %c15_716 = arith.constant 15 : index
    %c0_717 = arith.constant 0 : index
    %c0_718 = arith.constant 0 : index
    %835 = vector.load %arg5[%c0_715, %c15_716, %c0_717, %c0_718] : memref<1x18x8x128xf32, #tpu.memory_space<vmem>>, vector<1x1x8x128xf32>
    %836 = vector.shape_cast %835 : vector<1x1x8x128xf32> to vector<8x128xf32>
    %c0_719 = arith.constant 0 : index
    %c7_720 = arith.constant 7 : index
    %c0_721 = arith.constant 0 : index
    %c0_722 = arith.constant 0 : index
    %837 = vector.load %arg6[%c0_719, %c7_720, %c0_721, %c0_722] : memref<1x18x8x128xf32, #tpu.memory_space<vmem>>, vector<1x1x8x128xf32>
    %838 = vector.shape_cast %837 : vector<1x1x8x128xf32> to vector<8x128xf32>
    %c0_723 = arith.constant 0 : index
    %c16_724 = arith.constant 16 : index
    %c0_725 = arith.constant 0 : index
    %c0_726 = arith.constant 0 : index
    %839 = vector.load %arg6[%c0_723, %c16_724, %c0_725, %c0_726] : memref<1x18x8x128xf32, #tpu.memory_space<vmem>>, vector<1x1x8x128xf32>
    %840 = vector.shape_cast %839 : vector<1x1x8x128xf32> to vector<8x128xf32>
    %841 = arith.mulf %834, %838 : vector<8x128xf32>
    %842 = arith.mulf %836, %840 : vector<8x128xf32>
    %843 = arith.addf %841, %842 : vector<8x128xf32>
    %844 = arith.mulf %834, %840 : vector<8x128xf32>
    %845 = arith.mulf %836, %838 : vector<8x128xf32>
    %846 = arith.subf %844, %845 : vector<8x128xf32>
    %847 = arith.addf %831, %843 : vector<8x128xf32>
    %848 = arith.addf %832, %846 : vector<8x128xf32>
    %c0_727 = arith.constant 0 : index
    %c0_728 = arith.constant 0 : index
    %c0_729 = arith.constant 0 : index
    %c0_730 = arith.constant 0 : index
    %849 = vector.load %arg5[%c0_727, %c0_728, %c0_729, %c0_730] : memref<1x18x8x128xf32, #tpu.memory_space<vmem>>, vector<1x1x8x128xf32>
    %850 = vector.shape_cast %849 : vector<1x1x8x128xf32> to vector<8x128xf32>
    %c0_731 = arith.constant 0 : index
    %c9_732 = arith.constant 9 : index
    %c0_733 = arith.constant 0 : index
    %c0_734 = arith.constant 0 : index
    %851 = vector.load %arg5[%c0_731, %c9_732, %c0_733, %c0_734] : memref<1x18x8x128xf32, #tpu.memory_space<vmem>>, vector<1x1x8x128xf32>
    %852 = vector.shape_cast %851 : vector<1x1x8x128xf32> to vector<8x128xf32>
    %c0_735 = arith.constant 0 : index
    %c2_736 = arith.constant 2 : index
    %c0_737 = arith.constant 0 : index
    %c0_738 = arith.constant 0 : index
    %853 = vector.load %arg6[%c0_735, %c2_736, %c0_737, %c0_738] : memref<1x18x8x128xf32, #tpu.memory_space<vmem>>, vector<1x1x8x128xf32>
    %854 = vector.shape_cast %853 : vector<1x1x8x128xf32> to vector<8x128xf32>
    %c0_739 = arith.constant 0 : index
    %c11_740 = arith.constant 11 : index
    %c0_741 = arith.constant 0 : index
    %c0_742 = arith.constant 0 : index
    %855 = vector.load %arg6[%c0_739, %c11_740, %c0_741, %c0_742] : memref<1x18x8x128xf32, #tpu.memory_space<vmem>>, vector<1x1x8x128xf32>
    %856 = vector.shape_cast %855 : vector<1x1x8x128xf32> to vector<8x128xf32>
    %857 = arith.mulf %850, %854 : vector<8x128xf32>
    %858 = arith.mulf %852, %856 : vector<8x128xf32>
    %859 = arith.addf %857, %858 : vector<8x128xf32>
    %860 = arith.mulf %850, %856 : vector<8x128xf32>
    %861 = arith.mulf %852, %854 : vector<8x128xf32>
    %862 = arith.subf %860, %861 : vector<8x128xf32>
    %c0_743 = arith.constant 0 : index
    %c3_744 = arith.constant 3 : index
    %c0_745 = arith.constant 0 : index
    %c0_746 = arith.constant 0 : index
    %863 = vector.load %arg5[%c0_743, %c3_744, %c0_745, %c0_746] : memref<1x18x8x128xf32, #tpu.memory_space<vmem>>, vector<1x1x8x128xf32>
    %864 = vector.shape_cast %863 : vector<1x1x8x128xf32> to vector<8x128xf32>
    %c0_747 = arith.constant 0 : index
    %c12_748 = arith.constant 12 : index
    %c0_749 = arith.constant 0 : index
    %c0_750 = arith.constant 0 : index
    %865 = vector.load %arg5[%c0_747, %c12_748, %c0_749, %c0_750] : memref<1x18x8x128xf32, #tpu.memory_space<vmem>>, vector<1x1x8x128xf32>
    %866 = vector.shape_cast %865 : vector<1x1x8x128xf32> to vector<8x128xf32>
    %c0_751 = arith.constant 0 : index
    %c5_752 = arith.constant 5 : index
    %c0_753 = arith.constant 0 : index
    %c0_754 = arith.constant 0 : index
    %867 = vector.load %arg6[%c0_751, %c5_752, %c0_753, %c0_754] : memref<1x18x8x128xf32, #tpu.memory_space<vmem>>, vector<1x1x8x128xf32>
    %868 = vector.shape_cast %867 : vector<1x1x8x128xf32> to vector<8x128xf32>
    %c0_755 = arith.constant 0 : index
    %c14_756 = arith.constant 14 : index
    %c0_757 = arith.constant 0 : index
    %c0_758 = arith.constant 0 : index
    %869 = vector.load %arg6[%c0_755, %c14_756, %c0_757, %c0_758] : memref<1x18x8x128xf32, #tpu.memory_space<vmem>>, vector<1x1x8x128xf32>
    %870 = vector.shape_cast %869 : vector<1x1x8x128xf32> to vector<8x128xf32>
    %871 = arith.mulf %864, %868 : vector<8x128xf32>
    %872 = arith.mulf %866, %870 : vector<8x128xf32>
    %873 = arith.addf %871, %872 : vector<8x128xf32>
    %874 = arith.mulf %864, %870 : vector<8x128xf32>
    %875 = arith.mulf %866, %868 : vector<8x128xf32>
    %876 = arith.subf %874, %875 : vector<8x128xf32>
    %877 = arith.addf %859, %873 : vector<8x128xf32>
    %878 = arith.addf %862, %876 : vector<8x128xf32>
    %c0_759 = arith.constant 0 : index
    %c6_760 = arith.constant 6 : index
    %c0_761 = arith.constant 0 : index
    %c0_762 = arith.constant 0 : index
    %879 = vector.load %arg5[%c0_759, %c6_760, %c0_761, %c0_762] : memref<1x18x8x128xf32, #tpu.memory_space<vmem>>, vector<1x1x8x128xf32>
    %880 = vector.shape_cast %879 : vector<1x1x8x128xf32> to vector<8x128xf32>
    %c0_763 = arith.constant 0 : index
    %c15_764 = arith.constant 15 : index
    %c0_765 = arith.constant 0 : index
    %c0_766 = arith.constant 0 : index
    %881 = vector.load %arg5[%c0_763, %c15_764, %c0_765, %c0_766] : memref<1x18x8x128xf32, #tpu.memory_space<vmem>>, vector<1x1x8x128xf32>
    %882 = vector.shape_cast %881 : vector<1x1x8x128xf32> to vector<8x128xf32>
    %c0_767 = arith.constant 0 : index
    %c8_768 = arith.constant 8 : index
    %c0_769 = arith.constant 0 : index
    %c0_770 = arith.constant 0 : index
    %883 = vector.load %arg6[%c0_767, %c8_768, %c0_769, %c0_770] : memref<1x18x8x128xf32, #tpu.memory_space<vmem>>, vector<1x1x8x128xf32>
    %884 = vector.shape_cast %883 : vector<1x1x8x128xf32> to vector<8x128xf32>
    %c0_771 = arith.constant 0 : index
    %c17_772 = arith.constant 17 : index
    %c0_773 = arith.constant 0 : index
    %c0_774 = arith.constant 0 : index
    %885 = vector.load %arg6[%c0_771, %c17_772, %c0_773, %c0_774] : memref<1x18x8x128xf32, #tpu.memory_space<vmem>>, vector<1x1x8x128xf32>
    %886 = vector.shape_cast %885 : vector<1x1x8x128xf32> to vector<8x128xf32>
    %887 = arith.mulf %880, %884 : vector<8x128xf32>
    %888 = arith.mulf %882, %886 : vector<8x128xf32>
    %889 = arith.addf %887, %888 : vector<8x128xf32>
    %890 = arith.mulf %880, %886 : vector<8x128xf32>
    %891 = arith.mulf %882, %884 : vector<8x128xf32>
    %892 = arith.subf %890, %891 : vector<8x128xf32>
    %893 = arith.addf %877, %889 : vector<8x128xf32>
    %894 = arith.addf %878, %892 : vector<8x128xf32>
    %c0_775 = arith.constant 0 : index
    %c0_776 = arith.constant 0 : index
    %c0_777 = arith.constant 0 : index
    %c0_778 = arith.constant 0 : index
    %895 = vector.load %arg7[%c0_775, %c0_776, %c0_777, %c0_778] : memref<1x18x8x128xf32, #tpu.memory_space<vmem>>, vector<1x1x8x128xf32>
    %896 = vector.shape_cast %895 : vector<1x1x8x128xf32> to vector<8x128xf32>
    %c0_779 = arith.constant 0 : index
    %c9_780 = arith.constant 9 : index
    %c0_781 = arith.constant 0 : index
    %c0_782 = arith.constant 0 : index
    %897 = vector.load %arg7[%c0_779, %c9_780, %c0_781, %c0_782] : memref<1x18x8x128xf32, #tpu.memory_space<vmem>>, vector<1x1x8x128xf32>
    %898 = vector.shape_cast %897 : vector<1x1x8x128xf32> to vector<8x128xf32>
    %899 = arith.mulf %801, %896 : vector<8x128xf32>
    %900 = arith.mulf %802, %898 : vector<8x128xf32>
    %901 = arith.subf %899, %900 : vector<8x128xf32>
    %902 = arith.mulf %801, %898 : vector<8x128xf32>
    %903 = arith.mulf %802, %896 : vector<8x128xf32>
    %904 = arith.addf %902, %903 : vector<8x128xf32>
    %c0_783 = arith.constant 0 : index
    %c3_784 = arith.constant 3 : index
    %c0_785 = arith.constant 0 : index
    %c0_786 = arith.constant 0 : index
    %905 = vector.load %arg7[%c0_783, %c3_784, %c0_785, %c0_786] : memref<1x18x8x128xf32, #tpu.memory_space<vmem>>, vector<1x1x8x128xf32>
    %906 = vector.shape_cast %905 : vector<1x1x8x128xf32> to vector<8x128xf32>
    %c0_787 = arith.constant 0 : index
    %c12_788 = arith.constant 12 : index
    %c0_789 = arith.constant 0 : index
    %c0_790 = arith.constant 0 : index
    %907 = vector.load %arg7[%c0_787, %c12_788, %c0_789, %c0_790] : memref<1x18x8x128xf32, #tpu.memory_space<vmem>>, vector<1x1x8x128xf32>
    %908 = vector.shape_cast %907 : vector<1x1x8x128xf32> to vector<8x128xf32>
    %909 = arith.mulf %847, %906 : vector<8x128xf32>
    %910 = arith.mulf %848, %908 : vector<8x128xf32>
    %911 = arith.subf %909, %910 : vector<8x128xf32>
    %912 = arith.mulf %847, %908 : vector<8x128xf32>
    %913 = arith.mulf %848, %906 : vector<8x128xf32>
    %914 = arith.addf %912, %913 : vector<8x128xf32>
    %915 = arith.addf %901, %911 : vector<8x128xf32>
    %916 = arith.addf %904, %914 : vector<8x128xf32>
    %c0_791 = arith.constant 0 : index
    %c6_792 = arith.constant 6 : index
    %c0_793 = arith.constant 0 : index
    %c0_794 = arith.constant 0 : index
    %917 = vector.load %arg7[%c0_791, %c6_792, %c0_793, %c0_794] : memref<1x18x8x128xf32, #tpu.memory_space<vmem>>, vector<1x1x8x128xf32>
    %918 = vector.shape_cast %917 : vector<1x1x8x128xf32> to vector<8x128xf32>
    %c0_795 = arith.constant 0 : index
    %c15_796 = arith.constant 15 : index
    %c0_797 = arith.constant 0 : index
    %c0_798 = arith.constant 0 : index
    %919 = vector.load %arg7[%c0_795, %c15_796, %c0_797, %c0_798] : memref<1x18x8x128xf32, #tpu.memory_space<vmem>>, vector<1x1x8x128xf32>
    %920 = vector.shape_cast %919 : vector<1x1x8x128xf32> to vector<8x128xf32>
    %921 = arith.mulf %893, %918 : vector<8x128xf32>
    %922 = arith.mulf %894, %920 : vector<8x128xf32>
    %923 = arith.subf %921, %922 : vector<8x128xf32>
    %924 = arith.mulf %893, %920 : vector<8x128xf32>
    %925 = arith.mulf %894, %918 : vector<8x128xf32>
    %926 = arith.addf %924, %925 : vector<8x128xf32>
    %927 = arith.addf %915, %923 : vector<8x128xf32>
    %928 = arith.addf %916, %926 : vector<8x128xf32>
    %929 = vector.broadcast %0 : f32 to vector<8x128xf32>
    %930 = arith.mulf %929, %927 : vector<8x128xf32>
    %931 = arith.addf %174, %930 : vector<8x128xf32>
    %932 = vector.broadcast %0 : f32 to vector<8x128xf32>
    %933 = arith.mulf %932, %928 : vector<8x128xf32>
    %934 = arith.addf %176, %933 : vector<8x128xf32>
    %c0_799 = arith.constant 0 : index
    %c1_800 = arith.constant 1 : index
    %c0_801 = arith.constant 0 : index
    %c0_802 = arith.constant 0 : index
    %935 = vector.load %arg7[%c0_799, %c1_800, %c0_801, %c0_802] : memref<1x18x8x128xf32, #tpu.memory_space<vmem>>, vector<1x1x8x128xf32>
    %936 = vector.shape_cast %935 : vector<1x1x8x128xf32> to vector<8x128xf32>
    %c0_803 = arith.constant 0 : index
    %c10_804 = arith.constant 10 : index
    %c0_805 = arith.constant 0 : index
    %c0_806 = arith.constant 0 : index
    %937 = vector.load %arg7[%c0_803, %c10_804, %c0_805, %c0_806] : memref<1x18x8x128xf32, #tpu.memory_space<vmem>>, vector<1x1x8x128xf32>
    %938 = vector.shape_cast %937 : vector<1x1x8x128xf32> to vector<8x128xf32>
    %939 = arith.mulf %801, %936 : vector<8x128xf32>
    %940 = arith.mulf %802, %938 : vector<8x128xf32>
    %941 = arith.subf %939, %940 : vector<8x128xf32>
    %942 = arith.mulf %801, %938 : vector<8x128xf32>
    %943 = arith.mulf %802, %936 : vector<8x128xf32>
    %944 = arith.addf %942, %943 : vector<8x128xf32>
    %c0_807 = arith.constant 0 : index
    %c4_808 = arith.constant 4 : index
    %c0_809 = arith.constant 0 : index
    %c0_810 = arith.constant 0 : index
    %945 = vector.load %arg7[%c0_807, %c4_808, %c0_809, %c0_810] : memref<1x18x8x128xf32, #tpu.memory_space<vmem>>, vector<1x1x8x128xf32>
    %946 = vector.shape_cast %945 : vector<1x1x8x128xf32> to vector<8x128xf32>
    %c0_811 = arith.constant 0 : index
    %c13_812 = arith.constant 13 : index
    %c0_813 = arith.constant 0 : index
    %c0_814 = arith.constant 0 : index
    %947 = vector.load %arg7[%c0_811, %c13_812, %c0_813, %c0_814] : memref<1x18x8x128xf32, #tpu.memory_space<vmem>>, vector<1x1x8x128xf32>
    %948 = vector.shape_cast %947 : vector<1x1x8x128xf32> to vector<8x128xf32>
    %949 = arith.mulf %847, %946 : vector<8x128xf32>
    %950 = arith.mulf %848, %948 : vector<8x128xf32>
    %951 = arith.subf %949, %950 : vector<8x128xf32>
    %952 = arith.mulf %847, %948 : vector<8x128xf32>
    %953 = arith.mulf %848, %946 : vector<8x128xf32>
    %954 = arith.addf %952, %953 : vector<8x128xf32>
    %955 = arith.addf %941, %951 : vector<8x128xf32>
    %956 = arith.addf %944, %954 : vector<8x128xf32>
    %c0_815 = arith.constant 0 : index
    %c7_816 = arith.constant 7 : index
    %c0_817 = arith.constant 0 : index
    %c0_818 = arith.constant 0 : index
    %957 = vector.load %arg7[%c0_815, %c7_816, %c0_817, %c0_818] : memref<1x18x8x128xf32, #tpu.memory_space<vmem>>, vector<1x1x8x128xf32>
    %958 = vector.shape_cast %957 : vector<1x1x8x128xf32> to vector<8x128xf32>
    %c0_819 = arith.constant 0 : index
    %c16_820 = arith.constant 16 : index
    %c0_821 = arith.constant 0 : index
    %c0_822 = arith.constant 0 : index
    %959 = vector.load %arg7[%c0_819, %c16_820, %c0_821, %c0_822] : memref<1x18x8x128xf32, #tpu.memory_space<vmem>>, vector<1x1x8x128xf32>
    %960 = vector.shape_cast %959 : vector<1x1x8x128xf32> to vector<8x128xf32>
    %961 = arith.mulf %893, %958 : vector<8x128xf32>
    %962 = arith.mulf %894, %960 : vector<8x128xf32>
    %963 = arith.subf %961, %962 : vector<8x128xf32>
    %964 = arith.mulf %893, %960 : vector<8x128xf32>
    %965 = arith.mulf %894, %958 : vector<8x128xf32>
    %966 = arith.addf %964, %965 : vector<8x128xf32>
    %967 = arith.addf %955, %963 : vector<8x128xf32>
    %968 = arith.addf %956, %966 : vector<8x128xf32>
    %969 = vector.broadcast %0 : f32 to vector<8x128xf32>
    %970 = arith.mulf %969, %967 : vector<8x128xf32>
    %971 = arith.addf %212, %970 : vector<8x128xf32>
    %972 = vector.broadcast %0 : f32 to vector<8x128xf32>
    %973 = arith.mulf %972, %968 : vector<8x128xf32>
    %974 = arith.addf %214, %973 : vector<8x128xf32>
    %c0_823 = arith.constant 0 : index
    %c2_824 = arith.constant 2 : index
    %c0_825 = arith.constant 0 : index
    %c0_826 = arith.constant 0 : index
    %975 = vector.load %arg7[%c0_823, %c2_824, %c0_825, %c0_826] : memref<1x18x8x128xf32, #tpu.memory_space<vmem>>, vector<1x1x8x128xf32>
    %976 = vector.shape_cast %975 : vector<1x1x8x128xf32> to vector<8x128xf32>
    %c0_827 = arith.constant 0 : index
    %c11_828 = arith.constant 11 : index
    %c0_829 = arith.constant 0 : index
    %c0_830 = arith.constant 0 : index
    %977 = vector.load %arg7[%c0_827, %c11_828, %c0_829, %c0_830] : memref<1x18x8x128xf32, #tpu.memory_space<vmem>>, vector<1x1x8x128xf32>
    %978 = vector.shape_cast %977 : vector<1x1x8x128xf32> to vector<8x128xf32>
    %979 = arith.mulf %801, %976 : vector<8x128xf32>
    %980 = arith.mulf %802, %978 : vector<8x128xf32>
    %981 = arith.subf %979, %980 : vector<8x128xf32>
    %982 = arith.mulf %801, %978 : vector<8x128xf32>
    %983 = arith.mulf %802, %976 : vector<8x128xf32>
    %984 = arith.addf %982, %983 : vector<8x128xf32>
    %c0_831 = arith.constant 0 : index
    %c5_832 = arith.constant 5 : index
    %c0_833 = arith.constant 0 : index
    %c0_834 = arith.constant 0 : index
    %985 = vector.load %arg7[%c0_831, %c5_832, %c0_833, %c0_834] : memref<1x18x8x128xf32, #tpu.memory_space<vmem>>, vector<1x1x8x128xf32>
    %986 = vector.shape_cast %985 : vector<1x1x8x128xf32> to vector<8x128xf32>
    %c0_835 = arith.constant 0 : index
    %c14_836 = arith.constant 14 : index
    %c0_837 = arith.constant 0 : index
    %c0_838 = arith.constant 0 : index
    %987 = vector.load %arg7[%c0_835, %c14_836, %c0_837, %c0_838] : memref<1x18x8x128xf32, #tpu.memory_space<vmem>>, vector<1x1x8x128xf32>
    %988 = vector.shape_cast %987 : vector<1x1x8x128xf32> to vector<8x128xf32>
    %989 = arith.mulf %847, %986 : vector<8x128xf32>
    %990 = arith.mulf %848, %988 : vector<8x128xf32>
    %991 = arith.subf %989, %990 : vector<8x128xf32>
    %992 = arith.mulf %847, %988 : vector<8x128xf32>
    %993 = arith.mulf %848, %986 : vector<8x128xf32>
    %994 = arith.addf %992, %993 : vector<8x128xf32>
    %995 = arith.addf %981, %991 : vector<8x128xf32>
    %996 = arith.addf %984, %994 : vector<8x128xf32>
    %c0_839 = arith.constant 0 : index
    %c8_840 = arith.constant 8 : index
    %c0_841 = arith.constant 0 : index
    %c0_842 = arith.constant 0 : index
    %997 = vector.load %arg7[%c0_839, %c8_840, %c0_841, %c0_842] : memref<1x18x8x128xf32, #tpu.memory_space<vmem>>, vector<1x1x8x128xf32>
    %998 = vector.shape_cast %997 : vector<1x1x8x128xf32> to vector<8x128xf32>
    %c0_843 = arith.constant 0 : index
    %c17_844 = arith.constant 17 : index
    %c0_845 = arith.constant 0 : index
    %c0_846 = arith.constant 0 : index
    %999 = vector.load %arg7[%c0_843, %c17_844, %c0_845, %c0_846] : memref<1x18x8x128xf32, #tpu.memory_space<vmem>>, vector<1x1x8x128xf32>
    %1000 = vector.shape_cast %999 : vector<1x1x8x128xf32> to vector<8x128xf32>
    %1001 = arith.mulf %893, %998 : vector<8x128xf32>
    %1002 = arith.mulf %894, %1000 : vector<8x128xf32>
    %1003 = arith.subf %1001, %1002 : vector<8x128xf32>
    %1004 = arith.mulf %893, %1000 : vector<8x128xf32>
    %1005 = arith.mulf %894, %998 : vector<8x128xf32>
    %1006 = arith.addf %1004, %1005 : vector<8x128xf32>
    %1007 = arith.addf %995, %1003 : vector<8x128xf32>
    %1008 = arith.addf %996, %1006 : vector<8x128xf32>
    %1009 = vector.broadcast %0 : f32 to vector<8x128xf32>
    %1010 = arith.mulf %1009, %1007 : vector<8x128xf32>
    %1011 = arith.addf %250, %1010 : vector<8x128xf32>
    %1012 = vector.broadcast %0 : f32 to vector<8x128xf32>
    %1013 = arith.mulf %1012, %1008 : vector<8x128xf32>
    %1014 = arith.addf %252, %1013 : vector<8x128xf32>
    %c0_847 = arith.constant 0 : index
    %c1_848 = arith.constant 1 : index
    %c0_849 = arith.constant 0 : index
    %c0_850 = arith.constant 0 : index
    %1015 = vector.load %arg5[%c0_847, %c1_848, %c0_849, %c0_850] : memref<1x18x8x128xf32, #tpu.memory_space<vmem>>, vector<1x1x8x128xf32>
    %1016 = vector.shape_cast %1015 : vector<1x1x8x128xf32> to vector<8x128xf32>
    %c0_851 = arith.constant 0 : index
    %c10_852 = arith.constant 10 : index
    %c0_853 = arith.constant 0 : index
    %c0_854 = arith.constant 0 : index
    %1017 = vector.load %arg5[%c0_851, %c10_852, %c0_853, %c0_854] : memref<1x18x8x128xf32, #tpu.memory_space<vmem>>, vector<1x1x8x128xf32>
    %1018 = vector.shape_cast %1017 : vector<1x1x8x128xf32> to vector<8x128xf32>
    %c0_855 = arith.constant 0 : index
    %c0_856 = arith.constant 0 : index
    %c0_857 = arith.constant 0 : index
    %c0_858 = arith.constant 0 : index
    %1019 = vector.load %arg6[%c0_855, %c0_856, %c0_857, %c0_858] : memref<1x18x8x128xf32, #tpu.memory_space<vmem>>, vector<1x1x8x128xf32>
    %1020 = vector.shape_cast %1019 : vector<1x1x8x128xf32> to vector<8x128xf32>
    %c0_859 = arith.constant 0 : index
    %c9_860 = arith.constant 9 : index
    %c0_861 = arith.constant 0 : index
    %c0_862 = arith.constant 0 : index
    %1021 = vector.load %arg6[%c0_859, %c9_860, %c0_861, %c0_862] : memref<1x18x8x128xf32, #tpu.memory_space<vmem>>, vector<1x1x8x128xf32>
    %1022 = vector.shape_cast %1021 : vector<1x1x8x128xf32> to vector<8x128xf32>
    %1023 = arith.mulf %1016, %1020 : vector<8x128xf32>
    %1024 = arith.mulf %1018, %1022 : vector<8x128xf32>
    %1025 = arith.addf %1023, %1024 : vector<8x128xf32>
    %1026 = arith.mulf %1016, %1022 : vector<8x128xf32>
    %1027 = arith.mulf %1018, %1020 : vector<8x128xf32>
    %1028 = arith.subf %1026, %1027 : vector<8x128xf32>
    %c0_863 = arith.constant 0 : index
    %c4_864 = arith.constant 4 : index
    %c0_865 = arith.constant 0 : index
    %c0_866 = arith.constant 0 : index
    %1029 = vector.load %arg5[%c0_863, %c4_864, %c0_865, %c0_866] : memref<1x18x8x128xf32, #tpu.memory_space<vmem>>, vector<1x1x8x128xf32>
    %1030 = vector.shape_cast %1029 : vector<1x1x8x128xf32> to vector<8x128xf32>
    %c0_867 = arith.constant 0 : index
    %c13_868 = arith.constant 13 : index
    %c0_869 = arith.constant 0 : index
    %c0_870 = arith.constant 0 : index
    %1031 = vector.load %arg5[%c0_867, %c13_868, %c0_869, %c0_870] : memref<1x18x8x128xf32, #tpu.memory_space<vmem>>, vector<1x1x8x128xf32>
    %1032 = vector.shape_cast %1031 : vector<1x1x8x128xf32> to vector<8x128xf32>
    %c0_871 = arith.constant 0 : index
    %c3_872 = arith.constant 3 : index
    %c0_873 = arith.constant 0 : index
    %c0_874 = arith.constant 0 : index
    %1033 = vector.load %arg6[%c0_871, %c3_872, %c0_873, %c0_874] : memref<1x18x8x128xf32, #tpu.memory_space<vmem>>, vector<1x1x8x128xf32>
    %1034 = vector.shape_cast %1033 : vector<1x1x8x128xf32> to vector<8x128xf32>
    %c0_875 = arith.constant 0 : index
    %c12_876 = arith.constant 12 : index
    %c0_877 = arith.constant 0 : index
    %c0_878 = arith.constant 0 : index
    %1035 = vector.load %arg6[%c0_875, %c12_876, %c0_877, %c0_878] : memref<1x18x8x128xf32, #tpu.memory_space<vmem>>, vector<1x1x8x128xf32>
    %1036 = vector.shape_cast %1035 : vector<1x1x8x128xf32> to vector<8x128xf32>
    %1037 = arith.mulf %1030, %1034 : vector<8x128xf32>
    %1038 = arith.mulf %1032, %1036 : vector<8x128xf32>
    %1039 = arith.addf %1037, %1038 : vector<8x128xf32>
    %1040 = arith.mulf %1030, %1036 : vector<8x128xf32>
    %1041 = arith.mulf %1032, %1034 : vector<8x128xf32>
    %1042 = arith.subf %1040, %1041 : vector<8x128xf32>
    %1043 = arith.addf %1025, %1039 : vector<8x128xf32>
    %1044 = arith.addf %1028, %1042 : vector<8x128xf32>
    %c0_879 = arith.constant 0 : index
    %c7_880 = arith.constant 7 : index
    %c0_881 = arith.constant 0 : index
    %c0_882 = arith.constant 0 : index
    %1045 = vector.load %arg5[%c0_879, %c7_880, %c0_881, %c0_882] : memref<1x18x8x128xf32, #tpu.memory_space<vmem>>, vector<1x1x8x128xf32>
    %1046 = vector.shape_cast %1045 : vector<1x1x8x128xf32> to vector<8x128xf32>
    %c0_883 = arith.constant 0 : index
    %c16_884 = arith.constant 16 : index
    %c0_885 = arith.constant 0 : index
    %c0_886 = arith.constant 0 : index
    %1047 = vector.load %arg5[%c0_883, %c16_884, %c0_885, %c0_886] : memref<1x18x8x128xf32, #tpu.memory_space<vmem>>, vector<1x1x8x128xf32>
    %1048 = vector.shape_cast %1047 : vector<1x1x8x128xf32> to vector<8x128xf32>
    %c0_887 = arith.constant 0 : index
    %c6_888 = arith.constant 6 : index
    %c0_889 = arith.constant 0 : index
    %c0_890 = arith.constant 0 : index
    %1049 = vector.load %arg6[%c0_887, %c6_888, %c0_889, %c0_890] : memref<1x18x8x128xf32, #tpu.memory_space<vmem>>, vector<1x1x8x128xf32>
    %1050 = vector.shape_cast %1049 : vector<1x1x8x128xf32> to vector<8x128xf32>
    %c0_891 = arith.constant 0 : index
    %c15_892 = arith.constant 15 : index
    %c0_893 = arith.constant 0 : index
    %c0_894 = arith.constant 0 : index
    %1051 = vector.load %arg6[%c0_891, %c15_892, %c0_893, %c0_894] : memref<1x18x8x128xf32, #tpu.memory_space<vmem>>, vector<1x1x8x128xf32>
    %1052 = vector.shape_cast %1051 : vector<1x1x8x128xf32> to vector<8x128xf32>
    %1053 = arith.mulf %1046, %1050 : vector<8x128xf32>
    %1054 = arith.mulf %1048, %1052 : vector<8x128xf32>
    %1055 = arith.addf %1053, %1054 : vector<8x128xf32>
    %1056 = arith.mulf %1046, %1052 : vector<8x128xf32>
    %1057 = arith.mulf %1048, %1050 : vector<8x128xf32>
    %1058 = arith.subf %1056, %1057 : vector<8x128xf32>
    %1059 = arith.addf %1043, %1055 : vector<8x128xf32>
    %1060 = arith.addf %1044, %1058 : vector<8x128xf32>
    %c0_895 = arith.constant 0 : index
    %c1_896 = arith.constant 1 : index
    %c0_897 = arith.constant 0 : index
    %c0_898 = arith.constant 0 : index
    %1061 = vector.load %arg5[%c0_895, %c1_896, %c0_897, %c0_898] : memref<1x18x8x128xf32, #tpu.memory_space<vmem>>, vector<1x1x8x128xf32>
    %1062 = vector.shape_cast %1061 : vector<1x1x8x128xf32> to vector<8x128xf32>
    %c0_899 = arith.constant 0 : index
    %c10_900 = arith.constant 10 : index
    %c0_901 = arith.constant 0 : index
    %c0_902 = arith.constant 0 : index
    %1063 = vector.load %arg5[%c0_899, %c10_900, %c0_901, %c0_902] : memref<1x18x8x128xf32, #tpu.memory_space<vmem>>, vector<1x1x8x128xf32>
    %1064 = vector.shape_cast %1063 : vector<1x1x8x128xf32> to vector<8x128xf32>
    %c0_903 = arith.constant 0 : index
    %c1_904 = arith.constant 1 : index
    %c0_905 = arith.constant 0 : index
    %c0_906 = arith.constant 0 : index
    %1065 = vector.load %arg6[%c0_903, %c1_904, %c0_905, %c0_906] : memref<1x18x8x128xf32, #tpu.memory_space<vmem>>, vector<1x1x8x128xf32>
    %1066 = vector.shape_cast %1065 : vector<1x1x8x128xf32> to vector<8x128xf32>
    %c0_907 = arith.constant 0 : index
    %c10_908 = arith.constant 10 : index
    %c0_909 = arith.constant 0 : index
    %c0_910 = arith.constant 0 : index
    %1067 = vector.load %arg6[%c0_907, %c10_908, %c0_909, %c0_910] : memref<1x18x8x128xf32, #tpu.memory_space<vmem>>, vector<1x1x8x128xf32>
    %1068 = vector.shape_cast %1067 : vector<1x1x8x128xf32> to vector<8x128xf32>
    %1069 = arith.mulf %1062, %1066 : vector<8x128xf32>
    %1070 = arith.mulf %1064, %1068 : vector<8x128xf32>
    %1071 = arith.addf %1069, %1070 : vector<8x128xf32>
    %1072 = arith.mulf %1062, %1068 : vector<8x128xf32>
    %1073 = arith.mulf %1064, %1066 : vector<8x128xf32>
    %1074 = arith.subf %1072, %1073 : vector<8x128xf32>
    %c0_911 = arith.constant 0 : index
    %c4_912 = arith.constant 4 : index
    %c0_913 = arith.constant 0 : index
    %c0_914 = arith.constant 0 : index
    %1075 = vector.load %arg5[%c0_911, %c4_912, %c0_913, %c0_914] : memref<1x18x8x128xf32, #tpu.memory_space<vmem>>, vector<1x1x8x128xf32>
    %1076 = vector.shape_cast %1075 : vector<1x1x8x128xf32> to vector<8x128xf32>
    %c0_915 = arith.constant 0 : index
    %c13_916 = arith.constant 13 : index
    %c0_917 = arith.constant 0 : index
    %c0_918 = arith.constant 0 : index
    %1077 = vector.load %arg5[%c0_915, %c13_916, %c0_917, %c0_918] : memref<1x18x8x128xf32, #tpu.memory_space<vmem>>, vector<1x1x8x128xf32>
    %1078 = vector.shape_cast %1077 : vector<1x1x8x128xf32> to vector<8x128xf32>
    %c0_919 = arith.constant 0 : index
    %c4_920 = arith.constant 4 : index
    %c0_921 = arith.constant 0 : index
    %c0_922 = arith.constant 0 : index
    %1079 = vector.load %arg6[%c0_919, %c4_920, %c0_921, %c0_922] : memref<1x18x8x128xf32, #tpu.memory_space<vmem>>, vector<1x1x8x128xf32>
    %1080 = vector.shape_cast %1079 : vector<1x1x8x128xf32> to vector<8x128xf32>
    %c0_923 = arith.constant 0 : index
    %c13_924 = arith.constant 13 : index
    %c0_925 = arith.constant 0 : index
    %c0_926 = arith.constant 0 : index
    %1081 = vector.load %arg6[%c0_923, %c13_924, %c0_925, %c0_926] : memref<1x18x8x128xf32, #tpu.memory_space<vmem>>, vector<1x1x8x128xf32>
    %1082 = vector.shape_cast %1081 : vector<1x1x8x128xf32> to vector<8x128xf32>
    %1083 = arith.mulf %1076, %1080 : vector<8x128xf32>
    %1084 = arith.mulf %1078, %1082 : vector<8x128xf32>
    %1085 = arith.addf %1083, %1084 : vector<8x128xf32>
    %1086 = arith.mulf %1076, %1082 : vector<8x128xf32>
    %1087 = arith.mulf %1078, %1080 : vector<8x128xf32>
    %1088 = arith.subf %1086, %1087 : vector<8x128xf32>
    %1089 = arith.addf %1071, %1085 : vector<8x128xf32>
    %1090 = arith.addf %1074, %1088 : vector<8x128xf32>
    %c0_927 = arith.constant 0 : index
    %c7_928 = arith.constant 7 : index
    %c0_929 = arith.constant 0 : index
    %c0_930 = arith.constant 0 : index
    %1091 = vector.load %arg5[%c0_927, %c7_928, %c0_929, %c0_930] : memref<1x18x8x128xf32, #tpu.memory_space<vmem>>, vector<1x1x8x128xf32>
    %1092 = vector.shape_cast %1091 : vector<1x1x8x128xf32> to vector<8x128xf32>
    %c0_931 = arith.constant 0 : index
    %c16_932 = arith.constant 16 : index
    %c0_933 = arith.constant 0 : index
    %c0_934 = arith.constant 0 : index
    %1093 = vector.load %arg5[%c0_931, %c16_932, %c0_933, %c0_934] : memref<1x18x8x128xf32, #tpu.memory_space<vmem>>, vector<1x1x8x128xf32>
    %1094 = vector.shape_cast %1093 : vector<1x1x8x128xf32> to vector<8x128xf32>
    %c0_935 = arith.constant 0 : index
    %c7_936 = arith.constant 7 : index
    %c0_937 = arith.constant 0 : index
    %c0_938 = arith.constant 0 : index
    %1095 = vector.load %arg6[%c0_935, %c7_936, %c0_937, %c0_938] : memref<1x18x8x128xf32, #tpu.memory_space<vmem>>, vector<1x1x8x128xf32>
    %1096 = vector.shape_cast %1095 : vector<1x1x8x128xf32> to vector<8x128xf32>
    %c0_939 = arith.constant 0 : index
    %c16_940 = arith.constant 16 : index
    %c0_941 = arith.constant 0 : index
    %c0_942 = arith.constant 0 : index
    %1097 = vector.load %arg6[%c0_939, %c16_940, %c0_941, %c0_942] : memref<1x18x8x128xf32, #tpu.memory_space<vmem>>, vector<1x1x8x128xf32>
    %1098 = vector.shape_cast %1097 : vector<1x1x8x128xf32> to vector<8x128xf32>
    %1099 = arith.mulf %1092, %1096 : vector<8x128xf32>
    %1100 = arith.mulf %1094, %1098 : vector<8x128xf32>
    %1101 = arith.addf %1099, %1100 : vector<8x128xf32>
    %1102 = arith.mulf %1092, %1098 : vector<8x128xf32>
    %1103 = arith.mulf %1094, %1096 : vector<8x128xf32>
    %1104 = arith.subf %1102, %1103 : vector<8x128xf32>
    %1105 = arith.addf %1089, %1101 : vector<8x128xf32>
    %1106 = arith.addf %1090, %1104 : vector<8x128xf32>
    %c0_943 = arith.constant 0 : index
    %c1_944 = arith.constant 1 : index
    %c0_945 = arith.constant 0 : index
    %c0_946 = arith.constant 0 : index
    %1107 = vector.load %arg5[%c0_943, %c1_944, %c0_945, %c0_946] : memref<1x18x8x128xf32, #tpu.memory_space<vmem>>, vector<1x1x8x128xf32>
    %1108 = vector.shape_cast %1107 : vector<1x1x8x128xf32> to vector<8x128xf32>
    %c0_947 = arith.constant 0 : index
    %c10_948 = arith.constant 10 : index
    %c0_949 = arith.constant 0 : index
    %c0_950 = arith.constant 0 : index
    %1109 = vector.load %arg5[%c0_947, %c10_948, %c0_949, %c0_950] : memref<1x18x8x128xf32, #tpu.memory_space<vmem>>, vector<1x1x8x128xf32>
    %1110 = vector.shape_cast %1109 : vector<1x1x8x128xf32> to vector<8x128xf32>
    %c0_951 = arith.constant 0 : index
    %c2_952 = arith.constant 2 : index
    %c0_953 = arith.constant 0 : index
    %c0_954 = arith.constant 0 : index
    %1111 = vector.load %arg6[%c0_951, %c2_952, %c0_953, %c0_954] : memref<1x18x8x128xf32, #tpu.memory_space<vmem>>, vector<1x1x8x128xf32>
    %1112 = vector.shape_cast %1111 : vector<1x1x8x128xf32> to vector<8x128xf32>
    %c0_955 = arith.constant 0 : index
    %c11_956 = arith.constant 11 : index
    %c0_957 = arith.constant 0 : index
    %c0_958 = arith.constant 0 : index
    %1113 = vector.load %arg6[%c0_955, %c11_956, %c0_957, %c0_958] : memref<1x18x8x128xf32, #tpu.memory_space<vmem>>, vector<1x1x8x128xf32>
    %1114 = vector.shape_cast %1113 : vector<1x1x8x128xf32> to vector<8x128xf32>
    %1115 = arith.mulf %1108, %1112 : vector<8x128xf32>
    %1116 = arith.mulf %1110, %1114 : vector<8x128xf32>
    %1117 = arith.addf %1115, %1116 : vector<8x128xf32>
    %1118 = arith.mulf %1108, %1114 : vector<8x128xf32>
    %1119 = arith.mulf %1110, %1112 : vector<8x128xf32>
    %1120 = arith.subf %1118, %1119 : vector<8x128xf32>
    %c0_959 = arith.constant 0 : index
    %c4_960 = arith.constant 4 : index
    %c0_961 = arith.constant 0 : index
    %c0_962 = arith.constant 0 : index
    %1121 = vector.load %arg5[%c0_959, %c4_960, %c0_961, %c0_962] : memref<1x18x8x128xf32, #tpu.memory_space<vmem>>, vector<1x1x8x128xf32>
    %1122 = vector.shape_cast %1121 : vector<1x1x8x128xf32> to vector<8x128xf32>
    %c0_963 = arith.constant 0 : index
    %c13_964 = arith.constant 13 : index
    %c0_965 = arith.constant 0 : index
    %c0_966 = arith.constant 0 : index
    %1123 = vector.load %arg5[%c0_963, %c13_964, %c0_965, %c0_966] : memref<1x18x8x128xf32, #tpu.memory_space<vmem>>, vector<1x1x8x128xf32>
    %1124 = vector.shape_cast %1123 : vector<1x1x8x128xf32> to vector<8x128xf32>
    %c0_967 = arith.constant 0 : index
    %c5_968 = arith.constant 5 : index
    %c0_969 = arith.constant 0 : index
    %c0_970 = arith.constant 0 : index
    %1125 = vector.load %arg6[%c0_967, %c5_968, %c0_969, %c0_970] : memref<1x18x8x128xf32, #tpu.memory_space<vmem>>, vector<1x1x8x128xf32>
    %1126 = vector.shape_cast %1125 : vector<1x1x8x128xf32> to vector<8x128xf32>
    %c0_971 = arith.constant 0 : index
    %c14_972 = arith.constant 14 : index
    %c0_973 = arith.constant 0 : index
    %c0_974 = arith.constant 0 : index
    %1127 = vector.load %arg6[%c0_971, %c14_972, %c0_973, %c0_974] : memref<1x18x8x128xf32, #tpu.memory_space<vmem>>, vector<1x1x8x128xf32>
    %1128 = vector.shape_cast %1127 : vector<1x1x8x128xf32> to vector<8x128xf32>
    %1129 = arith.mulf %1122, %1126 : vector<8x128xf32>
    %1130 = arith.mulf %1124, %1128 : vector<8x128xf32>
    %1131 = arith.addf %1129, %1130 : vector<8x128xf32>
    %1132 = arith.mulf %1122, %1128 : vector<8x128xf32>
    %1133 = arith.mulf %1124, %1126 : vector<8x128xf32>
    %1134 = arith.subf %1132, %1133 : vector<8x128xf32>
    %1135 = arith.addf %1117, %1131 : vector<8x128xf32>
    %1136 = arith.addf %1120, %1134 : vector<8x128xf32>
    %c0_975 = arith.constant 0 : index
    %c7_976 = arith.constant 7 : index
    %c0_977 = arith.constant 0 : index
    %c0_978 = arith.constant 0 : index
    %1137 = vector.load %arg5[%c0_975, %c7_976, %c0_977, %c0_978] : memref<1x18x8x128xf32, #tpu.memory_space<vmem>>, vector<1x1x8x128xf32>
    %1138 = vector.shape_cast %1137 : vector<1x1x8x128xf32> to vector<8x128xf32>
    %c0_979 = arith.constant 0 : index
    %c16_980 = arith.constant 16 : index
    %c0_981 = arith.constant 0 : index
    %c0_982 = arith.constant 0 : index
    %1139 = vector.load %arg5[%c0_979, %c16_980, %c0_981, %c0_982] : memref<1x18x8x128xf32, #tpu.memory_space<vmem>>, vector<1x1x8x128xf32>
    %1140 = vector.shape_cast %1139 : vector<1x1x8x128xf32> to vector<8x128xf32>
    %c0_983 = arith.constant 0 : index
    %c8_984 = arith.constant 8 : index
    %c0_985 = arith.constant 0 : index
    %c0_986 = arith.constant 0 : index
    %1141 = vector.load %arg6[%c0_983, %c8_984, %c0_985, %c0_986] : memref<1x18x8x128xf32, #tpu.memory_space<vmem>>, vector<1x1x8x128xf32>
    %1142 = vector.shape_cast %1141 : vector<1x1x8x128xf32> to vector<8x128xf32>
    %c0_987 = arith.constant 0 : index
    %c17_988 = arith.constant 17 : index
    %c0_989 = arith.constant 0 : index
    %c0_990 = arith.constant 0 : index
    %1143 = vector.load %arg6[%c0_987, %c17_988, %c0_989, %c0_990] : memref<1x18x8x128xf32, #tpu.memory_space<vmem>>, vector<1x1x8x128xf32>
    %1144 = vector.shape_cast %1143 : vector<1x1x8x128xf32> to vector<8x128xf32>
    %1145 = arith.mulf %1138, %1142 : vector<8x128xf32>
    %1146 = arith.mulf %1140, %1144 : vector<8x128xf32>
    %1147 = arith.addf %1145, %1146 : vector<8x128xf32>
    %1148 = arith.mulf %1138, %1144 : vector<8x128xf32>
    %1149 = arith.mulf %1140, %1142 : vector<8x128xf32>
    %1150 = arith.subf %1148, %1149 : vector<8x128xf32>
    %1151 = arith.addf %1135, %1147 : vector<8x128xf32>
    %1152 = arith.addf %1136, %1150 : vector<8x128xf32>
    %c0_991 = arith.constant 0 : index
    %c0_992 = arith.constant 0 : index
    %c0_993 = arith.constant 0 : index
    %c0_994 = arith.constant 0 : index
    %1153 = vector.load %arg7[%c0_991, %c0_992, %c0_993, %c0_994] : memref<1x18x8x128xf32, #tpu.memory_space<vmem>>, vector<1x1x8x128xf32>
    %1154 = vector.shape_cast %1153 : vector<1x1x8x128xf32> to vector<8x128xf32>
    %c0_995 = arith.constant 0 : index
    %c9_996 = arith.constant 9 : index
    %c0_997 = arith.constant 0 : index
    %c0_998 = arith.constant 0 : index
    %1155 = vector.load %arg7[%c0_995, %c9_996, %c0_997, %c0_998] : memref<1x18x8x128xf32, #tpu.memory_space<vmem>>, vector<1x1x8x128xf32>
    %1156 = vector.shape_cast %1155 : vector<1x1x8x128xf32> to vector<8x128xf32>
    %1157 = arith.mulf %1059, %1154 : vector<8x128xf32>
    %1158 = arith.mulf %1060, %1156 : vector<8x128xf32>
    %1159 = arith.subf %1157, %1158 : vector<8x128xf32>
    %1160 = arith.mulf %1059, %1156 : vector<8x128xf32>
    %1161 = arith.mulf %1060, %1154 : vector<8x128xf32>
    %1162 = arith.addf %1160, %1161 : vector<8x128xf32>
    %c0_999 = arith.constant 0 : index
    %c3_1000 = arith.constant 3 : index
    %c0_1001 = arith.constant 0 : index
    %c0_1002 = arith.constant 0 : index
    %1163 = vector.load %arg7[%c0_999, %c3_1000, %c0_1001, %c0_1002] : memref<1x18x8x128xf32, #tpu.memory_space<vmem>>, vector<1x1x8x128xf32>
    %1164 = vector.shape_cast %1163 : vector<1x1x8x128xf32> to vector<8x128xf32>
    %c0_1003 = arith.constant 0 : index
    %c12_1004 = arith.constant 12 : index
    %c0_1005 = arith.constant 0 : index
    %c0_1006 = arith.constant 0 : index
    %1165 = vector.load %arg7[%c0_1003, %c12_1004, %c0_1005, %c0_1006] : memref<1x18x8x128xf32, #tpu.memory_space<vmem>>, vector<1x1x8x128xf32>
    %1166 = vector.shape_cast %1165 : vector<1x1x8x128xf32> to vector<8x128xf32>
    %1167 = arith.mulf %1105, %1164 : vector<8x128xf32>
    %1168 = arith.mulf %1106, %1166 : vector<8x128xf32>
    %1169 = arith.subf %1167, %1168 : vector<8x128xf32>
    %1170 = arith.mulf %1105, %1166 : vector<8x128xf32>
    %1171 = arith.mulf %1106, %1164 : vector<8x128xf32>
    %1172 = arith.addf %1170, %1171 : vector<8x128xf32>
    %1173 = arith.addf %1159, %1169 : vector<8x128xf32>
    %1174 = arith.addf %1162, %1172 : vector<8x128xf32>
    %c0_1007 = arith.constant 0 : index
    %c6_1008 = arith.constant 6 : index
    %c0_1009 = arith.constant 0 : index
    %c0_1010 = arith.constant 0 : index
    %1175 = vector.load %arg7[%c0_1007, %c6_1008, %c0_1009, %c0_1010] : memref<1x18x8x128xf32, #tpu.memory_space<vmem>>, vector<1x1x8x128xf32>
    %1176 = vector.shape_cast %1175 : vector<1x1x8x128xf32> to vector<8x128xf32>
    %c0_1011 = arith.constant 0 : index
    %c15_1012 = arith.constant 15 : index
    %c0_1013 = arith.constant 0 : index
    %c0_1014 = arith.constant 0 : index
    %1177 = vector.load %arg7[%c0_1011, %c15_1012, %c0_1013, %c0_1014] : memref<1x18x8x128xf32, #tpu.memory_space<vmem>>, vector<1x1x8x128xf32>
    %1178 = vector.shape_cast %1177 : vector<1x1x8x128xf32> to vector<8x128xf32>
    %1179 = arith.mulf %1151, %1176 : vector<8x128xf32>
    %1180 = arith.mulf %1152, %1178 : vector<8x128xf32>
    %1181 = arith.subf %1179, %1180 : vector<8x128xf32>
    %1182 = arith.mulf %1151, %1178 : vector<8x128xf32>
    %1183 = arith.mulf %1152, %1176 : vector<8x128xf32>
    %1184 = arith.addf %1182, %1183 : vector<8x128xf32>
    %1185 = arith.addf %1173, %1181 : vector<8x128xf32>
    %1186 = arith.addf %1174, %1184 : vector<8x128xf32>
    %1187 = vector.broadcast %0 : f32 to vector<8x128xf32>
    %1188 = arith.mulf %1187, %1185 : vector<8x128xf32>
    %1189 = arith.addf %426, %1188 : vector<8x128xf32>
    %1190 = vector.broadcast %0 : f32 to vector<8x128xf32>
    %1191 = arith.mulf %1190, %1186 : vector<8x128xf32>
    %1192 = arith.addf %428, %1191 : vector<8x128xf32>
    %c0_1015 = arith.constant 0 : index
    %c1_1016 = arith.constant 1 : index
    %c0_1017 = arith.constant 0 : index
    %c0_1018 = arith.constant 0 : index
    %1193 = vector.load %arg7[%c0_1015, %c1_1016, %c0_1017, %c0_1018] : memref<1x18x8x128xf32, #tpu.memory_space<vmem>>, vector<1x1x8x128xf32>
    %1194 = vector.shape_cast %1193 : vector<1x1x8x128xf32> to vector<8x128xf32>
    %c0_1019 = arith.constant 0 : index
    %c10_1020 = arith.constant 10 : index
    %c0_1021 = arith.constant 0 : index
    %c0_1022 = arith.constant 0 : index
    %1195 = vector.load %arg7[%c0_1019, %c10_1020, %c0_1021, %c0_1022] : memref<1x18x8x128xf32, #tpu.memory_space<vmem>>, vector<1x1x8x128xf32>
    %1196 = vector.shape_cast %1195 : vector<1x1x8x128xf32> to vector<8x128xf32>
    %1197 = arith.mulf %1059, %1194 : vector<8x128xf32>
    %1198 = arith.mulf %1060, %1196 : vector<8x128xf32>
    %1199 = arith.subf %1197, %1198 : vector<8x128xf32>
    %1200 = arith.mulf %1059, %1196 : vector<8x128xf32>
    %1201 = arith.mulf %1060, %1194 : vector<8x128xf32>
    %1202 = arith.addf %1200, %1201 : vector<8x128xf32>
    %c0_1023 = arith.constant 0 : index
    %c4_1024 = arith.constant 4 : index
    %c0_1025 = arith.constant 0 : index
    %c0_1026 = arith.constant 0 : index
    %1203 = vector.load %arg7[%c0_1023, %c4_1024, %c0_1025, %c0_1026] : memref<1x18x8x128xf32, #tpu.memory_space<vmem>>, vector<1x1x8x128xf32>
    %1204 = vector.shape_cast %1203 : vector<1x1x8x128xf32> to vector<8x128xf32>
    %c0_1027 = arith.constant 0 : index
    %c13_1028 = arith.constant 13 : index
    %c0_1029 = arith.constant 0 : index
    %c0_1030 = arith.constant 0 : index
    %1205 = vector.load %arg7[%c0_1027, %c13_1028, %c0_1029, %c0_1030] : memref<1x18x8x128xf32, #tpu.memory_space<vmem>>, vector<1x1x8x128xf32>
    %1206 = vector.shape_cast %1205 : vector<1x1x8x128xf32> to vector<8x128xf32>
    %1207 = arith.mulf %1105, %1204 : vector<8x128xf32>
    %1208 = arith.mulf %1106, %1206 : vector<8x128xf32>
    %1209 = arith.subf %1207, %1208 : vector<8x128xf32>
    %1210 = arith.mulf %1105, %1206 : vector<8x128xf32>
    %1211 = arith.mulf %1106, %1204 : vector<8x128xf32>
    %1212 = arith.addf %1210, %1211 : vector<8x128xf32>
    %1213 = arith.addf %1199, %1209 : vector<8x128xf32>
    %1214 = arith.addf %1202, %1212 : vector<8x128xf32>
    %c0_1031 = arith.constant 0 : index
    %c7_1032 = arith.constant 7 : index
    %c0_1033 = arith.constant 0 : index
    %c0_1034 = arith.constant 0 : index
    %1215 = vector.load %arg7[%c0_1031, %c7_1032, %c0_1033, %c0_1034] : memref<1x18x8x128xf32, #tpu.memory_space<vmem>>, vector<1x1x8x128xf32>
    %1216 = vector.shape_cast %1215 : vector<1x1x8x128xf32> to vector<8x128xf32>
    %c0_1035 = arith.constant 0 : index
    %c16_1036 = arith.constant 16 : index
    %c0_1037 = arith.constant 0 : index
    %c0_1038 = arith.constant 0 : index
    %1217 = vector.load %arg7[%c0_1035, %c16_1036, %c0_1037, %c0_1038] : memref<1x18x8x128xf32, #tpu.memory_space<vmem>>, vector<1x1x8x128xf32>
    %1218 = vector.shape_cast %1217 : vector<1x1x8x128xf32> to vector<8x128xf32>
    %1219 = arith.mulf %1151, %1216 : vector<8x128xf32>
    %1220 = arith.mulf %1152, %1218 : vector<8x128xf32>
    %1221 = arith.subf %1219, %1220 : vector<8x128xf32>
    %1222 = arith.mulf %1151, %1218 : vector<8x128xf32>
    %1223 = arith.mulf %1152, %1216 : vector<8x128xf32>
    %1224 = arith.addf %1222, %1223 : vector<8x128xf32>
    %1225 = arith.addf %1213, %1221 : vector<8x128xf32>
    %1226 = arith.addf %1214, %1224 : vector<8x128xf32>
    %1227 = vector.broadcast %0 : f32 to vector<8x128xf32>
    %1228 = arith.mulf %1227, %1225 : vector<8x128xf32>
    %1229 = arith.addf %464, %1228 : vector<8x128xf32>
    %1230 = vector.broadcast %0 : f32 to vector<8x128xf32>
    %1231 = arith.mulf %1230, %1226 : vector<8x128xf32>
    %1232 = arith.addf %466, %1231 : vector<8x128xf32>
    %c0_1039 = arith.constant 0 : index
    %c2_1040 = arith.constant 2 : index
    %c0_1041 = arith.constant 0 : index
    %c0_1042 = arith.constant 0 : index
    %1233 = vector.load %arg7[%c0_1039, %c2_1040, %c0_1041, %c0_1042] : memref<1x18x8x128xf32, #tpu.memory_space<vmem>>, vector<1x1x8x128xf32>
    %1234 = vector.shape_cast %1233 : vector<1x1x8x128xf32> to vector<8x128xf32>
    %c0_1043 = arith.constant 0 : index
    %c11_1044 = arith.constant 11 : index
    %c0_1045 = arith.constant 0 : index
    %c0_1046 = arith.constant 0 : index
    %1235 = vector.load %arg7[%c0_1043, %c11_1044, %c0_1045, %c0_1046] : memref<1x18x8x128xf32, #tpu.memory_space<vmem>>, vector<1x1x8x128xf32>
    %1236 = vector.shape_cast %1235 : vector<1x1x8x128xf32> to vector<8x128xf32>
    %1237 = arith.mulf %1059, %1234 : vector<8x128xf32>
    %1238 = arith.mulf %1060, %1236 : vector<8x128xf32>
    %1239 = arith.subf %1237, %1238 : vector<8x128xf32>
    %1240 = arith.mulf %1059, %1236 : vector<8x128xf32>
    %1241 = arith.mulf %1060, %1234 : vector<8x128xf32>
    %1242 = arith.addf %1240, %1241 : vector<8x128xf32>
    %c0_1047 = arith.constant 0 : index
    %c5_1048 = arith.constant 5 : index
    %c0_1049 = arith.constant 0 : index
    %c0_1050 = arith.constant 0 : index
    %1243 = vector.load %arg7[%c0_1047, %c5_1048, %c0_1049, %c0_1050] : memref<1x18x8x128xf32, #tpu.memory_space<vmem>>, vector<1x1x8x128xf32>
    %1244 = vector.shape_cast %1243 : vector<1x1x8x128xf32> to vector<8x128xf32>
    %c0_1051 = arith.constant 0 : index
    %c14_1052 = arith.constant 14 : index
    %c0_1053 = arith.constant 0 : index
    %c0_1054 = arith.constant 0 : index
    %1245 = vector.load %arg7[%c0_1051, %c14_1052, %c0_1053, %c0_1054] : memref<1x18x8x128xf32, #tpu.memory_space<vmem>>, vector<1x1x8x128xf32>
    %1246 = vector.shape_cast %1245 : vector<1x1x8x128xf32> to vector<8x128xf32>
    %1247 = arith.mulf %1105, %1244 : vector<8x128xf32>
    %1248 = arith.mulf %1106, %1246 : vector<8x128xf32>
    %1249 = arith.subf %1247, %1248 : vector<8x128xf32>
    %1250 = arith.mulf %1105, %1246 : vector<8x128xf32>
    %1251 = arith.mulf %1106, %1244 : vector<8x128xf32>
    %1252 = arith.addf %1250, %1251 : vector<8x128xf32>
    %1253 = arith.addf %1239, %1249 : vector<8x128xf32>
    %1254 = arith.addf %1242, %1252 : vector<8x128xf32>
    %c0_1055 = arith.constant 0 : index
    %c8_1056 = arith.constant 8 : index
    %c0_1057 = arith.constant 0 : index
    %c0_1058 = arith.constant 0 : index
    %1255 = vector.load %arg7[%c0_1055, %c8_1056, %c0_1057, %c0_1058] : memref<1x18x8x128xf32, #tpu.memory_space<vmem>>, vector<1x1x8x128xf32>
    %1256 = vector.shape_cast %1255 : vector<1x1x8x128xf32> to vector<8x128xf32>
    %c0_1059 = arith.constant 0 : index
    %c17_1060 = arith.constant 17 : index
    %c0_1061 = arith.constant 0 : index
    %c0_1062 = arith.constant 0 : index
    %1257 = vector.load %arg7[%c0_1059, %c17_1060, %c0_1061, %c0_1062] : memref<1x18x8x128xf32, #tpu.memory_space<vmem>>, vector<1x1x8x128xf32>
    %1258 = vector.shape_cast %1257 : vector<1x1x8x128xf32> to vector<8x128xf32>
    %1259 = arith.mulf %1151, %1256 : vector<8x128xf32>
    %1260 = arith.mulf %1152, %1258 : vector<8x128xf32>
    %1261 = arith.subf %1259, %1260 : vector<8x128xf32>
    %1262 = arith.mulf %1151, %1258 : vector<8x128xf32>
    %1263 = arith.mulf %1152, %1256 : vector<8x128xf32>
    %1264 = arith.addf %1262, %1263 : vector<8x128xf32>
    %1265 = arith.addf %1253, %1261 : vector<8x128xf32>
    %1266 = arith.addf %1254, %1264 : vector<8x128xf32>
    %1267 = vector.broadcast %0 : f32 to vector<8x128xf32>
    %1268 = arith.mulf %1267, %1265 : vector<8x128xf32>
    %1269 = arith.addf %502, %1268 : vector<8x128xf32>
    %1270 = vector.broadcast %0 : f32 to vector<8x128xf32>
    %1271 = arith.mulf %1270, %1266 : vector<8x128xf32>
    %1272 = arith.addf %504, %1271 : vector<8x128xf32>
    %c0_1063 = arith.constant 0 : index
    %c2_1064 = arith.constant 2 : index
    %c0_1065 = arith.constant 0 : index
    %c0_1066 = arith.constant 0 : index
    %1273 = vector.load %arg5[%c0_1063, %c2_1064, %c0_1065, %c0_1066] : memref<1x18x8x128xf32, #tpu.memory_space<vmem>>, vector<1x1x8x128xf32>
    %1274 = vector.shape_cast %1273 : vector<1x1x8x128xf32> to vector<8x128xf32>
    %c0_1067 = arith.constant 0 : index
    %c11_1068 = arith.constant 11 : index
    %c0_1069 = arith.constant 0 : index
    %c0_1070 = arith.constant 0 : index
    %1275 = vector.load %arg5[%c0_1067, %c11_1068, %c0_1069, %c0_1070] : memref<1x18x8x128xf32, #tpu.memory_space<vmem>>, vector<1x1x8x128xf32>
    %1276 = vector.shape_cast %1275 : vector<1x1x8x128xf32> to vector<8x128xf32>
    %c0_1071 = arith.constant 0 : index
    %c0_1072 = arith.constant 0 : index
    %c0_1073 = arith.constant 0 : index
    %c0_1074 = arith.constant 0 : index
    %1277 = vector.load %arg6[%c0_1071, %c0_1072, %c0_1073, %c0_1074] : memref<1x18x8x128xf32, #tpu.memory_space<vmem>>, vector<1x1x8x128xf32>
    %1278 = vector.shape_cast %1277 : vector<1x1x8x128xf32> to vector<8x128xf32>
    %c0_1075 = arith.constant 0 : index
    %c9_1076 = arith.constant 9 : index
    %c0_1077 = arith.constant 0 : index
    %c0_1078 = arith.constant 0 : index
    %1279 = vector.load %arg6[%c0_1075, %c9_1076, %c0_1077, %c0_1078] : memref<1x18x8x128xf32, #tpu.memory_space<vmem>>, vector<1x1x8x128xf32>
    %1280 = vector.shape_cast %1279 : vector<1x1x8x128xf32> to vector<8x128xf32>
    %1281 = arith.mulf %1274, %1278 : vector<8x128xf32>
    %1282 = arith.mulf %1276, %1280 : vector<8x128xf32>
    %1283 = arith.addf %1281, %1282 : vector<8x128xf32>
    %1284 = arith.mulf %1274, %1280 : vector<8x128xf32>
    %1285 = arith.mulf %1276, %1278 : vector<8x128xf32>
    %1286 = arith.subf %1284, %1285 : vector<8x128xf32>
    %c0_1079 = arith.constant 0 : index
    %c5_1080 = arith.constant 5 : index
    %c0_1081 = arith.constant 0 : index
    %c0_1082 = arith.constant 0 : index
    %1287 = vector.load %arg5[%c0_1079, %c5_1080, %c0_1081, %c0_1082] : memref<1x18x8x128xf32, #tpu.memory_space<vmem>>, vector<1x1x8x128xf32>
    %1288 = vector.shape_cast %1287 : vector<1x1x8x128xf32> to vector<8x128xf32>
    %c0_1083 = arith.constant 0 : index
    %c14_1084 = arith.constant 14 : index
    %c0_1085 = arith.constant 0 : index
    %c0_1086 = arith.constant 0 : index
    %1289 = vector.load %arg5[%c0_1083, %c14_1084, %c0_1085, %c0_1086] : memref<1x18x8x128xf32, #tpu.memory_space<vmem>>, vector<1x1x8x128xf32>
    %1290 = vector.shape_cast %1289 : vector<1x1x8x128xf32> to vector<8x128xf32>
    %c0_1087 = arith.constant 0 : index
    %c3_1088 = arith.constant 3 : index
    %c0_1089 = arith.constant 0 : index
    %c0_1090 = arith.constant 0 : index
    %1291 = vector.load %arg6[%c0_1087, %c3_1088, %c0_1089, %c0_1090] : memref<1x18x8x128xf32, #tpu.memory_space<vmem>>, vector<1x1x8x128xf32>
    %1292 = vector.shape_cast %1291 : vector<1x1x8x128xf32> to vector<8x128xf32>
    %c0_1091 = arith.constant 0 : index
    %c12_1092 = arith.constant 12 : index
    %c0_1093 = arith.constant 0 : index
    %c0_1094 = arith.constant 0 : index
    %1293 = vector.load %arg6[%c0_1091, %c12_1092, %c0_1093, %c0_1094] : memref<1x18x8x128xf32, #tpu.memory_space<vmem>>, vector<1x1x8x128xf32>
    %1294 = vector.shape_cast %1293 : vector<1x1x8x128xf32> to vector<8x128xf32>
    %1295 = arith.mulf %1288, %1292 : vector<8x128xf32>
    %1296 = arith.mulf %1290, %1294 : vector<8x128xf32>
    %1297 = arith.addf %1295, %1296 : vector<8x128xf32>
    %1298 = arith.mulf %1288, %1294 : vector<8x128xf32>
    %1299 = arith.mulf %1290, %1292 : vector<8x128xf32>
    %1300 = arith.subf %1298, %1299 : vector<8x128xf32>
    %1301 = arith.addf %1283, %1297 : vector<8x128xf32>
    %1302 = arith.addf %1286, %1300 : vector<8x128xf32>
    %c0_1095 = arith.constant 0 : index
    %c8_1096 = arith.constant 8 : index
    %c0_1097 = arith.constant 0 : index
    %c0_1098 = arith.constant 0 : index
    %1303 = vector.load %arg5[%c0_1095, %c8_1096, %c0_1097, %c0_1098] : memref<1x18x8x128xf32, #tpu.memory_space<vmem>>, vector<1x1x8x128xf32>
    %1304 = vector.shape_cast %1303 : vector<1x1x8x128xf32> to vector<8x128xf32>
    %c0_1099 = arith.constant 0 : index
    %c17_1100 = arith.constant 17 : index
    %c0_1101 = arith.constant 0 : index
    %c0_1102 = arith.constant 0 : index
    %1305 = vector.load %arg5[%c0_1099, %c17_1100, %c0_1101, %c0_1102] : memref<1x18x8x128xf32, #tpu.memory_space<vmem>>, vector<1x1x8x128xf32>
    %1306 = vector.shape_cast %1305 : vector<1x1x8x128xf32> to vector<8x128xf32>
    %c0_1103 = arith.constant 0 : index
    %c6_1104 = arith.constant 6 : index
    %c0_1105 = arith.constant 0 : index
    %c0_1106 = arith.constant 0 : index
    %1307 = vector.load %arg6[%c0_1103, %c6_1104, %c0_1105, %c0_1106] : memref<1x18x8x128xf32, #tpu.memory_space<vmem>>, vector<1x1x8x128xf32>
    %1308 = vector.shape_cast %1307 : vector<1x1x8x128xf32> to vector<8x128xf32>
    %c0_1107 = arith.constant 0 : index
    %c15_1108 = arith.constant 15 : index
    %c0_1109 = arith.constant 0 : index
    %c0_1110 = arith.constant 0 : index
    %1309 = vector.load %arg6[%c0_1107, %c15_1108, %c0_1109, %c0_1110] : memref<1x18x8x128xf32, #tpu.memory_space<vmem>>, vector<1x1x8x128xf32>
    %1310 = vector.shape_cast %1309 : vector<1x1x8x128xf32> to vector<8x128xf32>
    %1311 = arith.mulf %1304, %1308 : vector<8x128xf32>
    %1312 = arith.mulf %1306, %1310 : vector<8x128xf32>
    %1313 = arith.addf %1311, %1312 : vector<8x128xf32>
    %1314 = arith.mulf %1304, %1310 : vector<8x128xf32>
    %1315 = arith.mulf %1306, %1308 : vector<8x128xf32>
    %1316 = arith.subf %1314, %1315 : vector<8x128xf32>
    %1317 = arith.addf %1301, %1313 : vector<8x128xf32>
    %1318 = arith.addf %1302, %1316 : vector<8x128xf32>
    %c0_1111 = arith.constant 0 : index
    %c2_1112 = arith.constant 2 : index
    %c0_1113 = arith.constant 0 : index
    %c0_1114 = arith.constant 0 : index
    %1319 = vector.load %arg5[%c0_1111, %c2_1112, %c0_1113, %c0_1114] : memref<1x18x8x128xf32, #tpu.memory_space<vmem>>, vector<1x1x8x128xf32>
    %1320 = vector.shape_cast %1319 : vector<1x1x8x128xf32> to vector<8x128xf32>
    %c0_1115 = arith.constant 0 : index
    %c11_1116 = arith.constant 11 : index
    %c0_1117 = arith.constant 0 : index
    %c0_1118 = arith.constant 0 : index
    %1321 = vector.load %arg5[%c0_1115, %c11_1116, %c0_1117, %c0_1118] : memref<1x18x8x128xf32, #tpu.memory_space<vmem>>, vector<1x1x8x128xf32>
    %1322 = vector.shape_cast %1321 : vector<1x1x8x128xf32> to vector<8x128xf32>
    %c0_1119 = arith.constant 0 : index
    %c1_1120 = arith.constant 1 : index
    %c0_1121 = arith.constant 0 : index
    %c0_1122 = arith.constant 0 : index
    %1323 = vector.load %arg6[%c0_1119, %c1_1120, %c0_1121, %c0_1122] : memref<1x18x8x128xf32, #tpu.memory_space<vmem>>, vector<1x1x8x128xf32>
    %1324 = vector.shape_cast %1323 : vector<1x1x8x128xf32> to vector<8x128xf32>
    %c0_1123 = arith.constant 0 : index
    %c10_1124 = arith.constant 10 : index
    %c0_1125 = arith.constant 0 : index
    %c0_1126 = arith.constant 0 : index
    %1325 = vector.load %arg6[%c0_1123, %c10_1124, %c0_1125, %c0_1126] : memref<1x18x8x128xf32, #tpu.memory_space<vmem>>, vector<1x1x8x128xf32>
    %1326 = vector.shape_cast %1325 : vector<1x1x8x128xf32> to vector<8x128xf32>
    %1327 = arith.mulf %1320, %1324 : vector<8x128xf32>
    %1328 = arith.mulf %1322, %1326 : vector<8x128xf32>
    %1329 = arith.addf %1327, %1328 : vector<8x128xf32>
    %1330 = arith.mulf %1320, %1326 : vector<8x128xf32>
    %1331 = arith.mulf %1322, %1324 : vector<8x128xf32>
    %1332 = arith.subf %1330, %1331 : vector<8x128xf32>
    %c0_1127 = arith.constant 0 : index
    %c5_1128 = arith.constant 5 : index
    %c0_1129 = arith.constant 0 : index
    %c0_1130 = arith.constant 0 : index
    %1333 = vector.load %arg5[%c0_1127, %c5_1128, %c0_1129, %c0_1130] : memref<1x18x8x128xf32, #tpu.memory_space<vmem>>, vector<1x1x8x128xf32>
    %1334 = vector.shape_cast %1333 : vector<1x1x8x128xf32> to vector<8x128xf32>
    %c0_1131 = arith.constant 0 : index
    %c14_1132 = arith.constant 14 : index
    %c0_1133 = arith.constant 0 : index
    %c0_1134 = arith.constant 0 : index
    %1335 = vector.load %arg5[%c0_1131, %c14_1132, %c0_1133, %c0_1134] : memref<1x18x8x128xf32, #tpu.memory_space<vmem>>, vector<1x1x8x128xf32>
    %1336 = vector.shape_cast %1335 : vector<1x1x8x128xf32> to vector<8x128xf32>
    %c0_1135 = arith.constant 0 : index
    %c4_1136 = arith.constant 4 : index
    %c0_1137 = arith.constant 0 : index
    %c0_1138 = arith.constant 0 : index
    %1337 = vector.load %arg6[%c0_1135, %c4_1136, %c0_1137, %c0_1138] : memref<1x18x8x128xf32, #tpu.memory_space<vmem>>, vector<1x1x8x128xf32>
    %1338 = vector.shape_cast %1337 : vector<1x1x8x128xf32> to vector<8x128xf32>
    %c0_1139 = arith.constant 0 : index
    %c13_1140 = arith.constant 13 : index
    %c0_1141 = arith.constant 0 : index
    %c0_1142 = arith.constant 0 : index
    %1339 = vector.load %arg6[%c0_1139, %c13_1140, %c0_1141, %c0_1142] : memref<1x18x8x128xf32, #tpu.memory_space<vmem>>, vector<1x1x8x128xf32>
    %1340 = vector.shape_cast %1339 : vector<1x1x8x128xf32> to vector<8x128xf32>
    %1341 = arith.mulf %1334, %1338 : vector<8x128xf32>
    %1342 = arith.mulf %1336, %1340 : vector<8x128xf32>
    %1343 = arith.addf %1341, %1342 : vector<8x128xf32>
    %1344 = arith.mulf %1334, %1340 : vector<8x128xf32>
    %1345 = arith.mulf %1336, %1338 : vector<8x128xf32>
    %1346 = arith.subf %1344, %1345 : vector<8x128xf32>
    %1347 = arith.addf %1329, %1343 : vector<8x128xf32>
    %1348 = arith.addf %1332, %1346 : vector<8x128xf32>
    %c0_1143 = arith.constant 0 : index
    %c8_1144 = arith.constant 8 : index
    %c0_1145 = arith.constant 0 : index
    %c0_1146 = arith.constant 0 : index
    %1349 = vector.load %arg5[%c0_1143, %c8_1144, %c0_1145, %c0_1146] : memref<1x18x8x128xf32, #tpu.memory_space<vmem>>, vector<1x1x8x128xf32>
    %1350 = vector.shape_cast %1349 : vector<1x1x8x128xf32> to vector<8x128xf32>
    %c0_1147 = arith.constant 0 : index
    %c17_1148 = arith.constant 17 : index
    %c0_1149 = arith.constant 0 : index
    %c0_1150 = arith.constant 0 : index
    %1351 = vector.load %arg5[%c0_1147, %c17_1148, %c0_1149, %c0_1150] : memref<1x18x8x128xf32, #tpu.memory_space<vmem>>, vector<1x1x8x128xf32>
    %1352 = vector.shape_cast %1351 : vector<1x1x8x128xf32> to vector<8x128xf32>
    %c0_1151 = arith.constant 0 : index
    %c7_1152 = arith.constant 7 : index
    %c0_1153 = arith.constant 0 : index
    %c0_1154 = arith.constant 0 : index
    %1353 = vector.load %arg6[%c0_1151, %c7_1152, %c0_1153, %c0_1154] : memref<1x18x8x128xf32, #tpu.memory_space<vmem>>, vector<1x1x8x128xf32>
    %1354 = vector.shape_cast %1353 : vector<1x1x8x128xf32> to vector<8x128xf32>
    %c0_1155 = arith.constant 0 : index
    %c16_1156 = arith.constant 16 : index
    %c0_1157 = arith.constant 0 : index
    %c0_1158 = arith.constant 0 : index
    %1355 = vector.load %arg6[%c0_1155, %c16_1156, %c0_1157, %c0_1158] : memref<1x18x8x128xf32, #tpu.memory_space<vmem>>, vector<1x1x8x128xf32>
    %1356 = vector.shape_cast %1355 : vector<1x1x8x128xf32> to vector<8x128xf32>
    %1357 = arith.mulf %1350, %1354 : vector<8x128xf32>
    %1358 = arith.mulf %1352, %1356 : vector<8x128xf32>
    %1359 = arith.addf %1357, %1358 : vector<8x128xf32>
    %1360 = arith.mulf %1350, %1356 : vector<8x128xf32>
    %1361 = arith.mulf %1352, %1354 : vector<8x128xf32>
    %1362 = arith.subf %1360, %1361 : vector<8x128xf32>
    %1363 = arith.addf %1347, %1359 : vector<8x128xf32>
    %1364 = arith.addf %1348, %1362 : vector<8x128xf32>
    %c0_1159 = arith.constant 0 : index
    %c2_1160 = arith.constant 2 : index
    %c0_1161 = arith.constant 0 : index
    %c0_1162 = arith.constant 0 : index
    %1365 = vector.load %arg5[%c0_1159, %c2_1160, %c0_1161, %c0_1162] : memref<1x18x8x128xf32, #tpu.memory_space<vmem>>, vector<1x1x8x128xf32>
    %1366 = vector.shape_cast %1365 : vector<1x1x8x128xf32> to vector<8x128xf32>
    %c0_1163 = arith.constant 0 : index
    %c11_1164 = arith.constant 11 : index
    %c0_1165 = arith.constant 0 : index
    %c0_1166 = arith.constant 0 : index
    %1367 = vector.load %arg5[%c0_1163, %c11_1164, %c0_1165, %c0_1166] : memref<1x18x8x128xf32, #tpu.memory_space<vmem>>, vector<1x1x8x128xf32>
    %1368 = vector.shape_cast %1367 : vector<1x1x8x128xf32> to vector<8x128xf32>
    %c0_1167 = arith.constant 0 : index
    %c2_1168 = arith.constant 2 : index
    %c0_1169 = arith.constant 0 : index
    %c0_1170 = arith.constant 0 : index
    %1369 = vector.load %arg6[%c0_1167, %c2_1168, %c0_1169, %c0_1170] : memref<1x18x8x128xf32, #tpu.memory_space<vmem>>, vector<1x1x8x128xf32>
    %1370 = vector.shape_cast %1369 : vector<1x1x8x128xf32> to vector<8x128xf32>
    %c0_1171 = arith.constant 0 : index
    %c11_1172 = arith.constant 11 : index
    %c0_1173 = arith.constant 0 : index
    %c0_1174 = arith.constant 0 : index
    %1371 = vector.load %arg6[%c0_1171, %c11_1172, %c0_1173, %c0_1174] : memref<1x18x8x128xf32, #tpu.memory_space<vmem>>, vector<1x1x8x128xf32>
    %1372 = vector.shape_cast %1371 : vector<1x1x8x128xf32> to vector<8x128xf32>
    %1373 = arith.mulf %1366, %1370 : vector<8x128xf32>
    %1374 = arith.mulf %1368, %1372 : vector<8x128xf32>
    %1375 = arith.addf %1373, %1374 : vector<8x128xf32>
    %1376 = arith.mulf %1366, %1372 : vector<8x128xf32>
    %1377 = arith.mulf %1368, %1370 : vector<8x128xf32>
    %1378 = arith.subf %1376, %1377 : vector<8x128xf32>
    %c0_1175 = arith.constant 0 : index
    %c5_1176 = arith.constant 5 : index
    %c0_1177 = arith.constant 0 : index
    %c0_1178 = arith.constant 0 : index
    %1379 = vector.load %arg5[%c0_1175, %c5_1176, %c0_1177, %c0_1178] : memref<1x18x8x128xf32, #tpu.memory_space<vmem>>, vector<1x1x8x128xf32>
    %1380 = vector.shape_cast %1379 : vector<1x1x8x128xf32> to vector<8x128xf32>
    %c0_1179 = arith.constant 0 : index
    %c14_1180 = arith.constant 14 : index
    %c0_1181 = arith.constant 0 : index
    %c0_1182 = arith.constant 0 : index
    %1381 = vector.load %arg5[%c0_1179, %c14_1180, %c0_1181, %c0_1182] : memref<1x18x8x128xf32, #tpu.memory_space<vmem>>, vector<1x1x8x128xf32>
    %1382 = vector.shape_cast %1381 : vector<1x1x8x128xf32> to vector<8x128xf32>
    %c0_1183 = arith.constant 0 : index
    %c5_1184 = arith.constant 5 : index
    %c0_1185 = arith.constant 0 : index
    %c0_1186 = arith.constant 0 : index
    %1383 = vector.load %arg6[%c0_1183, %c5_1184, %c0_1185, %c0_1186] : memref<1x18x8x128xf32, #tpu.memory_space<vmem>>, vector<1x1x8x128xf32>
    %1384 = vector.shape_cast %1383 : vector<1x1x8x128xf32> to vector<8x128xf32>
    %c0_1187 = arith.constant 0 : index
    %c14_1188 = arith.constant 14 : index
    %c0_1189 = arith.constant 0 : index
    %c0_1190 = arith.constant 0 : index
    %1385 = vector.load %arg6[%c0_1187, %c14_1188, %c0_1189, %c0_1190] : memref<1x18x8x128xf32, #tpu.memory_space<vmem>>, vector<1x1x8x128xf32>
    %1386 = vector.shape_cast %1385 : vector<1x1x8x128xf32> to vector<8x128xf32>
    %1387 = arith.mulf %1380, %1384 : vector<8x128xf32>
    %1388 = arith.mulf %1382, %1386 : vector<8x128xf32>
    %1389 = arith.addf %1387, %1388 : vector<8x128xf32>
    %1390 = arith.mulf %1380, %1386 : vector<8x128xf32>
    %1391 = arith.mulf %1382, %1384 : vector<8x128xf32>
    %1392 = arith.subf %1390, %1391 : vector<8x128xf32>
    %1393 = arith.addf %1375, %1389 : vector<8x128xf32>
    %1394 = arith.addf %1378, %1392 : vector<8x128xf32>
    %c0_1191 = arith.constant 0 : index
    %c8_1192 = arith.constant 8 : index
    %c0_1193 = arith.constant 0 : index
    %c0_1194 = arith.constant 0 : index
    %1395 = vector.load %arg5[%c0_1191, %c8_1192, %c0_1193, %c0_1194] : memref<1x18x8x128xf32, #tpu.memory_space<vmem>>, vector<1x1x8x128xf32>
    %1396 = vector.shape_cast %1395 : vector<1x1x8x128xf32> to vector<8x128xf32>
    %c0_1195 = arith.constant 0 : index
    %c17_1196 = arith.constant 17 : index
    %c0_1197 = arith.constant 0 : index
    %c0_1198 = arith.constant 0 : index
    %1397 = vector.load %arg5[%c0_1195, %c17_1196, %c0_1197, %c0_1198] : memref<1x18x8x128xf32, #tpu.memory_space<vmem>>, vector<1x1x8x128xf32>
    %1398 = vector.shape_cast %1397 : vector<1x1x8x128xf32> to vector<8x128xf32>
    %c0_1199 = arith.constant 0 : index
    %c8_1200 = arith.constant 8 : index
    %c0_1201 = arith.constant 0 : index
    %c0_1202 = arith.constant 0 : index
    %1399 = vector.load %arg6[%c0_1199, %c8_1200, %c0_1201, %c0_1202] : memref<1x18x8x128xf32, #tpu.memory_space<vmem>>, vector<1x1x8x128xf32>
    %1400 = vector.shape_cast %1399 : vector<1x1x8x128xf32> to vector<8x128xf32>
    %c0_1203 = arith.constant 0 : index
    %c17_1204 = arith.constant 17 : index
    %c0_1205 = arith.constant 0 : index
    %c0_1206 = arith.constant 0 : index
    %1401 = vector.load %arg6[%c0_1203, %c17_1204, %c0_1205, %c0_1206] : memref<1x18x8x128xf32, #tpu.memory_space<vmem>>, vector<1x1x8x128xf32>
    %1402 = vector.shape_cast %1401 : vector<1x1x8x128xf32> to vector<8x128xf32>
    %1403 = arith.mulf %1396, %1400 : vector<8x128xf32>
    %1404 = arith.mulf %1398, %1402 : vector<8x128xf32>
    %1405 = arith.addf %1403, %1404 : vector<8x128xf32>
    %1406 = arith.mulf %1396, %1402 : vector<8x128xf32>
    %1407 = arith.mulf %1398, %1400 : vector<8x128xf32>
    %1408 = arith.subf %1406, %1407 : vector<8x128xf32>
    %1409 = arith.addf %1393, %1405 : vector<8x128xf32>
    %1410 = arith.addf %1394, %1408 : vector<8x128xf32>
    %c0_1207 = arith.constant 0 : index
    %c0_1208 = arith.constant 0 : index
    %c0_1209 = arith.constant 0 : index
    %c0_1210 = arith.constant 0 : index
    %1411 = vector.load %arg7[%c0_1207, %c0_1208, %c0_1209, %c0_1210] : memref<1x18x8x128xf32, #tpu.memory_space<vmem>>, vector<1x1x8x128xf32>
    %1412 = vector.shape_cast %1411 : vector<1x1x8x128xf32> to vector<8x128xf32>
    %c0_1211 = arith.constant 0 : index
    %c9_1212 = arith.constant 9 : index
    %c0_1213 = arith.constant 0 : index
    %c0_1214 = arith.constant 0 : index
    %1413 = vector.load %arg7[%c0_1211, %c9_1212, %c0_1213, %c0_1214] : memref<1x18x8x128xf32, #tpu.memory_space<vmem>>, vector<1x1x8x128xf32>
    %1414 = vector.shape_cast %1413 : vector<1x1x8x128xf32> to vector<8x128xf32>
    %1415 = arith.mulf %1317, %1412 : vector<8x128xf32>
    %1416 = arith.mulf %1318, %1414 : vector<8x128xf32>
    %1417 = arith.subf %1415, %1416 : vector<8x128xf32>
    %1418 = arith.mulf %1317, %1414 : vector<8x128xf32>
    %1419 = arith.mulf %1318, %1412 : vector<8x128xf32>
    %1420 = arith.addf %1418, %1419 : vector<8x128xf32>
    %c0_1215 = arith.constant 0 : index
    %c3_1216 = arith.constant 3 : index
    %c0_1217 = arith.constant 0 : index
    %c0_1218 = arith.constant 0 : index
    %1421 = vector.load %arg7[%c0_1215, %c3_1216, %c0_1217, %c0_1218] : memref<1x18x8x128xf32, #tpu.memory_space<vmem>>, vector<1x1x8x128xf32>
    %1422 = vector.shape_cast %1421 : vector<1x1x8x128xf32> to vector<8x128xf32>
    %c0_1219 = arith.constant 0 : index
    %c12_1220 = arith.constant 12 : index
    %c0_1221 = arith.constant 0 : index
    %c0_1222 = arith.constant 0 : index
    %1423 = vector.load %arg7[%c0_1219, %c12_1220, %c0_1221, %c0_1222] : memref<1x18x8x128xf32, #tpu.memory_space<vmem>>, vector<1x1x8x128xf32>
    %1424 = vector.shape_cast %1423 : vector<1x1x8x128xf32> to vector<8x128xf32>
    %1425 = arith.mulf %1363, %1422 : vector<8x128xf32>
    %1426 = arith.mulf %1364, %1424 : vector<8x128xf32>
    %1427 = arith.subf %1425, %1426 : vector<8x128xf32>
    %1428 = arith.mulf %1363, %1424 : vector<8x128xf32>
    %1429 = arith.mulf %1364, %1422 : vector<8x128xf32>
    %1430 = arith.addf %1428, %1429 : vector<8x128xf32>
    %1431 = arith.addf %1417, %1427 : vector<8x128xf32>
    %1432 = arith.addf %1420, %1430 : vector<8x128xf32>
    %c0_1223 = arith.constant 0 : index
    %c6_1224 = arith.constant 6 : index
    %c0_1225 = arith.constant 0 : index
    %c0_1226 = arith.constant 0 : index
    %1433 = vector.load %arg7[%c0_1223, %c6_1224, %c0_1225, %c0_1226] : memref<1x18x8x128xf32, #tpu.memory_space<vmem>>, vector<1x1x8x128xf32>
    %1434 = vector.shape_cast %1433 : vector<1x1x8x128xf32> to vector<8x128xf32>
    %c0_1227 = arith.constant 0 : index
    %c15_1228 = arith.constant 15 : index
    %c0_1229 = arith.constant 0 : index
    %c0_1230 = arith.constant 0 : index
    %1435 = vector.load %arg7[%c0_1227, %c15_1228, %c0_1229, %c0_1230] : memref<1x18x8x128xf32, #tpu.memory_space<vmem>>, vector<1x1x8x128xf32>
    %1436 = vector.shape_cast %1435 : vector<1x1x8x128xf32> to vector<8x128xf32>
    %1437 = arith.mulf %1409, %1434 : vector<8x128xf32>
    %1438 = arith.mulf %1410, %1436 : vector<8x128xf32>
    %1439 = arith.subf %1437, %1438 : vector<8x128xf32>
    %1440 = arith.mulf %1409, %1436 : vector<8x128xf32>
    %1441 = arith.mulf %1410, %1434 : vector<8x128xf32>
    %1442 = arith.addf %1440, %1441 : vector<8x128xf32>
    %1443 = arith.addf %1431, %1439 : vector<8x128xf32>
    %1444 = arith.addf %1432, %1442 : vector<8x128xf32>
    %1445 = vector.broadcast %0 : f32 to vector<8x128xf32>
    %1446 = arith.mulf %1445, %1443 : vector<8x128xf32>
    %1447 = arith.addf %678, %1446 : vector<8x128xf32>
    %1448 = vector.broadcast %0 : f32 to vector<8x128xf32>
    %1449 = arith.mulf %1448, %1444 : vector<8x128xf32>
    %1450 = arith.addf %680, %1449 : vector<8x128xf32>
    %c0_1231 = arith.constant 0 : index
    %c1_1232 = arith.constant 1 : index
    %c0_1233 = arith.constant 0 : index
    %c0_1234 = arith.constant 0 : index
    %1451 = vector.load %arg7[%c0_1231, %c1_1232, %c0_1233, %c0_1234] : memref<1x18x8x128xf32, #tpu.memory_space<vmem>>, vector<1x1x8x128xf32>
    %1452 = vector.shape_cast %1451 : vector<1x1x8x128xf32> to vector<8x128xf32>
    %c0_1235 = arith.constant 0 : index
    %c10_1236 = arith.constant 10 : index
    %c0_1237 = arith.constant 0 : index
    %c0_1238 = arith.constant 0 : index
    %1453 = vector.load %arg7[%c0_1235, %c10_1236, %c0_1237, %c0_1238] : memref<1x18x8x128xf32, #tpu.memory_space<vmem>>, vector<1x1x8x128xf32>
    %1454 = vector.shape_cast %1453 : vector<1x1x8x128xf32> to vector<8x128xf32>
    %1455 = arith.mulf %1317, %1452 : vector<8x128xf32>
    %1456 = arith.mulf %1318, %1454 : vector<8x128xf32>
    %1457 = arith.subf %1455, %1456 : vector<8x128xf32>
    %1458 = arith.mulf %1317, %1454 : vector<8x128xf32>
    %1459 = arith.mulf %1318, %1452 : vector<8x128xf32>
    %1460 = arith.addf %1458, %1459 : vector<8x128xf32>
    %c0_1239 = arith.constant 0 : index
    %c4_1240 = arith.constant 4 : index
    %c0_1241 = arith.constant 0 : index
    %c0_1242 = arith.constant 0 : index
    %1461 = vector.load %arg7[%c0_1239, %c4_1240, %c0_1241, %c0_1242] : memref<1x18x8x128xf32, #tpu.memory_space<vmem>>, vector<1x1x8x128xf32>
    %1462 = vector.shape_cast %1461 : vector<1x1x8x128xf32> to vector<8x128xf32>
    %c0_1243 = arith.constant 0 : index
    %c13_1244 = arith.constant 13 : index
    %c0_1245 = arith.constant 0 : index
    %c0_1246 = arith.constant 0 : index
    %1463 = vector.load %arg7[%c0_1243, %c13_1244, %c0_1245, %c0_1246] : memref<1x18x8x128xf32, #tpu.memory_space<vmem>>, vector<1x1x8x128xf32>
    %1464 = vector.shape_cast %1463 : vector<1x1x8x128xf32> to vector<8x128xf32>
    %1465 = arith.mulf %1363, %1462 : vector<8x128xf32>
    %1466 = arith.mulf %1364, %1464 : vector<8x128xf32>
    %1467 = arith.subf %1465, %1466 : vector<8x128xf32>
    %1468 = arith.mulf %1363, %1464 : vector<8x128xf32>
    %1469 = arith.mulf %1364, %1462 : vector<8x128xf32>
    %1470 = arith.addf %1468, %1469 : vector<8x128xf32>
    %1471 = arith.addf %1457, %1467 : vector<8x128xf32>
    %1472 = arith.addf %1460, %1470 : vector<8x128xf32>
    %c0_1247 = arith.constant 0 : index
    %c7_1248 = arith.constant 7 : index
    %c0_1249 = arith.constant 0 : index
    %c0_1250 = arith.constant 0 : index
    %1473 = vector.load %arg7[%c0_1247, %c7_1248, %c0_1249, %c0_1250] : memref<1x18x8x128xf32, #tpu.memory_space<vmem>>, vector<1x1x8x128xf32>
    %1474 = vector.shape_cast %1473 : vector<1x1x8x128xf32> to vector<8x128xf32>
    %c0_1251 = arith.constant 0 : index
    %c16_1252 = arith.constant 16 : index
    %c0_1253 = arith.constant 0 : index
    %c0_1254 = arith.constant 0 : index
    %1475 = vector.load %arg7[%c0_1251, %c16_1252, %c0_1253, %c0_1254] : memref<1x18x8x128xf32, #tpu.memory_space<vmem>>, vector<1x1x8x128xf32>
    %1476 = vector.shape_cast %1475 : vector<1x1x8x128xf32> to vector<8x128xf32>
    %1477 = arith.mulf %1409, %1474 : vector<8x128xf32>
    %1478 = arith.mulf %1410, %1476 : vector<8x128xf32>
    %1479 = arith.subf %1477, %1478 : vector<8x128xf32>
    %1480 = arith.mulf %1409, %1476 : vector<8x128xf32>
    %1481 = arith.mulf %1410, %1474 : vector<8x128xf32>
    %1482 = arith.addf %1480, %1481 : vector<8x128xf32>
    %1483 = arith.addf %1471, %1479 : vector<8x128xf32>
    %1484 = arith.addf %1472, %1482 : vector<8x128xf32>
    %1485 = vector.broadcast %0 : f32 to vector<8x128xf32>
    %1486 = arith.mulf %1485, %1483 : vector<8x128xf32>
    %1487 = arith.addf %716, %1486 : vector<8x128xf32>
    %1488 = vector.broadcast %0 : f32 to vector<8x128xf32>
    %1489 = arith.mulf %1488, %1484 : vector<8x128xf32>
    %1490 = arith.addf %718, %1489 : vector<8x128xf32>
    %c0_1255 = arith.constant 0 : index
    %c2_1256 = arith.constant 2 : index
    %c0_1257 = arith.constant 0 : index
    %c0_1258 = arith.constant 0 : index
    %1491 = vector.load %arg7[%c0_1255, %c2_1256, %c0_1257, %c0_1258] : memref<1x18x8x128xf32, #tpu.memory_space<vmem>>, vector<1x1x8x128xf32>
    %1492 = vector.shape_cast %1491 : vector<1x1x8x128xf32> to vector<8x128xf32>
    %c0_1259 = arith.constant 0 : index
    %c11_1260 = arith.constant 11 : index
    %c0_1261 = arith.constant 0 : index
    %c0_1262 = arith.constant 0 : index
    %1493 = vector.load %arg7[%c0_1259, %c11_1260, %c0_1261, %c0_1262] : memref<1x18x8x128xf32, #tpu.memory_space<vmem>>, vector<1x1x8x128xf32>
    %1494 = vector.shape_cast %1493 : vector<1x1x8x128xf32> to vector<8x128xf32>
    %1495 = arith.mulf %1317, %1492 : vector<8x128xf32>
    %1496 = arith.mulf %1318, %1494 : vector<8x128xf32>
    %1497 = arith.subf %1495, %1496 : vector<8x128xf32>
    %1498 = arith.mulf %1317, %1494 : vector<8x128xf32>
    %1499 = arith.mulf %1318, %1492 : vector<8x128xf32>
    %1500 = arith.addf %1498, %1499 : vector<8x128xf32>
    %c0_1263 = arith.constant 0 : index
    %c5_1264 = arith.constant 5 : index
    %c0_1265 = arith.constant 0 : index
    %c0_1266 = arith.constant 0 : index
    %1501 = vector.load %arg7[%c0_1263, %c5_1264, %c0_1265, %c0_1266] : memref<1x18x8x128xf32, #tpu.memory_space<vmem>>, vector<1x1x8x128xf32>
    %1502 = vector.shape_cast %1501 : vector<1x1x8x128xf32> to vector<8x128xf32>
    %c0_1267 = arith.constant 0 : index
    %c14_1268 = arith.constant 14 : index
    %c0_1269 = arith.constant 0 : index
    %c0_1270 = arith.constant 0 : index
    %1503 = vector.load %arg7[%c0_1267, %c14_1268, %c0_1269, %c0_1270] : memref<1x18x8x128xf32, #tpu.memory_space<vmem>>, vector<1x1x8x128xf32>
    %1504 = vector.shape_cast %1503 : vector<1x1x8x128xf32> to vector<8x128xf32>
    %1505 = arith.mulf %1363, %1502 : vector<8x128xf32>
    %1506 = arith.mulf %1364, %1504 : vector<8x128xf32>
    %1507 = arith.subf %1505, %1506 : vector<8x128xf32>
    %1508 = arith.mulf %1363, %1504 : vector<8x128xf32>
    %1509 = arith.mulf %1364, %1502 : vector<8x128xf32>
    %1510 = arith.addf %1508, %1509 : vector<8x128xf32>
    %1511 = arith.addf %1497, %1507 : vector<8x128xf32>
    %1512 = arith.addf %1500, %1510 : vector<8x128xf32>
    %c0_1271 = arith.constant 0 : index
    %c8_1272 = arith.constant 8 : index
    %c0_1273 = arith.constant 0 : index
    %c0_1274 = arith.constant 0 : index
    %1513 = vector.load %arg7[%c0_1271, %c8_1272, %c0_1273, %c0_1274] : memref<1x18x8x128xf32, #tpu.memory_space<vmem>>, vector<1x1x8x128xf32>
    %1514 = vector.shape_cast %1513 : vector<1x1x8x128xf32> to vector<8x128xf32>
    %c0_1275 = arith.constant 0 : index
    %c17_1276 = arith.constant 17 : index
    %c0_1277 = arith.constant 0 : index
    %c0_1278 = arith.constant 0 : index
    %1515 = vector.load %arg7[%c0_1275, %c17_1276, %c0_1277, %c0_1278] : memref<1x18x8x128xf32, #tpu.memory_space<vmem>>, vector<1x1x8x128xf32>
    %1516 = vector.shape_cast %1515 : vector<1x1x8x128xf32> to vector<8x128xf32>
    %1517 = arith.mulf %1409, %1514 : vector<8x128xf32>
    %1518 = arith.mulf %1410, %1516 : vector<8x128xf32>
    %1519 = arith.subf %1517, %1518 : vector<8x128xf32>
    %1520 = arith.mulf %1409, %1516 : vector<8x128xf32>
    %1521 = arith.mulf %1410, %1514 : vector<8x128xf32>
    %1522 = arith.addf %1520, %1521 : vector<8x128xf32>
    %1523 = arith.addf %1511, %1519 : vector<8x128xf32>
    %1524 = arith.addf %1512, %1522 : vector<8x128xf32>
    %1525 = vector.broadcast %0 : f32 to vector<8x128xf32>
    %1526 = arith.mulf %1525, %1523 : vector<8x128xf32>
    %1527 = arith.addf %754, %1526 : vector<8x128xf32>
    %1528 = vector.broadcast %0 : f32 to vector<8x128xf32>
    %1529 = arith.mulf %1528, %1524 : vector<8x128xf32>
    %1530 = arith.addf %756, %1529 : vector<8x128xf32>
    %c0_1279 = arith.constant 0 : index
    %c0_1280 = arith.constant 0 : index
    %c0_1281 = arith.constant 0 : index
    %c0_1282 = arith.constant 0 : index
    %1531 = vector.load %arg9[%c0_1279, %c0_1280, %c0_1281, %c0_1282] : memref<1x18x8x128xf32, #tpu.memory_space<vmem>>, vector<1x1x8x128xf32>
    %1532 = vector.shape_cast %1531 : vector<1x1x8x128xf32> to vector<8x128xf32>
    %1533 = vector.shape_cast %931 : vector<8x128xf32> to vector<1x1x8x128xf32>
    tpu.vector_store %arg9[%c0_1279, %c0_1280, %c0_1281, %c0_1282], %1533 {strides = array<i32>} : memref<1x18x8x128xf32, #tpu.memory_space<vmem>>, vector<1x1x8x128xf32>,
    %c0_1283 = arith.constant 0 : index
    %c9_1284 = arith.constant 9 : index
    %c0_1285 = arith.constant 0 : index
    %c0_1286 = arith.constant 0 : index
    %1534 = vector.load %arg9[%c0_1283, %c9_1284, %c0_1285, %c0_1286] : memref<1x18x8x128xf32, #tpu.memory_space<vmem>>, vector<1x1x8x128xf32>
    %1535 = vector.shape_cast %1534 : vector<1x1x8x128xf32> to vector<8x128xf32>
    %1536 = vector.shape_cast %934 : vector<8x128xf32> to vector<1x1x8x128xf32>
    tpu.vector_store %arg9[%c0_1283, %c9_1284, %c0_1285, %c0_1286], %1536 {strides = array<i32>} : memref<1x18x8x128xf32, #tpu.memory_space<vmem>>, vector<1x1x8x128xf32>,
    %c0_1287 = arith.constant 0 : index
    %c1_1288 = arith.constant 1 : index
    %c0_1289 = arith.constant 0 : index
    %c0_1290 = arith.constant 0 : index
    %1537 = vector.load %arg9[%c0_1287, %c1_1288, %c0_1289, %c0_1290] : memref<1x18x8x128xf32, #tpu.memory_space<vmem>>, vector<1x1x8x128xf32>
    %1538 = vector.shape_cast %1537 : vector<1x1x8x128xf32> to vector<8x128xf32>
    %1539 = vector.shape_cast %971 : vector<8x128xf32> to vector<1x1x8x128xf32>
    tpu.vector_store %arg9[%c0_1287, %c1_1288, %c0_1289, %c0_1290], %1539 {strides = array<i32>} : memref<1x18x8x128xf32, #tpu.memory_space<vmem>>, vector<1x1x8x128xf32>,
    %c0_1291 = arith.constant 0 : index
    %c10_1292 = arith.constant 10 : index
    %c0_1293 = arith.constant 0 : index
    %c0_1294 = arith.constant 0 : index
    %1540 = vector.load %arg9[%c0_1291, %c10_1292, %c0_1293, %c0_1294] : memref<1x18x8x128xf32, #tpu.memory_space<vmem>>, vector<1x1x8x128xf32>
    %1541 = vector.shape_cast %1540 : vector<1x1x8x128xf32> to vector<8x128xf32>
    %1542 = vector.shape_cast %974 : vector<8x128xf32> to vector<1x1x8x128xf32>
    tpu.vector_store %arg9[%c0_1291, %c10_1292, %c0_1293, %c0_1294], %1542 {strides = array<i32>} : memref<1x18x8x128xf32, #tpu.memory_space<vmem>>, vector<1x1x8x128xf32>,
    %c0_1295 = arith.constant 0 : index
    %c2_1296 = arith.constant 2 : index
    %c0_1297 = arith.constant 0 : index
    %c0_1298 = arith.constant 0 : index
    %1543 = vector.load %arg9[%c0_1295, %c2_1296, %c0_1297, %c0_1298] : memref<1x18x8x128xf32, #tpu.memory_space<vmem>>, vector<1x1x8x128xf32>
    %1544 = vector.shape_cast %1543 : vector<1x1x8x128xf32> to vector<8x128xf32>
    %1545 = vector.shape_cast %1011 : vector<8x128xf32> to vector<1x1x8x128xf32>
    tpu.vector_store %arg9[%c0_1295, %c2_1296, %c0_1297, %c0_1298], %1545 {strides = array<i32>} : memref<1x18x8x128xf32, #tpu.memory_space<vmem>>, vector<1x1x8x128xf32>,
    %c0_1299 = arith.constant 0 : index
    %c11_1300 = arith.constant 11 : index
    %c0_1301 = arith.constant 0 : index
    %c0_1302 = arith.constant 0 : index
    %1546 = vector.load %arg9[%c0_1299, %c11_1300, %c0_1301, %c0_1302] : memref<1x18x8x128xf32, #tpu.memory_space<vmem>>, vector<1x1x8x128xf32>
    %1547 = vector.shape_cast %1546 : vector<1x1x8x128xf32> to vector<8x128xf32>
    %1548 = vector.shape_cast %1014 : vector<8x128xf32> to vector<1x1x8x128xf32>
    tpu.vector_store %arg9[%c0_1299, %c11_1300, %c0_1301, %c0_1302], %1548 {strides = array<i32>} : memref<1x18x8x128xf32, #tpu.memory_space<vmem>>, vector<1x1x8x128xf32>,
    %c0_1303 = arith.constant 0 : index
    %c3_1304 = arith.constant 3 : index
    %c0_1305 = arith.constant 0 : index
    %c0_1306 = arith.constant 0 : index
    %1549 = vector.load %arg9[%c0_1303, %c3_1304, %c0_1305, %c0_1306] : memref<1x18x8x128xf32, #tpu.memory_space<vmem>>, vector<1x1x8x128xf32>
    %1550 = vector.shape_cast %1549 : vector<1x1x8x128xf32> to vector<8x128xf32>
    %1551 = vector.shape_cast %1189 : vector<8x128xf32> to vector<1x1x8x128xf32>
    tpu.vector_store %arg9[%c0_1303, %c3_1304, %c0_1305, %c0_1306], %1551 {strides = array<i32>} : memref<1x18x8x128xf32, #tpu.memory_space<vmem>>, vector<1x1x8x128xf32>,
    %c0_1307 = arith.constant 0 : index
    %c12_1308 = arith.constant 12 : index
    %c0_1309 = arith.constant 0 : index
    %c0_1310 = arith.constant 0 : index
    %1552 = vector.load %arg9[%c0_1307, %c12_1308, %c0_1309, %c0_1310] : memref<1x18x8x128xf32, #tpu.memory_space<vmem>>, vector<1x1x8x128xf32>
    %1553 = vector.shape_cast %1552 : vector<1x1x8x128xf32> to vector<8x128xf32>
    %1554 = vector.shape_cast %1192 : vector<8x128xf32> to vector<1x1x8x128xf32>
    tpu.vector_store %arg9[%c0_1307, %c12_1308, %c0_1309, %c0_1310], %1554 {strides = array<i32>} : memref<1x18x8x128xf32, #tpu.memory_space<vmem>>, vector<1x1x8x128xf32>,
    %c0_1311 = arith.constant 0 : index
    %c4_1312 = arith.constant 4 : index
    %c0_1313 = arith.constant 0 : index
    %c0_1314 = arith.constant 0 : index
    %1555 = vector.load %arg9[%c0_1311, %c4_1312, %c0_1313, %c0_1314] : memref<1x18x8x128xf32, #tpu.memory_space<vmem>>, vector<1x1x8x128xf32>
    %1556 = vector.shape_cast %1555 : vector<1x1x8x128xf32> to vector<8x128xf32>
    %1557 = vector.shape_cast %1229 : vector<8x128xf32> to vector<1x1x8x128xf32>
    tpu.vector_store %arg9[%c0_1311, %c4_1312, %c0_1313, %c0_1314], %1557 {strides = array<i32>} : memref<1x18x8x128xf32, #tpu.memory_space<vmem>>, vector<1x1x8x128xf32>,
    %c0_1315 = arith.constant 0 : index
    %c13_1316 = arith.constant 13 : index
    %c0_1317 = arith.constant 0 : index
    %c0_1318 = arith.constant 0 : index
    %1558 = vector.load %arg9[%c0_1315, %c13_1316, %c0_1317, %c0_1318] : memref<1x18x8x128xf32, #tpu.memory_space<vmem>>, vector<1x1x8x128xf32>
    %1559 = vector.shape_cast %1558 : vector<1x1x8x128xf32> to vector<8x128xf32>
    %1560 = vector.shape_cast %1232 : vector<8x128xf32> to vector<1x1x8x128xf32>
    tpu.vector_store %arg9[%c0_1315, %c13_1316, %c0_1317, %c0_1318], %1560 {strides = array<i32>} : memref<1x18x8x128xf32, #tpu.memory_space<vmem>>, vector<1x1x8x128xf32>,
    %c0_1319 = arith.constant 0 : index
    %c5_1320 = arith.constant 5 : index
    %c0_1321 = arith.constant 0 : index
    %c0_1322 = arith.constant 0 : index
    %1561 = vector.load %arg9[%c0_1319, %c5_1320, %c0_1321, %c0_1322] : memref<1x18x8x128xf32, #tpu.memory_space<vmem>>, vector<1x1x8x128xf32>
    %1562 = vector.shape_cast %1561 : vector<1x1x8x128xf32> to vector<8x128xf32>
    %1563 = vector.shape_cast %1269 : vector<8x128xf32> to vector<1x1x8x128xf32>
    tpu.vector_store %arg9[%c0_1319, %c5_1320, %c0_1321, %c0_1322], %1563 {strides = array<i32>} : memref<1x18x8x128xf32, #tpu.memory_space<vmem>>, vector<1x1x8x128xf32>,
    %c0_1323 = arith.constant 0 : index
    %c14_1324 = arith.constant 14 : index
    %c0_1325 = arith.constant 0 : index
    %c0_1326 = arith.constant 0 : index
    %1564 = vector.load %arg9[%c0_1323, %c14_1324, %c0_1325, %c0_1326] : memref<1x18x8x128xf32, #tpu.memory_space<vmem>>, vector<1x1x8x128xf32>
    %1565 = vector.shape_cast %1564 : vector<1x1x8x128xf32> to vector<8x128xf32>
    %1566 = vector.shape_cast %1272 : vector<8x128xf32> to vector<1x1x8x128xf32>
    tpu.vector_store %arg9[%c0_1323, %c14_1324, %c0_1325, %c0_1326], %1566 {strides = array<i32>} : memref<1x18x8x128xf32, #tpu.memory_space<vmem>>, vector<1x1x8x128xf32>,
    %c0_1327 = arith.constant 0 : index
    %c6_1328 = arith.constant 6 : index
    %c0_1329 = arith.constant 0 : index
    %c0_1330 = arith.constant 0 : index
    %1567 = vector.load %arg9[%c0_1327, %c6_1328, %c0_1329, %c0_1330] : memref<1x18x8x128xf32, #tpu.memory_space<vmem>>, vector<1x1x8x128xf32>
    %1568 = vector.shape_cast %1567 : vector<1x1x8x128xf32> to vector<8x128xf32>
    %1569 = vector.shape_cast %1447 : vector<8x128xf32> to vector<1x1x8x128xf32>
    tpu.vector_store %arg9[%c0_1327, %c6_1328, %c0_1329, %c0_1330], %1569 {strides = array<i32>} : memref<1x18x8x128xf32, #tpu.memory_space<vmem>>, vector<1x1x8x128xf32>,
    %c0_1331 = arith.constant 0 : index
    %c15_1332 = arith.constant 15 : index
    %c0_1333 = arith.constant 0 : index
    %c0_1334 = arith.constant 0 : index
    %1570 = vector.load %arg9[%c0_1331, %c15_1332, %c0_1333, %c0_1334] : memref<1x18x8x128xf32, #tpu.memory_space<vmem>>, vector<1x1x8x128xf32>
    %1571 = vector.shape_cast %1570 : vector<1x1x8x128xf32> to vector<8x128xf32>
    %1572 = vector.shape_cast %1450 : vector<8x128xf32> to vector<1x1x8x128xf32>
    tpu.vector_store %arg9[%c0_1331, %c15_1332, %c0_1333, %c0_1334], %1572 {strides = array<i32>} : memref<1x18x8x128xf32, #tpu.memory_space<vmem>>, vector<1x1x8x128xf32>,
    %c0_1335 = arith.constant 0 : index
    %c7_1336 = arith.constant 7 : index
    %c0_1337 = arith.constant 0 : index
    %c0_1338 = arith.constant 0 : index
    %1573 = vector.load %arg9[%c0_1335, %c7_1336, %c0_1337, %c0_1338] : memref<1x18x8x128xf32, #tpu.memory_space<vmem>>, vector<1x1x8x128xf32>
    %1574 = vector.shape_cast %1573 : vector<1x1x8x128xf32> to vector<8x128xf32>
    %1575 = vector.shape_cast %1487 : vector<8x128xf32> to vector<1x1x8x128xf32>
    tpu.vector_store %arg9[%c0_1335, %c7_1336, %c0_1337, %c0_1338], %1575 {strides = array<i32>} : memref<1x18x8x128xf32, #tpu.memory_space<vmem>>, vector<1x1x8x128xf32>,
    %c0_1339 = arith.constant 0 : index
    %c16_1340 = arith.constant 16 : index
    %c0_1341 = arith.constant 0 : index
    %c0_1342 = arith.constant 0 : index
    %1576 = vector.load %arg9[%c0_1339, %c16_1340, %c0_1341, %c0_1342] : memref<1x18x8x128xf32, #tpu.memory_space<vmem>>, vector<1x1x8x128xf32>
    %1577 = vector.shape_cast %1576 : vector<1x1x8x128xf32> to vector<8x128xf32>
    %1578 = vector.shape_cast %1490 : vector<8x128xf32> to vector<1x1x8x128xf32>
    tpu.vector_store %arg9[%c0_1339, %c16_1340, %c0_1341, %c0_1342], %1578 {strides = array<i32>} : memref<1x18x8x128xf32, #tpu.memory_space<vmem>>, vector<1x1x8x128xf32>,
    %c0_1343 = arith.constant 0 : index
    %c8_1344 = arith.constant 8 : index
    %c0_1345 = arith.constant 0 : index
    %c0_1346 = arith.constant 0 : index
    %1579 = vector.load %arg9[%c0_1343, %c8_1344, %c0_1345, %c0_1346] : memref<1x18x8x128xf32, #tpu.memory_space<vmem>>, vector<1x1x8x128xf32>
    %1580 = vector.shape_cast %1579 : vector<1x1x8x128xf32> to vector<8x128xf32>
    %1581 = vector.shape_cast %1527 : vector<8x128xf32> to vector<1x1x8x128xf32>
    tpu.vector_store %arg9[%c0_1343, %c8_1344, %c0_1345, %c0_1346], %1581 {strides = array<i32>} : memref<1x18x8x128xf32, #tpu.memory_space<vmem>>, vector<1x1x8x128xf32>,
    %c0_1347 = arith.constant 0 : index
    %c17_1348 = arith.constant 17 : index
    %c0_1349 = arith.constant 0 : index
    %c0_1350 = arith.constant 0 : index
    %1582 = vector.load %arg9[%c0_1347, %c17_1348, %c0_1349, %c0_1350] : memref<1x18x8x128xf32, #tpu.memory_space<vmem>>, vector<1x1x8x128xf32>
    %1583 = vector.shape_cast %1582 : vector<1x1x8x128xf32> to vector<8x128xf32>
    %1584 = vector.shape_cast %1530 : vector<8x128xf32> to vector<1x1x8x128xf32>
    tpu.vector_store %arg9[%c0_1347, %c17_1348, %c0_1349, %c0_1350], %1584 {strides = array<i32>} : memref<1x18x8x128xf32, #tpu.memory_space<vmem>>, vector<1x1x8x128xf32>,
    %c0_1351 = arith.constant 0 : index
    %c0_1352 = arith.constant 0 : index
    %c0_1353 = arith.constant 0 : index
    %c0_1354 = arith.constant 0 : index
    %1585 = vector.load %arg8[%c0_1351, %c0_1352, %c0_1353, %c0_1354] : memref<1x18x8x128xf32, #tpu.memory_space<vmem>>, vector<1x1x8x128xf32>
    %1586 = vector.shape_cast %1585 : vector<1x1x8x128xf32> to vector<8x128xf32>
    %c0_1355 = arith.constant 0 : index
    %c9_1356 = arith.constant 9 : index
    %c0_1357 = arith.constant 0 : index
    %c0_1358 = arith.constant 0 : index
    %1587 = vector.load %arg8[%c0_1355, %c9_1356, %c0_1357, %c0_1358] : memref<1x18x8x128xf32, #tpu.memory_space<vmem>>, vector<1x1x8x128xf32>
    %1588 = vector.shape_cast %1587 : vector<1x1x8x128xf32> to vector<8x128xf32>
    %1589 = arith.mulf %931, %1586 : vector<8x128xf32>
    %1590 = arith.mulf %934, %1588 : vector<8x128xf32>
    %1591 = arith.addf %1589, %1590 : vector<8x128xf32>
    %1592 = arith.mulf %934, %1586 : vector<8x128xf32>
    %1593 = arith.mulf %931, %1588 : vector<8x128xf32>
    %1594 = arith.subf %1592, %1593 : vector<8x128xf32>
    %c0_1359 = arith.constant 0 : index
    %c1_1360 = arith.constant 1 : index
    %c0_1361 = arith.constant 0 : index
    %c0_1362 = arith.constant 0 : index
    %1595 = vector.load %arg8[%c0_1359, %c1_1360, %c0_1361, %c0_1362] : memref<1x18x8x128xf32, #tpu.memory_space<vmem>>, vector<1x1x8x128xf32>
    %1596 = vector.shape_cast %1595 : vector<1x1x8x128xf32> to vector<8x128xf32>
    %c0_1363 = arith.constant 0 : index
    %c10_1364 = arith.constant 10 : index
    %c0_1365 = arith.constant 0 : index
    %c0_1366 = arith.constant 0 : index
    %1597 = vector.load %arg8[%c0_1363, %c10_1364, %c0_1365, %c0_1366] : memref<1x18x8x128xf32, #tpu.memory_space<vmem>>, vector<1x1x8x128xf32>
    %1598 = vector.shape_cast %1597 : vector<1x1x8x128xf32> to vector<8x128xf32>
    %1599 = arith.mulf %971, %1596 : vector<8x128xf32>
    %1600 = arith.mulf %974, %1598 : vector<8x128xf32>
    %1601 = arith.addf %1599, %1600 : vector<8x128xf32>
    %1602 = arith.mulf %974, %1596 : vector<8x128xf32>
    %1603 = arith.mulf %971, %1598 : vector<8x128xf32>
    %1604 = arith.subf %1602, %1603 : vector<8x128xf32>
    %1605 = arith.addf %1591, %1601 : vector<8x128xf32>
    %1606 = arith.addf %1594, %1604 : vector<8x128xf32>
    %c0_1367 = arith.constant 0 : index
    %c2_1368 = arith.constant 2 : index
    %c0_1369 = arith.constant 0 : index
    %c0_1370 = arith.constant 0 : index
    %1607 = vector.load %arg8[%c0_1367, %c2_1368, %c0_1369, %c0_1370] : memref<1x18x8x128xf32, #tpu.memory_space<vmem>>, vector<1x1x8x128xf32>
    %1608 = vector.shape_cast %1607 : vector<1x1x8x128xf32> to vector<8x128xf32>
    %c0_1371 = arith.constant 0 : index
    %c11_1372 = arith.constant 11 : index
    %c0_1373 = arith.constant 0 : index
    %c0_1374 = arith.constant 0 : index
    %1609 = vector.load %arg8[%c0_1371, %c11_1372, %c0_1373, %c0_1374] : memref<1x18x8x128xf32, #tpu.memory_space<vmem>>, vector<1x1x8x128xf32>
    %1610 = vector.shape_cast %1609 : vector<1x1x8x128xf32> to vector<8x128xf32>
    %1611 = arith.mulf %1011, %1608 : vector<8x128xf32>
    %1612 = arith.mulf %1014, %1610 : vector<8x128xf32>
    %1613 = arith.addf %1611, %1612 : vector<8x128xf32>
    %1614 = arith.mulf %1014, %1608 : vector<8x128xf32>
    %1615 = arith.mulf %1011, %1610 : vector<8x128xf32>
    %1616 = arith.subf %1614, %1615 : vector<8x128xf32>
    %1617 = arith.addf %1605, %1613 : vector<8x128xf32>
    %1618 = arith.addf %1606, %1616 : vector<8x128xf32>
    %c0_1375 = arith.constant 0 : index
    %c3_1376 = arith.constant 3 : index
    %c0_1377 = arith.constant 0 : index
    %c0_1378 = arith.constant 0 : index
    %1619 = vector.load %arg8[%c0_1375, %c3_1376, %c0_1377, %c0_1378] : memref<1x18x8x128xf32, #tpu.memory_space<vmem>>, vector<1x1x8x128xf32>
    %1620 = vector.shape_cast %1619 : vector<1x1x8x128xf32> to vector<8x128xf32>
    %c0_1379 = arith.constant 0 : index
    %c12_1380 = arith.constant 12 : index
    %c0_1381 = arith.constant 0 : index
    %c0_1382 = arith.constant 0 : index
    %1621 = vector.load %arg8[%c0_1379, %c12_1380, %c0_1381, %c0_1382] : memref<1x18x8x128xf32, #tpu.memory_space<vmem>>, vector<1x1x8x128xf32>
    %1622 = vector.shape_cast %1621 : vector<1x1x8x128xf32> to vector<8x128xf32>
    %1623 = arith.mulf %931, %1620 : vector<8x128xf32>
    %1624 = arith.mulf %934, %1622 : vector<8x128xf32>
    %1625 = arith.addf %1623, %1624 : vector<8x128xf32>
    %1626 = arith.mulf %934, %1620 : vector<8x128xf32>
    %1627 = arith.mulf %931, %1622 : vector<8x128xf32>
    %1628 = arith.subf %1626, %1627 : vector<8x128xf32>
    %c0_1383 = arith.constant 0 : index
    %c4_1384 = arith.constant 4 : index
    %c0_1385 = arith.constant 0 : index
    %c0_1386 = arith.constant 0 : index
    %1629 = vector.load %arg8[%c0_1383, %c4_1384, %c0_1385, %c0_1386] : memref<1x18x8x128xf32, #tpu.memory_space<vmem>>, vector<1x1x8x128xf32>
    %1630 = vector.shape_cast %1629 : vector<1x1x8x128xf32> to vector<8x128xf32>
    %c0_1387 = arith.constant 0 : index
    %c13_1388 = arith.constant 13 : index
    %c0_1389 = arith.constant 0 : index
    %c0_1390 = arith.constant 0 : index
    %1631 = vector.load %arg8[%c0_1387, %c13_1388, %c0_1389, %c0_1390] : memref<1x18x8x128xf32, #tpu.memory_space<vmem>>, vector<1x1x8x128xf32>
    %1632 = vector.shape_cast %1631 : vector<1x1x8x128xf32> to vector<8x128xf32>
    %1633 = arith.mulf %971, %1630 : vector<8x128xf32>
    %1634 = arith.mulf %974, %1632 : vector<8x128xf32>
    %1635 = arith.addf %1633, %1634 : vector<8x128xf32>
    %1636 = arith.mulf %974, %1630 : vector<8x128xf32>
    %1637 = arith.mulf %971, %1632 : vector<8x128xf32>
    %1638 = arith.subf %1636, %1637 : vector<8x128xf32>
    %1639 = arith.addf %1625, %1635 : vector<8x128xf32>
    %1640 = arith.addf %1628, %1638 : vector<8x128xf32>
    %c0_1391 = arith.constant 0 : index
    %c5_1392 = arith.constant 5 : index
    %c0_1393 = arith.constant 0 : index
    %c0_1394 = arith.constant 0 : index
    %1641 = vector.load %arg8[%c0_1391, %c5_1392, %c0_1393, %c0_1394] : memref<1x18x8x128xf32, #tpu.memory_space<vmem>>, vector<1x1x8x128xf32>
    %1642 = vector.shape_cast %1641 : vector<1x1x8x128xf32> to vector<8x128xf32>
    %c0_1395 = arith.constant 0 : index
    %c14_1396 = arith.constant 14 : index
    %c0_1397 = arith.constant 0 : index
    %c0_1398 = arith.constant 0 : index
    %1643 = vector.load %arg8[%c0_1395, %c14_1396, %c0_1397, %c0_1398] : memref<1x18x8x128xf32, #tpu.memory_space<vmem>>, vector<1x1x8x128xf32>
    %1644 = vector.shape_cast %1643 : vector<1x1x8x128xf32> to vector<8x128xf32>
    %1645 = arith.mulf %1011, %1642 : vector<8x128xf32>
    %1646 = arith.mulf %1014, %1644 : vector<8x128xf32>
    %1647 = arith.addf %1645, %1646 : vector<8x128xf32>
    %1648 = arith.mulf %1014, %1642 : vector<8x128xf32>
    %1649 = arith.mulf %1011, %1644 : vector<8x128xf32>
    %1650 = arith.subf %1648, %1649 : vector<8x128xf32>
    %1651 = arith.addf %1639, %1647 : vector<8x128xf32>
    %1652 = arith.addf %1640, %1650 : vector<8x128xf32>
    %c0_1399 = arith.constant 0 : index
    %c6_1400 = arith.constant 6 : index
    %c0_1401 = arith.constant 0 : index
    %c0_1402 = arith.constant 0 : index
    %1653 = vector.load %arg8[%c0_1399, %c6_1400, %c0_1401, %c0_1402] : memref<1x18x8x128xf32, #tpu.memory_space<vmem>>, vector<1x1x8x128xf32>
    %1654 = vector.shape_cast %1653 : vector<1x1x8x128xf32> to vector<8x128xf32>
    %c0_1403 = arith.constant 0 : index
    %c15_1404 = arith.constant 15 : index
    %c0_1405 = arith.constant 0 : index
    %c0_1406 = arith.constant 0 : index
    %1655 = vector.load %arg8[%c0_1403, %c15_1404, %c0_1405, %c0_1406] : memref<1x18x8x128xf32, #tpu.memory_space<vmem>>, vector<1x1x8x128xf32>
    %1656 = vector.shape_cast %1655 : vector<1x1x8x128xf32> to vector<8x128xf32>
    %1657 = arith.mulf %931, %1654 : vector<8x128xf32>
    %1658 = arith.mulf %934, %1656 : vector<8x128xf32>
    %1659 = arith.addf %1657, %1658 : vector<8x128xf32>
    %1660 = arith.mulf %934, %1654 : vector<8x128xf32>
    %1661 = arith.mulf %931, %1656 : vector<8x128xf32>
    %1662 = arith.subf %1660, %1661 : vector<8x128xf32>
    %c0_1407 = arith.constant 0 : index
    %c7_1408 = arith.constant 7 : index
    %c0_1409 = arith.constant 0 : index
    %c0_1410 = arith.constant 0 : index
    %1663 = vector.load %arg8[%c0_1407, %c7_1408, %c0_1409, %c0_1410] : memref<1x18x8x128xf32, #tpu.memory_space<vmem>>, vector<1x1x8x128xf32>
    %1664 = vector.shape_cast %1663 : vector<1x1x8x128xf32> to vector<8x128xf32>
    %c0_1411 = arith.constant 0 : index
    %c16_1412 = arith.constant 16 : index
    %c0_1413 = arith.constant 0 : index
    %c0_1414 = arith.constant 0 : index
    %1665 = vector.load %arg8[%c0_1411, %c16_1412, %c0_1413, %c0_1414] : memref<1x18x8x128xf32, #tpu.memory_space<vmem>>, vector<1x1x8x128xf32>
    %1666 = vector.shape_cast %1665 : vector<1x1x8x128xf32> to vector<8x128xf32>
    %1667 = arith.mulf %971, %1664 : vector<8x128xf32>
    %1668 = arith.mulf %974, %1666 : vector<8x128xf32>
    %1669 = arith.addf %1667, %1668 : vector<8x128xf32>
    %1670 = arith.mulf %974, %1664 : vector<8x128xf32>
    %1671 = arith.mulf %971, %1666 : vector<8x128xf32>
    %1672 = arith.subf %1670, %1671 : vector<8x128xf32>
    %1673 = arith.addf %1659, %1669 : vector<8x128xf32>
    %1674 = arith.addf %1662, %1672 : vector<8x128xf32>
    %c0_1415 = arith.constant 0 : index
    %c8_1416 = arith.constant 8 : index
    %c0_1417 = arith.constant 0 : index
    %c0_1418 = arith.constant 0 : index
    %1675 = vector.load %arg8[%c0_1415, %c8_1416, %c0_1417, %c0_1418] : memref<1x18x8x128xf32, #tpu.memory_space<vmem>>, vector<1x1x8x128xf32>
    %1676 = vector.shape_cast %1675 : vector<1x1x8x128xf32> to vector<8x128xf32>
    %c0_1419 = arith.constant 0 : index
    %c17_1420 = arith.constant 17 : index
    %c0_1421 = arith.constant 0 : index
    %c0_1422 = arith.constant 0 : index
    %1677 = vector.load %arg8[%c0_1419, %c17_1420, %c0_1421, %c0_1422] : memref<1x18x8x128xf32, #tpu.memory_space<vmem>>, vector<1x1x8x128xf32>
    %1678 = vector.shape_cast %1677 : vector<1x1x8x128xf32> to vector<8x128xf32>
    %1679 = arith.mulf %1011, %1676 : vector<8x128xf32>
    %1680 = arith.mulf %1014, %1678 : vector<8x128xf32>
    %1681 = arith.addf %1679, %1680 : vector<8x128xf32>
    %1682 = arith.mulf %1014, %1676 : vector<8x128xf32>
    %1683 = arith.mulf %1011, %1678 : vector<8x128xf32>
    %1684 = arith.subf %1682, %1683 : vector<8x128xf32>
    %1685 = arith.addf %1673, %1681 : vector<8x128xf32>
    %1686 = arith.addf %1674, %1684 : vector<8x128xf32>
    %c0_1423 = arith.constant 0 : index
    %c0_1424 = arith.constant 0 : index
    %c0_1425 = arith.constant 0 : index
    %c0_1426 = arith.constant 0 : index
    %1687 = vector.load %arg8[%c0_1423, %c0_1424, %c0_1425, %c0_1426] : memref<1x18x8x128xf32, #tpu.memory_space<vmem>>, vector<1x1x8x128xf32>
    %1688 = vector.shape_cast %1687 : vector<1x1x8x128xf32> to vector<8x128xf32>
    %c0_1427 = arith.constant 0 : index
    %c9_1428 = arith.constant 9 : index
    %c0_1429 = arith.constant 0 : index
    %c0_1430 = arith.constant 0 : index
    %1689 = vector.load %arg8[%c0_1427, %c9_1428, %c0_1429, %c0_1430] : memref<1x18x8x128xf32, #tpu.memory_space<vmem>>, vector<1x1x8x128xf32>
    %1690 = vector.shape_cast %1689 : vector<1x1x8x128xf32> to vector<8x128xf32>
    %1691 = arith.mulf %1189, %1688 : vector<8x128xf32>
    %1692 = arith.mulf %1192, %1690 : vector<8x128xf32>
    %1693 = arith.addf %1691, %1692 : vector<8x128xf32>
    %1694 = arith.mulf %1192, %1688 : vector<8x128xf32>
    %1695 = arith.mulf %1189, %1690 : vector<8x128xf32>
    %1696 = arith.subf %1694, %1695 : vector<8x128xf32>
    %c0_1431 = arith.constant 0 : index
    %c1_1432 = arith.constant 1 : index
    %c0_1433 = arith.constant 0 : index
    %c0_1434 = arith.constant 0 : index
    %1697 = vector.load %arg8[%c0_1431, %c1_1432, %c0_1433, %c0_1434] : memref<1x18x8x128xf32, #tpu.memory_space<vmem>>, vector<1x1x8x128xf32>
    %1698 = vector.shape_cast %1697 : vector<1x1x8x128xf32> to vector<8x128xf32>
    %c0_1435 = arith.constant 0 : index
    %c10_1436 = arith.constant 10 : index
    %c0_1437 = arith.constant 0 : index
    %c0_1438 = arith.constant 0 : index
    %1699 = vector.load %arg8[%c0_1435, %c10_1436, %c0_1437, %c0_1438] : memref<1x18x8x128xf32, #tpu.memory_space<vmem>>, vector<1x1x8x128xf32>
    %1700 = vector.shape_cast %1699 : vector<1x1x8x128xf32> to vector<8x128xf32>
    %1701 = arith.mulf %1229, %1698 : vector<8x128xf32>
    %1702 = arith.mulf %1232, %1700 : vector<8x128xf32>
    %1703 = arith.addf %1701, %1702 : vector<8x128xf32>
    %1704 = arith.mulf %1232, %1698 : vector<8x128xf32>
    %1705 = arith.mulf %1229, %1700 : vector<8x128xf32>
    %1706 = arith.subf %1704, %1705 : vector<8x128xf32>
    %1707 = arith.addf %1693, %1703 : vector<8x128xf32>
    %1708 = arith.addf %1696, %1706 : vector<8x128xf32>
    %c0_1439 = arith.constant 0 : index
    %c2_1440 = arith.constant 2 : index
    %c0_1441 = arith.constant 0 : index
    %c0_1442 = arith.constant 0 : index
    %1709 = vector.load %arg8[%c0_1439, %c2_1440, %c0_1441, %c0_1442] : memref<1x18x8x128xf32, #tpu.memory_space<vmem>>, vector<1x1x8x128xf32>
    %1710 = vector.shape_cast %1709 : vector<1x1x8x128xf32> to vector<8x128xf32>
    %c0_1443 = arith.constant 0 : index
    %c11_1444 = arith.constant 11 : index
    %c0_1445 = arith.constant 0 : index
    %c0_1446 = arith.constant 0 : index
    %1711 = vector.load %arg8[%c0_1443, %c11_1444, %c0_1445, %c0_1446] : memref<1x18x8x128xf32, #tpu.memory_space<vmem>>, vector<1x1x8x128xf32>
    %1712 = vector.shape_cast %1711 : vector<1x1x8x128xf32> to vector<8x128xf32>
    %1713 = arith.mulf %1269, %1710 : vector<8x128xf32>
    %1714 = arith.mulf %1272, %1712 : vector<8x128xf32>
    %1715 = arith.addf %1713, %1714 : vector<8x128xf32>
    %1716 = arith.mulf %1272, %1710 : vector<8x128xf32>
    %1717 = arith.mulf %1269, %1712 : vector<8x128xf32>
    %1718 = arith.subf %1716, %1717 : vector<8x128xf32>
    %1719 = arith.addf %1707, %1715 : vector<8x128xf32>
    %1720 = arith.addf %1708, %1718 : vector<8x128xf32>
    %c0_1447 = arith.constant 0 : index
    %c3_1448 = arith.constant 3 : index
    %c0_1449 = arith.constant 0 : index
    %c0_1450 = arith.constant 0 : index
    %1721 = vector.load %arg8[%c0_1447, %c3_1448, %c0_1449, %c0_1450] : memref<1x18x8x128xf32, #tpu.memory_space<vmem>>, vector<1x1x8x128xf32>
    %1722 = vector.shape_cast %1721 : vector<1x1x8x128xf32> to vector<8x128xf32>
    %c0_1451 = arith.constant 0 : index
    %c12_1452 = arith.constant 12 : index
    %c0_1453 = arith.constant 0 : index
    %c0_1454 = arith.constant 0 : index
    %1723 = vector.load %arg8[%c0_1451, %c12_1452, %c0_1453, %c0_1454] : memref<1x18x8x128xf32, #tpu.memory_space<vmem>>, vector<1x1x8x128xf32>
    %1724 = vector.shape_cast %1723 : vector<1x1x8x128xf32> to vector<8x128xf32>
    %1725 = arith.mulf %1189, %1722 : vector<8x128xf32>
    %1726 = arith.mulf %1192, %1724 : vector<8x128xf32>
    %1727 = arith.addf %1725, %1726 : vector<8x128xf32>
    %1728 = arith.mulf %1192, %1722 : vector<8x128xf32>
    %1729 = arith.mulf %1189, %1724 : vector<8x128xf32>
    %1730 = arith.subf %1728, %1729 : vector<8x128xf32>
    %c0_1455 = arith.constant 0 : index
    %c4_1456 = arith.constant 4 : index
    %c0_1457 = arith.constant 0 : index
    %c0_1458 = arith.constant 0 : index
    %1731 = vector.load %arg8[%c0_1455, %c4_1456, %c0_1457, %c0_1458] : memref<1x18x8x128xf32, #tpu.memory_space<vmem>>, vector<1x1x8x128xf32>
    %1732 = vector.shape_cast %1731 : vector<1x1x8x128xf32> to vector<8x128xf32>
    %c0_1459 = arith.constant 0 : index
    %c13_1460 = arith.constant 13 : index
    %c0_1461 = arith.constant 0 : index
    %c0_1462 = arith.constant 0 : index
    %1733 = vector.load %arg8[%c0_1459, %c13_1460, %c0_1461, %c0_1462] : memref<1x18x8x128xf32, #tpu.memory_space<vmem>>, vector<1x1x8x128xf32>
    %1734 = vector.shape_cast %1733 : vector<1x1x8x128xf32> to vector<8x128xf32>
    %1735 = arith.mulf %1229, %1732 : vector<8x128xf32>
    %1736 = arith.mulf %1232, %1734 : vector<8x128xf32>
    %1737 = arith.addf %1735, %1736 : vector<8x128xf32>
    %1738 = arith.mulf %1232, %1732 : vector<8x128xf32>
    %1739 = arith.mulf %1229, %1734 : vector<8x128xf32>
    %1740 = arith.subf %1738, %1739 : vector<8x128xf32>
    %1741 = arith.addf %1727, %1737 : vector<8x128xf32>
    %1742 = arith.addf %1730, %1740 : vector<8x128xf32>
    %c0_1463 = arith.constant 0 : index
    %c5_1464 = arith.constant 5 : index
    %c0_1465 = arith.constant 0 : index
    %c0_1466 = arith.constant 0 : index
    %1743 = vector.load %arg8[%c0_1463, %c5_1464, %c0_1465, %c0_1466] : memref<1x18x8x128xf32, #tpu.memory_space<vmem>>, vector<1x1x8x128xf32>
    %1744 = vector.shape_cast %1743 : vector<1x1x8x128xf32> to vector<8x128xf32>
    %c0_1467 = arith.constant 0 : index
    %c14_1468 = arith.constant 14 : index
    %c0_1469 = arith.constant 0 : index
    %c0_1470 = arith.constant 0 : index
    %1745 = vector.load %arg8[%c0_1467, %c14_1468, %c0_1469, %c0_1470] : memref<1x18x8x128xf32, #tpu.memory_space<vmem>>, vector<1x1x8x128xf32>
    %1746 = vector.shape_cast %1745 : vector<1x1x8x128xf32> to vector<8x128xf32>
    %1747 = arith.mulf %1269, %1744 : vector<8x128xf32>
    %1748 = arith.mulf %1272, %1746 : vector<8x128xf32>
    %1749 = arith.addf %1747, %1748 : vector<8x128xf32>
    %1750 = arith.mulf %1272, %1744 : vector<8x128xf32>
    %1751 = arith.mulf %1269, %1746 : vector<8x128xf32>
    %1752 = arith.subf %1750, %1751 : vector<8x128xf32>
    %1753 = arith.addf %1741, %1749 : vector<8x128xf32>
    %1754 = arith.addf %1742, %1752 : vector<8x128xf32>
    %c0_1471 = arith.constant 0 : index
    %c6_1472 = arith.constant 6 : index
    %c0_1473 = arith.constant 0 : index
    %c0_1474 = arith.constant 0 : index
    %1755 = vector.load %arg8[%c0_1471, %c6_1472, %c0_1473, %c0_1474] : memref<1x18x8x128xf32, #tpu.memory_space<vmem>>, vector<1x1x8x128xf32>
    %1756 = vector.shape_cast %1755 : vector<1x1x8x128xf32> to vector<8x128xf32>
    %c0_1475 = arith.constant 0 : index
    %c15_1476 = arith.constant 15 : index
    %c0_1477 = arith.constant 0 : index
    %c0_1478 = arith.constant 0 : index
    %1757 = vector.load %arg8[%c0_1475, %c15_1476, %c0_1477, %c0_1478] : memref<1x18x8x128xf32, #tpu.memory_space<vmem>>, vector<1x1x8x128xf32>
    %1758 = vector.shape_cast %1757 : vector<1x1x8x128xf32> to vector<8x128xf32>
    %1759 = arith.mulf %1189, %1756 : vector<8x128xf32>
    %1760 = arith.mulf %1192, %1758 : vector<8x128xf32>
    %1761 = arith.addf %1759, %1760 : vector<8x128xf32>
    %1762 = arith.mulf %1192, %1756 : vector<8x128xf32>
    %1763 = arith.mulf %1189, %1758 : vector<8x128xf32>
    %1764 = arith.subf %1762, %1763 : vector<8x128xf32>
    %c0_1479 = arith.constant 0 : index
    %c7_1480 = arith.constant 7 : index
    %c0_1481 = arith.constant 0 : index
    %c0_1482 = arith.constant 0 : index
    %1765 = vector.load %arg8[%c0_1479, %c7_1480, %c0_1481, %c0_1482] : memref<1x18x8x128xf32, #tpu.memory_space<vmem>>, vector<1x1x8x128xf32>
    %1766 = vector.shape_cast %1765 : vector<1x1x8x128xf32> to vector<8x128xf32>
    %c0_1483 = arith.constant 0 : index
    %c16_1484 = arith.constant 16 : index
    %c0_1485 = arith.constant 0 : index
    %c0_1486 = arith.constant 0 : index
    %1767 = vector.load %arg8[%c0_1483, %c16_1484, %c0_1485, %c0_1486] : memref<1x18x8x128xf32, #tpu.memory_space<vmem>>, vector<1x1x8x128xf32>
    %1768 = vector.shape_cast %1767 : vector<1x1x8x128xf32> to vector<8x128xf32>
    %1769 = arith.mulf %1229, %1766 : vector<8x128xf32>
    %1770 = arith.mulf %1232, %1768 : vector<8x128xf32>
    %1771 = arith.addf %1769, %1770 : vector<8x128xf32>
    %1772 = arith.mulf %1232, %1766 : vector<8x128xf32>
    %1773 = arith.mulf %1229, %1768 : vector<8x128xf32>
    %1774 = arith.subf %1772, %1773 : vector<8x128xf32>
    %1775 = arith.addf %1761, %1771 : vector<8x128xf32>
    %1776 = arith.addf %1764, %1774 : vector<8x128xf32>
    %c0_1487 = arith.constant 0 : index
    %c8_1488 = arith.constant 8 : index
    %c0_1489 = arith.constant 0 : index
    %c0_1490 = arith.constant 0 : index
    %1777 = vector.load %arg8[%c0_1487, %c8_1488, %c0_1489, %c0_1490] : memref<1x18x8x128xf32, #tpu.memory_space<vmem>>, vector<1x1x8x128xf32>
    %1778 = vector.shape_cast %1777 : vector<1x1x8x128xf32> to vector<8x128xf32>
    %c0_1491 = arith.constant 0 : index
    %c17_1492 = arith.constant 17 : index
    %c0_1493 = arith.constant 0 : index
    %c0_1494 = arith.constant 0 : index
    %1779 = vector.load %arg8[%c0_1491, %c17_1492, %c0_1493, %c0_1494] : memref<1x18x8x128xf32, #tpu.memory_space<vmem>>, vector<1x1x8x128xf32>
    %1780 = vector.shape_cast %1779 : vector<1x1x8x128xf32> to vector<8x128xf32>
    %1781 = arith.mulf %1269, %1778 : vector<8x128xf32>
    %1782 = arith.mulf %1272, %1780 : vector<8x128xf32>
    %1783 = arith.addf %1781, %1782 : vector<8x128xf32>
    %1784 = arith.mulf %1272, %1778 : vector<8x128xf32>
    %1785 = arith.mulf %1269, %1780 : vector<8x128xf32>
    %1786 = arith.subf %1784, %1785 : vector<8x128xf32>
    %1787 = arith.addf %1775, %1783 : vector<8x128xf32>
    %1788 = arith.addf %1776, %1786 : vector<8x128xf32>
    %c0_1495 = arith.constant 0 : index
    %c0_1496 = arith.constant 0 : index
    %c0_1497 = arith.constant 0 : index
    %c0_1498 = arith.constant 0 : index
    %1789 = vector.load %arg8[%c0_1495, %c0_1496, %c0_1497, %c0_1498] : memref<1x18x8x128xf32, #tpu.memory_space<vmem>>, vector<1x1x8x128xf32>
    %1790 = vector.shape_cast %1789 : vector<1x1x8x128xf32> to vector<8x128xf32>
    %c0_1499 = arith.constant 0 : index
    %c9_1500 = arith.constant 9 : index
    %c0_1501 = arith.constant 0 : index
    %c0_1502 = arith.constant 0 : index
    %1791 = vector.load %arg8[%c0_1499, %c9_1500, %c0_1501, %c0_1502] : memref<1x18x8x128xf32, #tpu.memory_space<vmem>>, vector<1x1x8x128xf32>
    %1792 = vector.shape_cast %1791 : vector<1x1x8x128xf32> to vector<8x128xf32>
    %1793 = arith.mulf %1447, %1790 : vector<8x128xf32>
    %1794 = arith.mulf %1450, %1792 : vector<8x128xf32>
    %1795 = arith.addf %1793, %1794 : vector<8x128xf32>
    %1796 = arith.mulf %1450, %1790 : vector<8x128xf32>
    %1797 = arith.mulf %1447, %1792 : vector<8x128xf32>
    %1798 = arith.subf %1796, %1797 : vector<8x128xf32>
    %c0_1503 = arith.constant 0 : index
    %c1_1504 = arith.constant 1 : index
    %c0_1505 = arith.constant 0 : index
    %c0_1506 = arith.constant 0 : index
    %1799 = vector.load %arg8[%c0_1503, %c1_1504, %c0_1505, %c0_1506] : memref<1x18x8x128xf32, #tpu.memory_space<vmem>>, vector<1x1x8x128xf32>
    %1800 = vector.shape_cast %1799 : vector<1x1x8x128xf32> to vector<8x128xf32>
    %c0_1507 = arith.constant 0 : index
    %c10_1508 = arith.constant 10 : index
    %c0_1509 = arith.constant 0 : index
    %c0_1510 = arith.constant 0 : index
    %1801 = vector.load %arg8[%c0_1507, %c10_1508, %c0_1509, %c0_1510] : memref<1x18x8x128xf32, #tpu.memory_space<vmem>>, vector<1x1x8x128xf32>
    %1802 = vector.shape_cast %1801 : vector<1x1x8x128xf32> to vector<8x128xf32>
    %1803 = arith.mulf %1487, %1800 : vector<8x128xf32>
    %1804 = arith.mulf %1490, %1802 : vector<8x128xf32>
    %1805 = arith.addf %1803, %1804 : vector<8x128xf32>
    %1806 = arith.mulf %1490, %1800 : vector<8x128xf32>
    %1807 = arith.mulf %1487, %1802 : vector<8x128xf32>
    %1808 = arith.subf %1806, %1807 : vector<8x128xf32>
    %1809 = arith.addf %1795, %1805 : vector<8x128xf32>
    %1810 = arith.addf %1798, %1808 : vector<8x128xf32>
    %c0_1511 = arith.constant 0 : index
    %c2_1512 = arith.constant 2 : index
    %c0_1513 = arith.constant 0 : index
    %c0_1514 = arith.constant 0 : index
    %1811 = vector.load %arg8[%c0_1511, %c2_1512, %c0_1513, %c0_1514] : memref<1x18x8x128xf32, #tpu.memory_space<vmem>>, vector<1x1x8x128xf32>
    %1812 = vector.shape_cast %1811 : vector<1x1x8x128xf32> to vector<8x128xf32>
    %c0_1515 = arith.constant 0 : index
    %c11_1516 = arith.constant 11 : index
    %c0_1517 = arith.constant 0 : index
    %c0_1518 = arith.constant 0 : index
    %1813 = vector.load %arg8[%c0_1515, %c11_1516, %c0_1517, %c0_1518] : memref<1x18x8x128xf32, #tpu.memory_space<vmem>>, vector<1x1x8x128xf32>
    %1814 = vector.shape_cast %1813 : vector<1x1x8x128xf32> to vector<8x128xf32>
    %1815 = arith.mulf %1527, %1812 : vector<8x128xf32>
    %1816 = arith.mulf %1530, %1814 : vector<8x128xf32>
    %1817 = arith.addf %1815, %1816 : vector<8x128xf32>
    %1818 = arith.mulf %1530, %1812 : vector<8x128xf32>
    %1819 = arith.mulf %1527, %1814 : vector<8x128xf32>
    %1820 = arith.subf %1818, %1819 : vector<8x128xf32>
    %1821 = arith.addf %1809, %1817 : vector<8x128xf32>
    %1822 = arith.addf %1810, %1820 : vector<8x128xf32>
    %c0_1519 = arith.constant 0 : index
    %c3_1520 = arith.constant 3 : index
    %c0_1521 = arith.constant 0 : index
    %c0_1522 = arith.constant 0 : index
    %1823 = vector.load %arg8[%c0_1519, %c3_1520, %c0_1521, %c0_1522] : memref<1x18x8x128xf32, #tpu.memory_space<vmem>>, vector<1x1x8x128xf32>
    %1824 = vector.shape_cast %1823 : vector<1x1x8x128xf32> to vector<8x128xf32>
    %c0_1523 = arith.constant 0 : index
    %c12_1524 = arith.constant 12 : index
    %c0_1525 = arith.constant 0 : index
    %c0_1526 = arith.constant 0 : index
    %1825 = vector.load %arg8[%c0_1523, %c12_1524, %c0_1525, %c0_1526] : memref<1x18x8x128xf32, #tpu.memory_space<vmem>>, vector<1x1x8x128xf32>
    %1826 = vector.shape_cast %1825 : vector<1x1x8x128xf32> to vector<8x128xf32>
    %1827 = arith.mulf %1447, %1824 : vector<8x128xf32>
    %1828 = arith.mulf %1450, %1826 : vector<8x128xf32>
    %1829 = arith.addf %1827, %1828 : vector<8x128xf32>
    %1830 = arith.mulf %1450, %1824 : vector<8x128xf32>
    %1831 = arith.mulf %1447, %1826 : vector<8x128xf32>
    %1832 = arith.subf %1830, %1831 : vector<8x128xf32>
    %c0_1527 = arith.constant 0 : index
    %c4_1528 = arith.constant 4 : index
    %c0_1529 = arith.constant 0 : index
    %c0_1530 = arith.constant 0 : index
    %1833 = vector.load %arg8[%c0_1527, %c4_1528, %c0_1529, %c0_1530] : memref<1x18x8x128xf32, #tpu.memory_space<vmem>>, vector<1x1x8x128xf32>
    %1834 = vector.shape_cast %1833 : vector<1x1x8x128xf32> to vector<8x128xf32>
    %c0_1531 = arith.constant 0 : index
    %c13_1532 = arith.constant 13 : index
    %c0_1533 = arith.constant 0 : index
    %c0_1534 = arith.constant 0 : index
    %1835 = vector.load %arg8[%c0_1531, %c13_1532, %c0_1533, %c0_1534] : memref<1x18x8x128xf32, #tpu.memory_space<vmem>>, vector<1x1x8x128xf32>
    %1836 = vector.shape_cast %1835 : vector<1x1x8x128xf32> to vector<8x128xf32>
    %1837 = arith.mulf %1487, %1834 : vector<8x128xf32>
    %1838 = arith.mulf %1490, %1836 : vector<8x128xf32>
    %1839 = arith.addf %1837, %1838 : vector<8x128xf32>
    %1840 = arith.mulf %1490, %1834 : vector<8x128xf32>
    %1841 = arith.mulf %1487, %1836 : vector<8x128xf32>
    %1842 = arith.subf %1840, %1841 : vector<8x128xf32>
    %1843 = arith.addf %1829, %1839 : vector<8x128xf32>
    %1844 = arith.addf %1832, %1842 : vector<8x128xf32>
    %c0_1535 = arith.constant 0 : index
    %c5_1536 = arith.constant 5 : index
    %c0_1537 = arith.constant 0 : index
    %c0_1538 = arith.constant 0 : index
    %1845 = vector.load %arg8[%c0_1535, %c5_1536, %c0_1537, %c0_1538] : memref<1x18x8x128xf32, #tpu.memory_space<vmem>>, vector<1x1x8x128xf32>
    %1846 = vector.shape_cast %1845 : vector<1x1x8x128xf32> to vector<8x128xf32>
    %c0_1539 = arith.constant 0 : index
    %c14_1540 = arith.constant 14 : index
    %c0_1541 = arith.constant 0 : index
    %c0_1542 = arith.constant 0 : index
    %1847 = vector.load %arg8[%c0_1539, %c14_1540, %c0_1541, %c0_1542] : memref<1x18x8x128xf32, #tpu.memory_space<vmem>>, vector<1x1x8x128xf32>
    %1848 = vector.shape_cast %1847 : vector<1x1x8x128xf32> to vector<8x128xf32>
    %1849 = arith.mulf %1527, %1846 : vector<8x128xf32>
    %1850 = arith.mulf %1530, %1848 : vector<8x128xf32>
    %1851 = arith.addf %1849, %1850 : vector<8x128xf32>
    %1852 = arith.mulf %1530, %1846 : vector<8x128xf32>
    %1853 = arith.mulf %1527, %1848 : vector<8x128xf32>
    %1854 = arith.subf %1852, %1853 : vector<8x128xf32>
    %1855 = arith.addf %1843, %1851 : vector<8x128xf32>
    %1856 = arith.addf %1844, %1854 : vector<8x128xf32>
    %c0_1543 = arith.constant 0 : index
    %c6_1544 = arith.constant 6 : index
    %c0_1545 = arith.constant 0 : index
    %c0_1546 = arith.constant 0 : index
    %1857 = vector.load %arg8[%c0_1543, %c6_1544, %c0_1545, %c0_1546] : memref<1x18x8x128xf32, #tpu.memory_space<vmem>>, vector<1x1x8x128xf32>
    %1858 = vector.shape_cast %1857 : vector<1x1x8x128xf32> to vector<8x128xf32>
    %c0_1547 = arith.constant 0 : index
    %c15_1548 = arith.constant 15 : index
    %c0_1549 = arith.constant 0 : index
    %c0_1550 = arith.constant 0 : index
    %1859 = vector.load %arg8[%c0_1547, %c15_1548, %c0_1549, %c0_1550] : memref<1x18x8x128xf32, #tpu.memory_space<vmem>>, vector<1x1x8x128xf32>
    %1860 = vector.shape_cast %1859 : vector<1x1x8x128xf32> to vector<8x128xf32>
    %1861 = arith.mulf %1447, %1858 : vector<8x128xf32>
    %1862 = arith.mulf %1450, %1860 : vector<8x128xf32>
    %1863 = arith.addf %1861, %1862 : vector<8x128xf32>
    %1864 = arith.mulf %1450, %1858 : vector<8x128xf32>
    %1865 = arith.mulf %1447, %1860 : vector<8x128xf32>
    %1866 = arith.subf %1864, %1865 : vector<8x128xf32>
    %c0_1551 = arith.constant 0 : index
    %c7_1552 = arith.constant 7 : index
    %c0_1553 = arith.constant 0 : index
    %c0_1554 = arith.constant 0 : index
    %1867 = vector.load %arg8[%c0_1551, %c7_1552, %c0_1553, %c0_1554] : memref<1x18x8x128xf32, #tpu.memory_space<vmem>>, vector<1x1x8x128xf32>
    %1868 = vector.shape_cast %1867 : vector<1x1x8x128xf32> to vector<8x128xf32>
    %c0_1555 = arith.constant 0 : index
    %c16_1556 = arith.constant 16 : index
    %c0_1557 = arith.constant 0 : index
    %c0_1558 = arith.constant 0 : index
    %1869 = vector.load %arg8[%c0_1555, %c16_1556, %c0_1557, %c0_1558] : memref<1x18x8x128xf32, #tpu.memory_space<vmem>>, vector<1x1x8x128xf32>
    %1870 = vector.shape_cast %1869 : vector<1x1x8x128xf32> to vector<8x128xf32>
    %1871 = arith.mulf %1487, %1868 : vector<8x128xf32>
    %1872 = arith.mulf %1490, %1870 : vector<8x128xf32>
    %1873 = arith.addf %1871, %1872 : vector<8x128xf32>
    %1874 = arith.mulf %1490, %1868 : vector<8x128xf32>
    %1875 = arith.mulf %1487, %1870 : vector<8x128xf32>
    %1876 = arith.subf %1874, %1875 : vector<8x128xf32>
    %1877 = arith.addf %1863, %1873 : vector<8x128xf32>
    %1878 = arith.addf %1866, %1876 : vector<8x128xf32>
    %c0_1559 = arith.constant 0 : index
    %c8_1560 = arith.constant 8 : index
    %c0_1561 = arith.constant 0 : index
    %c0_1562 = arith.constant 0 : index
    %1879 = vector.load %arg8[%c0_1559, %c8_1560, %c0_1561, %c0_1562] : memref<1x18x8x128xf32, #tpu.memory_space<vmem>>, vector<1x1x8x128xf32>
    %1880 = vector.shape_cast %1879 : vector<1x1x8x128xf32> to vector<8x128xf32>
    %c0_1563 = arith.constant 0 : index
    %c17_1564 = arith.constant 17 : index
    %c0_1565 = arith.constant 0 : index
    %c0_1566 = arith.constant 0 : index
    %1881 = vector.load %arg8[%c0_1563, %c17_1564, %c0_1565, %c0_1566] : memref<1x18x8x128xf32, #tpu.memory_space<vmem>>, vector<1x1x8x128xf32>
    %1882 = vector.shape_cast %1881 : vector<1x1x8x128xf32> to vector<8x128xf32>
    %1883 = arith.mulf %1527, %1880 : vector<8x128xf32>
    %1884 = arith.mulf %1530, %1882 : vector<8x128xf32>
    %1885 = arith.addf %1883, %1884 : vector<8x128xf32>
    %1886 = arith.mulf %1530, %1880 : vector<8x128xf32>
    %1887 = arith.mulf %1527, %1882 : vector<8x128xf32>
    %1888 = arith.subf %1886, %1887 : vector<8x128xf32>
    %1889 = arith.addf %1877, %1885 : vector<8x128xf32>
    %1890 = arith.addf %1878, %1888 : vector<8x128xf32>
    %1891 = arith.subf %1617, %1617 : vector<8x128xf32>
    %1892 = arith.subf %1719, %1651 : vector<8x128xf32>
    %1893 = arith.subf %1821, %1685 : vector<8x128xf32>
    %1894 = arith.subf %1651, %1719 : vector<8x128xf32>
    %1895 = arith.subf %1753, %1753 : vector<8x128xf32>
    %1896 = arith.subf %1855, %1787 : vector<8x128xf32>
    %1897 = arith.subf %1685, %1821 : vector<8x128xf32>
    %1898 = arith.subf %1787, %1855 : vector<8x128xf32>
    %1899 = arith.subf %1889, %1889 : vector<8x128xf32>
    %cst = arith.constant 0.000000e+00 : f32
    %1900 = vector.broadcast %cst : f32 to vector<8x128xf32>
    %1901 = arith.subf %1900, %1618 : vector<8x128xf32>
    %1902 = arith.subf %1901, %1618 : vector<8x128xf32>
    %cst_1567 = arith.constant 0.000000e+00 : f32
    %1903 = vector.broadcast %cst_1567 : f32 to vector<8x128xf32>
    %1904 = arith.subf %1903, %1720 : vector<8x128xf32>
    %1905 = arith.subf %1904, %1652 : vector<8x128xf32>
    %cst_1568 = arith.constant 0.000000e+00 : f32
    %1906 = vector.broadcast %cst_1568 : f32 to vector<8x128xf32>
    %1907 = arith.subf %1906, %1822 : vector<8x128xf32>
    %1908 = arith.subf %1907, %1686 : vector<8x128xf32>
    %cst_1569 = arith.constant 0.000000e+00 : f32
    %1909 = vector.broadcast %cst_1569 : f32 to vector<8x128xf32>
    %1910 = arith.subf %1909, %1652 : vector<8x128xf32>
    %1911 = arith.subf %1910, %1720 : vector<8x128xf32>
    %cst_1570 = arith.constant 0.000000e+00 : f32
    %1912 = vector.broadcast %cst_1570 : f32 to vector<8x128xf32>
    %1913 = arith.subf %1912, %1754 : vector<8x128xf32>
    %1914 = arith.subf %1913, %1754 : vector<8x128xf32>
    %cst_1571 = arith.constant 0.000000e+00 : f32
    %1915 = vector.broadcast %cst_1571 : f32 to vector<8x128xf32>
    %1916 = arith.subf %1915, %1856 : vector<8x128xf32>
    %1917 = arith.subf %1916, %1788 : vector<8x128xf32>
    %cst_1572 = arith.constant 0.000000e+00 : f32
    %1918 = vector.broadcast %cst_1572 : f32 to vector<8x128xf32>
    %1919 = arith.subf %1918, %1686 : vector<8x128xf32>
    %1920 = arith.subf %1919, %1822 : vector<8x128xf32>
    %cst_1573 = arith.constant 0.000000e+00 : f32
    %1921 = vector.broadcast %cst_1573 : f32 to vector<8x128xf32>
    %1922 = arith.subf %1921, %1788 : vector<8x128xf32>
    %1923 = arith.subf %1922, %1856 : vector<8x128xf32>
    %cst_1574 = arith.constant 0.000000e+00 : f32
    %1924 = vector.broadcast %cst_1574 : f32 to vector<8x128xf32>
    %1925 = arith.subf %1924, %1890 : vector<8x128xf32>
    %1926 = arith.subf %1925, %1890 : vector<8x128xf32>
    %1927 = arith.addf %1891, %1895 : vector<8x128xf32>
    %1928 = arith.addf %1927, %1899 : vector<8x128xf32>
    %cst_1575 = arith.constant 0.166666672 : f32
    %1929 = vector.broadcast %cst_1575 : f32 to vector<8x128xf32>
    %1930 = arith.mulf %1929, %1928 : vector<8x128xf32>
    %1931 = arith.addf %1902, %1914 : vector<8x128xf32>
    %1932 = arith.addf %1931, %1926 : vector<8x128xf32>
    %cst_1576 = arith.constant 0.166666672 : f32
    %1933 = vector.broadcast %cst_1576 : f32 to vector<8x128xf32>
    %1934 = arith.mulf %1933, %1932 : vector<8x128xf32>
    %cst_1577 = arith.constant -5.000000e-01 : f32
    %1935 = vector.broadcast %cst_1577 : f32 to vector<8x128xf32>
    %1936 = arith.mulf %1935, %1902 : vector<8x128xf32>
    %1937 = arith.addf %1936, %1934 : vector<8x128xf32>
    %cst_1578 = arith.constant -5.000000e-01 : f32
    %1938 = vector.broadcast %cst_1578 : f32 to vector<8x128xf32>
    %1939 = arith.mulf %1938, %1905 : vector<8x128xf32>
    %1940 = arith.addf %1939, %1934 : vector<8x128xf32>
    %cst_1579 = arith.constant -5.000000e-01 : f32
    %1941 = vector.broadcast %cst_1579 : f32 to vector<8x128xf32>
    %1942 = arith.mulf %1941, %1908 : vector<8x128xf32>
    %1943 = arith.addf %1942, %1934 : vector<8x128xf32>
    %cst_1580 = arith.constant -5.000000e-01 : f32
    %1944 = vector.broadcast %cst_1580 : f32 to vector<8x128xf32>
    %1945 = arith.mulf %1944, %1911 : vector<8x128xf32>
    %1946 = arith.addf %1945, %1934 : vector<8x128xf32>
    %cst_1581 = arith.constant -5.000000e-01 : f32
    %1947 = vector.broadcast %cst_1581 : f32 to vector<8x128xf32>
    %1948 = arith.mulf %1947, %1914 : vector<8x128xf32>
    %1949 = arith.addf %1948, %1934 : vector<8x128xf32>
    %cst_1582 = arith.constant -5.000000e-01 : f32
    %1950 = vector.broadcast %cst_1582 : f32 to vector<8x128xf32>
    %1951 = arith.mulf %1950, %1917 : vector<8x128xf32>
    %1952 = arith.addf %1951, %1934 : vector<8x128xf32>
    %cst_1583 = arith.constant -5.000000e-01 : f32
    %1953 = vector.broadcast %cst_1583 : f32 to vector<8x128xf32>
    %1954 = arith.mulf %1953, %1920 : vector<8x128xf32>
    %1955 = arith.addf %1954, %1934 : vector<8x128xf32>
    %cst_1584 = arith.constant -5.000000e-01 : f32
    %1956 = vector.broadcast %cst_1584 : f32 to vector<8x128xf32>
    %1957 = arith.mulf %1956, %1923 : vector<8x128xf32>
    %1958 = arith.addf %1957, %1934 : vector<8x128xf32>
    %cst_1585 = arith.constant -5.000000e-01 : f32
    %1959 = vector.broadcast %cst_1585 : f32 to vector<8x128xf32>
    %1960 = arith.mulf %1959, %1926 : vector<8x128xf32>
    %1961 = arith.addf %1960, %1934 : vector<8x128xf32>
    %cst_1586 = arith.constant 5.000000e-01 : f32
    %1962 = vector.broadcast %cst_1586 : f32 to vector<8x128xf32>
    %1963 = arith.mulf %1962, %1891 : vector<8x128xf32>
    %1964 = arith.subf %1963, %1930 : vector<8x128xf32>
    %cst_1587 = arith.constant 5.000000e-01 : f32
    %1965 = vector.broadcast %cst_1587 : f32 to vector<8x128xf32>
    %1966 = arith.mulf %1965, %1892 : vector<8x128xf32>
    %1967 = arith.subf %1966, %1930 : vector<8x128xf32>
    %cst_1588 = arith.constant 5.000000e-01 : f32
    %1968 = vector.broadcast %cst_1588 : f32 to vector<8x128xf32>
    %1969 = arith.mulf %1968, %1893 : vector<8x128xf32>
    %1970 = arith.subf %1969, %1930 : vector<8x128xf32>
    %cst_1589 = arith.constant 5.000000e-01 : f32
    %1971 = vector.broadcast %cst_1589 : f32 to vector<8x128xf32>
    %1972 = arith.mulf %1971, %1894 : vector<8x128xf32>
    %1973 = arith.subf %1972, %1930 : vector<8x128xf32>
    %cst_1590 = arith.constant 5.000000e-01 : f32
    %1974 = vector.broadcast %cst_1590 : f32 to vector<8x128xf32>
    %1975 = arith.mulf %1974, %1895 : vector<8x128xf32>
    %1976 = arith.subf %1975, %1930 : vector<8x128xf32>
    %cst_1591 = arith.constant 5.000000e-01 : f32
    %1977 = vector.broadcast %cst_1591 : f32 to vector<8x128xf32>
    %1978 = arith.mulf %1977, %1896 : vector<8x128xf32>
    %1979 = arith.subf %1978, %1930 : vector<8x128xf32>
    %cst_1592 = arith.constant 5.000000e-01 : f32
    %1980 = vector.broadcast %cst_1592 : f32 to vector<8x128xf32>
    %1981 = arith.mulf %1980, %1897 : vector<8x128xf32>
    %1982 = arith.subf %1981, %1930 : vector<8x128xf32>
    %cst_1593 = arith.constant 5.000000e-01 : f32
    %1983 = vector.broadcast %cst_1593 : f32 to vector<8x128xf32>
    %1984 = arith.mulf %1983, %1898 : vector<8x128xf32>
    %1985 = arith.subf %1984, %1930 : vector<8x128xf32>
    %cst_1594 = arith.constant 5.000000e-01 : f32
    %1986 = vector.broadcast %cst_1594 : f32 to vector<8x128xf32>
    %1987 = arith.mulf %1986, %1899 : vector<8x128xf32>
    %1988 = arith.subf %1987, %1930 : vector<8x128xf32>
    %c0_1595 = arith.constant 0 : index
    %c0_1596 = arith.constant 0 : index
    %c0_1597 = arith.constant 0 : index
    %c0_1598 = arith.constant 0 : index
    %1989 = vector.load %arg10[%c0_1595, %c0_1596, %c0_1597, %c0_1598] : memref<1x18x8x128xf32, #tpu.memory_space<vmem>>, vector<1x1x8x128xf32>
    %1990 = vector.shape_cast %1989 : vector<1x1x8x128xf32> to vector<8x128xf32>
    %1991 = vector.shape_cast %1937 : vector<8x128xf32> to vector<1x1x8x128xf32>
    tpu.vector_store %arg10[%c0_1595, %c0_1596, %c0_1597, %c0_1598], %1991 {strides = array<i32>} : memref<1x18x8x128xf32, #tpu.memory_space<vmem>>, vector<1x1x8x128xf32>,
    %c0_1599 = arith.constant 0 : index
    %c9_1600 = arith.constant 9 : index
    %c0_1601 = arith.constant 0 : index
    %c0_1602 = arith.constant 0 : index
    %1992 = vector.load %arg10[%c0_1599, %c9_1600, %c0_1601, %c0_1602] : memref<1x18x8x128xf32, #tpu.memory_space<vmem>>, vector<1x1x8x128xf32>
    %1993 = vector.shape_cast %1992 : vector<1x1x8x128xf32> to vector<8x128xf32>
    %1994 = vector.shape_cast %1964 : vector<8x128xf32> to vector<1x1x8x128xf32>
    tpu.vector_store %arg10[%c0_1599, %c9_1600, %c0_1601, %c0_1602], %1994 {strides = array<i32>} : memref<1x18x8x128xf32, #tpu.memory_space<vmem>>, vector<1x1x8x128xf32>,
    %c0_1603 = arith.constant 0 : index
    %c1_1604 = arith.constant 1 : index
    %c0_1605 = arith.constant 0 : index
    %c0_1606 = arith.constant 0 : index
    %1995 = vector.load %arg10[%c0_1603, %c1_1604, %c0_1605, %c0_1606] : memref<1x18x8x128xf32, #tpu.memory_space<vmem>>, vector<1x1x8x128xf32>
    %1996 = vector.shape_cast %1995 : vector<1x1x8x128xf32> to vector<8x128xf32>
    %1997 = vector.shape_cast %1940 : vector<8x128xf32> to vector<1x1x8x128xf32>
    tpu.vector_store %arg10[%c0_1603, %c1_1604, %c0_1605, %c0_1606], %1997 {strides = array<i32>} : memref<1x18x8x128xf32, #tpu.memory_space<vmem>>, vector<1x1x8x128xf32>,
    %c0_1607 = arith.constant 0 : index
    %c10_1608 = arith.constant 10 : index
    %c0_1609 = arith.constant 0 : index
    %c0_1610 = arith.constant 0 : index
    %1998 = vector.load %arg10[%c0_1607, %c10_1608, %c0_1609, %c0_1610] : memref<1x18x8x128xf32, #tpu.memory_space<vmem>>, vector<1x1x8x128xf32>
    %1999 = vector.shape_cast %1998 : vector<1x1x8x128xf32> to vector<8x128xf32>
    %2000 = vector.shape_cast %1967 : vector<8x128xf32> to vector<1x1x8x128xf32>
    tpu.vector_store %arg10[%c0_1607, %c10_1608, %c0_1609, %c0_1610], %2000 {strides = array<i32>} : memref<1x18x8x128xf32, #tpu.memory_space<vmem>>, vector<1x1x8x128xf32>,
    %c0_1611 = arith.constant 0 : index
    %c2_1612 = arith.constant 2 : index
    %c0_1613 = arith.constant 0 : index
    %c0_1614 = arith.constant 0 : index
    %2001 = vector.load %arg10[%c0_1611, %c2_1612, %c0_1613, %c0_1614] : memref<1x18x8x128xf32, #tpu.memory_space<vmem>>, vector<1x1x8x128xf32>
    %2002 = vector.shape_cast %2001 : vector<1x1x8x128xf32> to vector<8x128xf32>
    %2003 = vector.shape_cast %1943 : vector<8x128xf32> to vector<1x1x8x128xf32>
    tpu.vector_store %arg10[%c0_1611, %c2_1612, %c0_1613, %c0_1614], %2003 {strides = array<i32>} : memref<1x18x8x128xf32, #tpu.memory_space<vmem>>, vector<1x1x8x128xf32>,
    %c0_1615 = arith.constant 0 : index
    %c11_1616 = arith.constant 11 : index
    %c0_1617 = arith.constant 0 : index
    %c0_1618 = arith.constant 0 : index
    %2004 = vector.load %arg10[%c0_1615, %c11_1616, %c0_1617, %c0_1618] : memref<1x18x8x128xf32, #tpu.memory_space<vmem>>, vector<1x1x8x128xf32>
    %2005 = vector.shape_cast %2004 : vector<1x1x8x128xf32> to vector<8x128xf32>
    %2006 = vector.shape_cast %1970 : vector<8x128xf32> to vector<1x1x8x128xf32>
    tpu.vector_store %arg10[%c0_1615, %c11_1616, %c0_1617, %c0_1618], %2006 {strides = array<i32>} : memref<1x18x8x128xf32, #tpu.memory_space<vmem>>, vector<1x1x8x128xf32>,
    %c0_1619 = arith.constant 0 : index
    %c3_1620 = arith.constant 3 : index
    %c0_1621 = arith.constant 0 : index
    %c0_1622 = arith.constant 0 : index
    %2007 = vector.load %arg10[%c0_1619, %c3_1620, %c0_1621, %c0_1622] : memref<1x18x8x128xf32, #tpu.memory_space<vmem>>, vector<1x1x8x128xf32>
    %2008 = vector.shape_cast %2007 : vector<1x1x8x128xf32> to vector<8x128xf32>
    %2009 = vector.shape_cast %1946 : vector<8x128xf32> to vector<1x1x8x128xf32>
    tpu.vector_store %arg10[%c0_1619, %c3_1620, %c0_1621, %c0_1622], %2009 {strides = array<i32>} : memref<1x18x8x128xf32, #tpu.memory_space<vmem>>, vector<1x1x8x128xf32>,
    %c0_1623 = arith.constant 0 : index
    %c12_1624 = arith.constant 12 : index
    %c0_1625 = arith.constant 0 : index
    %c0_1626 = arith.constant 0 : index
    %2010 = vector.load %arg10[%c0_1623, %c12_1624, %c0_1625, %c0_1626] : memref<1x18x8x128xf32, #tpu.memory_space<vmem>>, vector<1x1x8x128xf32>
    %2011 = vector.shape_cast %2010 : vector<1x1x8x128xf32> to vector<8x128xf32>
    %2012 = vector.shape_cast %1973 : vector<8x128xf32> to vector<1x1x8x128xf32>
    tpu.vector_store %arg10[%c0_1623, %c12_1624, %c0_1625, %c0_1626], %2012 {strides = array<i32>} : memref<1x18x8x128xf32, #tpu.memory_space<vmem>>, vector<1x1x8x128xf32>,
    %c0_1627 = arith.constant 0 : index
    %c4_1628 = arith.constant 4 : index
    %c0_1629 = arith.constant 0 : index
    %c0_1630 = arith.constant 0 : index
    %2013 = vector.load %arg10[%c0_1627, %c4_1628, %c0_1629, %c0_1630] : memref<1x18x8x128xf32, #tpu.memory_space<vmem>>, vector<1x1x8x128xf32>
    %2014 = vector.shape_cast %2013 : vector<1x1x8x128xf32> to vector<8x128xf32>
    %2015 = vector.shape_cast %1949 : vector<8x128xf32> to vector<1x1x8x128xf32>
    tpu.vector_store %arg10[%c0_1627, %c4_1628, %c0_1629, %c0_1630], %2015 {strides = array<i32>} : memref<1x18x8x128xf32, #tpu.memory_space<vmem>>, vector<1x1x8x128xf32>,
    %c0_1631 = arith.constant 0 : index
    %c13_1632 = arith.constant 13 : index
    %c0_1633 = arith.constant 0 : index
    %c0_1634 = arith.constant 0 : index
    %2016 = vector.load %arg10[%c0_1631, %c13_1632, %c0_1633, %c0_1634] : memref<1x18x8x128xf32, #tpu.memory_space<vmem>>, vector<1x1x8x128xf32>
    %2017 = vector.shape_cast %2016 : vector<1x1x8x128xf32> to vector<8x128xf32>
    %2018 = vector.shape_cast %1976 : vector<8x128xf32> to vector<1x1x8x128xf32>
    tpu.vector_store %arg10[%c0_1631, %c13_1632, %c0_1633, %c0_1634], %2018 {strides = array<i32>} : memref<1x18x8x128xf32, #tpu.memory_space<vmem>>, vector<1x1x8x128xf32>,
    %c0_1635 = arith.constant 0 : index
    %c5_1636 = arith.constant 5 : index
    %c0_1637 = arith.constant 0 : index
    %c0_1638 = arith.constant 0 : index
    %2019 = vector.load %arg10[%c0_1635, %c5_1636, %c0_1637, %c0_1638] : memref<1x18x8x128xf32, #tpu.memory_space<vmem>>, vector<1x1x8x128xf32>
    %2020 = vector.shape_cast %2019 : vector<1x1x8x128xf32> to vector<8x128xf32>
    %2021 = vector.shape_cast %1952 : vector<8x128xf32> to vector<1x1x8x128xf32>
    tpu.vector_store %arg10[%c0_1635, %c5_1636, %c0_1637, %c0_1638], %2021 {strides = array<i32>} : memref<1x18x8x128xf32, #tpu.memory_space<vmem>>, vector<1x1x8x128xf32>,
    %c0_1639 = arith.constant 0 : index
    %c14_1640 = arith.constant 14 : index
    %c0_1641 = arith.constant 0 : index
    %c0_1642 = arith.constant 0 : index
    %2022 = vector.load %arg10[%c0_1639, %c14_1640, %c0_1641, %c0_1642] : memref<1x18x8x128xf32, #tpu.memory_space<vmem>>, vector<1x1x8x128xf32>
    %2023 = vector.shape_cast %2022 : vector<1x1x8x128xf32> to vector<8x128xf32>
    %2024 = vector.shape_cast %1979 : vector<8x128xf32> to vector<1x1x8x128xf32>
    tpu.vector_store %arg10[%c0_1639, %c14_1640, %c0_1641, %c0_1642], %2024 {strides = array<i32>} : memref<1x18x8x128xf32, #tpu.memory_space<vmem>>, vector<1x1x8x128xf32>,
    %c0_1643 = arith.constant 0 : index
    %c6_1644 = arith.constant 6 : index
    %c0_1645 = arith.constant 0 : index
    %c0_1646 = arith.constant 0 : index
    %2025 = vector.load %arg10[%c0_1643, %c6_1644, %c0_1645, %c0_1646] : memref<1x18x8x128xf32, #tpu.memory_space<vmem>>, vector<1x1x8x128xf32>
    %2026 = vector.shape_cast %2025 : vector<1x1x8x128xf32> to vector<8x128xf32>
    %2027 = vector.shape_cast %1955 : vector<8x128xf32> to vector<1x1x8x128xf32>
    tpu.vector_store %arg10[%c0_1643, %c6_1644, %c0_1645, %c0_1646], %2027 {strides = array<i32>} : memref<1x18x8x128xf32, #tpu.memory_space<vmem>>, vector<1x1x8x128xf32>,
    %c0_1647 = arith.constant 0 : index
    %c15_1648 = arith.constant 15 : index
    %c0_1649 = arith.constant 0 : index
    %c0_1650 = arith.constant 0 : index
    %2028 = vector.load %arg10[%c0_1647, %c15_1648, %c0_1649, %c0_1650] : memref<1x18x8x128xf32, #tpu.memory_space<vmem>>, vector<1x1x8x128xf32>
    %2029 = vector.shape_cast %2028 : vector<1x1x8x128xf32> to vector<8x128xf32>
    %2030 = vector.shape_cast %1982 : vector<8x128xf32> to vector<1x1x8x128xf32>
    tpu.vector_store %arg10[%c0_1647, %c15_1648, %c0_1649, %c0_1650], %2030 {strides = array<i32>} : memref<1x18x8x128xf32, #tpu.memory_space<vmem>>, vector<1x1x8x128xf32>,
    %c0_1651 = arith.constant 0 : index
    %c7_1652 = arith.constant 7 : index
    %c0_1653 = arith.constant 0 : index
    %c0_1654 = arith.constant 0 : index
    %2031 = vector.load %arg10[%c0_1651, %c7_1652, %c0_1653, %c0_1654] : memref<1x18x8x128xf32, #tpu.memory_space<vmem>>, vector<1x1x8x128xf32>
    %2032 = vector.shape_cast %2031 : vector<1x1x8x128xf32> to vector<8x128xf32>
    %2033 = vector.shape_cast %1958 : vector<8x128xf32> to vector<1x1x8x128xf32>
    tpu.vector_store %arg10[%c0_1651, %c7_1652, %c0_1653, %c0_1654], %2033 {strides = array<i32>} : memref<1x18x8x128xf32, #tpu.memory_space<vmem>>, vector<1x1x8x128xf32>,
    %c0_1655 = arith.constant 0 : index
    %c16_1656 = arith.constant 16 : index
    %c0_1657 = arith.constant 0 : index
    %c0_1658 = arith.constant 0 : index
    %2034 = vector.load %arg10[%c0_1655, %c16_1656, %c0_1657, %c0_1658] : memref<1x18x8x128xf32, #tpu.memory_space<vmem>>, vector<1x1x8x128xf32>
    %2035 = vector.shape_cast %2034 : vector<1x1x8x128xf32> to vector<8x128xf32>
    %2036 = vector.shape_cast %1985 : vector<8x128xf32> to vector<1x1x8x128xf32>
    tpu.vector_store %arg10[%c0_1655, %c16_1656, %c0_1657, %c0_1658], %2036 {strides = array<i32>} : memref<1x18x8x128xf32, #tpu.memory_space<vmem>>, vector<1x1x8x128xf32>,
    %c0_1659 = arith.constant 0 : index
    %c8_1660 = arith.constant 8 : index
    %c0_1661 = arith.constant 0 : index
    %c0_1662 = arith.constant 0 : index
    %2037 = vector.load %arg10[%c0_1659, %c8_1660, %c0_1661, %c0_1662] : memref<1x18x8x128xf32, #tpu.memory_space<vmem>>, vector<1x1x8x128xf32>
    %2038 = vector.shape_cast %2037 : vector<1x1x8x128xf32> to vector<8x128xf32>
    %2039 = vector.shape_cast %1961 : vector<8x128xf32> to vector<1x1x8x128xf32>
    tpu.vector_store %arg10[%c0_1659, %c8_1660, %c0_1661, %c0_1662], %2039 {strides = array<i32>} : memref<1x18x8x128xf32, #tpu.memory_space<vmem>>, vector<1x1x8x128xf32>,
    %c0_1663 = arith.constant 0 : index
    %c17_1664 = arith.constant 17 : index
    %c0_1665 = arith.constant 0 : index
    %c0_1666 = arith.constant 0 : index
    %2040 = vector.load %arg10[%c0_1663, %c17_1664, %c0_1665, %c0_1666] : memref<1x18x8x128xf32, #tpu.memory_space<vmem>>, vector<1x1x8x128xf32>
    %2041 = vector.shape_cast %2040 : vector<1x1x8x128xf32> to vector<8x128xf32>
    %2042 = vector.shape_cast %1988 : vector<8x128xf32> to vector<1x1x8x128xf32>
    tpu.vector_store %arg10[%c0_1663, %c17_1664, %c0_1665, %c0_1666], %2042 {strides = array<i32>} : memref<1x18x8x128xf32, #tpu.memory_space<vmem>>, vector<1x1x8x128xf32>,
    %2043 = arith.mulf %1937, %1937 : vector<8x128xf32>
    %2044 = arith.mulf %1964, %1964 : vector<8x128xf32>
    %2045 = arith.subf %2043, %2044 : vector<8x128xf32>
    %2046 = arith.mulf %1937, %1964 : vector<8x128xf32>
    %2047 = arith.mulf %1964, %1937 : vector<8x128xf32>
    %2048 = arith.addf %2046, %2047 : vector<8x128xf32>
    %2049 = arith.mulf %1940, %1946 : vector<8x128xf32>
    %2050 = arith.mulf %1967, %1973 : vector<8x128xf32>
    %2051 = arith.subf %2049, %2050 : vector<8x128xf32>
    %2052 = arith.mulf %1940, %1973 : vector<8x128xf32>
    %2053 = arith.mulf %1967, %1946 : vector<8x128xf32>
    %2054 = arith.addf %2052, %2053 : vector<8x128xf32>
    %2055 = arith.addf %2045, %2051 : vector<8x128xf32>
    %2056 = arith.addf %2048, %2054 : vector<8x128xf32>
    %2057 = arith.mulf %1943, %1955 : vector<8x128xf32>
    %2058 = arith.mulf %1970, %1982 : vector<8x128xf32>
    %2059 = arith.subf %2057, %2058 : vector<8x128xf32>
    %2060 = arith.mulf %1943, %1982 : vector<8x128xf32>
    %2061 = arith.mulf %1970, %1955 : vector<8x128xf32>
    %2062 = arith.addf %2060, %2061 : vector<8x128xf32>
    %2063 = arith.addf %2055, %2059 : vector<8x128xf32>
    %2064 = arith.addf %2056, %2062 : vector<8x128xf32>
    %c0_1667 = arith.constant 0 : index
    %c0_1668 = arith.constant 0 : index
    %c0_1669 = arith.constant 0 : index
    %c0_1670 = arith.constant 0 : index
    %2065 = vector.load %arg11[%c0_1667, %c0_1668, %c0_1669, %c0_1670] : memref<1x18x8x128xf32, #tpu.memory_space<vmem>>, vector<1x1x8x128xf32>
    %2066 = vector.shape_cast %2065 : vector<1x1x8x128xf32> to vector<8x128xf32>
    %2067 = vector.shape_cast %2063 : vector<8x128xf32> to vector<1x1x8x128xf32>
    tpu.vector_store %arg11[%c0_1667, %c0_1668, %c0_1669, %c0_1670], %2067 {strides = array<i32>} : memref<1x18x8x128xf32, #tpu.memory_space<vmem>>, vector<1x1x8x128xf32>,
    %c0_1671 = arith.constant 0 : index
    %c9_1672 = arith.constant 9 : index
    %c0_1673 = arith.constant 0 : index
    %c0_1674 = arith.constant 0 : index
    %2068 = vector.load %arg11[%c0_1671, %c9_1672, %c0_1673, %c0_1674] : memref<1x18x8x128xf32, #tpu.memory_space<vmem>>, vector<1x1x8x128xf32>
    %2069 = vector.shape_cast %2068 : vector<1x1x8x128xf32> to vector<8x128xf32>
    %2070 = vector.shape_cast %2064 : vector<8x128xf32> to vector<1x1x8x128xf32>
    tpu.vector_store %arg11[%c0_1671, %c9_1672, %c0_1673, %c0_1674], %2070 {strides = array<i32>} : memref<1x18x8x128xf32, #tpu.memory_space<vmem>>, vector<1x1x8x128xf32>,
    %2071 = arith.mulf %1937, %1940 : vector<8x128xf32>
    %2072 = arith.mulf %1964, %1967 : vector<8x128xf32>
    %2073 = arith.subf %2071, %2072 : vector<8x128xf32>
    %2074 = arith.mulf %1937, %1967 : vector<8x128xf32>
    %2075 = arith.mulf %1964, %1940 : vector<8x128xf32>
    %2076 = arith.addf %2074, %2075 : vector<8x128xf32>
    %2077 = arith.mulf %1940, %1949 : vector<8x128xf32>
    %2078 = arith.mulf %1967, %1976 : vector<8x128xf32>
    %2079 = arith.subf %2077, %2078 : vector<8x128xf32>
    %2080 = arith.mulf %1940, %1976 : vector<8x128xf32>
    %2081 = arith.mulf %1967, %1949 : vector<8x128xf32>
    %2082 = arith.addf %2080, %2081 : vector<8x128xf32>
    %2083 = arith.addf %2073, %2079 : vector<8x128xf32>
    %2084 = arith.addf %2076, %2082 : vector<8x128xf32>
    %2085 = arith.mulf %1943, %1958 : vector<8x128xf32>
    %2086 = arith.mulf %1970, %1985 : vector<8x128xf32>
    %2087 = arith.subf %2085, %2086 : vector<8x128xf32>
    %2088 = arith.mulf %1943, %1985 : vector<8x128xf32>
    %2089 = arith.mulf %1970, %1958 : vector<8x128xf32>
    %2090 = arith.addf %2088, %2089 : vector<8x128xf32>
    %2091 = arith.addf %2083, %2087 : vector<8x128xf32>
    %2092 = arith.addf %2084, %2090 : vector<8x128xf32>
    %c0_1675 = arith.constant 0 : index
    %c1_1676 = arith.constant 1 : index
    %c0_1677 = arith.constant 0 : index
    %c0_1678 = arith.constant 0 : index
    %2093 = vector.load %arg11[%c0_1675, %c1_1676, %c0_1677, %c0_1678] : memref<1x18x8x128xf32, #tpu.memory_space<vmem>>, vector<1x1x8x128xf32>
    %2094 = vector.shape_cast %2093 : vector<1x1x8x128xf32> to vector<8x128xf32>
    %2095 = vector.shape_cast %2091 : vector<8x128xf32> to vector<1x1x8x128xf32>
    tpu.vector_store %arg11[%c0_1675, %c1_1676, %c0_1677, %c0_1678], %2095 {strides = array<i32>} : memref<1x18x8x128xf32, #tpu.memory_space<vmem>>, vector<1x1x8x128xf32>,
    %c0_1679 = arith.constant 0 : index
    %c10_1680 = arith.constant 10 : index
    %c0_1681 = arith.constant 0 : index
    %c0_1682 = arith.constant 0 : index
    %2096 = vector.load %arg11[%c0_1679, %c10_1680, %c0_1681, %c0_1682] : memref<1x18x8x128xf32, #tpu.memory_space<vmem>>, vector<1x1x8x128xf32>
    %2097 = vector.shape_cast %2096 : vector<1x1x8x128xf32> to vector<8x128xf32>
    %2098 = vector.shape_cast %2092 : vector<8x128xf32> to vector<1x1x8x128xf32>
    tpu.vector_store %arg11[%c0_1679, %c10_1680, %c0_1681, %c0_1682], %2098 {strides = array<i32>} : memref<1x18x8x128xf32, #tpu.memory_space<vmem>>, vector<1x1x8x128xf32>,
    %2099 = arith.mulf %1937, %1943 : vector<8x128xf32>
    %2100 = arith.mulf %1964, %1970 : vector<8x128xf32>
    %2101 = arith.subf %2099, %2100 : vector<8x128xf32>
    %2102 = arith.mulf %1937, %1970 : vector<8x128xf32>
    %2103 = arith.mulf %1964, %1943 : vector<8x128xf32>
    %2104 = arith.addf %2102, %2103 : vector<8x128xf32>
    %2105 = arith.mulf %1940, %1952 : vector<8x128xf32>
    %2106 = arith.mulf %1967, %1979 : vector<8x128xf32>
    %2107 = arith.subf %2105, %2106 : vector<8x128xf32>
    %2108 = arith.mulf %1940, %1979 : vector<8x128xf32>
    %2109 = arith.mulf %1967, %1952 : vector<8x128xf32>
    %2110 = arith.addf %2108, %2109 : vector<8x128xf32>
    %2111 = arith.addf %2101, %2107 : vector<8x128xf32>
    %2112 = arith.addf %2104, %2110 : vector<8x128xf32>
    %2113 = arith.mulf %1943, %1961 : vector<8x128xf32>
    %2114 = arith.mulf %1970, %1988 : vector<8x128xf32>
    %2115 = arith.subf %2113, %2114 : vector<8x128xf32>
    %2116 = arith.mulf %1943, %1988 : vector<8x128xf32>
    %2117 = arith.mulf %1970, %1961 : vector<8x128xf32>
    %2118 = arith.addf %2116, %2117 : vector<8x128xf32>
    %2119 = arith.addf %2111, %2115 : vector<8x128xf32>
    %2120 = arith.addf %2112, %2118 : vector<8x128xf32>
    %c0_1683 = arith.constant 0 : index
    %c2_1684 = arith.constant 2 : index
    %c0_1685 = arith.constant 0 : index
    %c0_1686 = arith.constant 0 : index
    %2121 = vector.load %arg11[%c0_1683, %c2_1684, %c0_1685, %c0_1686] : memref<1x18x8x128xf32, #tpu.memory_space<vmem>>, vector<1x1x8x128xf32>
    %2122 = vector.shape_cast %2121 : vector<1x1x8x128xf32> to vector<8x128xf32>
    %2123 = vector.shape_cast %2119 : vector<8x128xf32> to vector<1x1x8x128xf32>
    tpu.vector_store %arg11[%c0_1683, %c2_1684, %c0_1685, %c0_1686], %2123 {strides = array<i32>} : memref<1x18x8x128xf32, #tpu.memory_space<vmem>>, vector<1x1x8x128xf32>,
    %c0_1687 = arith.constant 0 : index
    %c11_1688 = arith.constant 11 : index
    %c0_1689 = arith.constant 0 : index
    %c0_1690 = arith.constant 0 : index
    %2124 = vector.load %arg11[%c0_1687, %c11_1688, %c0_1689, %c0_1690] : memref<1x18x8x128xf32, #tpu.memory_space<vmem>>, vector<1x1x8x128xf32>
    %2125 = vector.shape_cast %2124 : vector<1x1x8x128xf32> to vector<8x128xf32>
    %2126 = vector.shape_cast %2120 : vector<8x128xf32> to vector<1x1x8x128xf32>
    tpu.vector_store %arg11[%c0_1687, %c11_1688, %c0_1689, %c0_1690], %2126 {strides = array<i32>} : memref<1x18x8x128xf32, #tpu.memory_space<vmem>>, vector<1x1x8x128xf32>,
    %2127 = arith.mulf %1946, %1937 : vector<8x128xf32>
    %2128 = arith.mulf %1973, %1964 : vector<8x128xf32>
    %2129 = arith.subf %2127, %2128 : vector<8x128xf32>
    %2130 = arith.mulf %1946, %1964 : vector<8x128xf32>
    %2131 = arith.mulf %1973, %1937 : vector<8x128xf32>
    %2132 = arith.addf %2130, %2131 : vector<8x128xf32>
    %2133 = arith.mulf %1949, %1946 : vector<8x128xf32>
    %2134 = arith.mulf %1976, %1973 : vector<8x128xf32>
    %2135 = arith.subf %2133, %2134 : vector<8x128xf32>
    %2136 = arith.mulf %1949, %1973 : vector<8x128xf32>
    %2137 = arith.mulf %1976, %1946 : vector<8x128xf32>
    %2138 = arith.addf %2136, %2137 : vector<8x128xf32>
    %2139 = arith.addf %2129, %2135 : vector<8x128xf32>
    %2140 = arith.addf %2132, %2138 : vector<8x128xf32>
    %2141 = arith.mulf %1952, %1955 : vector<8x128xf32>
    %2142 = arith.mulf %1979, %1982 : vector<8x128xf32>
    %2143 = arith.subf %2141, %2142 : vector<8x128xf32>
    %2144 = arith.mulf %1952, %1982 : vector<8x128xf32>
    %2145 = arith.mulf %1979, %1955 : vector<8x128xf32>
    %2146 = arith.addf %2144, %2145 : vector<8x128xf32>
    %2147 = arith.addf %2139, %2143 : vector<8x128xf32>
    %2148 = arith.addf %2140, %2146 : vector<8x128xf32>
    %c0_1691 = arith.constant 0 : index
    %c3_1692 = arith.constant 3 : index
    %c0_1693 = arith.constant 0 : index
    %c0_1694 = arith.constant 0 : index
    %2149 = vector.load %arg11[%c0_1691, %c3_1692, %c0_1693, %c0_1694] : memref<1x18x8x128xf32, #tpu.memory_space<vmem>>, vector<1x1x8x128xf32>
    %2150 = vector.shape_cast %2149 : vector<1x1x8x128xf32> to vector<8x128xf32>
    %2151 = vector.shape_cast %2147 : vector<8x128xf32> to vector<1x1x8x128xf32>
    tpu.vector_store %arg11[%c0_1691, %c3_1692, %c0_1693, %c0_1694], %2151 {strides = array<i32>} : memref<1x18x8x128xf32, #tpu.memory_space<vmem>>, vector<1x1x8x128xf32>,
    %c0_1695 = arith.constant 0 : index
    %c12_1696 = arith.constant 12 : index
    %c0_1697 = arith.constant 0 : index
    %c0_1698 = arith.constant 0 : index
    %2152 = vector.load %arg11[%c0_1695, %c12_1696, %c0_1697, %c0_1698] : memref<1x18x8x128xf32, #tpu.memory_space<vmem>>, vector<1x1x8x128xf32>
    %2153 = vector.shape_cast %2152 : vector<1x1x8x128xf32> to vector<8x128xf32>
    %2154 = vector.shape_cast %2148 : vector<8x128xf32> to vector<1x1x8x128xf32>
    tpu.vector_store %arg11[%c0_1695, %c12_1696, %c0_1697, %c0_1698], %2154 {strides = array<i32>} : memref<1x18x8x128xf32, #tpu.memory_space<vmem>>, vector<1x1x8x128xf32>,
    %2155 = arith.mulf %1946, %1940 : vector<8x128xf32>
    %2156 = arith.mulf %1973, %1967 : vector<8x128xf32>
    %2157 = arith.subf %2155, %2156 : vector<8x128xf32>
    %2158 = arith.mulf %1946, %1967 : vector<8x128xf32>
    %2159 = arith.mulf %1973, %1940 : vector<8x128xf32>
    %2160 = arith.addf %2158, %2159 : vector<8x128xf32>
    %2161 = arith.mulf %1949, %1949 : vector<8x128xf32>
    %2162 = arith.mulf %1976, %1976 : vector<8x128xf32>
    %2163 = arith.subf %2161, %2162 : vector<8x128xf32>
    %2164 = arith.mulf %1949, %1976 : vector<8x128xf32>
    %2165 = arith.mulf %1976, %1949 : vector<8x128xf32>
    %2166 = arith.addf %2164, %2165 : vector<8x128xf32>
    %2167 = arith.addf %2157, %2163 : vector<8x128xf32>
    %2168 = arith.addf %2160, %2166 : vector<8x128xf32>
    %2169 = arith.mulf %1952, %1958 : vector<8x128xf32>
    %2170 = arith.mulf %1979, %1985 : vector<8x128xf32>
    %2171 = arith.subf %2169, %2170 : vector<8x128xf32>
    %2172 = arith.mulf %1952, %1985 : vector<8x128xf32>
    %2173 = arith.mulf %1979, %1958 : vector<8x128xf32>
    %2174 = arith.addf %2172, %2173 : vector<8x128xf32>
    %2175 = arith.addf %2167, %2171 : vector<8x128xf32>
    %2176 = arith.addf %2168, %2174 : vector<8x128xf32>
    %c0_1699 = arith.constant 0 : index
    %c4_1700 = arith.constant 4 : index
    %c0_1701 = arith.constant 0 : index
    %c0_1702 = arith.constant 0 : index
    %2177 = vector.load %arg11[%c0_1699, %c4_1700, %c0_1701, %c0_1702] : memref<1x18x8x128xf32, #tpu.memory_space<vmem>>, vector<1x1x8x128xf32>
    %2178 = vector.shape_cast %2177 : vector<1x1x8x128xf32> to vector<8x128xf32>
    %2179 = vector.shape_cast %2175 : vector<8x128xf32> to vector<1x1x8x128xf32>
    tpu.vector_store %arg11[%c0_1699, %c4_1700, %c0_1701, %c0_1702], %2179 {strides = array<i32>} : memref<1x18x8x128xf32, #tpu.memory_space<vmem>>, vector<1x1x8x128xf32>,
    %c0_1703 = arith.constant 0 : index
    %c13_1704 = arith.constant 13 : index
    %c0_1705 = arith.constant 0 : index
    %c0_1706 = arith.constant 0 : index
    %2180 = vector.load %arg11[%c0_1703, %c13_1704, %c0_1705, %c0_1706] : memref<1x18x8x128xf32, #tpu.memory_space<vmem>>, vector<1x1x8x128xf32>
    %2181 = vector.shape_cast %2180 : vector<1x1x8x128xf32> to vector<8x128xf32>
    %2182 = vector.shape_cast %2176 : vector<8x128xf32> to vector<1x1x8x128xf32>
    tpu.vector_store %arg11[%c0_1703, %c13_1704, %c0_1705, %c0_1706], %2182 {strides = array<i32>} : memref<1x18x8x128xf32, #tpu.memory_space<vmem>>, vector<1x1x8x128xf32>,
    %2183 = arith.mulf %1946, %1943 : vector<8x128xf32>
    %2184 = arith.mulf %1973, %1970 : vector<8x128xf32>
    %2185 = arith.subf %2183, %2184 : vector<8x128xf32>
    %2186 = arith.mulf %1946, %1970 : vector<8x128xf32>
    %2187 = arith.mulf %1973, %1943 : vector<8x128xf32>
    %2188 = arith.addf %2186, %2187 : vector<8x128xf32>
    %2189 = arith.mulf %1949, %1952 : vector<8x128xf32>
    %2190 = arith.mulf %1976, %1979 : vector<8x128xf32>
    %2191 = arith.subf %2189, %2190 : vector<8x128xf32>
    %2192 = arith.mulf %1949, %1979 : vector<8x128xf32>
    %2193 = arith.mulf %1976, %1952 : vector<8x128xf32>
    %2194 = arith.addf %2192, %2193 : vector<8x128xf32>
    %2195 = arith.addf %2185, %2191 : vector<8x128xf32>
    %2196 = arith.addf %2188, %2194 : vector<8x128xf32>
    %2197 = arith.mulf %1952, %1961 : vector<8x128xf32>
    %2198 = arith.mulf %1979, %1988 : vector<8x128xf32>
    %2199 = arith.subf %2197, %2198 : vector<8x128xf32>
    %2200 = arith.mulf %1952, %1988 : vector<8x128xf32>
    %2201 = arith.mulf %1979, %1961 : vector<8x128xf32>
    %2202 = arith.addf %2200, %2201 : vector<8x128xf32>
    %2203 = arith.addf %2195, %2199 : vector<8x128xf32>
    %2204 = arith.addf %2196, %2202 : vector<8x128xf32>
    %c0_1707 = arith.constant 0 : index
    %c5_1708 = arith.constant 5 : index
    %c0_1709 = arith.constant 0 : index
    %c0_1710 = arith.constant 0 : index
    %2205 = vector.load %arg11[%c0_1707, %c5_1708, %c0_1709, %c0_1710] : memref<1x18x8x128xf32, #tpu.memory_space<vmem>>, vector<1x1x8x128xf32>
    %2206 = vector.shape_cast %2205 : vector<1x1x8x128xf32> to vector<8x128xf32>
    %2207 = vector.shape_cast %2203 : vector<8x128xf32> to vector<1x1x8x128xf32>
    tpu.vector_store %arg11[%c0_1707, %c5_1708, %c0_1709, %c0_1710], %2207 {strides = array<i32>} : memref<1x18x8x128xf32, #tpu.memory_space<vmem>>, vector<1x1x8x128xf32>,
    %c0_1711 = arith.constant 0 : index
    %c14_1712 = arith.constant 14 : index
    %c0_1713 = arith.constant 0 : index
    %c0_1714 = arith.constant 0 : index
    %2208 = vector.load %arg11[%c0_1711, %c14_1712, %c0_1713, %c0_1714] : memref<1x18x8x128xf32, #tpu.memory_space<vmem>>, vector<1x1x8x128xf32>
    %2209 = vector.shape_cast %2208 : vector<1x1x8x128xf32> to vector<8x128xf32>
    %2210 = vector.shape_cast %2204 : vector<8x128xf32> to vector<1x1x8x128xf32>
    tpu.vector_store %arg11[%c0_1711, %c14_1712, %c0_1713, %c0_1714], %2210 {strides = array<i32>} : memref<1x18x8x128xf32, #tpu.memory_space<vmem>>, vector<1x1x8x128xf32>,
    %2211 = arith.mulf %1955, %1937 : vector<8x128xf32>
    %2212 = arith.mulf %1982, %1964 : vector<8x128xf32>
    %2213 = arith.subf %2211, %2212 : vector<8x128xf32>
    %2214 = arith.mulf %1955, %1964 : vector<8x128xf32>
    %2215 = arith.mulf %1982, %1937 : vector<8x128xf32>
    %2216 = arith.addf %2214, %2215 : vector<8x128xf32>
    %2217 = arith.mulf %1958, %1946 : vector<8x128xf32>
    %2218 = arith.mulf %1985, %1973 : vector<8x128xf32>
    %2219 = arith.subf %2217, %2218 : vector<8x128xf32>
    %2220 = arith.mulf %1958, %1973 : vector<8x128xf32>
    %2221 = arith.mulf %1985, %1946 : vector<8x128xf32>
    %2222 = arith.addf %2220, %2221 : vector<8x128xf32>
    %2223 = arith.addf %2213, %2219 : vector<8x128xf32>
    %2224 = arith.addf %2216, %2222 : vector<8x128xf32>
    %2225 = arith.mulf %1961, %1955 : vector<8x128xf32>
    %2226 = arith.mulf %1988, %1982 : vector<8x128xf32>
    %2227 = arith.subf %2225, %2226 : vector<8x128xf32>
    %2228 = arith.mulf %1961, %1982 : vector<8x128xf32>
    %2229 = arith.mulf %1988, %1955 : vector<8x128xf32>
    %2230 = arith.addf %2228, %2229 : vector<8x128xf32>
    %2231 = arith.addf %2223, %2227 : vector<8x128xf32>
    %2232 = arith.addf %2224, %2230 : vector<8x128xf32>
    %c0_1715 = arith.constant 0 : index
    %c6_1716 = arith.constant 6 : index
    %c0_1717 = arith.constant 0 : index
    %c0_1718 = arith.constant 0 : index
    %2233 = vector.load %arg11[%c0_1715, %c6_1716, %c0_1717, %c0_1718] : memref<1x18x8x128xf32, #tpu.memory_space<vmem>>, vector<1x1x8x128xf32>
    %2234 = vector.shape_cast %2233 : vector<1x1x8x128xf32> to vector<8x128xf32>
    %2235 = vector.shape_cast %2231 : vector<8x128xf32> to vector<1x1x8x128xf32>
    tpu.vector_store %arg11[%c0_1715, %c6_1716, %c0_1717, %c0_1718], %2235 {strides = array<i32>} : memref<1x18x8x128xf32, #tpu.memory_space<vmem>>, vector<1x1x8x128xf32>,
    %c0_1719 = arith.constant 0 : index
    %c15_1720 = arith.constant 15 : index
    %c0_1721 = arith.constant 0 : index
    %c0_1722 = arith.constant 0 : index
    %2236 = vector.load %arg11[%c0_1719, %c15_1720, %c0_1721, %c0_1722] : memref<1x18x8x128xf32, #tpu.memory_space<vmem>>, vector<1x1x8x128xf32>
    %2237 = vector.shape_cast %2236 : vector<1x1x8x128xf32> to vector<8x128xf32>
    %2238 = vector.shape_cast %2232 : vector<8x128xf32> to vector<1x1x8x128xf32>
    tpu.vector_store %arg11[%c0_1719, %c15_1720, %c0_1721, %c0_1722], %2238 {strides = array<i32>} : memref<1x18x8x128xf32, #tpu.memory_space<vmem>>, vector<1x1x8x128xf32>,
    %2239 = arith.mulf %1955, %1940 : vector<8x128xf32>
    %2240 = arith.mulf %1982, %1967 : vector<8x128xf32>
    %2241 = arith.subf %2239, %2240 : vector<8x128xf32>
    %2242 = arith.mulf %1955, %1967 : vector<8x128xf32>
    %2243 = arith.mulf %1982, %1940 : vector<8x128xf32>
    %2244 = arith.addf %2242, %2243 : vector<8x128xf32>
    %2245 = arith.mulf %1958, %1949 : vector<8x128xf32>
    %2246 = arith.mulf %1985, %1976 : vector<8x128xf32>
    %2247 = arith.subf %2245, %2246 : vector<8x128xf32>
    %2248 = arith.mulf %1958, %1976 : vector<8x128xf32>
    %2249 = arith.mulf %1985, %1949 : vector<8x128xf32>
    %2250 = arith.addf %2248, %2249 : vector<8x128xf32>
    %2251 = arith.addf %2241, %2247 : vector<8x128xf32>
    %2252 = arith.addf %2244, %2250 : vector<8x128xf32>
    %2253 = arith.mulf %1961, %1958 : vector<8x128xf32>
    %2254 = arith.mulf %1988, %1985 : vector<8x128xf32>
    %2255 = arith.subf %2253, %2254 : vector<8x128xf32>
    %2256 = arith.mulf %1961, %1985 : vector<8x128xf32>
    %2257 = arith.mulf %1988, %1958 : vector<8x128xf32>
    %2258 = arith.addf %2256, %2257 : vector<8x128xf32>
    %2259 = arith.addf %2251, %2255 : vector<8x128xf32>
    %2260 = arith.addf %2252, %2258 : vector<8x128xf32>
    %c0_1723 = arith.constant 0 : index
    %c7_1724 = arith.constant 7 : index
    %c0_1725 = arith.constant 0 : index
    %c0_1726 = arith.constant 0 : index
    %2261 = vector.load %arg11[%c0_1723, %c7_1724, %c0_1725, %c0_1726] : memref<1x18x8x128xf32, #tpu.memory_space<vmem>>, vector<1x1x8x128xf32>
    %2262 = vector.shape_cast %2261 : vector<1x1x8x128xf32> to vector<8x128xf32>
    %2263 = vector.shape_cast %2259 : vector<8x128xf32> to vector<1x1x8x128xf32>
    tpu.vector_store %arg11[%c0_1723, %c7_1724, %c0_1725, %c0_1726], %2263 {strides = array<i32>} : memref<1x18x8x128xf32, #tpu.memory_space<vmem>>, vector<1x1x8x128xf32>,
    %c0_1727 = arith.constant 0 : index
    %c16_1728 = arith.constant 16 : index
    %c0_1729 = arith.constant 0 : index
    %c0_1730 = arith.constant 0 : index
    %2264 = vector.load %arg11[%c0_1727, %c16_1728, %c0_1729, %c0_1730] : memref<1x18x8x128xf32, #tpu.memory_space<vmem>>, vector<1x1x8x128xf32>
    %2265 = vector.shape_cast %2264 : vector<1x1x8x128xf32> to vector<8x128xf32>
    %2266 = vector.shape_cast %2260 : vector<8x128xf32> to vector<1x1x8x128xf32>
    tpu.vector_store %arg11[%c0_1727, %c16_1728, %c0_1729, %c0_1730], %2266 {strides = array<i32>} : memref<1x18x8x128xf32, #tpu.memory_space<vmem>>, vector<1x1x8x128xf32>,
    %2267 = arith.mulf %1955, %1943 : vector<8x128xf32>
    %2268 = arith.mulf %1982, %1970 : vector<8x128xf32>
    %2269 = arith.subf %2267, %2268 : vector<8x128xf32>
    %2270 = arith.mulf %1955, %1970 : vector<8x128xf32>
    %2271 = arith.mulf %1982, %1943 : vector<8x128xf32>
    %2272 = arith.addf %2270, %2271 : vector<8x128xf32>
    %2273 = arith.mulf %1958, %1952 : vector<8x128xf32>
    %2274 = arith.mulf %1985, %1979 : vector<8x128xf32>
    %2275 = arith.subf %2273, %2274 : vector<8x128xf32>
    %2276 = arith.mulf %1958, %1979 : vector<8x128xf32>
    %2277 = arith.mulf %1985, %1952 : vector<8x128xf32>
    %2278 = arith.addf %2276, %2277 : vector<8x128xf32>
    %2279 = arith.addf %2269, %2275 : vector<8x128xf32>
    %2280 = arith.addf %2272, %2278 : vector<8x128xf32>
    %2281 = arith.mulf %1961, %1961 : vector<8x128xf32>
    %2282 = arith.mulf %1988, %1988 : vector<8x128xf32>
    %2283 = arith.subf %2281, %2282 : vector<8x128xf32>
    %2284 = arith.mulf %1961, %1988 : vector<8x128xf32>
    %2285 = arith.mulf %1988, %1961 : vector<8x128xf32>
    %2286 = arith.addf %2284, %2285 : vector<8x128xf32>
    %2287 = arith.addf %2279, %2283 : vector<8x128xf32>
    %2288 = arith.addf %2280, %2286 : vector<8x128xf32>
    %c0_1731 = arith.constant 0 : index
    %c8_1732 = arith.constant 8 : index
    %c0_1733 = arith.constant 0 : index
    %c0_1734 = arith.constant 0 : index
    %2289 = vector.load %arg11[%c0_1731, %c8_1732, %c0_1733, %c0_1734] : memref<1x18x8x128xf32, #tpu.memory_space<vmem>>, vector<1x1x8x128xf32>
    %2290 = vector.shape_cast %2289 : vector<1x1x8x128xf32> to vector<8x128xf32>
    %2291 = vector.shape_cast %2287 : vector<8x128xf32> to vector<1x1x8x128xf32>
    tpu.vector_store %arg11[%c0_1731, %c8_1732, %c0_1733, %c0_1734], %2291 {strides = array<i32>} : memref<1x18x8x128xf32, #tpu.memory_space<vmem>>, vector<1x1x8x128xf32>,
    %c0_1735 = arith.constant 0 : index
    %c17_1736 = arith.constant 17 : index
    %c0_1737 = arith.constant 0 : index
    %c0_1738 = arith.constant 0 : index
    %2292 = vector.load %arg11[%c0_1735, %c17_1736, %c0_1737, %c0_1738] : memref<1x18x8x128xf32, #tpu.memory_space<vmem>>, vector<1x1x8x128xf32>
    %2293 = vector.shape_cast %2292 : vector<1x1x8x128xf32> to vector<8x128xf32>
    %2294 = vector.shape_cast %2288 : vector<8x128xf32> to vector<1x1x8x128xf32>
    tpu.vector_store %arg11[%c0_1735, %c17_1736, %c0_1737, %c0_1738], %2294 {strides = array<i32>} : memref<1x18x8x128xf32, #tpu.memory_space<vmem>>, vector<1x1x8x128xf32>,
    return
  }
  func.func @transform_0(%arg0: i32, %arg1: memref<1xf32, #tpu.memory_space<smem>>) -> (i32, i32, i32, i32) {
    %c0_i32 = arith.constant 0 : i32
    %c0_i32_0 = arith.constant 0 : i32
    %c0_i32_1 = arith.constant 0 : i32
    %c0_i32_2 = arith.constant 0 : i32
    return %arg0, %c0_i32, %c0_i32_0, %c0_i32_1 : i32, i32, i32, i32
  }
  func.func @transform_1(%arg0: i32, %arg1: memref<1xf32, #tpu.memory_space<smem>>) -> (i32, i32, i32, i32) {
    %c0_i32 = arith.constant 0 : i32
    %c0_i32_0 = arith.constant 0 : i32
    %c0_i32_1 = arith.constant 0 : i32
    %c0_i32_2 = arith.constant 0 : i32
    return %arg0, %c0_i32, %c0_i32_0, %c0_i32_1 : i32, i32, i32, i32
  }
  func.func @transform_2(%arg0: i32, %arg1: memref<1xf32, #tpu.memory_space<smem>>) -> (i32, i32, i32, i32) {
    %c0_i32 = arith.constant 0 : i32
    %c0_i32_0 = arith.constant 0 : i32
    %c0_i32_1 = arith.constant 0 : i32
    %c0_i32_2 = arith.constant 0 : i32
    return %arg0, %c0_i32, %c0_i32_0, %c0_i32_1 : i32, i32, i32, i32
  }
  func.func @transform_3(%arg0: i32, %arg1: memref<1xf32, #tpu.memory_space<smem>>) -> (i32, i32, i32, i32) {
    %c0_i32 = arith.constant 0 : i32
    %c0_i32_0 = arith.constant 0 : i32
    %c0_i32_1 = arith.constant 0 : i32
    %c0_i32_2 = arith.constant 0 : i32
    return %arg0, %c0_i32, %c0_i32_0, %c0_i32_1 : i32, i32, i32, i32
  }
  func.func @transform_4(%arg0: i32, %arg1: memref<1xf32, #tpu.memory_space<smem>>) -> (i32, i32, i32, i32) {
    %c0_i32 = arith.constant 0 : i32
    %c0_i32_0 = arith.constant 0 : i32
    %c0_i32_1 = arith.constant 0 : i32
    %c0_i32_2 = arith.constant 0 : i32
    return %arg0, %c0_i32, %c0_i32_0, %c0_i32_1 : i32, i32, i32, i32
  }
  func.func @transform_5(%arg0: i32, %arg1: memref<1xf32, #tpu.memory_space<smem>>) -> (i32, i32, i32, i32) {
    %c0_i32 = arith.constant 0 : i32
    %c0_i32_0 = arith.constant 0 : i32
    %c0_i32_1 = arith.constant 0 : i32
    %c0_i32_2 = arith.constant 0 : i32
    return %arg0, %c0_i32, %c0_i32_0, %c0_i32_1 : i32, i32, i32, i32
  }
  func.func @transform_6(%arg0: i32, %arg1: memref<1xf32, #tpu.memory_space<smem>>) -> (i32, i32, i32, i32) {
    %c0_i32 = arith.constant 0 : i32
    %c0_i32_0 = arith.constant 0 : i32
    %c0_i32_1 = arith.constant 0 : i32
    %c0_i32_2 = arith.constant 0 : i32
    return %arg0, %c0_i32, %c0_i32_0, %c0_i32_1 : i32, i32, i32, i32
  }
  func.func @transform_7(%arg0: i32, %arg1: memref<1xf32, #tpu.memory_space<smem>>) -> (i32, i32, i32, i32) {
    %c0_i32 = arith.constant 0 : i32
    %c0_i32_0 = arith.constant 0 : i32
    %c0_i32_1 = arith.constant 0 : i32
    %c0_i32_2 = arith.constant 0 : i32
    return %arg0, %c0_i32, %c0_i32_0, %c0_i32_1 : i32, i32, i32, i32
  }
  func.func @transform_8(%arg0: i32, %arg1: memref<1xf32, #tpu.memory_space<smem>>) -> (i32, i32, i32, i32) {
    %c0_i32 = arith.constant 0 : i32
    %c0_i32_0 = arith.constant 0 : i32
    %c0_i32_1 = arith.constant 0 : i32
    %c0_i32_2 = arith.constant 0 : i32
    return %arg0, %c0_i32, %c0_i32_0, %c0_i32_1 : i32, i32, i32, i32
  }
  func.func @transform_9(%arg0: i32, %arg1: memref<1xf32, #tpu.memory_space<smem>>) -> (i32, i32, i32, i32) {
    %c0_i32 = arith.constant 0 : i32
    %c0_i32_0 = arith.constant 0 : i32
    %c0_i32_1 = arith.constant 0 : i32
    %c0_i32_2 = arith.constant 0 : i32
    return %arg0, %c0_i32, %c0_i32_0, %c0_i32_1 : i32, i32, i32, i32
  }
}

module attributes {stable_mosaic.version = 11 : i64} {
  func.func @kernel(%arg0: i32, %arg1: memref<1x18x8x128xf32, #tpu.memory_space<vmem>>, %arg2: memref<1x18x8x128xf32, #tpu.memory_space<vmem>>, %arg3: memref<1x18x8x128xf32, #tpu.memory_space<vmem>>, %arg4: memref<1x6x8x128xf32, #tpu.memory_space<vmem>>, %arg5: memref<1x18x8x128xf32, #tpu.memory_space<vmem>>) attributes {dimension_semantics = [#tpu.dimension_semantics<parallel>], iteration_bounds = array<i64: 1>, scalar_prefetch = 0 : i64, scratch_operands = 0 : i64, tpu.core_type = #tpu.core_type<tc>, window_params = [{transform_indices = @transform_0, window_bounds = array<i64: 1, 18, 8, 128>}, {transform_indices = @transform_1, window_bounds = array<i64: 1, 18, 8, 128>}, {transform_indices = @transform_2, window_bounds = array<i64: 1, 18, 8, 128>}, {transform_indices = @transform_3, window_bounds = array<i64: 1, 6, 8, 128>}, {transform_indices = @transform_4, window_bounds = array<i64: 1, 18, 8, 128>}]} {
    %c0 = arith.constant 0 : index
    %c0_0 = arith.constant 0 : index
    %c0_1 = arith.constant 0 : index
    %c0_2 = arith.constant 0 : index
    %0 = vector.load %arg4[%c0, %c0_0, %c0_1, %c0_2] : memref<1x6x8x128xf32, #tpu.memory_space<vmem>>, vector<1x1x8x128xf32>
    %1 = vector.shape_cast %0 : vector<1x1x8x128xf32> to vector<8x128xf32>
    %c0_3 = arith.constant 0 : index
    %c1 = arith.constant 1 : index
    %c0_4 = arith.constant 0 : index
    %c0_5 = arith.constant 0 : index
    %2 = vector.load %arg4[%c0_3, %c1, %c0_4, %c0_5] : memref<1x6x8x128xf32, #tpu.memory_space<vmem>>, vector<1x1x8x128xf32>
    %3 = vector.shape_cast %2 : vector<1x1x8x128xf32> to vector<8x128xf32>
    %c0_6 = arith.constant 0 : index
    %c2 = arith.constant 2 : index
    %c0_7 = arith.constant 0 : index
    %c0_8 = arith.constant 0 : index
    %4 = vector.load %arg4[%c0_6, %c2, %c0_7, %c0_8] : memref<1x6x8x128xf32, #tpu.memory_space<vmem>>, vector<1x1x8x128xf32>
    %5 = vector.shape_cast %4 : vector<1x1x8x128xf32> to vector<8x128xf32>
    %c0_9 = arith.constant 0 : index
    %c3 = arith.constant 3 : index
    %c0_10 = arith.constant 0 : index
    %c0_11 = arith.constant 0 : index
    %6 = vector.load %arg4[%c0_9, %c3, %c0_10, %c0_11] : memref<1x6x8x128xf32, #tpu.memory_space<vmem>>, vector<1x1x8x128xf32>
    %7 = vector.shape_cast %6 : vector<1x1x8x128xf32> to vector<8x128xf32>
    %c0_12 = arith.constant 0 : index
    %c4 = arith.constant 4 : index
    %c0_13 = arith.constant 0 : index
    %c0_14 = arith.constant 0 : index
    %8 = vector.load %arg4[%c0_12, %c4, %c0_13, %c0_14] : memref<1x6x8x128xf32, #tpu.memory_space<vmem>>, vector<1x1x8x128xf32>
    %9 = vector.shape_cast %8 : vector<1x1x8x128xf32> to vector<8x128xf32>
    %c0_15 = arith.constant 0 : index
    %c5 = arith.constant 5 : index
    %c0_16 = arith.constant 0 : index
    %c0_17 = arith.constant 0 : index
    %10 = vector.load %arg4[%c0_15, %c5, %c0_16, %c0_17] : memref<1x6x8x128xf32, #tpu.memory_space<vmem>>, vector<1x1x8x128xf32>
    %11 = vector.shape_cast %10 : vector<1x1x8x128xf32> to vector<8x128xf32>
    %c0_18 = arith.constant 0 : index
    %c0_19 = arith.constant 0 : index
    %c0_20 = arith.constant 0 : index
    %c0_21 = arith.constant 0 : index
    %12 = vector.load %arg3[%c0_18, %c0_19, %c0_20, %c0_21] : memref<1x18x8x128xf32, #tpu.memory_space<vmem>>, vector<1x1x8x128xf32>
    %13 = vector.shape_cast %12 : vector<1x1x8x128xf32> to vector<8x128xf32>
    %c0_22 = arith.constant 0 : index
    %c1_23 = arith.constant 1 : index
    %c0_24 = arith.constant 0 : index
    %c0_25 = arith.constant 0 : index
    %14 = vector.load %arg3[%c0_22, %c1_23, %c0_24, %c0_25] : memref<1x18x8x128xf32, #tpu.memory_space<vmem>>, vector<1x1x8x128xf32>
    %15 = vector.shape_cast %14 : vector<1x1x8x128xf32> to vector<8x128xf32>
    %c0_26 = arith.constant 0 : index
    %c2_27 = arith.constant 2 : index
    %c0_28 = arith.constant 0 : index
    %c0_29 = arith.constant 0 : index
    %16 = vector.load %arg3[%c0_26, %c2_27, %c0_28, %c0_29] : memref<1x18x8x128xf32, #tpu.memory_space<vmem>>, vector<1x1x8x128xf32>
    %17 = vector.shape_cast %16 : vector<1x1x8x128xf32> to vector<8x128xf32>
    %c0_30 = arith.constant 0 : index
    %c3_31 = arith.constant 3 : index
    %c0_32 = arith.constant 0 : index
    %c0_33 = arith.constant 0 : index
    %18 = vector.load %arg3[%c0_30, %c3_31, %c0_32, %c0_33] : memref<1x18x8x128xf32, #tpu.memory_space<vmem>>, vector<1x1x8x128xf32>
    %19 = vector.shape_cast %18 : vector<1x1x8x128xf32> to vector<8x128xf32>
    %c0_34 = arith.constant 0 : index
    %c4_35 = arith.constant 4 : index
    %c0_36 = arith.constant 0 : index
    %c0_37 = arith.constant 0 : index
    %20 = vector.load %arg3[%c0_34, %c4_35, %c0_36, %c0_37] : memref<1x18x8x128xf32, #tpu.memory_space<vmem>>, vector<1x1x8x128xf32>
    %21 = vector.shape_cast %20 : vector<1x1x8x128xf32> to vector<8x128xf32>
    %c0_38 = arith.constant 0 : index
    %c5_39 = arith.constant 5 : index
    %c0_40 = arith.constant 0 : index
    %c0_41 = arith.constant 0 : index
    %22 = vector.load %arg3[%c0_38, %c5_39, %c0_40, %c0_41] : memref<1x18x8x128xf32, #tpu.memory_space<vmem>>, vector<1x1x8x128xf32>
    %23 = vector.shape_cast %22 : vector<1x1x8x128xf32> to vector<8x128xf32>
    %c0_42 = arith.constant 0 : index
    %c6 = arith.constant 6 : index
    %c0_43 = arith.constant 0 : index
    %c0_44 = arith.constant 0 : index
    %24 = vector.load %arg3[%c0_42, %c6, %c0_43, %c0_44] : memref<1x18x8x128xf32, #tpu.memory_space<vmem>>, vector<1x1x8x128xf32>
    %25 = vector.shape_cast %24 : vector<1x1x8x128xf32> to vector<8x128xf32>
    %c0_45 = arith.constant 0 : index
    %c7 = arith.constant 7 : index
    %c0_46 = arith.constant 0 : index
    %c0_47 = arith.constant 0 : index
    %26 = vector.load %arg3[%c0_45, %c7, %c0_46, %c0_47] : memref<1x18x8x128xf32, #tpu.memory_space<vmem>>, vector<1x1x8x128xf32>
    %27 = vector.shape_cast %26 : vector<1x1x8x128xf32> to vector<8x128xf32>
    %c0_48 = arith.constant 0 : index
    %c8 = arith.constant 8 : index
    %c0_49 = arith.constant 0 : index
    %c0_50 = arith.constant 0 : index
    %28 = vector.load %arg3[%c0_48, %c8, %c0_49, %c0_50] : memref<1x18x8x128xf32, #tpu.memory_space<vmem>>, vector<1x1x8x128xf32>
    %29 = vector.shape_cast %28 : vector<1x1x8x128xf32> to vector<8x128xf32>
    %c0_51 = arith.constant 0 : index
    %c9 = arith.constant 9 : index
    %c0_52 = arith.constant 0 : index
    %c0_53 = arith.constant 0 : index
    %30 = vector.load %arg3[%c0_51, %c9, %c0_52, %c0_53] : memref<1x18x8x128xf32, #tpu.memory_space<vmem>>, vector<1x1x8x128xf32>
    %31 = vector.shape_cast %30 : vector<1x1x8x128xf32> to vector<8x128xf32>
    %c0_54 = arith.constant 0 : index
    %c10 = arith.constant 10 : index
    %c0_55 = arith.constant 0 : index
    %c0_56 = arith.constant 0 : index
    %32 = vector.load %arg3[%c0_54, %c10, %c0_55, %c0_56] : memref<1x18x8x128xf32, #tpu.memory_space<vmem>>, vector<1x1x8x128xf32>
    %33 = vector.shape_cast %32 : vector<1x1x8x128xf32> to vector<8x128xf32>
    %c0_57 = arith.constant 0 : index
    %c11 = arith.constant 11 : index
    %c0_58 = arith.constant 0 : index
    %c0_59 = arith.constant 0 : index
    %34 = vector.load %arg3[%c0_57, %c11, %c0_58, %c0_59] : memref<1x18x8x128xf32, #tpu.memory_space<vmem>>, vector<1x1x8x128xf32>
    %35 = vector.shape_cast %34 : vector<1x1x8x128xf32> to vector<8x128xf32>
    %c0_60 = arith.constant 0 : index
    %c12 = arith.constant 12 : index
    %c0_61 = arith.constant 0 : index
    %c0_62 = arith.constant 0 : index
    %36 = vector.load %arg3[%c0_60, %c12, %c0_61, %c0_62] : memref<1x18x8x128xf32, #tpu.memory_space<vmem>>, vector<1x1x8x128xf32>
    %37 = vector.shape_cast %36 : vector<1x1x8x128xf32> to vector<8x128xf32>
    %c0_63 = arith.constant 0 : index
    %c13 = arith.constant 13 : index
    %c0_64 = arith.constant 0 : index
    %c0_65 = arith.constant 0 : index
    %38 = vector.load %arg3[%c0_63, %c13, %c0_64, %c0_65] : memref<1x18x8x128xf32, #tpu.memory_space<vmem>>, vector<1x1x8x128xf32>
    %39 = vector.shape_cast %38 : vector<1x1x8x128xf32> to vector<8x128xf32>
    %c0_66 = arith.constant 0 : index
    %c14 = arith.constant 14 : index
    %c0_67 = arith.constant 0 : index
    %c0_68 = arith.constant 0 : index
    %40 = vector.load %arg3[%c0_66, %c14, %c0_67, %c0_68] : memref<1x18x8x128xf32, #tpu.memory_space<vmem>>, vector<1x1x8x128xf32>
    %41 = vector.shape_cast %40 : vector<1x1x8x128xf32> to vector<8x128xf32>
    %c0_69 = arith.constant 0 : index
    %c15 = arith.constant 15 : index
    %c0_70 = arith.constant 0 : index
    %c0_71 = arith.constant 0 : index
    %42 = vector.load %arg3[%c0_69, %c15, %c0_70, %c0_71] : memref<1x18x8x128xf32, #tpu.memory_space<vmem>>, vector<1x1x8x128xf32>
    %43 = vector.shape_cast %42 : vector<1x1x8x128xf32> to vector<8x128xf32>
    %c0_72 = arith.constant 0 : index
    %c16 = arith.constant 16 : index
    %c0_73 = arith.constant 0 : index
    %c0_74 = arith.constant 0 : index
    %44 = vector.load %arg3[%c0_72, %c16, %c0_73, %c0_74] : memref<1x18x8x128xf32, #tpu.memory_space<vmem>>, vector<1x1x8x128xf32>
    %45 = vector.shape_cast %44 : vector<1x1x8x128xf32> to vector<8x128xf32>
    %c0_75 = arith.constant 0 : index
    %c17 = arith.constant 17 : index
    %c0_76 = arith.constant 0 : index
    %c0_77 = arith.constant 0 : index
    %46 = vector.load %arg3[%c0_75, %c17, %c0_76, %c0_77] : memref<1x18x8x128xf32, #tpu.memory_space<vmem>>, vector<1x1x8x128xf32>
    %47 = vector.shape_cast %46 : vector<1x1x8x128xf32> to vector<8x128xf32>
    %c0_78 = arith.constant 0 : index
    %c0_79 = arith.constant 0 : index
    %c0_80 = arith.constant 0 : index
    %c0_81 = arith.constant 0 : index
    %48 = vector.load %arg1[%c0_78, %c0_79, %c0_80, %c0_81] : memref<1x18x8x128xf32, #tpu.memory_space<vmem>>, vector<1x1x8x128xf32>
    %49 = vector.shape_cast %48 : vector<1x1x8x128xf32> to vector<8x128xf32>
    %c0_82 = arith.constant 0 : index
    %c9_83 = arith.constant 9 : index
    %c0_84 = arith.constant 0 : index
    %c0_85 = arith.constant 0 : index
    %50 = vector.load %arg1[%c0_82, %c9_83, %c0_84, %c0_85] : memref<1x18x8x128xf32, #tpu.memory_space<vmem>>, vector<1x1x8x128xf32>
    %51 = vector.shape_cast %50 : vector<1x1x8x128xf32> to vector<8x128xf32>
    %c0_86 = arith.constant 0 : index
    %c0_87 = arith.constant 0 : index
    %c0_88 = arith.constant 0 : index
    %c0_89 = arith.constant 0 : index
    %52 = vector.load %arg2[%c0_86, %c0_87, %c0_88, %c0_89] : memref<1x18x8x128xf32, #tpu.memory_space<vmem>>, vector<1x1x8x128xf32>
    %53 = vector.shape_cast %52 : vector<1x1x8x128xf32> to vector<8x128xf32>
    %c0_90 = arith.constant 0 : index
    %c9_91 = arith.constant 9 : index
    %c0_92 = arith.constant 0 : index
    %c0_93 = arith.constant 0 : index
    %54 = vector.load %arg2[%c0_90, %c9_91, %c0_92, %c0_93] : memref<1x18x8x128xf32, #tpu.memory_space<vmem>>, vector<1x1x8x128xf32>
    %55 = vector.shape_cast %54 : vector<1x1x8x128xf32> to vector<8x128xf32>
    %56 = arith.mulf %3, %49 : vector<8x128xf32>
    %57 = arith.mulf %9, %51 : vector<8x128xf32>
    %58 = arith.subf %56, %57 : vector<8x128xf32>
    %59 = arith.mulf %5, %53 : vector<8x128xf32>
    %60 = arith.addf %58, %59 : vector<8x128xf32>
    %61 = arith.mulf %11, %55 : vector<8x128xf32>
    %62 = arith.subf %60, %61 : vector<8x128xf32>
    %63 = arith.mulf %3, %51 : vector<8x128xf32>
    %64 = arith.mulf %9, %49 : vector<8x128xf32>
    %65 = arith.addf %63, %64 : vector<8x128xf32>
    %66 = arith.mulf %5, %55 : vector<8x128xf32>
    %67 = arith.addf %65, %66 : vector<8x128xf32>
    %68 = arith.mulf %11, %53 : vector<8x128xf32>
    %69 = arith.addf %67, %68 : vector<8x128xf32>
    %70 = arith.addf %62, %1 : vector<8x128xf32>
    %71 = arith.addf %69, %7 : vector<8x128xf32>
    %c0_94 = arith.constant 0 : index
    %c1_95 = arith.constant 1 : index
    %c0_96 = arith.constant 0 : index
    %c0_97 = arith.constant 0 : index
    %72 = vector.load %arg1[%c0_94, %c1_95, %c0_96, %c0_97] : memref<1x18x8x128xf32, #tpu.memory_space<vmem>>, vector<1x1x8x128xf32>
    %73 = vector.shape_cast %72 : vector<1x1x8x128xf32> to vector<8x128xf32>
    %c0_98 = arith.constant 0 : index
    %c10_99 = arith.constant 10 : index
    %c0_100 = arith.constant 0 : index
    %c0_101 = arith.constant 0 : index
    %74 = vector.load %arg1[%c0_98, %c10_99, %c0_100, %c0_101] : memref<1x18x8x128xf32, #tpu.memory_space<vmem>>, vector<1x1x8x128xf32>
    %75 = vector.shape_cast %74 : vector<1x1x8x128xf32> to vector<8x128xf32>
    %c0_102 = arith.constant 0 : index
    %c1_103 = arith.constant 1 : index
    %c0_104 = arith.constant 0 : index
    %c0_105 = arith.constant 0 : index
    %76 = vector.load %arg2[%c0_102, %c1_103, %c0_104, %c0_105] : memref<1x18x8x128xf32, #tpu.memory_space<vmem>>, vector<1x1x8x128xf32>
    %77 = vector.shape_cast %76 : vector<1x1x8x128xf32> to vector<8x128xf32>
    %c0_106 = arith.constant 0 : index
    %c10_107 = arith.constant 10 : index
    %c0_108 = arith.constant 0 : index
    %c0_109 = arith.constant 0 : index
    %78 = vector.load %arg2[%c0_106, %c10_107, %c0_108, %c0_109] : memref<1x18x8x128xf32, #tpu.memory_space<vmem>>, vector<1x1x8x128xf32>
    %79 = vector.shape_cast %78 : vector<1x1x8x128xf32> to vector<8x128xf32>
    %80 = arith.mulf %3, %73 : vector<8x128xf32>
    %81 = arith.mulf %9, %75 : vector<8x128xf32>
    %82 = arith.subf %80, %81 : vector<8x128xf32>
    %83 = arith.mulf %5, %77 : vector<8x128xf32>
    %84 = arith.addf %82, %83 : vector<8x128xf32>
    %85 = arith.mulf %11, %79 : vector<8x128xf32>
    %86 = arith.subf %84, %85 : vector<8x128xf32>
    %87 = arith.mulf %3, %75 : vector<8x128xf32>
    %88 = arith.mulf %9, %73 : vector<8x128xf32>
    %89 = arith.addf %87, %88 : vector<8x128xf32>
    %90 = arith.mulf %5, %79 : vector<8x128xf32>
    %91 = arith.addf %89, %90 : vector<8x128xf32>
    %92 = arith.mulf %11, %77 : vector<8x128xf32>
    %93 = arith.addf %91, %92 : vector<8x128xf32>
    %c0_110 = arith.constant 0 : index
    %c2_111 = arith.constant 2 : index
    %c0_112 = arith.constant 0 : index
    %c0_113 = arith.constant 0 : index
    %94 = vector.load %arg1[%c0_110, %c2_111, %c0_112, %c0_113] : memref<1x18x8x128xf32, #tpu.memory_space<vmem>>, vector<1x1x8x128xf32>
    %95 = vector.shape_cast %94 : vector<1x1x8x128xf32> to vector<8x128xf32>
    %c0_114 = arith.constant 0 : index
    %c11_115 = arith.constant 11 : index
    %c0_116 = arith.constant 0 : index
    %c0_117 = arith.constant 0 : index
    %96 = vector.load %arg1[%c0_114, %c11_115, %c0_116, %c0_117] : memref<1x18x8x128xf32, #tpu.memory_space<vmem>>, vector<1x1x8x128xf32>
    %97 = vector.shape_cast %96 : vector<1x1x8x128xf32> to vector<8x128xf32>
    %c0_118 = arith.constant 0 : index
    %c2_119 = arith.constant 2 : index
    %c0_120 = arith.constant 0 : index
    %c0_121 = arith.constant 0 : index
    %98 = vector.load %arg2[%c0_118, %c2_119, %c0_120, %c0_121] : memref<1x18x8x128xf32, #tpu.memory_space<vmem>>, vector<1x1x8x128xf32>
    %99 = vector.shape_cast %98 : vector<1x1x8x128xf32> to vector<8x128xf32>
    %c0_122 = arith.constant 0 : index
    %c11_123 = arith.constant 11 : index
    %c0_124 = arith.constant 0 : index
    %c0_125 = arith.constant 0 : index
    %100 = vector.load %arg2[%c0_122, %c11_123, %c0_124, %c0_125] : memref<1x18x8x128xf32, #tpu.memory_space<vmem>>, vector<1x1x8x128xf32>
    %101 = vector.shape_cast %100 : vector<1x1x8x128xf32> to vector<8x128xf32>
    %102 = arith.mulf %3, %95 : vector<8x128xf32>
    %103 = arith.mulf %9, %97 : vector<8x128xf32>
    %104 = arith.subf %102, %103 : vector<8x128xf32>
    %105 = arith.mulf %5, %99 : vector<8x128xf32>
    %106 = arith.addf %104, %105 : vector<8x128xf32>
    %107 = arith.mulf %11, %101 : vector<8x128xf32>
    %108 = arith.subf %106, %107 : vector<8x128xf32>
    %109 = arith.mulf %3, %97 : vector<8x128xf32>
    %110 = arith.mulf %9, %95 : vector<8x128xf32>
    %111 = arith.addf %109, %110 : vector<8x128xf32>
    %112 = arith.mulf %5, %101 : vector<8x128xf32>
    %113 = arith.addf %111, %112 : vector<8x128xf32>
    %114 = arith.mulf %11, %99 : vector<8x128xf32>
    %115 = arith.addf %113, %114 : vector<8x128xf32>
    %116 = arith.mulf %70, %13 : vector<8x128xf32>
    %117 = arith.mulf %71, %31 : vector<8x128xf32>
    %118 = arith.subf %116, %117 : vector<8x128xf32>
    %119 = arith.mulf %70, %31 : vector<8x128xf32>
    %120 = arith.mulf %71, %13 : vector<8x128xf32>
    %121 = arith.addf %119, %120 : vector<8x128xf32>
    %122 = arith.mulf %86, %19 : vector<8x128xf32>
    %123 = arith.mulf %93, %37 : vector<8x128xf32>
    %124 = arith.subf %122, %123 : vector<8x128xf32>
    %125 = arith.mulf %86, %37 : vector<8x128xf32>
    %126 = arith.mulf %93, %19 : vector<8x128xf32>
    %127 = arith.addf %125, %126 : vector<8x128xf32>
    %128 = arith.addf %118, %124 : vector<8x128xf32>
    %129 = arith.addf %121, %127 : vector<8x128xf32>
    %130 = arith.mulf %108, %25 : vector<8x128xf32>
    %131 = arith.mulf %115, %43 : vector<8x128xf32>
    %132 = arith.subf %130, %131 : vector<8x128xf32>
    %133 = arith.mulf %108, %43 : vector<8x128xf32>
    %134 = arith.mulf %115, %25 : vector<8x128xf32>
    %135 = arith.addf %133, %134 : vector<8x128xf32>
    %136 = arith.addf %128, %132 : vector<8x128xf32>
    %137 = arith.addf %129, %135 : vector<8x128xf32>
    %c0_126 = arith.constant 0 : index
    %c0_127 = arith.constant 0 : index
    %c0_128 = arith.constant 0 : index
    %c0_129 = arith.constant 0 : index
    %138 = vector.load %arg5[%c0_126, %c0_127, %c0_128, %c0_129] : memref<1x18x8x128xf32, #tpu.memory_space<vmem>>, vector<1x1x8x128xf32>
    %139 = vector.shape_cast %138 : vector<1x1x8x128xf32> to vector<8x128xf32>
    %140 = vector.shape_cast %136 : vector<8x128xf32> to vector<1x1x8x128xf32>
    tpu.vector_store %arg5[%c0_126, %c0_127, %c0_128, %c0_129], %140 {strides = array<i32>} : memref<1x18x8x128xf32, #tpu.memory_space<vmem>>, vector<1x1x8x128xf32>,
    %c0_130 = arith.constant 0 : index
    %c9_131 = arith.constant 9 : index
    %c0_132 = arith.constant 0 : index
    %c0_133 = arith.constant 0 : index
    %141 = vector.load %arg5[%c0_130, %c9_131, %c0_132, %c0_133] : memref<1x18x8x128xf32, #tpu.memory_space<vmem>>, vector<1x1x8x128xf32>
    %142 = vector.shape_cast %141 : vector<1x1x8x128xf32> to vector<8x128xf32>
    %143 = vector.shape_cast %137 : vector<8x128xf32> to vector<1x1x8x128xf32>
    tpu.vector_store %arg5[%c0_130, %c9_131, %c0_132, %c0_133], %143 {strides = array<i32>} : memref<1x18x8x128xf32, #tpu.memory_space<vmem>>, vector<1x1x8x128xf32>,
    %144 = arith.mulf %70, %15 : vector<8x128xf32>
    %145 = arith.mulf %71, %33 : vector<8x128xf32>
    %146 = arith.subf %144, %145 : vector<8x128xf32>
    %147 = arith.mulf %70, %33 : vector<8x128xf32>
    %148 = arith.mulf %71, %15 : vector<8x128xf32>
    %149 = arith.addf %147, %148 : vector<8x128xf32>
    %150 = arith.mulf %86, %21 : vector<8x128xf32>
    %151 = arith.mulf %93, %39 : vector<8x128xf32>
    %152 = arith.subf %150, %151 : vector<8x128xf32>
    %153 = arith.mulf %86, %39 : vector<8x128xf32>
    %154 = arith.mulf %93, %21 : vector<8x128xf32>
    %155 = arith.addf %153, %154 : vector<8x128xf32>
    %156 = arith.addf %146, %152 : vector<8x128xf32>
    %157 = arith.addf %149, %155 : vector<8x128xf32>
    %158 = arith.mulf %108, %27 : vector<8x128xf32>
    %159 = arith.mulf %115, %45 : vector<8x128xf32>
    %160 = arith.subf %158, %159 : vector<8x128xf32>
    %161 = arith.mulf %108, %45 : vector<8x128xf32>
    %162 = arith.mulf %115, %27 : vector<8x128xf32>
    %163 = arith.addf %161, %162 : vector<8x128xf32>
    %164 = arith.addf %156, %160 : vector<8x128xf32>
    %165 = arith.addf %157, %163 : vector<8x128xf32>
    %c0_134 = arith.constant 0 : index
    %c1_135 = arith.constant 1 : index
    %c0_136 = arith.constant 0 : index
    %c0_137 = arith.constant 0 : index
    %166 = vector.load %arg5[%c0_134, %c1_135, %c0_136, %c0_137] : memref<1x18x8x128xf32, #tpu.memory_space<vmem>>, vector<1x1x8x128xf32>
    %167 = vector.shape_cast %166 : vector<1x1x8x128xf32> to vector<8x128xf32>
    %168 = vector.shape_cast %164 : vector<8x128xf32> to vector<1x1x8x128xf32>
    tpu.vector_store %arg5[%c0_134, %c1_135, %c0_136, %c0_137], %168 {strides = array<i32>} : memref<1x18x8x128xf32, #tpu.memory_space<vmem>>, vector<1x1x8x128xf32>,
    %c0_138 = arith.constant 0 : index
    %c10_139 = arith.constant 10 : index
    %c0_140 = arith.constant 0 : index
    %c0_141 = arith.constant 0 : index
    %169 = vector.load %arg5[%c0_138, %c10_139, %c0_140, %c0_141] : memref<1x18x8x128xf32, #tpu.memory_space<vmem>>, vector<1x1x8x128xf32>
    %170 = vector.shape_cast %169 : vector<1x1x8x128xf32> to vector<8x128xf32>
    %171 = vector.shape_cast %165 : vector<8x128xf32> to vector<1x1x8x128xf32>
    tpu.vector_store %arg5[%c0_138, %c10_139, %c0_140, %c0_141], %171 {strides = array<i32>} : memref<1x18x8x128xf32, #tpu.memory_space<vmem>>, vector<1x1x8x128xf32>,
    %172 = arith.mulf %70, %17 : vector<8x128xf32>
    %173 = arith.mulf %71, %35 : vector<8x128xf32>
    %174 = arith.subf %172, %173 : vector<8x128xf32>
    %175 = arith.mulf %70, %35 : vector<8x128xf32>
    %176 = arith.mulf %71, %17 : vector<8x128xf32>
    %177 = arith.addf %175, %176 : vector<8x128xf32>
    %178 = arith.mulf %86, %23 : vector<8x128xf32>
    %179 = arith.mulf %93, %41 : vector<8x128xf32>
    %180 = arith.subf %178, %179 : vector<8x128xf32>
    %181 = arith.mulf %86, %41 : vector<8x128xf32>
    %182 = arith.mulf %93, %23 : vector<8x128xf32>
    %183 = arith.addf %181, %182 : vector<8x128xf32>
    %184 = arith.addf %174, %180 : vector<8x128xf32>
    %185 = arith.addf %177, %183 : vector<8x128xf32>
    %186 = arith.mulf %108, %29 : vector<8x128xf32>
    %187 = arith.mulf %115, %47 : vector<8x128xf32>
    %188 = arith.subf %186, %187 : vector<8x128xf32>
    %189 = arith.mulf %108, %47 : vector<8x128xf32>
    %190 = arith.mulf %115, %29 : vector<8x128xf32>
    %191 = arith.addf %189, %190 : vector<8x128xf32>
    %192 = arith.addf %184, %188 : vector<8x128xf32>
    %193 = arith.addf %185, %191 : vector<8x128xf32>
    %c0_142 = arith.constant 0 : index
    %c2_143 = arith.constant 2 : index
    %c0_144 = arith.constant 0 : index
    %c0_145 = arith.constant 0 : index
    %194 = vector.load %arg5[%c0_142, %c2_143, %c0_144, %c0_145] : memref<1x18x8x128xf32, #tpu.memory_space<vmem>>, vector<1x1x8x128xf32>
    %195 = vector.shape_cast %194 : vector<1x1x8x128xf32> to vector<8x128xf32>
    %196 = vector.shape_cast %192 : vector<8x128xf32> to vector<1x1x8x128xf32>
    tpu.vector_store %arg5[%c0_142, %c2_143, %c0_144, %c0_145], %196 {strides = array<i32>} : memref<1x18x8x128xf32, #tpu.memory_space<vmem>>, vector<1x1x8x128xf32>,
    %c0_146 = arith.constant 0 : index
    %c11_147 = arith.constant 11 : index
    %c0_148 = arith.constant 0 : index
    %c0_149 = arith.constant 0 : index
    %197 = vector.load %arg5[%c0_146, %c11_147, %c0_148, %c0_149] : memref<1x18x8x128xf32, #tpu.memory_space<vmem>>, vector<1x1x8x128xf32>
    %198 = vector.shape_cast %197 : vector<1x1x8x128xf32> to vector<8x128xf32>
    %199 = vector.shape_cast %193 : vector<8x128xf32> to vector<1x1x8x128xf32>
    tpu.vector_store %arg5[%c0_146, %c11_147, %c0_148, %c0_149], %199 {strides = array<i32>} : memref<1x18x8x128xf32, #tpu.memory_space<vmem>>, vector<1x1x8x128xf32>,
    %c0_150 = arith.constant 0 : index
    %c3_151 = arith.constant 3 : index
    %c0_152 = arith.constant 0 : index
    %c0_153 = arith.constant 0 : index
    %200 = vector.load %arg1[%c0_150, %c3_151, %c0_152, %c0_153] : memref<1x18x8x128xf32, #tpu.memory_space<vmem>>, vector<1x1x8x128xf32>
    %201 = vector.shape_cast %200 : vector<1x1x8x128xf32> to vector<8x128xf32>
    %c0_154 = arith.constant 0 : index
    %c12_155 = arith.constant 12 : index
    %c0_156 = arith.constant 0 : index
    %c0_157 = arith.constant 0 : index
    %202 = vector.load %arg1[%c0_154, %c12_155, %c0_156, %c0_157] : memref<1x18x8x128xf32, #tpu.memory_space<vmem>>, vector<1x1x8x128xf32>
    %203 = vector.shape_cast %202 : vector<1x1x8x128xf32> to vector<8x128xf32>
    %c0_158 = arith.constant 0 : index
    %c3_159 = arith.constant 3 : index
    %c0_160 = arith.constant 0 : index
    %c0_161 = arith.constant 0 : index
    %204 = vector.load %arg2[%c0_158, %c3_159, %c0_160, %c0_161] : memref<1x18x8x128xf32, #tpu.memory_space<vmem>>, vector<1x1x8x128xf32>
    %205 = vector.shape_cast %204 : vector<1x1x8x128xf32> to vector<8x128xf32>
    %c0_162 = arith.constant 0 : index
    %c12_163 = arith.constant 12 : index
    %c0_164 = arith.constant 0 : index
    %c0_165 = arith.constant 0 : index
    %206 = vector.load %arg2[%c0_162, %c12_163, %c0_164, %c0_165] : memref<1x18x8x128xf32, #tpu.memory_space<vmem>>, vector<1x1x8x128xf32>
    %207 = vector.shape_cast %206 : vector<1x1x8x128xf32> to vector<8x128xf32>
    %208 = arith.mulf %3, %201 : vector<8x128xf32>
    %209 = arith.mulf %9, %203 : vector<8x128xf32>
    %210 = arith.subf %208, %209 : vector<8x128xf32>
    %211 = arith.mulf %5, %205 : vector<8x128xf32>
    %212 = arith.addf %210, %211 : vector<8x128xf32>
    %213 = arith.mulf %11, %207 : vector<8x128xf32>
    %214 = arith.subf %212, %213 : vector<8x128xf32>
    %215 = arith.mulf %3, %203 : vector<8x128xf32>
    %216 = arith.mulf %9, %201 : vector<8x128xf32>
    %217 = arith.addf %215, %216 : vector<8x128xf32>
    %218 = arith.mulf %5, %207 : vector<8x128xf32>
    %219 = arith.addf %217, %218 : vector<8x128xf32>
    %220 = arith.mulf %11, %205 : vector<8x128xf32>
    %221 = arith.addf %219, %220 : vector<8x128xf32>
    %c0_166 = arith.constant 0 : index
    %c4_167 = arith.constant 4 : index
    %c0_168 = arith.constant 0 : index
    %c0_169 = arith.constant 0 : index
    %222 = vector.load %arg1[%c0_166, %c4_167, %c0_168, %c0_169] : memref<1x18x8x128xf32, #tpu.memory_space<vmem>>, vector<1x1x8x128xf32>
    %223 = vector.shape_cast %222 : vector<1x1x8x128xf32> to vector<8x128xf32>
    %c0_170 = arith.constant 0 : index
    %c13_171 = arith.constant 13 : index
    %c0_172 = arith.constant 0 : index
    %c0_173 = arith.constant 0 : index
    %224 = vector.load %arg1[%c0_170, %c13_171, %c0_172, %c0_173] : memref<1x18x8x128xf32, #tpu.memory_space<vmem>>, vector<1x1x8x128xf32>
    %225 = vector.shape_cast %224 : vector<1x1x8x128xf32> to vector<8x128xf32>
    %c0_174 = arith.constant 0 : index
    %c4_175 = arith.constant 4 : index
    %c0_176 = arith.constant 0 : index
    %c0_177 = arith.constant 0 : index
    %226 = vector.load %arg2[%c0_174, %c4_175, %c0_176, %c0_177] : memref<1x18x8x128xf32, #tpu.memory_space<vmem>>, vector<1x1x8x128xf32>
    %227 = vector.shape_cast %226 : vector<1x1x8x128xf32> to vector<8x128xf32>
    %c0_178 = arith.constant 0 : index
    %c13_179 = arith.constant 13 : index
    %c0_180 = arith.constant 0 : index
    %c0_181 = arith.constant 0 : index
    %228 = vector.load %arg2[%c0_178, %c13_179, %c0_180, %c0_181] : memref<1x18x8x128xf32, #tpu.memory_space<vmem>>, vector<1x1x8x128xf32>
    %229 = vector.shape_cast %228 : vector<1x1x8x128xf32> to vector<8x128xf32>
    %230 = arith.mulf %3, %223 : vector<8x128xf32>
    %231 = arith.mulf %9, %225 : vector<8x128xf32>
    %232 = arith.subf %230, %231 : vector<8x128xf32>
    %233 = arith.mulf %5, %227 : vector<8x128xf32>
    %234 = arith.addf %232, %233 : vector<8x128xf32>
    %235 = arith.mulf %11, %229 : vector<8x128xf32>
    %236 = arith.subf %234, %235 : vector<8x128xf32>
    %237 = arith.mulf %3, %225 : vector<8x128xf32>
    %238 = arith.mulf %9, %223 : vector<8x128xf32>
    %239 = arith.addf %237, %238 : vector<8x128xf32>
    %240 = arith.mulf %5, %229 : vector<8x128xf32>
    %241 = arith.addf %239, %240 : vector<8x128xf32>
    %242 = arith.mulf %11, %227 : vector<8x128xf32>
    %243 = arith.addf %241, %242 : vector<8x128xf32>
    %244 = arith.addf %236, %1 : vector<8x128xf32>
    %245 = arith.addf %243, %7 : vector<8x128xf32>
    %c0_182 = arith.constant 0 : index
    %c5_183 = arith.constant 5 : index
    %c0_184 = arith.constant 0 : index
    %c0_185 = arith.constant 0 : index
    %246 = vector.load %arg1[%c0_182, %c5_183, %c0_184, %c0_185] : memref<1x18x8x128xf32, #tpu.memory_space<vmem>>, vector<1x1x8x128xf32>
    %247 = vector.shape_cast %246 : vector<1x1x8x128xf32> to vector<8x128xf32>
    %c0_186 = arith.constant 0 : index
    %c14_187 = arith.constant 14 : index
    %c0_188 = arith.constant 0 : index
    %c0_189 = arith.constant 0 : index
    %248 = vector.load %arg1[%c0_186, %c14_187, %c0_188, %c0_189] : memref<1x18x8x128xf32, #tpu.memory_space<vmem>>, vector<1x1x8x128xf32>
    %249 = vector.shape_cast %248 : vector<1x1x8x128xf32> to vector<8x128xf32>
    %c0_190 = arith.constant 0 : index
    %c5_191 = arith.constant 5 : index
    %c0_192 = arith.constant 0 : index
    %c0_193 = arith.constant 0 : index
    %250 = vector.load %arg2[%c0_190, %c5_191, %c0_192, %c0_193] : memref<1x18x8x128xf32, #tpu.memory_space<vmem>>, vector<1x1x8x128xf32>
    %251 = vector.shape_cast %250 : vector<1x1x8x128xf32> to vector<8x128xf32>
    %c0_194 = arith.constant 0 : index
    %c14_195 = arith.constant 14 : index
    %c0_196 = arith.constant 0 : index
    %c0_197 = arith.constant 0 : index
    %252 = vector.load %arg2[%c0_194, %c14_195, %c0_196, %c0_197] : memref<1x18x8x128xf32, #tpu.memory_space<vmem>>, vector<1x1x8x128xf32>
    %253 = vector.shape_cast %252 : vector<1x1x8x128xf32> to vector<8x128xf32>
    %254 = arith.mulf %3, %247 : vector<8x128xf32>
    %255 = arith.mulf %9, %249 : vector<8x128xf32>
    %256 = arith.subf %254, %255 : vector<8x128xf32>
    %257 = arith.mulf %5, %251 : vector<8x128xf32>
    %258 = arith.addf %256, %257 : vector<8x128xf32>
    %259 = arith.mulf %11, %253 : vector<8x128xf32>
    %260 = arith.subf %258, %259 : vector<8x128xf32>
    %261 = arith.mulf %3, %249 : vector<8x128xf32>
    %262 = arith.mulf %9, %247 : vector<8x128xf32>
    %263 = arith.addf %261, %262 : vector<8x128xf32>
    %264 = arith.mulf %5, %253 : vector<8x128xf32>
    %265 = arith.addf %263, %264 : vector<8x128xf32>
    %266 = arith.mulf %11, %251 : vector<8x128xf32>
    %267 = arith.addf %265, %266 : vector<8x128xf32>
    %268 = arith.mulf %214, %13 : vector<8x128xf32>
    %269 = arith.mulf %221, %31 : vector<8x128xf32>
    %270 = arith.subf %268, %269 : vector<8x128xf32>
    %271 = arith.mulf %214, %31 : vector<8x128xf32>
    %272 = arith.mulf %221, %13 : vector<8x128xf32>
    %273 = arith.addf %271, %272 : vector<8x128xf32>
    %274 = arith.mulf %244, %19 : vector<8x128xf32>
    %275 = arith.mulf %245, %37 : vector<8x128xf32>
    %276 = arith.subf %274, %275 : vector<8x128xf32>
    %277 = arith.mulf %244, %37 : vector<8x128xf32>
    %278 = arith.mulf %245, %19 : vector<8x128xf32>
    %279 = arith.addf %277, %278 : vector<8x128xf32>
    %280 = arith.addf %270, %276 : vector<8x128xf32>
    %281 = arith.addf %273, %279 : vector<8x128xf32>
    %282 = arith.mulf %260, %25 : vector<8x128xf32>
    %283 = arith.mulf %267, %43 : vector<8x128xf32>
    %284 = arith.subf %282, %283 : vector<8x128xf32>
    %285 = arith.mulf %260, %43 : vector<8x128xf32>
    %286 = arith.mulf %267, %25 : vector<8x128xf32>
    %287 = arith.addf %285, %286 : vector<8x128xf32>
    %288 = arith.addf %280, %284 : vector<8x128xf32>
    %289 = arith.addf %281, %287 : vector<8x128xf32>
    %c0_198 = arith.constant 0 : index
    %c3_199 = arith.constant 3 : index
    %c0_200 = arith.constant 0 : index
    %c0_201 = arith.constant 0 : index
    %290 = vector.load %arg5[%c0_198, %c3_199, %c0_200, %c0_201] : memref<1x18x8x128xf32, #tpu.memory_space<vmem>>, vector<1x1x8x128xf32>
    %291 = vector.shape_cast %290 : vector<1x1x8x128xf32> to vector<8x128xf32>
    %292 = vector.shape_cast %288 : vector<8x128xf32> to vector<1x1x8x128xf32>
    tpu.vector_store %arg5[%c0_198, %c3_199, %c0_200, %c0_201], %292 {strides = array<i32>} : memref<1x18x8x128xf32, #tpu.memory_space<vmem>>, vector<1x1x8x128xf32>,
    %c0_202 = arith.constant 0 : index
    %c12_203 = arith.constant 12 : index
    %c0_204 = arith.constant 0 : index
    %c0_205 = arith.constant 0 : index
    %293 = vector.load %arg5[%c0_202, %c12_203, %c0_204, %c0_205] : memref<1x18x8x128xf32, #tpu.memory_space<vmem>>, vector<1x1x8x128xf32>
    %294 = vector.shape_cast %293 : vector<1x1x8x128xf32> to vector<8x128xf32>
    %295 = vector.shape_cast %289 : vector<8x128xf32> to vector<1x1x8x128xf32>
    tpu.vector_store %arg5[%c0_202, %c12_203, %c0_204, %c0_205], %295 {strides = array<i32>} : memref<1x18x8x128xf32, #tpu.memory_space<vmem>>, vector<1x1x8x128xf32>,
    %296 = arith.mulf %214, %15 : vector<8x128xf32>
    %297 = arith.mulf %221, %33 : vector<8x128xf32>
    %298 = arith.subf %296, %297 : vector<8x128xf32>
    %299 = arith.mulf %214, %33 : vector<8x128xf32>
    %300 = arith.mulf %221, %15 : vector<8x128xf32>
    %301 = arith.addf %299, %300 : vector<8x128xf32>
    %302 = arith.mulf %244, %21 : vector<8x128xf32>
    %303 = arith.mulf %245, %39 : vector<8x128xf32>
    %304 = arith.subf %302, %303 : vector<8x128xf32>
    %305 = arith.mulf %244, %39 : vector<8x128xf32>
    %306 = arith.mulf %245, %21 : vector<8x128xf32>
    %307 = arith.addf %305, %306 : vector<8x128xf32>
    %308 = arith.addf %298, %304 : vector<8x128xf32>
    %309 = arith.addf %301, %307 : vector<8x128xf32>
    %310 = arith.mulf %260, %27 : vector<8x128xf32>
    %311 = arith.mulf %267, %45 : vector<8x128xf32>
    %312 = arith.subf %310, %311 : vector<8x128xf32>
    %313 = arith.mulf %260, %45 : vector<8x128xf32>
    %314 = arith.mulf %267, %27 : vector<8x128xf32>
    %315 = arith.addf %313, %314 : vector<8x128xf32>
    %316 = arith.addf %308, %312 : vector<8x128xf32>
    %317 = arith.addf %309, %315 : vector<8x128xf32>
    %c0_206 = arith.constant 0 : index
    %c4_207 = arith.constant 4 : index
    %c0_208 = arith.constant 0 : index
    %c0_209 = arith.constant 0 : index
    %318 = vector.load %arg5[%c0_206, %c4_207, %c0_208, %c0_209] : memref<1x18x8x128xf32, #tpu.memory_space<vmem>>, vector<1x1x8x128xf32>
    %319 = vector.shape_cast %318 : vector<1x1x8x128xf32> to vector<8x128xf32>
    %320 = vector.shape_cast %316 : vector<8x128xf32> to vector<1x1x8x128xf32>
    tpu.vector_store %arg5[%c0_206, %c4_207, %c0_208, %c0_209], %320 {strides = array<i32>} : memref<1x18x8x128xf32, #tpu.memory_space<vmem>>, vector<1x1x8x128xf32>,
    %c0_210 = arith.constant 0 : index
    %c13_211 = arith.constant 13 : index
    %c0_212 = arith.constant 0 : index
    %c0_213 = arith.constant 0 : index
    %321 = vector.load %arg5[%c0_210, %c13_211, %c0_212, %c0_213] : memref<1x18x8x128xf32, #tpu.memory_space<vmem>>, vector<1x1x8x128xf32>
    %322 = vector.shape_cast %321 : vector<1x1x8x128xf32> to vector<8x128xf32>
    %323 = vector.shape_cast %317 : vector<8x128xf32> to vector<1x1x8x128xf32>
    tpu.vector_store %arg5[%c0_210, %c13_211, %c0_212, %c0_213], %323 {strides = array<i32>} : memref<1x18x8x128xf32, #tpu.memory_space<vmem>>, vector<1x1x8x128xf32>,
    %324 = arith.mulf %214, %17 : vector<8x128xf32>
    %325 = arith.mulf %221, %35 : vector<8x128xf32>
    %326 = arith.subf %324, %325 : vector<8x128xf32>
    %327 = arith.mulf %214, %35 : vector<8x128xf32>
    %328 = arith.mulf %221, %17 : vector<8x128xf32>
    %329 = arith.addf %327, %328 : vector<8x128xf32>
    %330 = arith.mulf %244, %23 : vector<8x128xf32>
    %331 = arith.mulf %245, %41 : vector<8x128xf32>
    %332 = arith.subf %330, %331 : vector<8x128xf32>
    %333 = arith.mulf %244, %41 : vector<8x128xf32>
    %334 = arith.mulf %245, %23 : vector<8x128xf32>
    %335 = arith.addf %333, %334 : vector<8x128xf32>
    %336 = arith.addf %326, %332 : vector<8x128xf32>
    %337 = arith.addf %329, %335 : vector<8x128xf32>
    %338 = arith.mulf %260, %29 : vector<8x128xf32>
    %339 = arith.mulf %267, %47 : vector<8x128xf32>
    %340 = arith.subf %338, %339 : vector<8x128xf32>
    %341 = arith.mulf %260, %47 : vector<8x128xf32>
    %342 = arith.mulf %267, %29 : vector<8x128xf32>
    %343 = arith.addf %341, %342 : vector<8x128xf32>
    %344 = arith.addf %336, %340 : vector<8x128xf32>
    %345 = arith.addf %337, %343 : vector<8x128xf32>
    %c0_214 = arith.constant 0 : index
    %c5_215 = arith.constant 5 : index
    %c0_216 = arith.constant 0 : index
    %c0_217 = arith.constant 0 : index
    %346 = vector.load %arg5[%c0_214, %c5_215, %c0_216, %c0_217] : memref<1x18x8x128xf32, #tpu.memory_space<vmem>>, vector<1x1x8x128xf32>
    %347 = vector.shape_cast %346 : vector<1x1x8x128xf32> to vector<8x128xf32>
    %348 = vector.shape_cast %344 : vector<8x128xf32> to vector<1x1x8x128xf32>
    tpu.vector_store %arg5[%c0_214, %c5_215, %c0_216, %c0_217], %348 {strides = array<i32>} : memref<1x18x8x128xf32, #tpu.memory_space<vmem>>, vector<1x1x8x128xf32>,
    %c0_218 = arith.constant 0 : index
    %c14_219 = arith.constant 14 : index
    %c0_220 = arith.constant 0 : index
    %c0_221 = arith.constant 0 : index
    %349 = vector.load %arg5[%c0_218, %c14_219, %c0_220, %c0_221] : memref<1x18x8x128xf32, #tpu.memory_space<vmem>>, vector<1x1x8x128xf32>
    %350 = vector.shape_cast %349 : vector<1x1x8x128xf32> to vector<8x128xf32>
    %351 = vector.shape_cast %345 : vector<8x128xf32> to vector<1x1x8x128xf32>
    tpu.vector_store %arg5[%c0_218, %c14_219, %c0_220, %c0_221], %351 {strides = array<i32>} : memref<1x18x8x128xf32, #tpu.memory_space<vmem>>, vector<1x1x8x128xf32>,
    %c0_222 = arith.constant 0 : index
    %c6_223 = arith.constant 6 : index
    %c0_224 = arith.constant 0 : index
    %c0_225 = arith.constant 0 : index
    %352 = vector.load %arg1[%c0_222, %c6_223, %c0_224, %c0_225] : memref<1x18x8x128xf32, #tpu.memory_space<vmem>>, vector<1x1x8x128xf32>
    %353 = vector.shape_cast %352 : vector<1x1x8x128xf32> to vector<8x128xf32>
    %c0_226 = arith.constant 0 : index
    %c15_227 = arith.constant 15 : index
    %c0_228 = arith.constant 0 : index
    %c0_229 = arith.constant 0 : index
    %354 = vector.load %arg1[%c0_226, %c15_227, %c0_228, %c0_229] : memref<1x18x8x128xf32, #tpu.memory_space<vmem>>, vector<1x1x8x128xf32>
    %355 = vector.shape_cast %354 : vector<1x1x8x128xf32> to vector<8x128xf32>
    %c0_230 = arith.constant 0 : index
    %c6_231 = arith.constant 6 : index
    %c0_232 = arith.constant 0 : index
    %c0_233 = arith.constant 0 : index
    %356 = vector.load %arg2[%c0_230, %c6_231, %c0_232, %c0_233] : memref<1x18x8x128xf32, #tpu.memory_space<vmem>>, vector<1x1x8x128xf32>
    %357 = vector.shape_cast %356 : vector<1x1x8x128xf32> to vector<8x128xf32>
    %c0_234 = arith.constant 0 : index
    %c15_235 = arith.constant 15 : index
    %c0_236 = arith.constant 0 : index
    %c0_237 = arith.constant 0 : index
    %358 = vector.load %arg2[%c0_234, %c15_235, %c0_236, %c0_237] : memref<1x18x8x128xf32, #tpu.memory_space<vmem>>, vector<1x1x8x128xf32>
    %359 = vector.shape_cast %358 : vector<1x1x8x128xf32> to vector<8x128xf32>
    %360 = arith.mulf %3, %353 : vector<8x128xf32>
    %361 = arith.mulf %9, %355 : vector<8x128xf32>
    %362 = arith.subf %360, %361 : vector<8x128xf32>
    %363 = arith.mulf %5, %357 : vector<8x128xf32>
    %364 = arith.addf %362, %363 : vector<8x128xf32>
    %365 = arith.mulf %11, %359 : vector<8x128xf32>
    %366 = arith.subf %364, %365 : vector<8x128xf32>
    %367 = arith.mulf %3, %355 : vector<8x128xf32>
    %368 = arith.mulf %9, %353 : vector<8x128xf32>
    %369 = arith.addf %367, %368 : vector<8x128xf32>
    %370 = arith.mulf %5, %359 : vector<8x128xf32>
    %371 = arith.addf %369, %370 : vector<8x128xf32>
    %372 = arith.mulf %11, %357 : vector<8x128xf32>
    %373 = arith.addf %371, %372 : vector<8x128xf32>
    %c0_238 = arith.constant 0 : index
    %c7_239 = arith.constant 7 : index
    %c0_240 = arith.constant 0 : index
    %c0_241 = arith.constant 0 : index
    %374 = vector.load %arg1[%c0_238, %c7_239, %c0_240, %c0_241] : memref<1x18x8x128xf32, #tpu.memory_space<vmem>>, vector<1x1x8x128xf32>
    %375 = vector.shape_cast %374 : vector<1x1x8x128xf32> to vector<8x128xf32>
    %c0_242 = arith.constant 0 : index
    %c16_243 = arith.constant 16 : index
    %c0_244 = arith.constant 0 : index
    %c0_245 = arith.constant 0 : index
    %376 = vector.load %arg1[%c0_242, %c16_243, %c0_244, %c0_245] : memref<1x18x8x128xf32, #tpu.memory_space<vmem>>, vector<1x1x8x128xf32>
    %377 = vector.shape_cast %376 : vector<1x1x8x128xf32> to vector<8x128xf32>
    %c0_246 = arith.constant 0 : index
    %c7_247 = arith.constant 7 : index
    %c0_248 = arith.constant 0 : index
    %c0_249 = arith.constant 0 : index
    %378 = vector.load %arg2[%c0_246, %c7_247, %c0_248, %c0_249] : memref<1x18x8x128xf32, #tpu.memory_space<vmem>>, vector<1x1x8x128xf32>
    %379 = vector.shape_cast %378 : vector<1x1x8x128xf32> to vector<8x128xf32>
    %c0_250 = arith.constant 0 : index
    %c16_251 = arith.constant 16 : index
    %c0_252 = arith.constant 0 : index
    %c0_253 = arith.constant 0 : index
    %380 = vector.load %arg2[%c0_250, %c16_251, %c0_252, %c0_253] : memref<1x18x8x128xf32, #tpu.memory_space<vmem>>, vector<1x1x8x128xf32>
    %381 = vector.shape_cast %380 : vector<1x1x8x128xf32> to vector<8x128xf32>
    %382 = arith.mulf %3, %375 : vector<8x128xf32>
    %383 = arith.mulf %9, %377 : vector<8x128xf32>
    %384 = arith.subf %382, %383 : vector<8x128xf32>
    %385 = arith.mulf %5, %379 : vector<8x128xf32>
    %386 = arith.addf %384, %385 : vector<8x128xf32>
    %387 = arith.mulf %11, %381 : vector<8x128xf32>
    %388 = arith.subf %386, %387 : vector<8x128xf32>
    %389 = arith.mulf %3, %377 : vector<8x128xf32>
    %390 = arith.mulf %9, %375 : vector<8x128xf32>
    %391 = arith.addf %389, %390 : vector<8x128xf32>
    %392 = arith.mulf %5, %381 : vector<8x128xf32>
    %393 = arith.addf %391, %392 : vector<8x128xf32>
    %394 = arith.mulf %11, %379 : vector<8x128xf32>
    %395 = arith.addf %393, %394 : vector<8x128xf32>
    %c0_254 = arith.constant 0 : index
    %c8_255 = arith.constant 8 : index
    %c0_256 = arith.constant 0 : index
    %c0_257 = arith.constant 0 : index
    %396 = vector.load %arg1[%c0_254, %c8_255, %c0_256, %c0_257] : memref<1x18x8x128xf32, #tpu.memory_space<vmem>>, vector<1x1x8x128xf32>
    %397 = vector.shape_cast %396 : vector<1x1x8x128xf32> to vector<8x128xf32>
    %c0_258 = arith.constant 0 : index
    %c17_259 = arith.constant 17 : index
    %c0_260 = arith.constant 0 : index
    %c0_261 = arith.constant 0 : index
    %398 = vector.load %arg1[%c0_258, %c17_259, %c0_260, %c0_261] : memref<1x18x8x128xf32, #tpu.memory_space<vmem>>, vector<1x1x8x128xf32>
    %399 = vector.shape_cast %398 : vector<1x1x8x128xf32> to vector<8x128xf32>
    %c0_262 = arith.constant 0 : index
    %c8_263 = arith.constant 8 : index
    %c0_264 = arith.constant 0 : index
    %c0_265 = arith.constant 0 : index
    %400 = vector.load %arg2[%c0_262, %c8_263, %c0_264, %c0_265] : memref<1x18x8x128xf32, #tpu.memory_space<vmem>>, vector<1x1x8x128xf32>
    %401 = vector.shape_cast %400 : vector<1x1x8x128xf32> to vector<8x128xf32>
    %c0_266 = arith.constant 0 : index
    %c17_267 = arith.constant 17 : index
    %c0_268 = arith.constant 0 : index
    %c0_269 = arith.constant 0 : index
    %402 = vector.load %arg2[%c0_266, %c17_267, %c0_268, %c0_269] : memref<1x18x8x128xf32, #tpu.memory_space<vmem>>, vector<1x1x8x128xf32>
    %403 = vector.shape_cast %402 : vector<1x1x8x128xf32> to vector<8x128xf32>
    %404 = arith.mulf %3, %397 : vector<8x128xf32>
    %405 = arith.mulf %9, %399 : vector<8x128xf32>
    %406 = arith.subf %404, %405 : vector<8x128xf32>
    %407 = arith.mulf %5, %401 : vector<8x128xf32>
    %408 = arith.addf %406, %407 : vector<8x128xf32>
    %409 = arith.mulf %11, %403 : vector<8x128xf32>
    %410 = arith.subf %408, %409 : vector<8x128xf32>
    %411 = arith.mulf %3, %399 : vector<8x128xf32>
    %412 = arith.mulf %9, %397 : vector<8x128xf32>
    %413 = arith.addf %411, %412 : vector<8x128xf32>
    %414 = arith.mulf %5, %403 : vector<8x128xf32>
    %415 = arith.addf %413, %414 : vector<8x128xf32>
    %416 = arith.mulf %11, %401 : vector<8x128xf32>
    %417 = arith.addf %415, %416 : vector<8x128xf32>
    %418 = arith.addf %410, %1 : vector<8x128xf32>
    %419 = arith.addf %417, %7 : vector<8x128xf32>
    %420 = arith.mulf %366, %13 : vector<8x128xf32>
    %421 = arith.mulf %373, %31 : vector<8x128xf32>
    %422 = arith.subf %420, %421 : vector<8x128xf32>
    %423 = arith.mulf %366, %31 : vector<8x128xf32>
    %424 = arith.mulf %373, %13 : vector<8x128xf32>
    %425 = arith.addf %423, %424 : vector<8x128xf32>
    %426 = arith.mulf %388, %19 : vector<8x128xf32>
    %427 = arith.mulf %395, %37 : vector<8x128xf32>
    %428 = arith.subf %426, %427 : vector<8x128xf32>
    %429 = arith.mulf %388, %37 : vector<8x128xf32>
    %430 = arith.mulf %395, %19 : vector<8x128xf32>
    %431 = arith.addf %429, %430 : vector<8x128xf32>
    %432 = arith.addf %422, %428 : vector<8x128xf32>
    %433 = arith.addf %425, %431 : vector<8x128xf32>
    %434 = arith.mulf %418, %25 : vector<8x128xf32>
    %435 = arith.mulf %419, %43 : vector<8x128xf32>
    %436 = arith.subf %434, %435 : vector<8x128xf32>
    %437 = arith.mulf %418, %43 : vector<8x128xf32>
    %438 = arith.mulf %419, %25 : vector<8x128xf32>
    %439 = arith.addf %437, %438 : vector<8x128xf32>
    %440 = arith.addf %432, %436 : vector<8x128xf32>
    %441 = arith.addf %433, %439 : vector<8x128xf32>
    %c0_270 = arith.constant 0 : index
    %c6_271 = arith.constant 6 : index
    %c0_272 = arith.constant 0 : index
    %c0_273 = arith.constant 0 : index
    %442 = vector.load %arg5[%c0_270, %c6_271, %c0_272, %c0_273] : memref<1x18x8x128xf32, #tpu.memory_space<vmem>>, vector<1x1x8x128xf32>
    %443 = vector.shape_cast %442 : vector<1x1x8x128xf32> to vector<8x128xf32>
    %444 = vector.shape_cast %440 : vector<8x128xf32> to vector<1x1x8x128xf32>
    tpu.vector_store %arg5[%c0_270, %c6_271, %c0_272, %c0_273], %444 {strides = array<i32>} : memref<1x18x8x128xf32, #tpu.memory_space<vmem>>, vector<1x1x8x128xf32>,
    %c0_274 = arith.constant 0 : index
    %c15_275 = arith.constant 15 : index
    %c0_276 = arith.constant 0 : index
    %c0_277 = arith.constant 0 : index
    %445 = vector.load %arg5[%c0_274, %c15_275, %c0_276, %c0_277] : memref<1x18x8x128xf32, #tpu.memory_space<vmem>>, vector<1x1x8x128xf32>
    %446 = vector.shape_cast %445 : vector<1x1x8x128xf32> to vector<8x128xf32>
    %447 = vector.shape_cast %441 : vector<8x128xf32> to vector<1x1x8x128xf32>
    tpu.vector_store %arg5[%c0_274, %c15_275, %c0_276, %c0_277], %447 {strides = array<i32>} : memref<1x18x8x128xf32, #tpu.memory_space<vmem>>, vector<1x1x8x128xf32>,
    %448 = arith.mulf %366, %15 : vector<8x128xf32>
    %449 = arith.mulf %373, %33 : vector<8x128xf32>
    %450 = arith.subf %448, %449 : vector<8x128xf32>
    %451 = arith.mulf %366, %33 : vector<8x128xf32>
    %452 = arith.mulf %373, %15 : vector<8x128xf32>
    %453 = arith.addf %451, %452 : vector<8x128xf32>
    %454 = arith.mulf %388, %21 : vector<8x128xf32>
    %455 = arith.mulf %395, %39 : vector<8x128xf32>
    %456 = arith.subf %454, %455 : vector<8x128xf32>
    %457 = arith.mulf %388, %39 : vector<8x128xf32>
    %458 = arith.mulf %395, %21 : vector<8x128xf32>
    %459 = arith.addf %457, %458 : vector<8x128xf32>
    %460 = arith.addf %450, %456 : vector<8x128xf32>
    %461 = arith.addf %453, %459 : vector<8x128xf32>
    %462 = arith.mulf %418, %27 : vector<8x128xf32>
    %463 = arith.mulf %419, %45 : vector<8x128xf32>
    %464 = arith.subf %462, %463 : vector<8x128xf32>
    %465 = arith.mulf %418, %45 : vector<8x128xf32>
    %466 = arith.mulf %419, %27 : vector<8x128xf32>
    %467 = arith.addf %465, %466 : vector<8x128xf32>
    %468 = arith.addf %460, %464 : vector<8x128xf32>
    %469 = arith.addf %461, %467 : vector<8x128xf32>
    %c0_278 = arith.constant 0 : index
    %c7_279 = arith.constant 7 : index
    %c0_280 = arith.constant 0 : index
    %c0_281 = arith.constant 0 : index
    %470 = vector.load %arg5[%c0_278, %c7_279, %c0_280, %c0_281] : memref<1x18x8x128xf32, #tpu.memory_space<vmem>>, vector<1x1x8x128xf32>
    %471 = vector.shape_cast %470 : vector<1x1x8x128xf32> to vector<8x128xf32>
    %472 = vector.shape_cast %468 : vector<8x128xf32> to vector<1x1x8x128xf32>
    tpu.vector_store %arg5[%c0_278, %c7_279, %c0_280, %c0_281], %472 {strides = array<i32>} : memref<1x18x8x128xf32, #tpu.memory_space<vmem>>, vector<1x1x8x128xf32>,
    %c0_282 = arith.constant 0 : index
    %c16_283 = arith.constant 16 : index
    %c0_284 = arith.constant 0 : index
    %c0_285 = arith.constant 0 : index
    %473 = vector.load %arg5[%c0_282, %c16_283, %c0_284, %c0_285] : memref<1x18x8x128xf32, #tpu.memory_space<vmem>>, vector<1x1x8x128xf32>
    %474 = vector.shape_cast %473 : vector<1x1x8x128xf32> to vector<8x128xf32>
    %475 = vector.shape_cast %469 : vector<8x128xf32> to vector<1x1x8x128xf32>
    tpu.vector_store %arg5[%c0_282, %c16_283, %c0_284, %c0_285], %475 {strides = array<i32>} : memref<1x18x8x128xf32, #tpu.memory_space<vmem>>, vector<1x1x8x128xf32>,
    %476 = arith.mulf %366, %17 : vector<8x128xf32>
    %477 = arith.mulf %373, %35 : vector<8x128xf32>
    %478 = arith.subf %476, %477 : vector<8x128xf32>
    %479 = arith.mulf %366, %35 : vector<8x128xf32>
    %480 = arith.mulf %373, %17 : vector<8x128xf32>
    %481 = arith.addf %479, %480 : vector<8x128xf32>
    %482 = arith.mulf %388, %23 : vector<8x128xf32>
    %483 = arith.mulf %395, %41 : vector<8x128xf32>
    %484 = arith.subf %482, %483 : vector<8x128xf32>
    %485 = arith.mulf %388, %41 : vector<8x128xf32>
    %486 = arith.mulf %395, %23 : vector<8x128xf32>
    %487 = arith.addf %485, %486 : vector<8x128xf32>
    %488 = arith.addf %478, %484 : vector<8x128xf32>
    %489 = arith.addf %481, %487 : vector<8x128xf32>
    %490 = arith.mulf %418, %29 : vector<8x128xf32>
    %491 = arith.mulf %419, %47 : vector<8x128xf32>
    %492 = arith.subf %490, %491 : vector<8x128xf32>
    %493 = arith.mulf %418, %47 : vector<8x128xf32>
    %494 = arith.mulf %419, %29 : vector<8x128xf32>
    %495 = arith.addf %493, %494 : vector<8x128xf32>
    %496 = arith.addf %488, %492 : vector<8x128xf32>
    %497 = arith.addf %489, %495 : vector<8x128xf32>
    %c0_286 = arith.constant 0 : index
    %c8_287 = arith.constant 8 : index
    %c0_288 = arith.constant 0 : index
    %c0_289 = arith.constant 0 : index
    %498 = vector.load %arg5[%c0_286, %c8_287, %c0_288, %c0_289] : memref<1x18x8x128xf32, #tpu.memory_space<vmem>>, vector<1x1x8x128xf32>
    %499 = vector.shape_cast %498 : vector<1x1x8x128xf32> to vector<8x128xf32>
    %500 = vector.shape_cast %496 : vector<8x128xf32> to vector<1x1x8x128xf32>
    tpu.vector_store %arg5[%c0_286, %c8_287, %c0_288, %c0_289], %500 {strides = array<i32>} : memref<1x18x8x128xf32, #tpu.memory_space<vmem>>, vector<1x1x8x128xf32>,
    %c0_290 = arith.constant 0 : index
    %c17_291 = arith.constant 17 : index
    %c0_292 = arith.constant 0 : index
    %c0_293 = arith.constant 0 : index
    %501 = vector.load %arg5[%c0_290, %c17_291, %c0_292, %c0_293] : memref<1x18x8x128xf32, #tpu.memory_space<vmem>>, vector<1x1x8x128xf32>
    %502 = vector.shape_cast %501 : vector<1x1x8x128xf32> to vector<8x128xf32>
    %503 = vector.shape_cast %497 : vector<8x128xf32> to vector<1x1x8x128xf32>
    tpu.vector_store %arg5[%c0_290, %c17_291, %c0_292, %c0_293], %503 {strides = array<i32>} : memref<1x18x8x128xf32, #tpu.memory_space<vmem>>, vector<1x1x8x128xf32>,
    return
  }
  func.func @transform_0(%arg0: i32) -> (i32, i32, i32, i32) {
    %c0_i32 = arith.constant 0 : i32
    %c0_i32_0 = arith.constant 0 : i32
    %c0_i32_1 = arith.constant 0 : i32
    %c0_i32_2 = arith.constant 0 : i32
    return %arg0, %c0_i32, %c0_i32_0, %c0_i32_1 : i32, i32, i32, i32
  }
  func.func @transform_1(%arg0: i32) -> (i32, i32, i32, i32) {
    %c0_i32 = arith.constant 0 : i32
    %c0_i32_0 = arith.constant 0 : i32
    %c0_i32_1 = arith.constant 0 : i32
    %c0_i32_2 = arith.constant 0 : i32
    return %arg0, %c0_i32, %c0_i32_0, %c0_i32_1 : i32, i32, i32, i32
  }
  func.func @transform_2(%arg0: i32) -> (i32, i32, i32, i32) {
    %c0_i32 = arith.constant 0 : i32
    %c0_i32_0 = arith.constant 0 : i32
    %c0_i32_1 = arith.constant 0 : i32
    %c0_i32_2 = arith.constant 0 : i32
    return %arg0, %c0_i32, %c0_i32_0, %c0_i32_1 : i32, i32, i32, i32
  }
  func.func @transform_3(%arg0: i32) -> (i32, i32, i32, i32) {
    %c0_i32 = arith.constant 0 : i32
    %c0_i32_0 = arith.constant 0 : i32
    %c0_i32_1 = arith.constant 0 : i32
    %c0_i32_2 = arith.constant 0 : i32
    return %arg0, %c0_i32, %c0_i32_0, %c0_i32_1 : i32, i32, i32, i32
  }
  func.func @transform_4(%arg0: i32) -> (i32, i32, i32, i32) {
    %c0_i32 = arith.constant 0 : i32
    %c0_i32_0 = arith.constant 0 : i32
    %c0_i32_1 = arith.constant 0 : i32
    %c0_i32_2 = arith.constant 0 : i32
    return %arg0, %c0_i32, %c0_i32_0, %c0_i32_1 : i32, i32, i32, i32
  }
}

</mosaic_0001>

<llo_original>
// kernel: custom-call.1
$region0: #{custom-call.1}
  %s0 = inlined_call_operand.vmem [shape: c64[2,2,4,4,3,3], index: 0, kind: input, shape index: {}]
  %s1 = inlined_call_operand.vmem [shape: f32[2,2,4,4,3,3], index: 1, kind: output, shape index: {}]
  %s2 = scalar_lea.vmem %s0, 256
  %v3 = vld [vmem:[%s2] sm:$0xff]
  %4 = vst [vmem:[%s1] sm:$0xff] %v3
  %s5 = scalar_lea.vmem %s1, 8
  %s6 = scalar_lea.vmem %s2, 8
  %v7 = vld [vmem:[%s6] sm:$0xff]
  %8 = vst [vmem:[%s5] sm:$0xff] %v7
  %s9 = scalar_lea.vmem %s1, 16
  %s10 = scalar_lea.vmem %s2, 16
  %v11 = vld [vmem:[%s10] sm:$0xff]
  %12 = vst [vmem:[%s9] sm:$0xff] %v11
  %s13 = scalar_lea.vmem %s1, 24
  %s14 = scalar_lea.vmem %s2, 24
  %v15 = vld [vmem:[%s14] sm:$0xff]
  %16 = vst [vmem:[%s13] sm:$0xff] %v15
  %s17 = scalar_lea.vmem %s1, 32
  %s18 = scalar_lea.vmem %s2, 32
  %v19 = vld [vmem:[%s18] sm:$0xff]
  %20 = vst [vmem:[%s17] sm:$0xff] %v19
  %s21 = scalar_lea.vmem %s1, 40
  %s22 = scalar_lea.vmem %s2, 40
  %v23 = vld [vmem:[%s22] sm:$0xff]
  %24 = vst [vmem:[%s21] sm:$0xff] %v23
  %s25 = scalar_lea.vmem %s1, 48
  %s26 = scalar_lea.vmem %s2, 48
  %v27 = vld [vmem:[%s26] sm:$0xff]
  %28 = vst [vmem:[%s25] sm:$0xff] %v27
  %s29 = scalar_lea.vmem %s1, 56
  %s30 = scalar_lea.vmem %s2, 56
  %v31 = vld [vmem:[%s30] sm:$0xff]
  %32 = vst [vmem:[%s29] sm:$0xff] %v31
  %s33 = scalar_lea.vmem %s1, 64
  %s34 = scalar_lea.vmem %s2, 64
  %v35 = vld [vmem:[%s34] sm:$0xff]
  %36 = vst [vmem:[%s33] sm:$0xff] %v35
  %s37 = scalar_lea.vmem %s1, 72
  %s38 = scalar_lea.vmem %s2, 72
  %v39 = vld [vmem:[%s38] sm:$0xff]
  %40 = vst [vmem:[%s37] sm:$0xff] %v39
  %s41 = scalar_lea.vmem %s1, 80
  %s42 = scalar_lea.vmem %s2, 80
  %v43 = vld [vmem:[%s42] sm:$0xff]
  %44 = vst [vmem:[%s41] sm:$0xff] %v43
  %s45 = scalar_lea.vmem %s1, 88
  %s46 = scalar_lea.vmem %s2, 88
  %v47 = vld [vmem:[%s46] sm:$0xff]
  %48 = vst [vmem:[%s45] sm:$0xff] %v47
  %s49 = scalar_lea.vmem %s1, 96
  %s50 = scalar_lea.vmem %s2, 96
  %v51 = vld [vmem:[%s50] sm:$0xff]
  %52 = vst [vmem:[%s49] sm:$0xff] %v51
  %s53 = scalar_lea.vmem %s1, 104
  %s54 = scalar_lea.vmem %s2, 104
  %v55 = vld [vmem:[%s54] sm:$0xff]
  %56 = vst [vmem:[%s53] sm:$0xff] %v55
  %s57 = scalar_lea.vmem %s1, 112
  %s58 = scalar_lea.vmem %s2, 112
  %v59 = vld [vmem:[%s58] sm:$0xff]
  %60 = vst [vmem:[%s57] sm:$0xff] %v59
  %s61 = scalar_lea.vmem %s1, 120
  %s62 = scalar_lea.vmem %s2, 120
  %v63 = vld [vmem:[%s62] sm:$0xff]
  %64 = vst [vmem:[%s61] sm:$0xff] %v63
  %s65 = scalar_lea.vmem %s1, 128
  %s66 = scalar_lea.vmem %s2, 128
  %v67 = vld [vmem:[%s66] sm:$0xff]
  %68 = vst [vmem:[%s65] sm:$0xff] %v67
  %s69 = scalar_lea.vmem %s1, 136
  %s70 = scalar_lea.vmem %s2, 136
  %v71 = vld [vmem:[%s70] sm:$0xff]
  %72 = vst [vmem:[%s69] sm:$0xff] %v71
  %s73 = scalar_lea.vmem %s1, 144
  %s74 = scalar_lea.vmem %s2, 144
  %v75 = vld [vmem:[%s74] sm:$0xff]
  %76 = vst [vmem:[%s73] sm:$0xff] %v75
  %s77 = scalar_lea.vmem %s1, 152
  %s78 = scalar_lea.vmem %s2, 152
  %v79 = vld [vmem:[%s78] sm:$0xff]
  %80 = vst [vmem:[%s77] sm:$0xff] %v79
  %s81 = scalar_lea.vmem %s1, 160
  %s82 = scalar_lea.vmem %s2, 160
  %v83 = vld [vmem:[%s82] sm:$0xff]
  %84 = vst [vmem:[%s81] sm:$0xff] %v83
  %s85 = scalar_lea.vmem %s1, 168
  %s86 = scalar_lea.vmem %s2, 168
  %v87 = vld [vmem:[%s86] sm:$0xff]
  %88 = vst [vmem:[%s85] sm:$0xff] %v87
  %s89 = scalar_lea.vmem %s1, 176
  %s90 = scalar_lea.vmem %s2, 176
  %v91 = vld [vmem:[%s90] sm:$0xff]
  %92 = vst [vmem:[%s89] sm:$0xff] %v91
  %s93 = scalar_lea.vmem %s1, 184
  %s94 = scalar_lea.vmem %s2, 184
  %v95 = vld [vmem:[%s94] sm:$0xff]
  %96 = vst [vmem:[%s93] sm:$0xff] %v95
  %s97 = scalar_lea.vmem %s1, 192
  %s98 = scalar_lea.vmem %s2, 192
  %v99 = vld [vmem:[%s98] sm:$0xff]
  %100 = vst [vmem:[%s97] sm:$0xff] %v99
  %s101 = scalar_lea.vmem %s1, 200
  %s102 = scalar_lea.vmem %s2, 200
  %v103 = vld [vmem:[%s102] sm:$0xff]
  %104 = vst [vmem:[%s101] sm:$0xff] %v103
  %s105 = scalar_lea.vmem %s1, 208
  %s106 = scalar_lea.vmem %s2, 208
  %v107 = vld [vmem:[%s106] sm:$0xff]
  %108 = vst [vmem:[%s105] sm:$0xff] %v107
  %s109 = scalar_lea.vmem %s1, 216
  %s110 = scalar_lea.vmem %s2, 216
  %v111 = vld [vmem:[%s110] sm:$0xff]
  %112 = vst [vmem:[%s109] sm:$0xff] %v111
  %s113 = scalar_lea.vmem %s1, 224
  %s114 = scalar_lea.vmem %s2, 224
  %v115 = vld [vmem:[%s114] sm:$0xff]
  %116 = vst [vmem:[%s113] sm:$0xff] %v115
  %s117 = scalar_lea.vmem %s1, 232
  %s118 = scalar_lea.vmem %s2, 232
  %v119 = vld [vmem:[%s118] sm:$0xff]
  %120 = vst [vmem:[%s117] sm:$0xff] %v119
  %s121 = scalar_lea.vmem %s1, 240
  %s122 = scalar_lea.vmem %s2, 240
  %v123 = vld [vmem:[%s122] sm:$0xff]
  %124 = vst [vmem:[%s121] sm:$0xff] %v123
  %s125 = scalar_lea.vmem %s1, 248
  %s126 = scalar_lea.vmem %s2, 248
  %v127 = vld [vmem:[%s126] sm:$0xff]
  %128 = vst [vmem:[%s125] sm:$0xff] %v127

// kernel: custom-call
$region0: #{custom-call}
  %s0 = inlined_call_operand.vmem [shape: c64[2,2,4,4,3,3], index: 0, kind: input, shape index: {}]
  %s1 = inlined_call_operand.vmem [shape: f32[2,2,4,4,3,3], index: 1, kind: output, shape index: {}]
  %v2 = vld [vmem:[%s0] sm:$0xff]
  %3 = vst [vmem:[%s1] sm:$0xff] %v2
  %s4 = scalar_lea.vmem %s1, 8
  %s5 = scalar_lea.vmem %s0, 8
  %v6 = vld [vmem:[%s5] sm:$0xff]
  %7 = vst [vmem:[%s4] sm:$0xff] %v6
  %s8 = scalar_lea.vmem %s1, 16
  %s9 = scalar_lea.vmem %s0, 16
  %v10 = vld [vmem:[%s9] sm:$0xff]
  %11 = vst [vmem:[%s8] sm:$0xff] %v10
  %s12 = scalar_lea.vmem %s1, 24
  %s13 = scalar_lea.vmem %s0, 24
  %v14 = vld [vmem:[%s13] sm:$0xff]
  %15 = vst [vmem:[%s12] sm:$0xff] %v14
  %s16 = scalar_lea.vmem %s1, 32
  %s17 = scalar_lea.vmem %s0, 32
  %v18 = vld [vmem:[%s17] sm:$0xff]
  %19 = vst [vmem:[%s16] sm:$0xff] %v18
  %s20 = scalar_lea.vmem %s1, 40
  %s21 = scalar_lea.vmem %s0, 40
  %v22 = vld [vmem:[%s21] sm:$0xff]
  %23 = vst [vmem:[%s20] sm:$0xff] %v22
  %s24 = scalar_lea.vmem %s1, 48
  %s25 = scalar_lea.vmem %s0, 48
  %v26 = vld [vmem:[%s25] sm:$0xff]
  %27 = vst [vmem:[%s24] sm:$0xff] %v26
  %s28 = scalar_lea.vmem %s1, 56
  %s29 = scalar_lea.vmem %s0, 56
  %v30 = vld [vmem:[%s29] sm:$0xff]
  %31 = vst [vmem:[%s28] sm:$0xff] %v30
  %s32 = scalar_lea.vmem %s1, 64
  %s33 = scalar_lea.vmem %s0, 64
  %v34 = vld [vmem:[%s33] sm:$0xff]
  %35 = vst [vmem:[%s32] sm:$0xff] %v34
  %s36 = scalar_lea.vmem %s1, 72
  %s37 = scalar_lea.vmem %s0, 72
  %v38 = vld [vmem:[%s37] sm:$0xff]
  %39 = vst [vmem:[%s36] sm:$0xff] %v38
  %s40 = scalar_lea.vmem %s1, 80
  %s41 = scalar_lea.vmem %s0, 80
  %v42 = vld [vmem:[%s41] sm:$0xff]
  %43 = vst [vmem:[%s40] sm:$0xff] %v42
  %s44 = scalar_lea.vmem %s1, 88
  %s45 = scalar_lea.vmem %s0, 88
  %v46 = vld [vmem:[%s45] sm:$0xff]
  %47 = vst [vmem:[%s44] sm:$0xff] %v46
  %s48 = scalar_lea.vmem %s1, 96
  %s49 = scalar_lea.vmem %s0, 96
  %v50 = vld [vmem:[%s49] sm:$0xff]
  %51 = vst [vmem:[%s48] sm:$0xff] %v50
  %s52 = scalar_lea.vmem %s1, 104
  %s53 = scalar_lea.vmem %s0, 104
  %v54 = vld [vmem:[%s53] sm:$0xff]
  %55 = vst [vmem:[%s52] sm:$0xff] %v54
  %s56 = scalar_lea.vmem %s1, 112
  %s57 = scalar_lea.vmem %s0, 112
  %v58 = vld [vmem:[%s57] sm:$0xff]
  %59 = vst [vmem:[%s56] sm:$0xff] %v58
  %s60 = scalar_lea.vmem %s1, 120
  %s61 = scalar_lea.vmem %s0, 120
  %v62 = vld [vmem:[%s61] sm:$0xff]
  %63 = vst [vmem:[%s60] sm:$0xff] %v62
  %s64 = scalar_lea.vmem %s1, 128
  %s65 = scalar_lea.vmem %s0, 128
  %v66 = vld [vmem:[%s65] sm:$0xff]
  %67 = vst [vmem:[%s64] sm:$0xff] %v66
  %s68 = scalar_lea.vmem %s1, 136
  %s69 = scalar_lea.vmem %s0, 136
  %v70 = vld [vmem:[%s69] sm:$0xff]
  %71 = vst [vmem:[%s68] sm:$0xff] %v70
  %s72 = scalar_lea.vmem %s1, 144
  %s73 = scalar_lea.vmem %s0, 144
  %v74 = vld [vmem:[%s73] sm:$0xff]
  %75 = vst [vmem:[%s72] sm:$0xff] %v74
  %s76 = scalar_lea.vmem %s1, 152
  %s77 = scalar_lea.vmem %s0, 152
  %v78 = vld [vmem:[%s77] sm:$0xff]
  %79 = vst [vmem:[%s76] sm:$0xff] %v78
  %s80 = scalar_lea.vmem %s1, 160
  %s81 = scalar_lea.vmem %s0, 160
  %v82 = vld [vmem:[%s81] sm:$0xff]
  %83 = vst [vmem:[%s80] sm:$0xff] %v82
  %s84 = scalar_lea.vmem %s1, 168
  %s85 = scalar_lea.vmem %s0, 168
  %v86 = vld [vmem:[%s85] sm:$0xff]
  %87 = vst [vmem:[%s84] sm:$0xff] %v86
  %s88 = scalar_lea.vmem %s1, 176
  %s89 = scalar_lea.vmem %s0, 176
  %v90 = vld [vmem:[%s89] sm:$0xff]
  %91 = vst [vmem:[%s88] sm:$0xff] %v90
  %s92 = scalar_lea.vmem %s1, 184
  %s93 = scalar_lea.vmem %s0, 184
  %v94 = vld [vmem:[%s93] sm:$0xff]
  %95 = vst [vmem:[%s92] sm:$0xff] %v94
  %s96 = scalar_lea.vmem %s1, 192
  %s97 = scalar_lea.vmem %s0, 192
  %v98 = vld [vmem:[%s97] sm:$0xff]
  %99 = vst [vmem:[%s96] sm:$0xff] %v98
  %s100 = scalar_lea.vmem %s1, 200
  %s101 = scalar_lea.vmem %s0, 200
  %v102 = vld [vmem:[%s101] sm:$0xff]
  %103 = vst [vmem:[%s100] sm:$0xff] %v102
  %s104 = scalar_lea.vmem %s1, 208
  %s105 = scalar_lea.vmem %s0, 208
  %v106 = vld [vmem:[%s105] sm:$0xff]
  %107 = vst [vmem:[%s104] sm:$0xff] %v106
  %s108 = scalar_lea.vmem %s1, 216
  %s109 = scalar_lea.vmem %s0, 216
  %v110 = vld [vmem:[%s109] sm:$0xff]
  %111 = vst [vmem:[%s108] sm:$0xff] %v110
  %s112 = scalar_lea.vmem %s1, 224
  %s113 = scalar_lea.vmem %s0, 224
  %v114 = vld [vmem:[%s113] sm:$0xff]
  %115 = vst [vmem:[%s112] sm:$0xff] %v114
  %s116 = scalar_lea.vmem %s1, 232
  %s117 = scalar_lea.vmem %s0, 232
  %v118 = vld [vmem:[%s117] sm:$0xff]
  %119 = vst [vmem:[%s116] sm:$0xff] %v118
  %s120 = scalar_lea.vmem %s1, 240
  %s121 = scalar_lea.vmem %s0, 240
  %v122 = vld [vmem:[%s121] sm:$0xff]
  %123 = vst [vmem:[%s120] sm:$0xff] %v122
  %s124 = scalar_lea.vmem %s1, 248
  %s125 = scalar_lea.vmem %s0, 248
  %v126 = vld [vmem:[%s125] sm:$0xff]
  %127 = vst [vmem:[%s124] sm:$0xff] %v126

// kernel: sin.6
$region0: #{sin.6}
  #allocation0 [shape = 's32[1]{0}', space=sflag, size = 0x4, scoped, tag = 'scoped memory for sin.6']
  %s0 = inlined_call_operand.vmem [shape: f32[2,4,4], index: 0, kind: input, shape index: {}]
  %s1 = inlined_call_operand.vmem [shape: f32[2,4,4], index: 1, kind: output, shape index: {}]
  %v2 = vld [vmem:[%s0] sm:$0xf]
  %v3 = vand.u32 2147483647, %v2
  %vm4 = vcmp.le.f32.partialorder %v3, 0.7853982
  %vm5 = vcmp.lt.s32.totalorder %v2, 0
  %v6 = vand.u32 %v2, 2139095040
  %v7 = vshrl.u32 %v6, 23
  %v8 = vsub.s32 %v7, 127
  %v9 = vand.u32 2147483647, %v2
  %v10 = vand.u32 %v9, 8388607
  %v11 = vor.u32 %v10, 8388608
  %v12 = vsub.s32 0, %v11
  %v13 = vadd.s32 %v8, 1
  %vm14 = vcmp.gt.s32.totalorder %v13, 0
  %v15 = vsel %vm14, %v13, 0
  %v16 = vshrl.u32 %v15, 5
  %v17 = vand.u32 %v15, 31
  %v18 = vsub.s32 32, %v17
  %v19 = vshrl.u32 683565275, %v18
  %v20 = vshll.u32 683565275, %v17
  %v21 = vshrl.u32 2475754826, %v18
  %v22 = vor.u32 %v20, %v21
  %v23 = vshll.u32 2475754826, %v17
  %v24 = vshrl.u32 2131351028, %v18
  %v25 = vor.u32 %v23, %v24
  %v26 = vshll.u32 2131351028, %v17
  %v27 = vshrl.u32 2102212464, %v18
  %v28 = vor.u32 %v26, %v27
  %v29 = vshll.u32 2102212464, %v17
  %v30 = vshrl.u32 920167782, %v18
  %v31 = vor.u32 %v29, %v30
  %v32 = vshll.u32 920167782, %v17
  %v33 = vshrl.u32 1326507024, %v18
  %v34 = vor.u32 %v32, %v33
  %vm35 = vcmp.lt.s32.totalorder %v16, 1
  %vm36 = vcmp.lt.s32.totalorder %v16, 2
  %vm37 = vcmp.lt.s32.totalorder %v16, 3
  %vm38 = vcmp.lt.s32.totalorder %v16, 4
  %v39 = vsel %vm35, %v19, %v22
  %v40 = vsel %vm38, %v28, 2102212464
  %v41 = vsel %vm37, %v25, %v40
  %v42 = vsel %vm36, %v39, %v41
  %v43 = vsel %vm35, %v22, %v25
  %v44 = vsel %vm38, %v31, 920167782
  %v45 = vsel %vm37, %v28, %v44
  %v46 = vsel %vm36, %v43, %v45
  %v47 = vsel %vm35, %v25, %v28
  %v48 = vsel %vm38, %v34, 1326507024
  %v49 = vsel %vm37, %v31, %v48
  %v50 = vsel %vm36, %v47, %v49
  %v51 = vshll.u32 %v11, 8
  %v52 = vand.u32 %v51, 65535
  %v53 = vshrl.u32 %v51, 16
  %v54 = vand.u32 %v50, 65535
  %v55 = vshrl.u32 %v50, 16
  %v56 = vmul.u32 %v52, %v54
  %v57 = vmul.u32 %v52, %v55
  %v58 = vmul.u32 %v53, %v54
  %v59 = vmul.u32 %v53, %v55
  %v60 = vshll.u32 %v57, 16
  %v61 = vshrl.u32 %v57, 16
  %v62 = vshll.u32 %v58, 16
  %v63 = vshrl.u32 %v58, 16
  %vm64 = vc.u32 %v56, %v60
  %v65 = vsel %vm64, 1, 0
  %v66 = vadd.s32 %v56, %v60
  %v67 = vadd.s32 %v59, %v65
  %vm68 = vc.u32 %v66, %v62
  %v69 = vsel %vm68, 1, 0
  %v70 = vadd.s32 %v66, %v62
  %v71 = vadd.s32 %v67, %v69
  %v72 = vadd.s32 %v71, %v61
  %v73 = vadd.s32 %v72, %v63
  %v74 = vand.u32 %v51, 65535
  %v75 = vshrl.u32 %v51, 16
  %v76 = vand.u32 %v46, 65535
  %v77 = vshrl.u32 %v46, 16
  %v78 = vmul.u32 %v74, %v76
  %v79 = vmul.u32 %v74, %v77
  %v80 = vmul.u32 %v75, %v76
  %v81 = vmul.u32 %v75, %v77
  %v82 = vshll.u32 %v79, 16
  %v83 = vshrl.u32 %v79, 16
  %v84 = vshll.u32 %v80, 16
  %v85 = vshrl.u32 %v80, 16
  %vm86 = vc.u32 %v78, %v82
  %v87 = vsel %vm86, 1, 0
  %v88 = vadd.s32 %v78, %v82
  %v89 = vadd.s32 %v81, %v87
  %vm90 = vc.u32 %v88, %v84
  %v91 = vsel %vm90, 1, 0
  %v92 = vadd.s32 %v88, %v84
  %v93 = vadd.s32 %v89, %v91
  %v94 = vadd.s32 %v93, %v83
  %v95 = vadd.s32 %v94, %v85
  %v96 = vmul.u32 %v51, %v42
  %v97 = vadd.s32 %v73, %v92
  %vm98 = vc.u32 %v73, %v92
  %v99 = vadd.s32 %v95, 1
  %v100 = vsel %vm98, %v99, %v95
  %v101 = vadd.s32 %v96, %v100
  %v102 = vadd.s32 %v101, 536870912
  %v103 = vshrl.u32 %v102, 30
  %v104 = vshll.u32 %v103, 30
  %v105 = vsub.s32 %v101, %v104
  %vm106 = vcmp.lt.s32.totalorder %v105, 0
  %v107 = vsub.s32 0, %v105
  %v108 = vsel %vm106, %v107, %v105
  %v109 = vclz %v108
  %v110 = vsub.s32 %v109, 2
  %vm111 = vcmp.gt.s32.totalorder 0, %v110
  %v112 = vsel %vm111, 0, %v110
  %v113 = vsub.s32 32, %v112
  %v114 = vshll.u32 %v105, %v112
  %v115 = vshrl.u32 %v97, %v113
  %v116 = vor.u32 %v114, %v115
  %v117 = vsub.s32 4294967266, %v112
  %v118 = vadd.s32 %v117, 127
  %v119 = vshll.u32 %v118, 23
  %v120 = vor.u32 4788187, %v119
  %v121 = vand.u32 2147483647, %v120
  %v123 = vcvt.s32.f32 %v116
  %v124 = vmul.f32 %v123, %v121
  %v125 = vxor.u32 %v124, 2147483648
  %v126 = vsel %vm5, %v125, %v124
  %v127 = vsub.s32 4, %v103
  %v128 = vsel %vm5, %v127, %v103
  %v129 = vsel %vm4, %v2, %v126
  %v130 = vsel %vm4, 0, %v128
  %v131 = vmul.f32 %v129, %v129
  %v132 = vmul.f32 %v131, -0.001358992
  %v133 = vadd.f32 %v132, 0.041655596
  %v134 = vmul.f32 %v131, %v133
  %v135 = vadd.f32 %v134, -0.4999988
  %v136 = vmul.f32 %v131, %v135
  %v137 = vadd.f32 1.0, %v136
  %v138 = vmul.f32 %v129, %v129
  %v139 = vmul.f32 %v138, -0.00019511016
  %v140 = vadd.f32 %v139, 0.008332121
  %v141 = vmul.f32 %v138, %v140
  %v142 = vadd.f32 %v141, -0.16666654
  %v143 = vmul.f32 %v138, %v142
  %v144 = vadd.f32 %v143, 1.0
  %v145 = vmul.f32 %v144, %v129
  %vm146 = vweird.f32 %v2
  %v147 = vadd.s32 %v130, 3
  %v148 = vand.u32 %v147, 3
  %vm149 = vcmp.lt.s32.totalorder %v148, 2
  %vm150 = vcmp.eq.s32.totalorder %v148, 0
  %v151 = vxor.u32 %v145, 2147483648
  %v152 = vsel %vm150, %v137, %v151
  %vm153 = vcmp.eq.s32.totalorder %v148, 2
  %v154 = vxor.u32 %v137, 2147483648
  %v155 = vsel %vm153, %v154, %v145
  %v156 = vsel %vm149, %v152, %v155
  %v157 = vsel %vm146, nan, %v156
  %158 = vst [vmem:[%s1] sm:$0xf] %v157
  %s159 = scalar_lea.vmem %s0, 4
  %v160 = vld [vmem:[%s159] sm:$0xf]
  %v161 = vand.u32 2147483647, %v160
  %vm162 = vcmp.le.f32.partialorder %v161, 0.7853982
  %vm163 = vcmp.lt.s32.totalorder %v160, 0
  %v164 = vand.u32 %v160, 2139095040
  %v165 = vshrl.u32 %v164, 23
  %v166 = vsub.s32 %v165, 127
  %v167 = vand.u32 2147483647, %v160
  %v168 = vand.u32 %v167, 8388607
  %v169 = vor.u32 %v168, 8388608
  %v170 = vsub.s32 0, %v169
  %v171 = vadd.s32 %v166, 1
  %vm172 = vcmp.gt.s32.totalorder %v171, 0
  %v173 = vsel %vm172, %v171, 0
  %v174 = vshrl.u32 %v173, 5
  %v175 = vand.u32 %v173, 31
  %v176 = vsub.s32 32, %v175
  %v177 = vshrl.u32 683565275, %v176
  %v178 = vshll.u32 683565275, %v175
  %v179 = vshrl.u32 2475754826, %v176
  %v180 = vor.u32 %v178, %v179
  %v181 = vshll.u32 2475754826, %v175
  %v182 = vshrl.u32 2131351028, %v176
  %v183 = vor.u32 %v181, %v182
  %v184 = vshll.u32 2131351028, %v175
  %v185 = vshrl.u32 2102212464, %v176
  %v186 = vor.u32 %v184, %v185
  %v187 = vshll.u32 2102212464, %v175
  %v188 = vshrl.u32 920167782, %v176
  %v189 = vor.u32 %v187, %v188
  %v190 = vshll.u32 920167782, %v175
  %v191 = vshrl.u32 1326507024, %v176
  %v192 = vor.u32 %v190, %v191
  %vm193 = vcmp.lt.s32.totalorder %v174, 1
  %vm194 = vcmp.lt.s32.totalorder %v174, 2
  %vm195 = vcmp.lt.s32.totalorder %v174, 3
  %vm196 = vcmp.lt.s32.totalorder %v174, 4
  %v197 = vsel %vm193, %v177, %v180
  %v198 = vsel %vm196, %v186, 2102212464
  %v199 = vsel %vm195, %v183, %v198
  %v200 = vsel %vm194, %v197, %v199
  %v201 = vsel %vm193, %v180, %v183
  %v202 = vsel %vm196, %v189, 920167782
  %v203 = vsel %vm195, %v186, %v202
  %v204 = vsel %vm194, %v201, %v203
  %v205 = vsel %vm193, %v183, %v186
  %v206 = vsel %vm196, %v192, 1326507024
  %v207 = vsel %vm195, %v189, %v206
  %v208 = vsel %vm194, %v205, %v207
  %v209 = vshll.u32 %v169, 8
  %v210 = vand.u32 %v209, 65535
  %v211 = vshrl.u32 %v209, 16
  %v212 = vand.u32 %v208, 65535
  %v213 = vshrl.u32 %v208, 16
  %v214 = vmul.u32 %v210, %v212
  %v215 = vmul.u32 %v210, %v213
  %v216 = vmul.u32 %v211, %v212
  %v217 = vmul.u32 %v211, %v213
  %v218 = vshll.u32 %v215, 16
  %v219 = vshrl.u32 %v215, 16
  %v220 = vshll.u32 %v216, 16
  %v221 = vshrl.u32 %v216, 16
  %vm222 = vc.u32 %v214, %v218
  %v223 = vsel %vm222, 1, 0
  %v224 = vadd.s32 %v214, %v218
  %v225 = vadd.s32 %v217, %v223
  %vm226 = vc.u32 %v224, %v220
  %v227 = vsel %vm226, 1, 0
  %v228 = vadd.s32 %v224, %v220
  %v229 = vadd.s32 %v225, %v227
  %v230 = vadd.s32 %v229, %v219
  %v231 = vadd.s32 %v230, %v221
  %v232 = vand.u32 %v209, 65535
  %v233 = vshrl.u32 %v209, 16
  %v234 = vand.u32 %v204, 65535
  %v235 = vshrl.u32 %v204, 16
  %v236 = vmul.u32 %v232, %v234
  %v237 = vmul.u32 %v232, %v235
  %v238 = vmul.u32 %v233, %v234
  %v239 = vmul.u32 %v233, %v235
  %v240 = vshll.u32 %v237, 16
  %v241 = vshrl.u32 %v237, 16
  %v242 = vshll.u32 %v238, 16
  %v243 = vshrl.u32 %v238, 16
  %vm244 = vc.u32 %v236, %v240
  %v245 = vsel %vm244, 1, 0
  %v246 = vadd.s32 %v236, %v240
  %v247 = vadd.s32 %v239, %v245
  %vm248 = vc.u32 %v246, %v242
  %v249 = vsel %vm248, 1, 0
  %v250 = vadd.s32 %v246, %v242
  %v251 = vadd.s32 %v247, %v249
  %v252 = vadd.s32 %v251, %v241
  %v253 = vadd.s32 %v252, %v243
  %v254 = vmul.u32 %v209, %v200
  %v255 = vadd.s32 %v231, %v250
  %vm256 = vc.u32 %v231, %v250
  %v257 = vadd.s32 %v253, 1
  %v258 = vsel %vm256, %v257, %v253
  %v259 = vadd.s32 %v254, %v258
  %v260 = vadd.s32 %v259, 536870912
  %v261 = vshrl.u32 %v260, 30
  %v262 = vshll.u32 %v261, 30
  %v263 = vsub.s32 %v259, %v262
  %vm264 = vcmp.lt.s32.totalorder %v263, 0
  %v265 = vsub.s32 0, %v263
  %v266 = vsel %vm264, %v265, %v263
  %v267 = vclz %v266
  %v268 = vsub.s32 %v267, 2
  %vm269 = vcmp.gt.s32.totalorder 0, %v268
  %v270 = vsel %vm269, 0, %v268
  %v271 = vsub.s32 32, %v270
  %v272 = vshll.u32 %v263, %v270
  %v273 = vshrl.u32 %v255, %v271
  %v274 = vor.u32 %v272, %v273
  %v275 = vsub.s32 4294967266, %v270
  %v276 = vadd.s32 %v275, 127
  %v277 = vshll.u32 %v276, 23
  %v278 = vor.u32 4788187, %v277
  %v279 = vand.u32 2147483647, %v278
  %v281 = vcvt.s32.f32 %v274
  %v282 = vmul.f32 %v281, %v279
  %v283 = vxor.u32 %v282, 2147483648
  %v284 = vsel %vm163, %v283, %v282
  %v285 = vsub.s32 4, %v261
  %v286 = vsel %vm163, %v285, %v261
  %v287 = vsel %vm162, %v160, %v284
  %v288 = vsel %vm162, 0, %v286
  %v289 = vmul.f32 %v287, %v287
  %v290 = vmul.f32 %v289, -0.001358992
  %v291 = vadd.f32 %v290, 0.041655596
  %v292 = vmul.f32 %v289, %v291
  %v293 = vadd.f32 %v292, -0.4999988
  %v294 = vmul.f32 %v289, %v293
  %v295 = vadd.f32 1.0, %v294
  %v296 = vmul.f32 %v287, %v287
  %v297 = vmul.f32 %v296, -0.00019511016
  %v298 = vadd.f32 %v297, 0.008332121
  %v299 = vmul.f32 %v296, %v298
  %v300 = vadd.f32 %v299, -0.16666654
  %v301 = vmul.f32 %v296, %v300
  %v302 = vadd.f32 %v301, 1.0
  %v303 = vmul.f32 %v302, %v287
  %vm304 = vweird.f32 %v160
  %v305 = vadd.s32 %v288, 3
  %v306 = vand.u32 %v305, 3
  %vm307 = vcmp.lt.s32.totalorder %v306, 2
  %vm308 = vcmp.eq.s32.totalorder %v306, 0
  %v309 = vxor.u32 %v303, 2147483648
  %v310 = vsel %vm308, %v295, %v309
  %vm311 = vcmp.eq.s32.totalorder %v306, 2
  %v312 = vxor.u32 %v295, 2147483648
  %v313 = vsel %vm311, %v312, %v303
  %v314 = vsel %vm307, %v310, %v313
  %v315 = vsel %vm304, nan, %v314
  %s316 = scalar_lea.vmem %s1, 4
  %317 = vst [vmem:[%s316] sm:$0xf] %v315

// kernel: custom-call.3
$region0: #{custom-call.3}
  %s0 = inlined_call_operand.vmem [shape: f32[2,1,4,4,3,3], index: 0, kind: input, shape index: {}]
  %s1 = inlined_call_operand.vmem [shape: f32[2,1,4,4,3,3], index: 1, kind: input, shape index: {}]
  %s2 = inlined_call_operand.hbm [shape: c64[2,1,4,4,3,3], index: 2, kind: output, shape index: {}]
  %s3 = scalar_lea.hbm %s2, 72
  $region1: #{custom-call.3} parent=0
    #allocation0 [shape = 's32[1]{0}', space=sflag, size = 0x4, scoped, tag = 'scoped memory for custom-call.3']
    %4 = vsyncpa [#allocation0], 0
    %s6 = sshll.u32 %s0, 4
    %s7 = int_to_ptr.vmem [resolvable:$true] %s6
    %s8 = sshll.u32 %s2, 4
    %s9 = int_to_ptr.hbm [resolvable:$true] %s8
    %11 = dma.vmem_to_hbm [thread:$0]  %s7, 1152, %s9, [#allocation0]
    %13 = dma.done [#allocation0], 1152
    %14 = vsyncpa [#allocation0], 1
  $region2: #{custom-call.3} parent=0
    #allocation1 [shape = 's32[1]{0}', space=sflag, size = 0x4, scoped, tag = 'scoped memory for custom-call.3']
    %15 = vsyncpa [#allocation1], 0
    %s17 = sshll.u32 %s1, 4
    %s18 = int_to_ptr.vmem [resolvable:$true] %s17
    %s19 = sshll.u32 %s3, 4
    %s20 = int_to_ptr.hbm [resolvable:$true] %s19
    %22 = dma.vmem_to_hbm [thread:$0]  %s18, 1152, %s20, [#allocation1]
    %24 = dma.done [#allocation1], 1152
    %25 = vsyncpa [#allocation1], 1

// kernel: stout_smearing.3
$region0: #{stout_smearing.3}
  #allocation0 [shape = 'u32[]', space=smem, size = 0x4, offset = 0x4, fixed_abs, tag = 'smem constant byte address 0x4 - core index']
  #allocation1 [shape = 'u32[72,128]{1,0:T(1,128)}', space=vmem, size = 0x9000, scoped, tag = 'internal scratch']
  %s0 = inlined_call_operand.vmem [shape: f32[1,18,8,128], index: 0, kind: input, shape index: {}]
  %s1 = inlined_call_operand.vmem [shape: f32[1,18,8,128], index: 1, kind: input, shape index: {}]
  %s2 = inlined_call_operand.vmem [shape: f32[1,18,8,128], index: 2, kind: input, shape index: {}]
  %s3 = inlined_call_operand.vmem [shape: f32[1,6,8,128], index: 3, kind: input, shape index: {}]
  %s4 = inlined_call_operand.vmem [shape: f32[1,18,8,128], index: 4, kind: output, shape index: {}]
  %s5 = sld [smem:[#allocation0]]
  $region26: #{stout_smearing.3} parent=0
    _
  %s7 = ssub.s32 1, %s5
  %s8 = scalar_select 0, %s7, %s5
  // Predicated region
  $region2: #{stout_smearing.3} parent=0 // pred_check
    _
  $region3: #{stout_smearing.3} parent=0 // pred_check_branch
    %10 = sbr.rel (0) target = $region5
  $region4: #{stout_smearing.3} parent=0 // pred_region
    _
  $region5: #{stout_smearing.3} parent=0 // pred_fallthru
    _
  // Predicated region
  $region6: #{stout_smearing.3} parent=0 // pred_check
    _
  $region7: #{stout_smearing.3} parent=0 // pred_check_branch
    %12 = sbr.rel (0) target = $region9
  $region8: #{stout_smearing.3} parent=0 // pred_region
    _
  $region9: #{stout_smearing.3} parent=0 // pred_fallthru
    _
  // Predicated region
  $region10: #{stout_smearing.3} parent=0 // pred_check
    _
  $region11: #{stout_smearing.3} parent=0 // pred_check_branch
    %14 = sbr.rel (0) target = $region13
  $region12: #{stout_smearing.3} parent=0 // pred_region
    _
  $region13: #{stout_smearing.3} parent=0 // pred_fallthru
    _
  // Predicated region
  $region14: #{stout_smearing.3} parent=0 // pred_check
    _
  $region15: #{stout_smearing.3} parent=0 // pred_check_branch
    %16 = sbr.rel (0) target = $region17
  $region16: #{stout_smearing.3} parent=0 // pred_region
    _
  $region17: #{stout_smearing.3} parent=0 // pred_fallthru
    _
  %v17 = vld [vmem:[%s3] sm:$0xff]
  %s18 = scalar_lea.vmem %s3, 8
  %v19 = vld [vmem:[%s18] sm:$0xff]
  %s20 = scalar_lea.vmem %s3, 16
  %v21 = vld [vmem:[%s20] sm:$0xff]
  %s22 = scalar_lea.vmem %s3, 24
  %v23 = vld [vmem:[%s22] sm:$0xff]
  %s24 = scalar_lea.vmem %s3, 32
  %v25 = vld [vmem:[%s24] sm:$0xff]
  %s26 = scalar_lea.vmem %s3, 40
  %v27 = vld [vmem:[%s26] sm:$0xff]
  %v28 = vld [vmem:[%s2] sm:$0xff]
  %s29 = scalar_lea.vmem %s2, 8
  %v30 = vld [vmem:[%s29] sm:$0xff]
  %s31 = scalar_lea.vmem %s2, 16
  %v32 = vld [vmem:[%s31] sm:$0xff]
  %s33 = scalar_lea.vmem %s2, 24
  %v34 = vld [vmem:[%s33] sm:$0xff]
  %s35 = scalar_lea.vmem %s2, 32
  %v36 = vld [vmem:[%s35] sm:$0xff]
  %s37 = scalar_lea.vmem %s2, 40
  %v38 = vld [vmem:[%s37] sm:$0xff]
  %s39 = scalar_lea.vmem %s2, 48
  %v40 = vld [vmem:[%s39] sm:$0xff]
  %s41 = scalar_lea.vmem %s2, 56
  %v42 = vld [vmem:[%s41] sm:$0xff]
  %s43 = scalar_lea.vmem %s2, 64
  %v44 = vld [vmem:[%s43] sm:$0xff]
  %s45 = scalar_lea.vmem %s2, 72
  %v46 = vld [vmem:[%s45] sm:$0xff]
  %s47 = scalar_lea.vmem %s2, 80
  %v48 = vld [vmem:[%s47] sm:$0xff]
  %s49 = scalar_lea.vmem %s2, 88
  %v50 = vld [vmem:[%s49] sm:$0xff]
  %s51 = scalar_lea.vmem %s2, 96
  %v52 = vld [vmem:[%s51] sm:$0xff]
  %s53 = scalar_lea.vmem %s2, 104
  %v54 = vld [vmem:[%s53] sm:$0xff]
  %s55 = scalar_lea.vmem %s2, 112
  %v56 = vld [vmem:[%s55] sm:$0xff]
  %s57 = scalar_lea.vmem %s2, 120
  %v58 = vld [vmem:[%s57] sm:$0xff]
  %s59 = scalar_lea.vmem %s2, 128
  %v60 = vld [vmem:[%s59] sm:$0xff]
  %s61 = scalar_lea.vmem %s2, 136
  %v62 = vld [vmem:[%s61] sm:$0xff]
  %v63 = vld [vmem:[%s0] sm:$0xff]
  %s64 = scalar_lea.vmem %s0, 72
  %v65 = vld [vmem:[%s64] sm:$0xff]
  %v66 = vld [vmem:[%s1] sm:$0xff]
  %s67 = scalar_lea.vmem %s1, 72
  %v68 = vld [vmem:[%s67] sm:$0xff]
  %v69 = vmul.f32 %v19, %v63
  %v70 = vmul.f32 %v25, %v65
  %v71 = vsub.f32 %v69, %v70
  %v72 = vmul.f32 %v21, %v66
  %v73 = vadd.f32 %v71, %v72
  %v74 = vmul.f32 %v27, %v68
  %v75 = vsub.f32 %v73, %v74
  %v76 = vmul.f32 %v19, %v65
  %v77 = vmul.f32 %v25, %v63
  %v78 = vadd.f32 %v76, %v77
  %v79 = vmul.f32 %v21, %v68
  %v80 = vadd.f32 %v78, %v79
  %v81 = vmul.f32 %v27, %v66
  %v82 = vadd.f32 %v80, %v81
  %v83 = vadd.f32 %v75, %v17
  %v84 = vadd.f32 %v82, %v23
  %s85 = scalar_lea.vmem %s0, 8
  %v86 = vld [vmem:[%s85] sm:$0xff]
  %s87 = scalar_lea.vmem %s0, 80
  %v88 = vld [vmem:[%s87] sm:$0xff]
  %s89 = scalar_lea.vmem %s1, 8
  %v90 = vld [vmem:[%s89] sm:$0xff]
  %s91 = scalar_lea.vmem %s1, 80
  %v92 = vld [vmem:[%s91] sm:$0xff]
  %v93 = vmul.f32 %v19, %v86
  %v94 = vmul.f32 %v25, %v88
  %v95 = vsub.f32 %v93, %v94
  %v96 = vmul.f32 %v21, %v90
  %v97 = vadd.f32 %v95, %v96
  %v98 = vmul.f32 %v27, %v92
  %v99 = vsub.f32 %v97, %v98
  %v100 = vmul.f32 %v19, %v88
  %v101 = vmul.f32 %v25, %v86
  %v102 = vadd.f32 %v100, %v101
  %v103 = vmul.f32 %v21, %v92
  %v104 = vadd.f32 %v102, %v103
  %v105 = vmul.f32 %v27, %v90
  %v106 = vadd.f32 %v104, %v105
  %s107 = scalar_lea.vmem %s0, 16
  %v108 = vld [vmem:[%s107] sm:$0xff]
  %s109 = scalar_lea.vmem %s0, 88
  %v110 = vld [vmem:[%s109] sm:$0xff]
  %s111 = scalar_lea.vmem %s1, 16
  %v112 = vld [vmem:[%s111] sm:$0xff]
  %s113 = scalar_lea.vmem %s1, 88
  %v114 = vld [vmem:[%s113] sm:$0xff]
  %v115 = vmul.f32 %v19, %v108
  %v116 = vmul.f32 %v25, %v110
  %v117 = vsub.f32 %v115, %v116
  %v118 = vmul.f32 %v21, %v112
  %v119 = vadd.f32 %v117, %v118
  %v120 = vmul.f32 %v27, %v114
  %v121 = vsub.f32 %v119, %v120
  %v122 = vmul.f32 %v19, %v110
  %v123 = vmul.f32 %v25, %v108
  %v124 = vadd.f32 %v122, %v123
  %v125 = vmul.f32 %v21, %v114
  %v126 = vadd.f32 %v124, %v125
  %v127 = vmul.f32 %v27, %v112
  %v128 = vadd.f32 %v126, %v127
  %v129 = vmul.f32 %v83, %v28
  %v130 = vmul.f32 %v84, %v46
  %v131 = vsub.f32 %v129, %v130
  %v132 = vmul.f32 %v83, %v46
  %v133 = vmul.f32 %v84, %v28
  %v134 = vadd.f32 %v132, %v133
  %v135 = vmul.f32 %v99, %v34
  %v136 = vmul.f32 %v106, %v52
  %v137 = vsub.f32 %v135, %v136
  %v138 = vmul.f32 %v99, %v52
  %v139 = vmul.f32 %v106, %v34
  %v140 = vadd.f32 %v138, %v139
  %v141 = vadd.f32 %v131, %v137
  %v142 = vadd.f32 %v134, %v140
  %v143 = vmul.f32 %v121, %v40
  %v144 = vmul.f32 %v128, %v58
  %v145 = vsub.f32 %v143, %v144
  %v146 = vmul.f32 %v121, %v58
  %v147 = vmul.f32 %v128, %v40
  %v148 = vadd.f32 %v146, %v147
  %v149 = vadd.f32 %v141, %v145
  %v150 = vadd.f32 %v142, %v148
  %151 = vst [vmem:[%s4] sm:$0xff] %v149
  %s152 = scalar_lea.vmem %s4, 72
  %153 = vst [vmem:[%s152] sm:$0xff] %v150
  %v154 = vmul.f32 %v83, %v30
  %v155 = vmul.f32 %v84, %v48
  %v156 = vsub.f32 %v154, %v155
  %v157 = vmul.f32 %v83, %v48
  %v158 = vmul.f32 %v84, %v30
  %v159 = vadd.f32 %v157, %v158
  %v160 = vmul.f32 %v99, %v36
  %v161 = vmul.f32 %v106, %v54
  %v162 = vsub.f32 %v160, %v161
  %v163 = vmul.f32 %v99, %v54
  %v164 = vmul.f32 %v106, %v36
  %v165 = vadd.f32 %v163, %v164
  %v166 = vadd.f32 %v156, %v162
  %v167 = vadd.f32 %v159, %v165
  %v168 = vmul.f32 %v121, %v42
  %v169 = vmul.f32 %v128, %v60
  %v170 = vsub.f32 %v168, %v169
  %v171 = vmul.f32 %v121, %v60
  %v172 = vmul.f32 %v128, %v42
  %v173 = vadd.f32 %v171, %v172
  %v174 = vadd.f32 %v166, %v170
  %v175 = vadd.f32 %v167, %v173
  %s176 = scalar_lea.vmem %s4, 8
  %177 = vst [vmem:[%s176] sm:$0xff] %v174
  %s178 = scalar_lea.vmem %s4, 80
  %179 = vst [vmem:[%s178] sm:$0xff] %v175
  %v180 = vmul.f32 %v83, %v32
  %v181 = vmul.f32 %v84, %v50
  %v182 = vsub.f32 %v180, %v181
  %v183 = vmul.f32 %v83, %v50
  %v184 = vmul.f32 %v84, %v32
  %v185 = vadd.f32 %v183, %v184
  %v186 = vmul.f32 %v99, %v38
  %v187 = vmul.f32 %v106, %v56
  %v188 = vsub.f32 %v186, %v187
  %v189 = vmul.f32 %v99, %v56
  %v190 = vmul.f32 %v106, %v38
  %v191 = vadd.f32 %v189, %v190
  %v192 = vadd.f32 %v182, %v188
  %v193 = vadd.f32 %v185, %v191
  %v194 = vmul.f32 %v121, %v44
  %v195 = vmul.f32 %v128, %v62
  %v196 = vsub.f32 %v194, %v195
  %v197 = vmul.f32 %v121, %v62
  %v198 = vmul.f32 %v128, %v44
  %v199 = vadd.f32 %v197, %v198
  %v200 = vadd.f32 %v192, %v196
  %v201 = vadd.f32 %v193, %v199
  %s202 = scalar_lea.vmem %s4, 16
  %203 = vst [vmem:[%s202] sm:$0xff] %v200
  %s204 = scalar_lea.vmem %s4, 88
  %205 = vst [vmem:[%s204] sm:$0xff] %v201
  %s206 = scalar_lea.vmem %s0, 24
  %v207 = vld [vmem:[%s206] sm:$0xff]
  %s208 = scalar_lea.vmem %s0, 96
  %v209 = vld [vmem:[%s208] sm:$0xff]
  %s210 = scalar_lea.vmem %s1, 24
  %v211 = vld [vmem:[%s210] sm:$0xff]
  %s212 = scalar_lea.vmem %s1, 96
  %v213 = vld [vmem:[%s212] sm:$0xff]
  %v214 = vmul.f32 %v19, %v207
  %v215 = vmul.f32 %v25, %v209
  %v216 = vsub.f32 %v214, %v215
  %v217 = vmul.f32 %v21, %v211
  %v218 = vadd.f32 %v216, %v217
  %v219 = vmul.f32 %v27, %v213
  %v220 = vsub.f32 %v218, %v219
  %v221 = vmul.f32 %v19, %v209
  %v222 = vmul.f32 %v25, %v207
  %v223 = vadd.f32 %v221, %v222
  %v224 = vmul.f32 %v21, %v213
  %v225 = vadd.f32 %v223, %v224
  %v226 = vmul.f32 %v27, %v211
  %v227 = vadd.f32 %v225, %v226
  %s228 = scalar_lea.vmem %s0, 32
  %v229 = vld [vmem:[%s228] sm:$0xff]
  %s230 = scalar_lea.vmem %s0, 104
  %v231 = vld [vmem:[%s230] sm:$0xff]
  %s232 = scalar_lea.vmem %s1, 32
  %v233 = vld [vmem:[%s232] sm:$0xff]
  %s234 = scalar_lea.vmem %s1, 104
  %v235 = vld [vmem:[%s234] sm:$0xff]
  %v236 = vmul.f32 %v19, %v229
  %v237 = vmul.f32 %v25, %v231
  %v238 = vsub.f32 %v236, %v237
  %v239 = vmul.f32 %v21, %v233
  %v240 = vadd.f32 %v238, %v239
  %v241 = vmul.f32 %v27, %v235
  %v242 = vsub.f32 %v240, %v241
  %v243 = vmul.f32 %v19, %v231
  %v244 = vmul.f32 %v25, %v229
  %v245 = vadd.f32 %v243, %v244
  %v246 = vmul.f32 %v21, %v235
  %v247 = vadd.f32 %v245, %v246
  %v248 = vmul.f32 %v27, %v233
  %v249 = vadd.f32 %v247, %v248
  %v250 = vadd.f32 %v242, %v17
  %v251 = vadd.f32 %v249, %v23
  %s252 = scalar_lea.vmem %s0, 40
  %v253 = vld [vmem:[%s252] sm:$0xff]
  %s254 = scalar_lea.vmem %s0, 112
  %v255 = vld [vmem:[%s254] sm:$0xff]
  %s256 = scalar_lea.vmem %s1, 40
  %v257 = vld [vmem:[%s256] sm:$0xff]
  %s258 = scalar_lea.vmem %s1, 112
  %v259 = vld [vmem:[%s258] sm:$0xff]
  %v260 = vmul.f32 %v19, %v253
  %v261 = vmul.f32 %v25, %v255
  %v262 = vsub.f32 %v260, %v261
  %v263 = vmul.f32 %v21, %v257
  %v264 = vadd.f32 %v262, %v263
  %v265 = vmul.f32 %v27, %v259
  %v266 = vsub.f32 %v264, %v265
  %v267 = vmul.f32 %v19, %v255
  %v268 = vmul.f32 %v25, %v253
  %v269 = vadd.f32 %v267, %v268
  %v270 = vmul.f32 %v21, %v259
  %v271 = vadd.f32 %v269, %v270
  %v272 = vmul.f32 %v27, %v257
  %v273 = vadd.f32 %v271, %v272
  %v274 = vmul.f32 %v220, %v28
  %v275 = vmul.f32 %v227, %v46
  %v276 = vsub.f32 %v274, %v275
  %v277 = vmul.f32 %v220, %v46
  %v278 = vmul.f32 %v227, %v28
  %v279 = vadd.f32 %v277, %v278
  %v280 = vmul.f32 %v250, %v34
  %v281 = vmul.f32 %v251, %v52
  %v282 = vsub.f32 %v280, %v281
  %v283 = vmul.f32 %v250, %v52
  %v284 = vmul.f32 %v251, %v34
  %v285 = vadd.f32 %v283, %v284
  %v286 = vadd.f32 %v276, %v282
  %v287 = vadd.f32 %v279, %v285
  %v288 = vmul.f32 %v266, %v40
  %v289 = vmul.f32 %v273, %v58
  %v290 = vsub.f32 %v288, %v289
  %v291 = vmul.f32 %v266, %v58
  %v292 = vmul.f32 %v273, %v40
  %v293 = vadd.f32 %v291, %v292
  %v294 = vadd.f32 %v286, %v290
  %v295 = vadd.f32 %v287, %v293
  %s296 = scalar_lea.vmem %s4, 24
  %297 = vst [vmem:[%s296] sm:$0xff] %v294
  %s298 = scalar_lea.vmem %s4, 96
  %299 = vst [vmem:[%s298] sm:$0xff] %v295
  %v300 = vmul.f32 %v220, %v30
  %v301 = vmul.f32 %v227, %v48
  %v302 = vsub.f32 %v300, %v301
  %v303 = vmul.f32 %v220, %v48
  %v304 = vmul.f32 %v227, %v30
  %v305 = vadd.f32 %v303, %v304
  %v306 = vmul.f32 %v250, %v36
  %v307 = vmul.f32 %v251, %v54
  %v308 = vsub.f32 %v306, %v307
  %v309 = vmul.f32 %v250, %v54
  %v310 = vmul.f32 %v251, %v36
  %v311 = vadd.f32 %v309, %v310
  %v312 = vadd.f32 %v302, %v308
  %v313 = vadd.f32 %v305, %v311
  %v314 = vmul.f32 %v266, %v42
  %v315 = vmul.f32 %v273, %v60
  %v316 = vsub.f32 %v314, %v315
  %v317 = vmul.f32 %v266, %v60
  %v318 = vmul.f32 %v273, %v42
  %v319 = vadd.f32 %v317, %v318
  %v320 = vadd.f32 %v312, %v316
  %v321 = vadd.f32 %v313, %v319
  %s322 = scalar_lea.vmem %s4, 32
  %323 = vst [vmem:[%s322] sm:$0xff] %v320
  %s324 = scalar_lea.vmem %s4, 104
  %325 = vst [vmem:[%s324] sm:$0xff] %v321
  %v326 = vmul.f32 %v220, %v32
  %v327 = vmul.f32 %v227, %v50
  %v328 = vsub.f32 %v326, %v327
  %v329 = vmul.f32 %v220, %v50
  %v330 = vmul.f32 %v227, %v32
  %v331 = vadd.f32 %v329, %v330
  %v332 = vmul.f32 %v250, %v38
  %v333 = vmul.f32 %v251, %v56
  %v334 = vsub.f32 %v332, %v333
  %v335 = vmul.f32 %v250, %v56
  %v336 = vmul.f32 %v251, %v38
  %v337 = vadd.f32 %v335, %v336
  %v338 = vadd.f32 %v328, %v334
  %v339 = vadd.f32 %v331, %v337
  %v340 = vmul.f32 %v266, %v44
  %v341 = vmul.f32 %v273, %v62
  %v342 = vsub.f32 %v340, %v341
  %v343 = vmul.f32 %v266, %v62
  %v344 = vmul.f32 %v273, %v44
  %v345 = vadd.f32 %v343, %v344
  %v346 = vadd.f32 %v338, %v342
  %v347 = vadd.f32 %v339, %v345
  %s348 = scalar_lea.vmem %s4, 40
  %349 = vst [vmem:[%s348] sm:$0xff] %v346
  %s350 = scalar_lea.vmem %s4, 112
  %351 = vst [vmem:[%s350] sm:$0xff] %v347
  %s352 = scalar_lea.vmem %s0, 48
  %v353 = vld [vmem:[%s352] sm:$0xff]
  %s354 = scalar_lea.vmem %s0, 120
  %v355 = vld [vmem:[%s354] sm:$0xff]
  %s356 = scalar_lea.vmem %s1, 48
  %v357 = vld [vmem:[%s356] sm:$0xff]
  %s358 = scalar_lea.vmem %s1, 120
  %v359 = vld [vmem:[%s358] sm:$0xff]
  %v360 = vmul.f32 %v19, %v353
  %v361 = vmul.f32 %v25, %v355
  %v362 = vsub.f32 %v360, %v361
  %v363 = vmul.f32 %v21, %v357
  %v364 = vadd.f32 %v362, %v363
  %v365 = vmul.f32 %v27, %v359
  %v366 = vsub.f32 %v364, %v365
  %v367 = vmul.f32 %v19, %v355
  %v368 = vmul.f32 %v25, %v353
  %v369 = vadd.f32 %v367, %v368
  %v370 = vmul.f32 %v21, %v359
  %v371 = vadd.f32 %v369, %v370
  %v372 = vmul.f32 %v27, %v357
  %v373 = vadd.f32 %v371, %v372
  %s374 = scalar_lea.vmem %s0, 56
  %v375 = vld [vmem:[%s374] sm:$0xff]
  %s376 = scalar_lea.vmem %s0, 128
  %v377 = vld [vmem:[%s376] sm:$0xff]
  %s378 = scalar_lea.vmem %s1, 56
  %v379 = vld [vmem:[%s378] sm:$0xff]
  %s380 = scalar_lea.vmem %s1, 128
  %v381 = vld [vmem:[%s380] sm:$0xff]
  %v382 = vmul.f32 %v19, %v375
  %v383 = vmul.f32 %v25, %v377
  %v384 = vsub.f32 %v382, %v383
  %v385 = vmul.f32 %v21, %v379
  %v386 = vadd.f32 %v384, %v385
  %v387 = vmul.f32 %v27, %v381
  %v388 = vsub.f32 %v386, %v387
  %v389 = vmul.f32 %v19, %v377
  %v390 = vmul.f32 %v25, %v375
  %v391 = vadd.f32 %v389, %v390
  %v392 = vmul.f32 %v21, %v381
  %v393 = vadd.f32 %v391, %v392
  %v394 = vmul.f32 %v27, %v379
  %v395 = vadd.f32 %v393, %v394
  %s396 = scalar_lea.vmem %s0, 64
  %v397 = vld [vmem:[%s396] sm:$0xff]
  %s398 = scalar_lea.vmem %s0, 136
  %v399 = vld [vmem:[%s398] sm:$0xff]
  %s400 = scalar_lea.vmem %s1, 64
  %v401 = vld [vmem:[%s400] sm:$0xff]
  %s402 = scalar_lea.vmem %s1, 136
  %v403 = vld [vmem:[%s402] sm:$0xff]
  %v404 = vmul.f32 %v19, %v397
  %v405 = vmul.f32 %v25, %v399
  %v406 = vsub.f32 %v404, %v405
  %v407 = vmul.f32 %v21, %v401
  %v408 = vadd.f32 %v406, %v407
  %v409 = vmul.f32 %v27, %v403
  %v410 = vsub.f32 %v408, %v409
  %v411 = vmul.f32 %v19, %v399
  %v412 = vmul.f32 %v25, %v397
  %v413 = vadd.f32 %v411, %v412
  %v414 = vmul.f32 %v21, %v403
  %v415 = vadd.f32 %v413, %v414
  %v416 = vmul.f32 %v27, %v401
  %v417 = vadd.f32 %v415, %v416
  %v418 = vadd.f32 %v410, %v17
  %v419 = vadd.f32 %v417, %v23
  %v420 = vmul.f32 %v366, %v28
  %v421 = vmul.f32 %v373, %v46
  %v422 = vsub.f32 %v420, %v421
  %v423 = vmul.f32 %v366, %v46
  %v424 = vmul.f32 %v373, %v28
  %v425 = vadd.f32 %v423, %v424
  %v426 = vmul.f32 %v388, %v34
  %v427 = vmul.f32 %v395, %v52
  %v428 = vsub.f32 %v426, %v427
  %v429 = vmul.f32 %v388, %v52
  %v430 = vmul.f32 %v395, %v34
  %v431 = vadd.f32 %v429, %v430
  %v432 = vadd.f32 %v422, %v428
  %v433 = vadd.f32 %v425, %v431
  %v434 = vmul.f32 %v418, %v40
  %v435 = vmul.f32 %v419, %v58
  %v436 = vsub.f32 %v434, %v435
  %v437 = vmul.f32 %v418, %v58
  %v438 = vmul.f32 %v419, %v40
  %v439 = vadd.f32 %v437, %v438
  %v440 = vadd.f32 %v432, %v436
  %v441 = vadd.f32 %v433, %v439
  %s442 = scalar_lea.vmem %s4, 48
  %443 = vst [vmem:[%s442] sm:$0xff] %v440
  %s444 = scalar_lea.vmem %s4, 120
  %445 = vst [vmem:[%s444] sm:$0xff] %v441
  %v446 = vmul.f32 %v366, %v30
  %v447 = vmul.f32 %v373, %v48
  %v448 = vsub.f32 %v446, %v447
  %v449 = vmul.f32 %v366, %v48
  %v450 = vmul.f32 %v373, %v30
  %v451 = vadd.f32 %v449, %v450
  %v452 = vmul.f32 %v388, %v36
  %v453 = vmul.f32 %v395, %v54
  %v454 = vsub.f32 %v452, %v453
  %v455 = vmul.f32 %v388, %v54
  %v456 = vmul.f32 %v395, %v36
  %v457 = vadd.f32 %v455, %v456
  %v458 = vadd.f32 %v448, %v454
  %v459 = vadd.f32 %v451, %v457
  %v460 = vmul.f32 %v418, %v42
  %v461 = vmul.f32 %v419, %v60
  %v462 = vsub.f32 %v460, %v461
  %v463 = vmul.f32 %v418, %v60
  %v464 = vmul.f32 %v419, %v42
  %v465 = vadd.f32 %v463, %v464
  %v466 = vadd.f32 %v458, %v462
  %v467 = vadd.f32 %v459, %v465
  %s468 = scalar_lea.vmem %s4, 56
  %469 = vst [vmem:[%s468] sm:$0xff] %v466
  %s470 = scalar_lea.vmem %s4, 128
  %471 = vst [vmem:[%s470] sm:$0xff] %v467
  %v472 = vmul.f32 %v366, %v32
  %v473 = vmul.f32 %v373, %v50
  %v474 = vsub.f32 %v472, %v473
  %v475 = vmul.f32 %v366, %v50
  %v476 = vmul.f32 %v373, %v32
  %v477 = vadd.f32 %v475, %v476
  %v478 = vmul.f32 %v388, %v38
  %v479 = vmul.f32 %v395, %v56
  %v480 = vsub.f32 %v478, %v479
  %v481 = vmul.f32 %v388, %v56
  %v482 = vmul.f32 %v395, %v38
  %v483 = vadd.f32 %v481, %v482
  %v484 = vadd.f32 %v474, %v480
  %v485 = vadd.f32 %v477, %v483
  %v486 = vmul.f32 %v418, %v44
  %v487 = vmul.f32 %v419, %v62
  %v488 = vsub.f32 %v486, %v487
  %v489 = vmul.f32 %v418, %v62
  %v490 = vmul.f32 %v419, %v44
  %v491 = vadd.f32 %v489, %v490
  %v492 = vadd.f32 %v484, %v488
  %v493 = vadd.f32 %v485, %v491
  %s494 = scalar_lea.vmem %s4, 64
  %495 = vst [vmem:[%s494] sm:$0xff] %v492
  %s496 = scalar_lea.vmem %s4, 136
  %497 = vst [vmem:[%s496] sm:$0xff] %v493
  // Predicated region
  $region18: #{stout_smearing.3} parent=0 // pred_check
    _
  $region19: #{stout_smearing.3} parent=0 // pred_check_branch
    %499 = sbr.rel (0) target = $region21
  $region20: #{stout_smearing.3} parent=0 // pred_region
    _
  $region21: #{stout_smearing.3} parent=0 // pred_fallthru
    _
  // Predicated region
  $region22: #{stout_smearing.3} parent=0 // pred_check
    _
  $region23: #{stout_smearing.3} parent=0 // pred_check_branch
    %501 = sbr.rel (0) target = $region25
  $region24: #{stout_smearing.3} parent=0 // pred_region
    _
  $region25: #{stout_smearing.3} parent=0 // pred_fallthru
    _

// kernel: stout_smearing.2
$region0: #{stout_smearing.2}
  #allocation0 [shape = 'u32[]', space=smem, size = 0x4, offset = 0x4, fixed_abs, tag = 'smem constant byte address 0x4 - core index']
  #allocation1 [shape = 'u32[72,128]{1,0:T(1,128)}', space=vmem, size = 0x9000, scoped, tag = 'internal scratch']
  #allocation2 [shape = 's32[1]{0}', space=sflag, size = 0x4, scoped, tag = 'scoped memory for stout_smearing.2']
  #allocation3 [shape = 'f32[1]{0:T(128)S(6)}', space=smem, size = 0x200, scoped, tag = 'prefetched SMEM operand 0']
  %s0 = inlined_call_operand.<no memory space> [shape: f32[1], index: 0, kind: input, shape index: {}]
  %s1 = inlined_call_operand.vmem [shape: f32[1,18,8,128], index: 1, kind: input, shape index: {}]
  %s2 = inlined_call_operand.vmem [shape: f32[1,18,8,128], index: 2, kind: input, shape index: {}]
  %s3 = inlined_call_operand.vmem [shape: f32[1,18,8,128], index: 3, kind: input, shape index: {}]
  %s4 = inlined_call_operand.vmem [shape: f32[1,18,8,128], index: 4, kind: input, shape index: {}]
  %s5 = inlined_call_operand.vmem [shape: f32[1,18,8,128], index: 5, kind: input, shape index: {}]
  %s6 = inlined_call_operand.vmem [shape: f32[1,18,8,128], index: 6, kind: input, shape index: {}]
  %s7 = inlined_call_operand.vmem [shape: f32[1,18,8,128], index: 7, kind: input, shape index: {}]
  %s8 = inlined_call_operand.vmem [shape: f32[1,18,8,128], index: 8, kind: output, shape index: {0}]
  %s9 = inlined_call_operand.vmem [shape: f32[1,18,8,128], index: 9, kind: output, shape index: {1}]
  %s10 = inlined_call_operand.vmem [shape: f32[1,18,8,128], index: 10, kind: output, shape index: {2}]
  %11 = xla_tuple %s8, %s9, %s10
  %s12 = sld [smem:[#allocation0]]
  $region54: #{stout_smearing.2} parent=0
    _
  %s14 = ssub.s32 1, %s12
  %s15 = scalar_select 0, %s14, %s12
  %16 = sst [smem:[#allocation3]] %s0
  // Predicated region
  $region2: #{stout_smearing.2} parent=0 // pred_check
    _
  $region3: #{stout_smearing.2} parent=0 // pred_check_branch
    %18 = sbr.rel (0) target = $region5
  $region4: #{stout_smearing.2} parent=0 // pred_region
    _
  $region5: #{stout_smearing.2} parent=0 // pred_fallthru
    _
  // Predicated region
  $region6: #{stout_smearing.2} parent=0 // pred_check
    _
  $region7: #{stout_smearing.2} parent=0 // pred_check_branch
    %20 = sbr.rel (0) target = $region9
  $region8: #{stout_smearing.2} parent=0 // pred_region
    _
  $region9: #{stout_smearing.2} parent=0 // pred_fallthru
    _
  // Predicated region
  $region10: #{stout_smearing.2} parent=0 // pred_check
    _
  $region11: #{stout_smearing.2} parent=0 // pred_check_branch
    %22 = sbr.rel (0) target = $region13
  $region12: #{stout_smearing.2} parent=0 // pred_region
    _
  $region13: #{stout_smearing.2} parent=0 // pred_fallthru
    _
  // Predicated region
  $region14: #{stout_smearing.2} parent=0 // pred_check
    _
  $region15: #{stout_smearing.2} parent=0 // pred_check_branch
    %24 = sbr.rel (0) target = $region17
  $region16: #{stout_smearing.2} parent=0 // pred_region
    _
  $region17: #{stout_smearing.2} parent=0 // pred_fallthru
    _
  // Predicated region
  $region18: #{stout_smearing.2} parent=0 // pred_check
    _
  $region19: #{stout_smearing.2} parent=0 // pred_check_branch
    %26 = sbr.rel (0) target = $region21
  $region20: #{stout_smearing.2} parent=0 // pred_region
    _
  $region21: #{stout_smearing.2} parent=0 // pred_fallthru
    _
  // Predicated region
  $region22: #{stout_smearing.2} parent=0 // pred_check
    _
  $region23: #{stout_smearing.2} parent=0 // pred_check_branch
    %28 = sbr.rel (0) target = $region25
  $region24: #{stout_smearing.2} parent=0 // pred_region
    _
  $region25: #{stout_smearing.2} parent=0 // pred_fallthru
    _
  // Predicated region
  $region26: #{stout_smearing.2} parent=0 // pred_check
    _
  $region27: #{stout_smearing.2} parent=0 // pred_check_branch
    %30 = sbr.rel (0) target = $region29
  $region28: #{stout_smearing.2} parent=0 // pred_region
    _
  $region29: #{stout_smearing.2} parent=0 // pred_fallthru
    _
  %s31 = sld [smem:[#allocation3]]
  %v32 = vld [vmem:[%s1] sm:$0xff]
  %s33 = scalar_lea.vmem %s1, 72
  %v34 = vld [vmem:[%s33] sm:$0xff]
  %v35 = vld [vmem:[%s2] sm:$0xff]
  %s36 = scalar_lea.vmem %s2, 72
  %v37 = vld [vmem:[%s36] sm:$0xff]
  %v38 = vmul.f32 %v32, %v35
  %v39 = vmul.f32 %v34, %v37
  %v40 = vsub.f32 %v38, %v39
  %v41 = vmul.f32 %v32, %v37
  %v42 = vmul.f32 %v34, %v35
  %v43 = vadd.f32 %v41, %v42
  %s44 = scalar_lea.vmem %s1, 8
  %v45 = vld [vmem:[%s44] sm:$0xff]
  %s46 = scalar_lea.vmem %s1, 80
  %v47 = vld [vmem:[%s46] sm:$0xff]
  %s48 = scalar_lea.vmem %s2, 24
  %v49 = vld [vmem:[%s48] sm:$0xff]
  %s50 = scalar_lea.vmem %s2, 96
  %v51 = vld [vmem:[%s50] sm:$0xff]
  %v52 = vmul.f32 %v45, %v49
  %v53 = vmul.f32 %v47, %v51
  %v54 = vsub.f32 %v52, %v53
  %v55 = vmul.f32 %v45, %v51
  %v56 = vmul.f32 %v47, %v49
  %v57 = vadd.f32 %v55, %v56
  %v58 = vadd.f32 %v40, %v54
  %v59 = vadd.f32 %v43, %v57
  %s60 = scalar_lea.vmem %s1, 16
  %v61 = vld [vmem:[%s60] sm:$0xff]
  %s62 = scalar_lea.vmem %s1, 88
  %v63 = vld [vmem:[%s62] sm:$0xff]
  %s64 = scalar_lea.vmem %s2, 48
  %v65 = vld [vmem:[%s64] sm:$0xff]
  %s66 = scalar_lea.vmem %s2, 120
  %v67 = vld [vmem:[%s66] sm:$0xff]
  %v68 = vmul.f32 %v61, %v65
  %v69 = vmul.f32 %v63, %v67
  %v70 = vsub.f32 %v68, %v69
  %v71 = vmul.f32 %v61, %v67
  %v72 = vmul.f32 %v63, %v65
  %v73 = vadd.f32 %v71, %v72
  %v74 = vadd.f32 %v58, %v70
  %v75 = vadd.f32 %v59, %v73
  %s76 = scalar_lea.vmem %s2, 8
  %v77 = vld [vmem:[%s76] sm:$0xff]
  %s78 = scalar_lea.vmem %s2, 80
  %v79 = vld [vmem:[%s78] sm:$0xff]
  %v80 = vmul.f32 %v32, %v77
  %v81 = vmul.f32 %v34, %v79
  %v82 = vsub.f32 %v80, %v81
  %v83 = vmul.f32 %v32, %v79
  %v84 = vmul.f32 %v34, %v77
  %v85 = vadd.f32 %v83, %v84
  %s86 = scalar_lea.vmem %s2, 32
  %v87 = vld [vmem:[%s86] sm:$0xff]
  %s88 = scalar_lea.vmem %s2, 104
  %v89 = vld [vmem:[%s88] sm:$0xff]
  %v90 = vmul.f32 %v45, %v87
  %v91 = vmul.f32 %v47, %v89
  %v92 = vsub.f32 %v90, %v91
  %v93 = vmul.f32 %v45, %v89
  %v94 = vmul.f32 %v47, %v87
  %v95 = vadd.f32 %v93, %v94
  %v96 = vadd.f32 %v82, %v92
  %v97 = vadd.f32 %v85, %v95
  %s98 = scalar_lea.vmem %s2, 56
  %v99 = vld [vmem:[%s98] sm:$0xff]
  %s100 = scalar_lea.vmem %s2, 128
  %v101 = vld [vmem:[%s100] sm:$0xff]
  %v102 = vmul.f32 %v61, %v99
  %v103 = vmul.f32 %v63, %v101
  %v104 = vsub.f32 %v102, %v103
  %v105 = vmul.f32 %v61, %v101
  %v106 = vmul.f32 %v63, %v99
  %v107 = vadd.f32 %v105, %v106
  %v108 = vadd.f32 %v96, %v104
  %v109 = vadd.f32 %v97, %v107
  %s110 = scalar_lea.vmem %s2, 16
  %v111 = vld [vmem:[%s110] sm:$0xff]
  %s112 = scalar_lea.vmem %s2, 88
  %v113 = vld [vmem:[%s112] sm:$0xff]
  %v114 = vmul.f32 %v32, %v111
  %v115 = vmul.f32 %v34, %v113
  %v116 = vsub.f32 %v114, %v115
  %v117 = vmul.f32 %v32, %v113
  %v118 = vmul.f32 %v34, %v111
  %v119 = vadd.f32 %v117, %v118
  %s120 = scalar_lea.vmem %s2, 40
  %v121 = vld [vmem:[%s120] sm:$0xff]
  %s122 = scalar_lea.vmem %s2, 112
  %v123 = vld [vmem:[%s122] sm:$0xff]
  %v124 = vmul.f32 %v45, %v121
  %v125 = vmul.f32 %v47, %v123
  %v126 = vsub.f32 %v124, %v125
  %v127 = vmul.f32 %v45, %v123
  %v128 = vmul.f32 %v47, %v121
  %v129 = vadd.f32 %v127, %v128
  %v130 = vadd.f32 %v116, %v126
  %v131 = vadd.f32 %v119, %v129
  %s132 = scalar_lea.vmem %s2, 64
  %v133 = vld [vmem:[%s132] sm:$0xff]
  %s134 = scalar_lea.vmem %s2, 136
  %v135 = vld [vmem:[%s134] sm:$0xff]
  %v136 = vmul.f32 %v61, %v133
  %v137 = vmul.f32 %v63, %v135
  %v138 = vsub.f32 %v136, %v137
  %v139 = vmul.f32 %v61, %v135
  %v140 = vmul.f32 %v63, %v133
  %v141 = vadd.f32 %v139, %v140
  %v142 = vadd.f32 %v130, %v138
  %v143 = vadd.f32 %v131, %v141
  %v144 = vld [vmem:[%s3] sm:$0xff]
  %s145 = scalar_lea.vmem %s3, 72
  %v146 = vld [vmem:[%s145] sm:$0xff]
  %v147 = vmul.f32 %v74, %v144
  %v148 = vmul.f32 %v75, %v146
  %v149 = vadd.f32 %v147, %v148
  %v150 = vmul.f32 %v75, %v144
  %v151 = vmul.f32 %v74, %v146
  %v152 = vsub.f32 %v150, %v151
  %s153 = scalar_lea.vmem %s3, 8
  %v154 = vld [vmem:[%s153] sm:$0xff]
  %s155 = scalar_lea.vmem %s3, 80
  %v156 = vld [vmem:[%s155] sm:$0xff]
  %v157 = vmul.f32 %v108, %v154
  %v158 = vmul.f32 %v109, %v156
  %v159 = vadd.f32 %v157, %v158
  %v160 = vmul.f32 %v109, %v154
  %v161 = vmul.f32 %v108, %v156
  %v162 = vsub.f32 %v160, %v161
  %v163 = vadd.f32 %v149, %v159
  %v164 = vadd.f32 %v152, %v162
  %s165 = scalar_lea.vmem %s3, 16
  %v166 = vld [vmem:[%s165] sm:$0xff]
  %s167 = scalar_lea.vmem %s3, 88
  %v168 = vld [vmem:[%s167] sm:$0xff]
  %v169 = vmul.f32 %v142, %v166
  %v170 = vmul.f32 %v143, %v168
  %v171 = vadd.f32 %v169, %v170
  %v172 = vmul.f32 %v143, %v166
  %v173 = vmul.f32 %v142, %v168
  %v174 = vsub.f32 %v172, %v173
  %v175 = vadd.f32 %v163, %v171
  %v176 = vadd.f32 %v164, %v174
  %v177 = vstv %s31
  %v178 = vmul.f32 %v177, %v175
  %v179 = vmul.f32 %v177, %v176
  %s180 = scalar_lea.vmem %s3, 24
  %v181 = vld [vmem:[%s180] sm:$0xff]
  %s182 = scalar_lea.vmem %s3, 96
  %v183 = vld [vmem:[%s182] sm:$0xff]
  %v184 = vmul.f32 %v74, %v181
  %v185 = vmul.f32 %v75, %v183
  %v186 = vadd.f32 %v184, %v185
  %v187 = vmul.f32 %v75, %v181
  %v188 = vmul.f32 %v74, %v183
  %v189 = vsub.f32 %v187, %v188
  %s190 = scalar_lea.vmem %s3, 32
  %v191 = vld [vmem:[%s190] sm:$0xff]
  %s192 = scalar_lea.vmem %s3, 104
  %v193 = vld [vmem:[%s192] sm:$0xff]
  %v194 = vmul.f32 %v108, %v191
  %v195 = vmul.f32 %v109, %v193
  %v196 = vadd.f32 %v194, %v195
  %v197 = vmul.f32 %v109, %v191
  %v198 = vmul.f32 %v108, %v193
  %v199 = vsub.f32 %v197, %v198
  %v200 = vadd.f32 %v186, %v196
  %v201 = vadd.f32 %v189, %v199
  %s202 = scalar_lea.vmem %s3, 40
  %v203 = vld [vmem:[%s202] sm:$0xff]
  %s204 = scalar_lea.vmem %s3, 112
  %v205 = vld [vmem:[%s204] sm:$0xff]
  %v206 = vmul.f32 %v142, %v203
  %v207 = vmul.f32 %v143, %v205
  %v208 = vadd.f32 %v206, %v207
  %v209 = vmul.f32 %v143, %v203
  %v210 = vmul.f32 %v142, %v205
  %v211 = vsub.f32 %v209, %v210
  %v212 = vadd.f32 %v200, %v208
  %v213 = vadd.f32 %v201, %v211
  %v214 = vmul.f32 %v177, %v212
  %v215 = vmul.f32 %v177, %v213
  %s216 = scalar_lea.vmem %s3, 48
  %v217 = vld [vmem:[%s216] sm:$0xff]
  %s218 = scalar_lea.vmem %s3, 120
  %v219 = vld [vmem:[%s218] sm:$0xff]
  %v220 = vmul.f32 %v74, %v217
  %v221 = vmul.f32 %v75, %v219
  %v222 = vadd.f32 %v220, %v221
  %v223 = vmul.f32 %v75, %v217
  %v224 = vmul.f32 %v74, %v219
  %v225 = vsub.f32 %v223, %v224
  %s226 = scalar_lea.vmem %s3, 56
  %v227 = vld [vmem:[%s226] sm:$0xff]
  %s228 = scalar_lea.vmem %s3, 128
  %v229 = vld [vmem:[%s228] sm:$0xff]
  %v230 = vmul.f32 %v108, %v227
  %v231 = vmul.f32 %v109, %v229
  %v232 = vadd.f32 %v230, %v231
  %v233 = vmul.f32 %v109, %v227
  %v234 = vmul.f32 %v108, %v229
  %v235 = vsub.f32 %v233, %v234
  %v236 = vadd.f32 %v222, %v232
  %v237 = vadd.f32 %v225, %v235
  %s238 = scalar_lea.vmem %s3, 64
  %v239 = vld [vmem:[%s238] sm:$0xff]
  %s240 = scalar_lea.vmem %s3, 136
  %v241 = vld [vmem:[%s240] sm:$0xff]
  %v242 = vmul.f32 %v142, %v239
  %v243 = vmul.f32 %v143, %v241
  %v244 = vadd.f32 %v242, %v243
  %v245 = vmul.f32 %v143, %v239
  %v246 = vmul.f32 %v142, %v241
  %v247 = vsub.f32 %v245, %v246
  %v248 = vadd.f32 %v236, %v244
  %v249 = vadd.f32 %v237, %v247
  %v250 = vmul.f32 %v177, %v248
  %v251 = vmul.f32 %v177, %v249
  %s252 = scalar_lea.vmem %s1, 24
  %v253 = vld [vmem:[%s252] sm:$0xff]
  %s254 = scalar_lea.vmem %s1, 96
  %v255 = vld [vmem:[%s254] sm:$0xff]
  %v256 = vmul.f32 %v253, %v35
  %v257 = vmul.f32 %v255, %v37
  %v258 = vsub.f32 %v256, %v257
  %v259 = vmul.f32 %v253, %v37
  %v260 = vmul.f32 %v255, %v35
  %v261 = vadd.f32 %v259, %v260
  %s262 = scalar_lea.vmem %s1, 32
  %v263 = vld [vmem:[%s262] sm:$0xff]
  %s264 = scalar_lea.vmem %s1, 104
  %v265 = vld [vmem:[%s264] sm:$0xff]
  %v266 = vmul.f32 %v263, %v49
  %v267 = vmul.f32 %v265, %v51
  %v268 = vsub.f32 %v266, %v267
  %v269 = vmul.f32 %v263, %v51
  %v270 = vmul.f32 %v265, %v49
  %v271 = vadd.f32 %v269, %v270
  %v272 = vadd.f32 %v258, %v268
  %v273 = vadd.f32 %v261, %v271
  %s274 = scalar_lea.vmem %s1, 40
  %v275 = vld [vmem:[%s274] sm:$0xff]
  %s276 = scalar_lea.vmem %s1, 112
  %v277 = vld [vmem:[%s276] sm:$0xff]
  %v278 = vmul.f32 %v275, %v65
  %v279 = vmul.f32 %v277, %v67
  %v280 = vsub.f32 %v278, %v279
  %v281 = vmul.f32 %v275, %v67
  %v282 = vmul.f32 %v277, %v65
  %v283 = vadd.f32 %v281, %v282
  %v284 = vadd.f32 %v272, %v280
  %v285 = vadd.f32 %v273, %v283
  %v286 = vmul.f32 %v253, %v77
  %v287 = vmul.f32 %v255, %v79
  %v288 = vsub.f32 %v286, %v287
  %v289 = vmul.f32 %v253, %v79
  %v290 = vmul.f32 %v255, %v77
  %v291 = vadd.f32 %v289, %v290
  %v292 = vmul.f32 %v263, %v87
  %v293 = vmul.f32 %v265, %v89
  %v294 = vsub.f32 %v292, %v293
  %v295 = vmul.f32 %v263, %v89
  %v296 = vmul.f32 %v265, %v87
  %v297 = vadd.f32 %v295, %v296
  %v298 = vadd.f32 %v288, %v294
  %v299 = vadd.f32 %v291, %v297
  %v300 = vmul.f32 %v275, %v99
  %v301 = vmul.f32 %v277, %v101
  %v302 = vsub.f32 %v300, %v301
  %v303 = vmul.f32 %v275, %v101
  %v304 = vmul.f32 %v277, %v99
  %v305 = vadd.f32 %v303, %v304
  %v306 = vadd.f32 %v298, %v302
  %v307 = vadd.f32 %v299, %v305
  %v308 = vmul.f32 %v253, %v111
  %v309 = vmul.f32 %v255, %v113
  %v310 = vsub.f32 %v308, %v309
  %v311 = vmul.f32 %v253, %v113
  %v312 = vmul.f32 %v255, %v111
  %v313 = vadd.f32 %v311, %v312
  %v314 = vmul.f32 %v263, %v121
  %v315 = vmul.f32 %v265, %v123
  %v316 = vsub.f32 %v314, %v315
  %v317 = vmul.f32 %v263, %v123
  %v318 = vmul.f32 %v265, %v121
  %v319 = vadd.f32 %v317, %v318
  %v320 = vadd.f32 %v310, %v316
  %v321 = vadd.f32 %v313, %v319
  %v322 = vmul.f32 %v275, %v133
  %v323 = vmul.f32 %v277, %v135
  %v324 = vsub.f32 %v322, %v323
  %v325 = vmul.f32 %v275, %v135
  %v326 = vmul.f32 %v277, %v133
  %v327 = vadd.f32 %v325, %v326
  %v328 = vadd.f32 %v320, %v324
  %v329 = vadd.f32 %v321, %v327
  %v330 = vmul.f32 %v284, %v144
  %v331 = vmul.f32 %v285, %v146
  %v332 = vadd.f32 %v330, %v331
  %v333 = vmul.f32 %v285, %v144
  %v334 = vmul.f32 %v284, %v146
  %v335 = vsub.f32 %v333, %v334
  %v336 = vmul.f32 %v306, %v154
  %v337 = vmul.f32 %v307, %v156
  %v338 = vadd.f32 %v336, %v337
  %v339 = vmul.f32 %v307, %v154
  %v340 = vmul.f32 %v306, %v156
  %v341 = vsub.f32 %v339, %v340
  %v342 = vadd.f32 %v332, %v338
  %v343 = vadd.f32 %v335, %v341
  %v344 = vmul.f32 %v328, %v166
  %v345 = vmul.f32 %v329, %v168
  %v346 = vadd.f32 %v344, %v345
  %v347 = vmul.f32 %v329, %v166
  %v348 = vmul.f32 %v328, %v168
  %v349 = vsub.f32 %v347, %v348
  %v350 = vadd.f32 %v342, %v346
  %v351 = vadd.f32 %v343, %v349
  %v352 = vmul.f32 %v177, %v350
  %v353 = vmul.f32 %v177, %v351
  %v354 = vmul.f32 %v284, %v181
  %v355 = vmul.f32 %v285, %v183
  %v356 = vadd.f32 %v354, %v355
  %v357 = vmul.f32 %v285, %v181
  %v358 = vmul.f32 %v284, %v183
  %v359 = vsub.f32 %v357, %v358
  %v360 = vmul.f32 %v306, %v191
  %v361 = vmul.f32 %v307, %v193
  %v362 = vadd.f32 %v360, %v361
  %v363 = vmul.f32 %v307, %v191
  %v364 = vmul.f32 %v306, %v193
  %v365 = vsub.f32 %v363, %v364
  %v366 = vadd.f32 %v356, %v362
  %v367 = vadd.f32 %v359, %v365
  %v368 = vmul.f32 %v328, %v203
  %v369 = vmul.f32 %v329, %v205
  %v370 = vadd.f32 %v368, %v369
  %v371 = vmul.f32 %v329, %v203
  %v372 = vmul.f32 %v328, %v205
  %v373 = vsub.f32 %v371, %v372
  %v374 = vadd.f32 %v366, %v370
  %v375 = vadd.f32 %v367, %v373
  %v376 = vmul.f32 %v177, %v374
  %v377 = vmul.f32 %v177, %v375
  %v378 = vmul.f32 %v284, %v217
  %v379 = vmul.f32 %v285, %v219
  %v380 = vadd.f32 %v378, %v379
  %v381 = vmul.f32 %v285, %v217
  %v382 = vmul.f32 %v284, %v219
  %v383 = vsub.f32 %v381, %v382
  %v384 = vmul.f32 %v306, %v227
  %v385 = vmul.f32 %v307, %v229
  %v386 = vadd.f32 %v384, %v385
  %v387 = vmul.f32 %v307, %v227
  %v388 = vmul.f32 %v306, %v229
  %v389 = vsub.f32 %v387, %v388
  %v390 = vadd.f32 %v380, %v386
  %v391 = vadd.f32 %v383, %v389
  %v392 = vmul.f32 %v328, %v239
  %v393 = vmul.f32 %v329, %v241
  %v394 = vadd.f32 %v392, %v393
  %v395 = vmul.f32 %v329, %v239
  %v396 = vmul.f32 %v328, %v241
  %v397 = vsub.f32 %v395, %v396
  %v398 = vadd.f32 %v390, %v394
  %v399 = vadd.f32 %v391, %v397
  %v400 = vmul.f32 %v177, %v398
  %v401 = vmul.f32 %v177, %v399
  %s402 = scalar_lea.vmem %s1, 48
  %v403 = vld [vmem:[%s402] sm:$0xff]
  %s404 = scalar_lea.vmem %s1, 120
  %v405 = vld [vmem:[%s404] sm:$0xff]
  %v406 = vmul.f32 %v403, %v35
  %v407 = vmul.f32 %v405, %v37
  %v408 = vsub.f32 %v406, %v407
  %v409 = vmul.f32 %v403, %v37
  %v410 = vmul.f32 %v405, %v35
  %v411 = vadd.f32 %v409, %v410
  %s412 = scalar_lea.vmem %s1, 56
  %v413 = vld [vmem:[%s412] sm:$0xff]
  %s414 = scalar_lea.vmem %s1, 128
  %v415 = vld [vmem:[%s414] sm:$0xff]
  %v416 = vmul.f32 %v413, %v49
  %v417 = vmul.f32 %v415, %v51
  %v418 = vsub.f32 %v416, %v417
  %v419 = vmul.f32 %v413, %v51
  %v420 = vmul.f32 %v415, %v49
  %v421 = vadd.f32 %v419, %v420
  %v422 = vadd.f32 %v408, %v418
  %v423 = vadd.f32 %v411, %v421
  %s424 = scalar_lea.vmem %s1, 64
  %v425 = vld [vmem:[%s424] sm:$0xff]
  %s426 = scalar_lea.vmem %s1, 136
  %v427 = vld [vmem:[%s426] sm:$0xff]
  %v428 = vmul.f32 %v425, %v65
  %v429 = vmul.f32 %v427, %v67
  %v430 = vsub.f32 %v428, %v429
  %v431 = vmul.f32 %v425, %v67
  %v432 = vmul.f32 %v427, %v65
  %v433 = vadd.f32 %v431, %v432
  %v434 = vadd.f32 %v422, %v430
  %v435 = vadd.f32 %v423, %v433
  %v436 = vmul.f32 %v403, %v77
  %v437 = vmul.f32 %v405, %v79
  %v438 = vsub.f32 %v436, %v437
  %v439 = vmul.f32 %v403, %v79
  %v440 = vmul.f32 %v405, %v77
  %v441 = vadd.f32 %v439, %v440
  %v442 = vmul.f32 %v413, %v87
  %v443 = vmul.f32 %v415, %v89
  %v444 = vsub.f32 %v442, %v443
  %v445 = vmul.f32 %v413, %v89
  %v446 = vmul.f32 %v415, %v87
  %v447 = vadd.f32 %v445, %v446
  %v448 = vadd.f32 %v438, %v444
  %v449 = vadd.f32 %v441, %v447
  %v450 = vmul.f32 %v425, %v99
  %v451 = vmul.f32 %v427, %v101
  %v452 = vsub.f32 %v450, %v451
  %v453 = vmul.f32 %v425, %v101
  %v454 = vmul.f32 %v427, %v99
  %v455 = vadd.f32 %v453, %v454
  %v456 = vadd.f32 %v448, %v452
  %v457 = vadd.f32 %v449, %v455
  %v458 = vmul.f32 %v403, %v111
  %v459 = vmul.f32 %v405, %v113
  %v460 = vsub.f32 %v458, %v459
  %v461 = vmul.f32 %v403, %v113
  %v462 = vmul.f32 %v405, %v111
  %v463 = vadd.f32 %v461, %v462
  %v464 = vmul.f32 %v413, %v121
  %v465 = vmul.f32 %v415, %v123
  %v466 = vsub.f32 %v464, %v465
  %v467 = vmul.f32 %v413, %v123
  %v468 = vmul.f32 %v415, %v121
  %v469 = vadd.f32 %v467, %v468
  %v470 = vadd.f32 %v460, %v466
  %v471 = vadd.f32 %v463, %v469
  %v472 = vmul.f32 %v425, %v133
  %v473 = vmul.f32 %v427, %v135
  %v474 = vsub.f32 %v472, %v473
  %v475 = vmul.f32 %v425, %v135
  %v476 = vmul.f32 %v427, %v133
  %v477 = vadd.f32 %v475, %v476
  %v478 = vadd.f32 %v470, %v474
  %v479 = vadd.f32 %v471, %v477
  %v480 = vmul.f32 %v434, %v144
  %v481 = vmul.f32 %v435, %v146
  %v482 = vadd.f32 %v480, %v481
  %v483 = vmul.f32 %v435, %v144
  %v484 = vmul.f32 %v434, %v146
  %v485 = vsub.f32 %v483, %v484
  %v486 = vmul.f32 %v456, %v154
  %v487 = vmul.f32 %v457, %v156
  %v488 = vadd.f32 %v486, %v487
  %v489 = vmul.f32 %v457, %v154
  %v490 = vmul.f32 %v456, %v156
  %v491 = vsub.f32 %v489, %v490
  %v492 = vadd.f32 %v482, %v488
  %v493 = vadd.f32 %v485, %v491
  %v494 = vmul.f32 %v478, %v166
  %v495 = vmul.f32 %v479, %v168
  %v496 = vadd.f32 %v494, %v495
  %v497 = vmul.f32 %v479, %v166
  %v498 = vmul.f32 %v478, %v168
  %v499 = vsub.f32 %v497, %v498
  %v500 = vadd.f32 %v492, %v496
  %v501 = vadd.f32 %v493, %v499
  %v502 = vmul.f32 %v177, %v500
  %v503 = vmul.f32 %v177, %v501
  %v504 = vmul.f32 %v434, %v181
  %v505 = vmul.f32 %v435, %v183
  %v506 = vadd.f32 %v504, %v505
  %v507 = vmul.f32 %v435, %v181
  %v508 = vmul.f32 %v434, %v183
  %v509 = vsub.f32 %v507, %v508
  %v510 = vmul.f32 %v456, %v191
  %v511 = vmul.f32 %v457, %v193
  %v512 = vadd.f32 %v510, %v511
  %v513 = vmul.f32 %v457, %v191
  %v514 = vmul.f32 %v456, %v193
  %v515 = vsub.f32 %v513, %v514
  %v516 = vadd.f32 %v506, %v512
  %v517 = vadd.f32 %v509, %v515
  %v518 = vmul.f32 %v478, %v203
  %v519 = vmul.f32 %v479, %v205
  %v520 = vadd.f32 %v518, %v519
  %v521 = vmul.f32 %v479, %v203
  %v522 = vmul.f32 %v478, %v205
  %v523 = vsub.f32 %v521, %v522
  %v524 = vadd.f32 %v516, %v520
  %v525 = vadd.f32 %v517, %v523
  %v526 = vmul.f32 %v177, %v524
  %v527 = vmul.f32 %v177, %v525
  %v528 = vmul.f32 %v434, %v217
  %v529 = vmul.f32 %v435, %v219
  %v530 = vadd.f32 %v528, %v529
  %v531 = vmul.f32 %v435, %v217
  %v532 = vmul.f32 %v434, %v219
  %v533 = vsub.f32 %v531, %v532
  %v534 = vmul.f32 %v456, %v227
  %v535 = vmul.f32 %v457, %v229
  %v536 = vadd.f32 %v534, %v535
  %v537 = vmul.f32 %v457, %v227
  %v538 = vmul.f32 %v456, %v229
  %v539 = vsub.f32 %v537, %v538
  %v540 = vadd.f32 %v530, %v536
  %v541 = vadd.f32 %v533, %v539
  %v542 = vmul.f32 %v478, %v239
  %v543 = vmul.f32 %v479, %v241
  %v544 = vadd.f32 %v542, %v543
  %v545 = vmul.f32 %v479, %v239
  %v546 = vmul.f32 %v478, %v241
  %v547 = vsub.f32 %v545, %v546
  %v548 = vadd.f32 %v540, %v544
  %v549 = vadd.f32 %v541, %v547
  %v550 = vmul.f32 %v177, %v548
  %v551 = vmul.f32 %v177, %v549
  %v552 = vld [vmem:[%s4] sm:$0xff]
  %s553 = scalar_lea.vmem %s4, 72
  %v554 = vld [vmem:[%s553] sm:$0xff]
  %v555 = vld [vmem:[%s5] sm:$0xff]
  %s556 = scalar_lea.vmem %s5, 72
  %v557 = vld [vmem:[%s556] sm:$0xff]
  %v558 = vmul.f32 %v552, %v555
  %v559 = vmul.f32 %v554, %v557
  %v560 = vadd.f32 %v558, %v559
  %v561 = vmul.f32 %v552, %v557
  %v562 = vmul.f32 %v554, %v555
  %v563 = vsub.f32 %v561, %v562
  %s564 = scalar_lea.vmem %s4, 24
  %v565 = vld [vmem:[%s564] sm:$0xff]
  %s566 = scalar_lea.vmem %s4, 96
  %v567 = vld [vmem:[%s566] sm:$0xff]
  %s568 = scalar_lea.vmem %s5, 24
  %v569 = vld [vmem:[%s568] sm:$0xff]
  %s570 = scalar_lea.vmem %s5, 96
  %v571 = vld [vmem:[%s570] sm:$0xff]
  %v572 = vmul.f32 %v565, %v569
  %v573 = vmul.f32 %v567, %v571
  %v574 = vadd.f32 %v572, %v573
  %v575 = vmul.f32 %v565, %v571
  %v576 = vmul.f32 %v567, %v569
  %v577 = vsub.f32 %v575, %v576
  %v578 = vadd.f32 %v560, %v574
  %v579 = vadd.f32 %v563, %v577
  %s580 = scalar_lea.vmem %s4, 48
  %v581 = vld [vmem:[%s580] sm:$0xff]
  %s582 = scalar_lea.vmem %s4, 120
  %v583 = vld [vmem:[%s582] sm:$0xff]
  %s584 = scalar_lea.vmem %s5, 48
  %v585 = vld [vmem:[%s584] sm:$0xff]
  %s586 = scalar_lea.vmem %s5, 120
  %v587 = vld [vmem:[%s586] sm:$0xff]
  %v588 = vmul.f32 %v581, %v585
  %v589 = vmul.f32 %v583, %v587
  %v590 = vadd.f32 %v588, %v589
  %v591 = vmul.f32 %v581, %v587
  %v592 = vmul.f32 %v583, %v585
  %v593 = vsub.f32 %v591, %v592
  %v594 = vadd.f32 %v578, %v590
  %v595 = vadd.f32 %v579, %v593
  %s596 = scalar_lea.vmem %s5, 8
  %v597 = vld [vmem:[%s596] sm:$0xff]
  %s598 = scalar_lea.vmem %s5, 80
  %v599 = vld [vmem:[%s598] sm:$0xff]
  %v600 = vmul.f32 %v552, %v597
  %v601 = vmul.f32 %v554, %v599
  %v602 = vadd.f32 %v600, %v601
  %v603 = vmul.f32 %v552, %v599
  %v604 = vmul.f32 %v554, %v597
  %v605 = vsub.f32 %v603, %v604
  %s606 = scalar_lea.vmem %s5, 32
  %v607 = vld [vmem:[%s606] sm:$0xff]
  %s608 = scalar_lea.vmem %s5, 104
  %v609 = vld [vmem:[%s608] sm:$0xff]
  %v610 = vmul.f32 %v565, %v607
  %v611 = vmul.f32 %v567, %v609
  %v612 = vadd.f32 %v610, %v611
  %v613 = vmul.f32 %v565, %v609
  %v614 = vmul.f32 %v567, %v607
  %v615 = vsub.f32 %v613, %v614
  %v616 = vadd.f32 %v602, %v612
  %v617 = vadd.f32 %v605, %v615
  %s618 = scalar_lea.vmem %s5, 56
  %v619 = vld [vmem:[%s618] sm:$0xff]
  %s620 = scalar_lea.vmem %s5, 128
  %v621 = vld [vmem:[%s620] sm:$0xff]
  %v622 = vmul.f32 %v581, %v619
  %v623 = vmul.f32 %v583, %v621
  %v624 = vadd.f32 %v622, %v623
  %v625 = vmul.f32 %v581, %v621
  %v626 = vmul.f32 %v583, %v619
  %v627 = vsub.f32 %v625, %v626
  %v628 = vadd.f32 %v616, %v624
  %v629 = vadd.f32 %v617, %v627
  %s630 = scalar_lea.vmem %s5, 16
  %v631 = vld [vmem:[%s630] sm:$0xff]
  %s632 = scalar_lea.vmem %s5, 88
  %v633 = vld [vmem:[%s632] sm:$0xff]
  %v634 = vmul.f32 %v552, %v631
  %v635 = vmul.f32 %v554, %v633
  %v636 = vadd.f32 %v634, %v635
  %v637 = vmul.f32 %v552, %v633
  %v638 = vmul.f32 %v554, %v631
  %v639 = vsub.f32 %v637, %v638
  %s640 = scalar_lea.vmem %s5, 40
  %v641 = vld [vmem:[%s640] sm:$0xff]
  %s642 = scalar_lea.vmem %s5, 112
  %v643 = vld [vmem:[%s642] sm:$0xff]
  %v644 = vmul.f32 %v565, %v641
  %v645 = vmul.f32 %v567, %v643
  %v646 = vadd.f32 %v644, %v645
  %v647 = vmul.f32 %v565, %v643
  %v648 = vmul.f32 %v567, %v641
  %v649 = vsub.f32 %v647, %v648
  %v650 = vadd.f32 %v636, %v646
  %v651 = vadd.f32 %v639, %v649
  %s652 = scalar_lea.vmem %s5, 64
  %v653 = vld [vmem:[%s652] sm:$0xff]
  %s654 = scalar_lea.vmem %s5, 136
  %v655 = vld [vmem:[%s654] sm:$0xff]
  %v656 = vmul.f32 %v581, %v653
  %v657 = vmul.f32 %v583, %v655
  %v658 = vadd.f32 %v656, %v657
  %v659 = vmul.f32 %v581, %v655
  %v660 = vmul.f32 %v583, %v653
  %v661 = vsub.f32 %v659, %v660
  %v662 = vadd.f32 %v650, %v658
  %v663 = vadd.f32 %v651, %v661
  %v664 = vld [vmem:[%s6] sm:$0xff]
  %s665 = scalar_lea.vmem %s6, 72
  %v666 = vld [vmem:[%s665] sm:$0xff]
  %v667 = vmul.f32 %v594, %v664
  %v668 = vmul.f32 %v595, %v666
  %v669 = vsub.f32 %v667, %v668
  %v670 = vmul.f32 %v594, %v666
  %v671 = vmul.f32 %v595, %v664
  %v672 = vadd.f32 %v670, %v671
  %s673 = scalar_lea.vmem %s6, 24
  %v674 = vld [vmem:[%s673] sm:$0xff]
  %s675 = scalar_lea.vmem %s6, 96
  %v676 = vld [vmem:[%s675] sm:$0xff]
  %v677 = vmul.f32 %v628, %v674
  %v678 = vmul.f32 %v629, %v676
  %v679 = vsub.f32 %v677, %v678
  %v680 = vmul.f32 %v628, %v676
  %v681 = vmul.f32 %v629, %v674
  %v682 = vadd.f32 %v680, %v681
  %v683 = vadd.f32 %v669, %v679
  %v684 = vadd.f32 %v672, %v682
  %s685 = scalar_lea.vmem %s6, 48
  %v686 = vld [vmem:[%s685] sm:$0xff]
  %s687 = scalar_lea.vmem %s6, 120
  %v688 = vld [vmem:[%s687] sm:$0xff]
  %v689 = vmul.f32 %v662, %v686
  %v690 = vmul.f32 %v663, %v688
  %v691 = vsub.f32 %v689, %v690
  %v692 = vmul.f32 %v662, %v688
  %v693 = vmul.f32 %v663, %v686
  %v694 = vadd.f32 %v692, %v693
  %v695 = vadd.f32 %v683, %v691
  %v696 = vadd.f32 %v684, %v694
  %v697 = vmul.f32 %v177, %v695
  %v698 = vadd.f32 %v178, %v697
  %v699 = vmul.f32 %v177, %v696
  %v700 = vadd.f32 %v179, %v699
  %s701 = scalar_lea.vmem %s6, 8
  %v702 = vld [vmem:[%s701] sm:$0xff]
  %s703 = scalar_lea.vmem %s6, 80
  %v704 = vld [vmem:[%s703] sm:$0xff]
  %v705 = vmul.f32 %v594, %v702
  %v706 = vmul.f32 %v595, %v704
  %v707 = vsub.f32 %v705, %v706
  %v708 = vmul.f32 %v594, %v704
  %v709 = vmul.f32 %v595, %v702
  %v710 = vadd.f32 %v708, %v709
  %s711 = scalar_lea.vmem %s6, 32
  %v712 = vld [vmem:[%s711] sm:$0xff]
  %s713 = scalar_lea.vmem %s6, 104
  %v714 = vld [vmem:[%s713] sm:$0xff]
  %v715 = vmul.f32 %v628, %v712
  %v716 = vmul.f32 %v629, %v714
  %v717 = vsub.f32 %v715, %v716
  %v718 = vmul.f32 %v628, %v714
  %v719 = vmul.f32 %v629, %v712
  %v720 = vadd.f32 %v718, %v719
  %v721 = vadd.f32 %v707, %v717
  %v722 = vadd.f32 %v710, %v720
  %s723 = scalar_lea.vmem %s6, 56
  %v724 = vld [vmem:[%s723] sm:$0xff]
  %s725 = scalar_lea.vmem %s6, 128
  %v726 = vld [vmem:[%s725] sm:$0xff]
  %v727 = vmul.f32 %v662, %v724
  %v728 = vmul.f32 %v663, %v726
  %v729 = vsub.f32 %v727, %v728
  %v730 = vmul.f32 %v662, %v726
  %v731 = vmul.f32 %v663, %v724
  %v732 = vadd.f32 %v730, %v731
  %v733 = vadd.f32 %v721, %v729
  %v734 = vadd.f32 %v722, %v732
  %v735 = vmul.f32 %v177, %v733
  %v736 = vadd.f32 %v214, %v735
  %v737 = vmul.f32 %v177, %v734
  %v738 = vadd.f32 %v215, %v737
  %s739 = scalar_lea.vmem %s6, 16
  %v740 = vld [vmem:[%s739] sm:$0xff]
  %s741 = scalar_lea.vmem %s6, 88
  %v742 = vld [vmem:[%s741] sm:$0xff]
  %v743 = vmul.f32 %v594, %v740
  %v744 = vmul.f32 %v595, %v742
  %v745 = vsub.f32 %v743, %v744
  %v746 = vmul.f32 %v594, %v742
  %v747 = vmul.f32 %v595, %v740
  %v748 = vadd.f32 %v746, %v747
  %s749 = scalar_lea.vmem %s6, 40
  %v750 = vld [vmem:[%s749] sm:$0xff]
  %s751 = scalar_lea.vmem %s6, 112
  %v752 = vld [vmem:[%s751] sm:$0xff]
  %v753 = vmul.f32 %v628, %v750
  %v754 = vmul.f32 %v629, %v752
  %v755 = vsub.f32 %v753, %v754
  %v756 = vmul.f32 %v628, %v752
  %v757 = vmul.f32 %v629, %v750
  %v758 = vadd.f32 %v756, %v757
  %v759 = vadd.f32 %v745, %v755
  %v760 = vadd.f32 %v748, %v758
  %s761 = scalar_lea.vmem %s6, 64
  %v762 = vld [vmem:[%s761] sm:$0xff]
  %s763 = scalar_lea.vmem %s6, 136
  %v764 = vld [vmem:[%s763] sm:$0xff]
  %v765 = vmul.f32 %v662, %v762
  %v766 = vmul.f32 %v663, %v764
  %v767 = vsub.f32 %v765, %v766
  %v768 = vmul.f32 %v662, %v764
  %v769 = vmul.f32 %v663, %v762
  %v770 = vadd.f32 %v768, %v769
  %v771 = vadd.f32 %v759, %v767
  %v772 = vadd.f32 %v760, %v770
  %v773 = vmul.f32 %v177, %v771
  %v774 = vadd.f32 %v250, %v773
  %v775 = vmul.f32 %v177, %v772
  %v776 = vadd.f32 %v251, %v775
  %s777 = scalar_lea.vmem %s4, 8
  %v778 = vld [vmem:[%s777] sm:$0xff]
  %s779 = scalar_lea.vmem %s4, 80
  %v780 = vld [vmem:[%s779] sm:$0xff]
  %v781 = vmul.f32 %v778, %v555
  %v782 = vmul.f32 %v780, %v557
  %v783 = vadd.f32 %v781, %v782
  %v784 = vmul.f32 %v778, %v557
  %v785 = vmul.f32 %v780, %v555
  %v786 = vsub.f32 %v784, %v785
  %s787 = scalar_lea.vmem %s4, 32
  %v788 = vld [vmem:[%s787] sm:$0xff]
  %s789 = scalar_lea.vmem %s4, 104
  %v790 = vld [vmem:[%s789] sm:$0xff]
  %v791 = vmul.f32 %v788, %v569
  %v792 = vmul.f32 %v790, %v571
  %v793 = vadd.f32 %v791, %v792
  %v794 = vmul.f32 %v788, %v571
  %v795 = vmul.f32 %v790, %v569
  %v796 = vsub.f32 %v794, %v795
  %v797 = vadd.f32 %v783, %v793
  %v798 = vadd.f32 %v786, %v796
  %s799 = scalar_lea.vmem %s4, 56
  %v800 = vld [vmem:[%s799] sm:$0xff]
  %s801 = scalar_lea.vmem %s4, 128
  %v802 = vld [vmem:[%s801] sm:$0xff]
  %v803 = vmul.f32 %v800, %v585
  %v804 = vmul.f32 %v802, %v587
  %v805 = vadd.f32 %v803, %v804
  %v806 = vmul.f32 %v800, %v587
  %v807 = vmul.f32 %v802, %v585
  %v808 = vsub.f32 %v806, %v807
  %v809 = vadd.f32 %v797, %v805
  %v810 = vadd.f32 %v798, %v808
  %v811 = vmul.f32 %v778, %v597
  %v812 = vmul.f32 %v780, %v599
  %v813 = vadd.f32 %v811, %v812
  %v814 = vmul.f32 %v778, %v599
  %v815 = vmul.f32 %v780, %v597
  %v816 = vsub.f32 %v814, %v815
  %v817 = vmul.f32 %v788, %v607
  %v818 = vmul.f32 %v790, %v609
  %v819 = vadd.f32 %v817, %v818
  %v820 = vmul.f32 %v788, %v609
  %v821 = vmul.f32 %v790, %v607
  %v822 = vsub.f32 %v820, %v821
  %v823 = vadd.f32 %v813, %v819
  %v824 = vadd.f32 %v816, %v822
  %v825 = vmul.f32 %v800, %v619
  %v826 = vmul.f32 %v802, %v621
  %v827 = vadd.f32 %v825, %v826
  %v828 = vmul.f32 %v800, %v621
  %v829 = vmul.f32 %v802, %v619
  %v830 = vsub.f32 %v828, %v829
  %v831 = vadd.f32 %v823, %v827
  %v832 = vadd.f32 %v824, %v830
  %v833 = vmul.f32 %v778, %v631
  %v834 = vmul.f32 %v780, %v633
  %v835 = vadd.f32 %v833, %v834
  %v836 = vmul.f32 %v778, %v633
  %v837 = vmul.f32 %v780, %v631
  %v838 = vsub.f32 %v836, %v837
  %v839 = vmul.f32 %v788, %v641
  %v840 = vmul.f32 %v790, %v643
  %v841 = vadd.f32 %v839, %v840
  %v842 = vmul.f32 %v788, %v643
  %v843 = vmul.f32 %v790, %v641
  %v844 = vsub.f32 %v842, %v843
  %v845 = vadd.f32 %v835, %v841
  %v846 = vadd.f32 %v838, %v844
  %v847 = vmul.f32 %v800, %v653
  %v848 = vmul.f32 %v802, %v655
  %v849 = vadd.f32 %v847, %v848
  %v850 = vmul.f32 %v800, %v655
  %v851 = vmul.f32 %v802, %v653
  %v852 = vsub.f32 %v850, %v851
  %v853 = vadd.f32 %v845, %v849
  %v854 = vadd.f32 %v846, %v852
  %v855 = vmul.f32 %v809, %v664
  %v856 = vmul.f32 %v810, %v666
  %v857 = vsub.f32 %v855, %v856
  %v858 = vmul.f32 %v809, %v666
  %v859 = vmul.f32 %v810, %v664
  %v860 = vadd.f32 %v858, %v859
  %v861 = vmul.f32 %v831, %v674
  %v862 = vmul.f32 %v832, %v676
  %v863 = vsub.f32 %v861, %v862
  %v864 = vmul.f32 %v831, %v676
  %v865 = vmul.f32 %v832, %v674
  %v866 = vadd.f32 %v864, %v865
  %v867 = vadd.f32 %v857, %v863
  %v868 = vadd.f32 %v860, %v866
  %v869 = vmul.f32 %v853, %v686
  %v870 = vmul.f32 %v854, %v688
  %v871 = vsub.f32 %v869, %v870
  %v872 = vmul.f32 %v853, %v688
  %v873 = vmul.f32 %v854, %v686
  %v874 = vadd.f32 %v872, %v873
  %v875 = vadd.f32 %v867, %v871
  %v876 = vadd.f32 %v868, %v874
  %v877 = vmul.f32 %v177, %v875
  %v878 = vadd.f32 %v352, %v877
  %v879 = vmul.f32 %v177, %v876
  %v880 = vadd.f32 %v353, %v879
  %v881 = vmul.f32 %v809, %v702
  %v882 = vmul.f32 %v810, %v704
  %v883 = vsub.f32 %v881, %v882
  %v884 = vmul.f32 %v809, %v704
  %v885 = vmul.f32 %v810, %v702
  %v886 = vadd.f32 %v884, %v885
  %v887 = vmul.f32 %v831, %v712
  %v888 = vmul.f32 %v832, %v714
  %v889 = vsub.f32 %v887, %v888
  %v890 = vmul.f32 %v831, %v714
  %v891 = vmul.f32 %v832, %v712
  %v892 = vadd.f32 %v890, %v891
  %v893 = vadd.f32 %v883, %v889
  %v894 = vadd.f32 %v886, %v892
  %v895 = vmul.f32 %v853, %v724
  %v896 = vmul.f32 %v854, %v726
  %v897 = vsub.f32 %v895, %v896
  %v898 = vmul.f32 %v853, %v726
  %v899 = vmul.f32 %v854, %v724
  %v900 = vadd.f32 %v898, %v899
  %v901 = vadd.f32 %v893, %v897
  %v902 = vadd.f32 %v894, %v900
  %v903 = vmul.f32 %v177, %v901
  %v904 = vadd.f32 %v376, %v903
  %v905 = vmul.f32 %v177, %v902
  %v906 = vadd.f32 %v377, %v905
  %v907 = vmul.f32 %v809, %v740
  %v908 = vmul.f32 %v810, %v742
  %v909 = vsub.f32 %v907, %v908
  %v910 = vmul.f32 %v809, %v742
  %v911 = vmul.f32 %v810, %v740
  %v912 = vadd.f32 %v910, %v911
  %v913 = vmul.f32 %v831, %v750
  %v914 = vmul.f32 %v832, %v752
  %v915 = vsub.f32 %v913, %v914
  %v916 = vmul.f32 %v831, %v752
  %v917 = vmul.f32 %v832, %v750
  %v918 = vadd.f32 %v916, %v917
  %v919 = vadd.f32 %v909, %v915
  %v920 = vadd.f32 %v912, %v918
  %v921 = vmul.f32 %v853, %v762
  %v922 = vmul.f32 %v854, %v764
  %v923 = vsub.f32 %v921, %v922
  %v924 = vmul.f32 %v853, %v764
  %v925 = vmul.f32 %v854, %v762
  %v926 = vadd.f32 %v924, %v925
  %v927 = vadd.f32 %v919, %v923
  %v928 = vadd.f32 %v920, %v926
  %v929 = vmul.f32 %v177, %v927
  %v930 = vadd.f32 %v400, %v929
  %v931 = vmul.f32 %v177, %v928
  %v932 = vadd.f32 %v401, %v931
  %s933 = scalar_lea.vmem %s4, 16
  %v934 = vld [vmem:[%s933] sm:$0xff]
  %s935 = scalar_lea.vmem %s4, 88
  %v936 = vld [vmem:[%s935] sm:$0xff]
  %v937 = vmul.f32 %v934, %v555
  %v938 = vmul.f32 %v936, %v557
  %v939 = vadd.f32 %v937, %v938
  %v940 = vmul.f32 %v934, %v557
  %v941 = vmul.f32 %v936, %v555
  %v942 = vsub.f32 %v940, %v941
  %s943 = scalar_lea.vmem %s4, 40
  %v944 = vld [vmem:[%s943] sm:$0xff]
  %s945 = scalar_lea.vmem %s4, 112
  %v946 = vld [vmem:[%s945] sm:$0xff]
  %v947 = vmul.f32 %v944, %v569
  %v948 = vmul.f32 %v946, %v571
  %v949 = vadd.f32 %v947, %v948
  %v950 = vmul.f32 %v944, %v571
  %v951 = vmul.f32 %v946, %v569
  %v952 = vsub.f32 %v950, %v951
  %v953 = vadd.f32 %v939, %v949
  %v954 = vadd.f32 %v942, %v952
  %s955 = scalar_lea.vmem %s4, 64
  %v956 = vld [vmem:[%s955] sm:$0xff]
  %s957 = scalar_lea.vmem %s4, 136
  %v958 = vld [vmem:[%s957] sm:$0xff]
  %v959 = vmul.f32 %v956, %v585
  %v960 = vmul.f32 %v958, %v587
  %v961 = vadd.f32 %v959, %v960
  %v962 = vmul.f32 %v956, %v587
  %v963 = vmul.f32 %v958, %v585
  %v964 = vsub.f32 %v962, %v963
  %v965 = vadd.f32 %v953, %v961
  %v966 = vadd.f32 %v954, %v964
  %v967 = vmul.f32 %v934, %v597
  %v968 = vmul.f32 %v936, %v599
  %v969 = vadd.f32 %v967, %v968
  %v970 = vmul.f32 %v934, %v599
  %v971 = vmul.f32 %v936, %v597
  %v972 = vsub.f32 %v970, %v971
  %v973 = vmul.f32 %v944, %v607
  %v974 = vmul.f32 %v946, %v609
  %v975 = vadd.f32 %v973, %v974
  %v976 = vmul.f32 %v944, %v609
  %v977 = vmul.f32 %v946, %v607
  %v978 = vsub.f32 %v976, %v977
  %v979 = vadd.f32 %v969, %v975
  %v980 = vadd.f32 %v972, %v978
  %v981 = vmul.f32 %v956, %v619
  %v982 = vmul.f32 %v958, %v621
  %v983 = vadd.f32 %v981, %v982
  %v984 = vmul.f32 %v956, %v621
  %v985 = vmul.f32 %v958, %v619
  %v986 = vsub.f32 %v984, %v985
  %v987 = vadd.f32 %v979, %v983
  %v988 = vadd.f32 %v980, %v986
  %v989 = vmul.f32 %v934, %v631
  %v990 = vmul.f32 %v936, %v633
  %v991 = vadd.f32 %v989, %v990
  %v992 = vmul.f32 %v934, %v633
  %v993 = vmul.f32 %v936, %v631
  %v994 = vsub.f32 %v992, %v993
  %v995 = vmul.f32 %v944, %v641
  %v996 = vmul.f32 %v946, %v643
  %v997 = vadd.f32 %v995, %v996
  %v998 = vmul.f32 %v944, %v643
  %v999 = vmul.f32 %v946, %v641
  %v1000 = vsub.f32 %v998, %v999
  %v1001 = vadd.f32 %v991, %v997
  %v1002 = vadd.f32 %v994, %v1000
  %v1003 = vmul.f32 %v956, %v653
  %v1004 = vmul.f32 %v958, %v655
  %v1005 = vadd.f32 %v1003, %v1004
  %v1006 = vmul.f32 %v956, %v655
  %v1007 = vmul.f32 %v958, %v653
  %v1008 = vsub.f32 %v1006, %v1007
  %v1009 = vadd.f32 %v1001, %v1005
  %v1010 = vadd.f32 %v1002, %v1008
  %v1011 = vmul.f32 %v965, %v664
  %v1012 = vmul.f32 %v966, %v666
  %v1013 = vsub.f32 %v1011, %v1012
  %v1014 = vmul.f32 %v965, %v666
  %v1015 = vmul.f32 %v966, %v664
  %v1016 = vadd.f32 %v1014, %v1015
  %v1017 = vmul.f32 %v987, %v674
  %v1018 = vmul.f32 %v988, %v676
  %v1019 = vsub.f32 %v1017, %v1018
  %v1020 = vmul.f32 %v987, %v676
  %v1021 = vmul.f32 %v988, %v674
  %v1022 = vadd.f32 %v1020, %v1021
  %v1023 = vadd.f32 %v1013, %v1019
  %v1024 = vadd.f32 %v1016, %v1022
  %v1025 = vmul.f32 %v1009, %v686
  %v1026 = vmul.f32 %v1010, %v688
  %v1027 = vsub.f32 %v1025, %v1026
  %v1028 = vmul.f32 %v1009, %v688
  %v1029 = vmul.f32 %v1010, %v686
  %v1030 = vadd.f32 %v1028, %v1029
  %v1031 = vadd.f32 %v1023, %v1027
  %v1032 = vadd.f32 %v1024, %v1030
  %v1033 = vmul.f32 %v177, %v1031
  %v1034 = vadd.f32 %v502, %v1033
  %v1035 = vmul.f32 %v177, %v1032
  %v1036 = vadd.f32 %v503, %v1035
  %v1037 = vmul.f32 %v965, %v702
  %v1038 = vmul.f32 %v966, %v704
  %v1039 = vsub.f32 %v1037, %v1038
  %v1040 = vmul.f32 %v965, %v704
  %v1041 = vmul.f32 %v966, %v702
  %v1042 = vadd.f32 %v1040, %v1041
  %v1043 = vmul.f32 %v987, %v712
  %v1044 = vmul.f32 %v988, %v714
  %v1045 = vsub.f32 %v1043, %v1044
  %v1046 = vmul.f32 %v987, %v714
  %v1047 = vmul.f32 %v988, %v712
  %v1048 = vadd.f32 %v1046, %v1047
  %v1049 = vadd.f32 %v1039, %v1045
  %v1050 = vadd.f32 %v1042, %v1048
  %v1051 = vmul.f32 %v1009, %v724
  %v1052 = vmul.f32 %v1010, %v726
  %v1053 = vsub.f32 %v1051, %v1052
  %v1054 = vmul.f32 %v1009, %v726
  %v1055 = vmul.f32 %v1010, %v724
  %v1056 = vadd.f32 %v1054, %v1055
  %v1057 = vadd.f32 %v1049, %v1053
  %v1058 = vadd.f32 %v1050, %v1056
  %v1059 = vmul.f32 %v177, %v1057
  %v1060 = vadd.f32 %v526, %v1059
  %v1061 = vmul.f32 %v177, %v1058
  %v1062 = vadd.f32 %v527, %v1061
  %v1063 = vmul.f32 %v965, %v740
  %v1064 = vmul.f32 %v966, %v742
  %v1065 = vsub.f32 %v1063, %v1064
  %v1066 = vmul.f32 %v965, %v742
  %v1067 = vmul.f32 %v966, %v740
  %v1068 = vadd.f32 %v1066, %v1067
  %v1069 = vmul.f32 %v987, %v750
  %v1070 = vmul.f32 %v988, %v752
  %v1071 = vsub.f32 %v1069, %v1070
  %v1072 = vmul.f32 %v987, %v752
  %v1073 = vmul.f32 %v988, %v750
  %v1074 = vadd.f32 %v1072, %v1073
  %v1075 = vadd.f32 %v1065, %v1071
  %v1076 = vadd.f32 %v1068, %v1074
  %v1077 = vmul.f32 %v1009, %v762
  %v1078 = vmul.f32 %v1010, %v764
  %v1079 = vsub.f32 %v1077, %v1078
  %v1080 = vmul.f32 %v1009, %v764
  %v1081 = vmul.f32 %v1010, %v762
  %v1082 = vadd.f32 %v1080, %v1081
  %v1083 = vadd.f32 %v1075, %v1079
  %v1084 = vadd.f32 %v1076, %v1082
  %v1085 = vmul.f32 %v177, %v1083
  %v1086 = vadd.f32 %v550, %v1085
  %v1087 = vmul.f32 %v177, %v1084
  %v1088 = vadd.f32 %v551, %v1087
  %1089 = vst [vmem:[%s8] sm:$0xff] %v698
  %s1090 = scalar_lea.vmem %s8, 72
  %1091 = vst [vmem:[%s1090] sm:$0xff] %v700
  %s1092 = scalar_lea.vmem %s8, 8
  %1093 = vst [vmem:[%s1092] sm:$0xff] %v736
  %s1094 = scalar_lea.vmem %s8, 80
  %1095 = vst [vmem:[%s1094] sm:$0xff] %v738
  %s1096 = scalar_lea.vmem %s8, 16
  %1097 = vst [vmem:[%s1096] sm:$0xff] %v774
  %s1098 = scalar_lea.vmem %s8, 88
  %1099 = vst [vmem:[%s1098] sm:$0xff] %v776
  %s1100 = scalar_lea.vmem %s8, 24
  %1101 = vst [vmem:[%s1100] sm:$0xff] %v878
  %s1102 = scalar_lea.vmem %s8, 96
  %1103 = vst [vmem:[%s1102] sm:$0xff] %v880
  %s1104 = scalar_lea.vmem %s8, 32
  %1105 = vst [vmem:[%s1104] sm:$0xff] %v904
  %s1106 = scalar_lea.vmem %s8, 104
  %1107 = vst [vmem:[%s1106] sm:$0xff] %v906
  %s1108 = scalar_lea.vmem %s8, 40
  %1109 = vst [vmem:[%s1108] sm:$0xff] %v930
  %s1110 = scalar_lea.vmem %s8, 112
  %1111 = vst [vmem:[%s1110] sm:$0xff] %v932
  %s1112 = scalar_lea.vmem %s8, 48
  %1113 = vst [vmem:[%s1112] sm:$0xff] %v1034
  %s1114 = scalar_lea.vmem %s8, 120
  %1115 = vst [vmem:[%s1114] sm:$0xff] %v1036
  %s1116 = scalar_lea.vmem %s8, 56
  %1117 = vst [vmem:[%s1116] sm:$0xff] %v1060
  %s1118 = scalar_lea.vmem %s8, 128
  %1119 = vst [vmem:[%s1118] sm:$0xff] %v1062
  %s1120 = scalar_lea.vmem %s8, 64
  %1121 = vst [vmem:[%s1120] sm:$0xff] %v1086
  %s1122 = scalar_lea.vmem %s8, 136
  %1123 = vst [vmem:[%s1122] sm:$0xff] %v1088
  %v1124 = vld [vmem:[%s7] sm:$0xff]
  %s1125 = scalar_lea.vmem %s7, 72
  %v1126 = vld [vmem:[%s1125] sm:$0xff]
  %v1127 = vmul.f32 %v698, %v1124
  %v1128 = vmul.f32 %v700, %v1126
  %v1129 = vadd.f32 %v1127, %v1128
  %v1130 = vmul.f32 %v700, %v1124
  %v1131 = vmul.f32 %v698, %v1126
  %v1132 = vsub.f32 %v1130, %v1131
  %s1133 = scalar_lea.vmem %s7, 8
  %v1134 = vld [vmem:[%s1133] sm:$0xff]
  %s1135 = scalar_lea.vmem %s7, 80
  %v1136 = vld [vmem:[%s1135] sm:$0xff]
  %v1137 = vmul.f32 %v736, %v1134
  %v1138 = vmul.f32 %v738, %v1136
  %v1139 = vadd.f32 %v1137, %v1138
  %v1140 = vmul.f32 %v738, %v1134
  %v1141 = vmul.f32 %v736, %v1136
  %v1142 = vsub.f32 %v1140, %v1141
  %v1143 = vadd.f32 %v1129, %v1139
  %v1144 = vadd.f32 %v1132, %v1142
  %s1145 = scalar_lea.vmem %s7, 16
  %v1146 = vld [vmem:[%s1145] sm:$0xff]
  %s1147 = scalar_lea.vmem %s7, 88
  %v1148 = vld [vmem:[%s1147] sm:$0xff]
  %v1149 = vmul.f32 %v774, %v1146
  %v1150 = vmul.f32 %v776, %v1148
  %v1151 = vadd.f32 %v1149, %v1150
  %v1152 = vmul.f32 %v776, %v1146
  %v1153 = vmul.f32 %v774, %v1148
  %v1154 = vsub.f32 %v1152, %v1153
  %v1155 = vadd.f32 %v1143, %v1151
  %v1156 = vadd.f32 %v1144, %v1154
  %s1157 = scalar_lea.vmem %s7, 24
  %v1158 = vld [vmem:[%s1157] sm:$0xff]
  %s1159 = scalar_lea.vmem %s7, 96
  %v1160 = vld [vmem:[%s1159] sm:$0xff]
  %v1161 = vmul.f32 %v698, %v1158
  %v1162 = vmul.f32 %v700, %v1160
  %v1163 = vadd.f32 %v1161, %v1162
  %v1164 = vmul.f32 %v700, %v1158
  %v1165 = vmul.f32 %v698, %v1160
  %v1166 = vsub.f32 %v1164, %v1165
  %s1167 = scalar_lea.vmem %s7, 32
  %v1168 = vld [vmem:[%s1167] sm:$0xff]
  %s1169 = scalar_lea.vmem %s7, 104
  %v1170 = vld [vmem:[%s1169] sm:$0xff]
  %v1171 = vmul.f32 %v736, %v1168
  %v1172 = vmul.f32 %v738, %v1170
  %v1173 = vadd.f32 %v1171, %v1172
  %v1174 = vmul.f32 %v738, %v1168
  %v1175 = vmul.f32 %v736, %v1170
  %v1176 = vsub.f32 %v1174, %v1175
  %v1177 = vadd.f32 %v1163, %v1173
  %v1178 = vadd.f32 %v1166, %v1176
  %s1179 = scalar_lea.vmem %s7, 40
  %v1180 = vld [vmem:[%s1179] sm:$0xff]
  %s1181 = scalar_lea.vmem %s7, 112
  %v1182 = vld [vmem:[%s1181] sm:$0xff]
  %v1183 = vmul.f32 %v774, %v1180
  %v1184 = vmul.f32 %v776, %v1182
  %v1185 = vadd.f32 %v1183, %v1184
  %v1186 = vmul.f32 %v776, %v1180
  %v1187 = vmul.f32 %v774, %v1182
  %v1188 = vsub.f32 %v1186, %v1187
  %v1189 = vadd.f32 %v1177, %v1185
  %v1190 = vadd.f32 %v1178, %v1188
  %s1191 = scalar_lea.vmem %s7, 48
  %v1192 = vld [vmem:[%s1191] sm:$0xff]
  %s1193 = scalar_lea.vmem %s7, 120
  %v1194 = vld [vmem:[%s1193] sm:$0xff]
  %v1195 = vmul.f32 %v698, %v1192
  %v1196 = vmul.f32 %v700, %v1194
  %v1197 = vadd.f32 %v1195, %v1196
  %v1198 = vmul.f32 %v700, %v1192
  %v1199 = vmul.f32 %v698, %v1194
  %v1200 = vsub.f32 %v1198, %v1199
  %s1201 = scalar_lea.vmem %s7, 56
  %v1202 = vld [vmem:[%s1201] sm:$0xff]
  %s1203 = scalar_lea.vmem %s7, 128
  %v1204 = vld [vmem:[%s1203] sm:$0xff]
  %v1205 = vmul.f32 %v736, %v1202
  %v1206 = vmul.f32 %v738, %v1204
  %v1207 = vadd.f32 %v1205, %v1206
  %v1208 = vmul.f32 %v738, %v1202
  %v1209 = vmul.f32 %v736, %v1204
  %v1210 = vsub.f32 %v1208, %v1209
  %v1211 = vadd.f32 %v1197, %v1207
  %v1212 = vadd.f32 %v1200, %v1210
  %s1213 = scalar_lea.vmem %s7, 64
  %v1214 = vld [vmem:[%s1213] sm:$0xff]
  %s1215 = scalar_lea.vmem %s7, 136
  %v1216 = vld [vmem:[%s1215] sm:$0xff]
  %v1217 = vmul.f32 %v774, %v1214
  %v1218 = vmul.f32 %v776, %v1216
  %v1219 = vadd.f32 %v1217, %v1218
  %v1220 = vmul.f32 %v776, %v1214
  %v1221 = vmul.f32 %v774, %v1216
  %v1222 = vsub.f32 %v1220, %v1221
  %v1223 = vadd.f32 %v1211, %v1219
  %v1224 = vadd.f32 %v1212, %v1222
  %v1225 = vmul.f32 %v878, %v1124
  %v1226 = vmul.f32 %v880, %v1126
  %v1227 = vadd.f32 %v1225, %v1226
  %v1228 = vmul.f32 %v880, %v1124
  %v1229 = vmul.f32 %v878, %v1126
  %v1230 = vsub.f32 %v1228, %v1229
  %v1231 = vmul.f32 %v904, %v1134
  %v1232 = vmul.f32 %v906, %v1136
  %v1233 = vadd.f32 %v1231, %v1232
  %v1234 = vmul.f32 %v906, %v1134
  %v1235 = vmul.f32 %v904, %v1136
  %v1236 = vsub.f32 %v1234, %v1235
  %v1237 = vadd.f32 %v1227, %v1233
  %v1238 = vadd.f32 %v1230, %v1236
  %v1239 = vmul.f32 %v930, %v1146
  %v1240 = vmul.f32 %v932, %v1148
  %v1241 = vadd.f32 %v1239, %v1240
  %v1242 = vmul.f32 %v932, %v1146
  %v1243 = vmul.f32 %v930, %v1148
  %v1244 = vsub.f32 %v1242, %v1243
  %v1245 = vadd.f32 %v1237, %v1241
  %v1246 = vadd.f32 %v1238, %v1244
  %v1247 = vmul.f32 %v878, %v1158
  %v1248 = vmul.f32 %v880, %v1160
  %v1249 = vadd.f32 %v1247, %v1248
  %v1250 = vmul.f32 %v880, %v1158
  %v1251 = vmul.f32 %v878, %v1160
  %v1252 = vsub.f32 %v1250, %v1251
  %v1253 = vmul.f32 %v904, %v1168
  %v1254 = vmul.f32 %v906, %v1170
  %v1255 = vadd.f32 %v1253, %v1254
  %v1256 = vmul.f32 %v906, %v1168
  %v1257 = vmul.f32 %v904, %v1170
  %v1258 = vsub.f32 %v1256, %v1257
  %v1259 = vadd.f32 %v1249, %v1255
  %v1260 = vadd.f32 %v1252, %v1258
  %v1261 = vmul.f32 %v930, %v1180
  %v1262 = vmul.f32 %v932, %v1182
  %v1263 = vadd.f32 %v1261, %v1262
  %v1264 = vmul.f32 %v932, %v1180
  %v1265 = vmul.f32 %v930, %v1182
  %v1266 = vsub.f32 %v1264, %v1265
  %v1267 = vadd.f32 %v1259, %v1263
  %v1268 = vadd.f32 %v1260, %v1266
  %v1269 = vmul.f32 %v878, %v1192
  %v1270 = vmul.f32 %v880, %v1194
  %v1271 = vadd.f32 %v1269, %v1270
  %v1272 = vmul.f32 %v880, %v1192
  %v1273 = vmul.f32 %v878, %v1194
  %v1274 = vsub.f32 %v1272, %v1273
  %v1275 = vmul.f32 %v904, %v1202
  %v1276 = vmul.f32 %v906, %v1204
  %v1277 = vadd.f32 %v1275, %v1276
  %v1278 = vmul.f32 %v906, %v1202
  %v1279 = vmul.f32 %v904, %v1204
  %v1280 = vsub.f32 %v1278, %v1279
  %v1281 = vadd.f32 %v1271, %v1277
  %v1282 = vadd.f32 %v1274, %v1280
  %v1283 = vmul.f32 %v930, %v1214
  %v1284 = vmul.f32 %v932, %v1216
  %v1285 = vadd.f32 %v1283, %v1284
  %v1286 = vmul.f32 %v932, %v1214
  %v1287 = vmul.f32 %v930, %v1216
  %v1288 = vsub.f32 %v1286, %v1287
  %v1289 = vadd.f32 %v1281, %v1285
  %v1290 = vadd.f32 %v1282, %v1288
  %v1291 = vmul.f32 %v1034, %v1124
  %v1292 = vmul.f32 %v1036, %v1126
  %v1293 = vadd.f32 %v1291, %v1292
  %v1294 = vmul.f32 %v1036, %v1124
  %v1295 = vmul.f32 %v1034, %v1126
  %v1296 = vsub.f32 %v1294, %v1295
  %v1297 = vmul.f32 %v1060, %v1134
  %v1298 = vmul.f32 %v1062, %v1136
  %v1299 = vadd.f32 %v1297, %v1298
  %v1300 = vmul.f32 %v1062, %v1134
  %v1301 = vmul.f32 %v1060, %v1136
  %v1302 = vsub.f32 %v1300, %v1301
  %v1303 = vadd.f32 %v1293, %v1299
  %v1304 = vadd.f32 %v1296, %v1302
  %v1305 = vmul.f32 %v1086, %v1146
  %v1306 = vmul.f32 %v1088, %v1148
  %v1307 = vadd.f32 %v1305, %v1306
  %v1308 = vmul.f32 %v1088, %v1146
  %v1309 = vmul.f32 %v1086, %v1148
  %v1310 = vsub.f32 %v1308, %v1309
  %v1311 = vadd.f32 %v1303, %v1307
  %v1312 = vadd.f32 %v1304, %v1310
  %v1313 = vmul.f32 %v1034, %v1158
  %v1314 = vmul.f32 %v1036, %v1160
  %v1315 = vadd.f32 %v1313, %v1314
  %v1316 = vmul.f32 %v1036, %v1158
  %v1317 = vmul.f32 %v1034, %v1160
  %v1318 = vsub.f32 %v1316, %v1317
  %v1319 = vmul.f32 %v1060, %v1168
  %v1320 = vmul.f32 %v1062, %v1170
  %v1321 = vadd.f32 %v1319, %v1320
  %v1322 = vmul.f32 %v1062, %v1168
  %v1323 = vmul.f32 %v1060, %v1170
  %v1324 = vsub.f32 %v1322, %v1323
  %v1325 = vadd.f32 %v1315, %v1321
  %v1326 = vadd.f32 %v1318, %v1324
  %v1327 = vmul.f32 %v1086, %v1180
  %v1328 = vmul.f32 %v1088, %v1182
  %v1329 = vadd.f32 %v1327, %v1328
  %v1330 = vmul.f32 %v1088, %v1180
  %v1331 = vmul.f32 %v1086, %v1182
  %v1332 = vsub.f32 %v1330, %v1331
  %v1333 = vadd.f32 %v1325, %v1329
  %v1334 = vadd.f32 %v1326, %v1332
  %v1335 = vmul.f32 %v1034, %v1192
  %v1336 = vmul.f32 %v1036, %v1194
  %v1337 = vadd.f32 %v1335, %v1336
  %v1338 = vmul.f32 %v1036, %v1192
  %v1339 = vmul.f32 %v1034, %v1194
  %v1340 = vsub.f32 %v1338, %v1339
  %v1341 = vmul.f32 %v1060, %v1202
  %v1342 = vmul.f32 %v1062, %v1204
  %v1343 = vadd.f32 %v1341, %v1342
  %v1344 = vmul.f32 %v1062, %v1202
  %v1345 = vmul.f32 %v1060, %v1204
  %v1346 = vsub.f32 %v1344, %v1345
  %v1347 = vadd.f32 %v1337, %v1343
  %v1348 = vadd.f32 %v1340, %v1346
  %v1349 = vmul.f32 %v1086, %v1214
  %v1350 = vmul.f32 %v1088, %v1216
  %v1351 = vadd.f32 %v1349, %v1350
  %v1352 = vmul.f32 %v1088, %v1214
  %v1353 = vmul.f32 %v1086, %v1216
  %v1354 = vsub.f32 %v1352, %v1353
  %v1355 = vadd.f32 %v1347, %v1351
  %v1356 = vadd.f32 %v1348, %v1354
  %v1357 = vsub.f32 %v1155, %v1155
  %v1358 = vsub.f32 %v1245, %v1189
  %v1359 = vsub.f32 %v1311, %v1223
  %v1360 = vsub.f32 %v1189, %v1245
  %v1361 = vsub.f32 %v1267, %v1267
  %v1362 = vsub.f32 %v1333, %v1289
  %v1363 = vsub.f32 %v1223, %v1311
  %v1364 = vsub.f32 %v1289, %v1333
  %v1365 = vsub.f32 %v1355, %v1355
  %v1366 = vsub.f32 0.0, %v1156
  %v1367 = vsub.f32 %v1366, %v1156
  %v1368 = vsub.f32 0.0, %v1246
  %v1369 = vsub.f32 %v1368, %v1190
  %v1370 = vsub.f32 0.0, %v1312
  %v1371 = vsub.f32 %v1370, %v1224
  %v1372 = vsub.f32 0.0, %v1190
  %v1373 = vsub.f32 %v1372, %v1246
  %v1374 = vsub.f32 0.0, %v1268
  %v1375 = vsub.f32 %v1374, %v1268
  %v1376 = vsub.f32 0.0, %v1334
  %v1377 = vsub.f32 %v1376, %v1290
  %v1378 = vsub.f32 0.0, %v1224
  %v1379 = vsub.f32 %v1378, %v1312
  %v1380 = vsub.f32 0.0, %v1290
  %v1381 = vsub.f32 %v1380, %v1334
  %v1382 = vsub.f32 0.0, %v1356
  %v1383 = vsub.f32 %v1382, %v1356
  %v1384 = vadd.f32 %v1357, %v1361
  %v1385 = vadd.f32 %v1384, %v1365
  %v1386 = vmul.f32 %v1385, 0.16666667
  %v1387 = vadd.f32 %v1367, %v1375
  %v1388 = vadd.f32 %v1387, %v1383
  %v1389 = vmul.f32 %v1388, 0.16666667
  %v1390 = vmul.f32 %v1367, -0.5
  %v1391 = vadd.f32 %v1390, %v1389
  %v1392 = vmul.f32 %v1369, -0.5
  %v1393 = vadd.f32 %v1392, %v1389
  %v1394 = vmul.f32 %v1371, -0.5
  %v1395 = vadd.f32 %v1394, %v1389
  %v1396 = vmul.f32 %v1373, -0.5
  %v1397 = vadd.f32 %v1396, %v1389
  %v1398 = vmul.f32 %v1375, -0.5
  %v1399 = vadd.f32 %v1398, %v1389
  %v1400 = vmul.f32 %v1377, -0.5
  %v1401 = vadd.f32 %v1400, %v1389
  %v1402 = vmul.f32 %v1379, -0.5
  %v1403 = vadd.f32 %v1402, %v1389
  %v1404 = vmul.f32 %v1381, -0.5
  %v1405 = vadd.f32 %v1404, %v1389
  %v1406 = vmul.f32 %v1383, -0.5
  %v1407 = vadd.f32 %v1406, %v1389
  %v1408 = vmul.f32 %v1357, 0.5
  %v1409 = vsub.f32 %v1408, %v1386
  %v1410 = vmul.f32 %v1358, 0.5
  %v1411 = vsub.f32 %v1410, %v1386
  %v1412 = vmul.f32 %v1359, 0.5
  %v1413 = vsub.f32 %v1412, %v1386
  %v1414 = vmul.f32 %v1360, 0.5
  %v1415 = vsub.f32 %v1414, %v1386
  %v1416 = vmul.f32 %v1361, 0.5
  %v1417 = vsub.f32 %v1416, %v1386
  %v1418 = vmul.f32 %v1362, 0.5
  %v1419 = vsub.f32 %v1418, %v1386
  %v1420 = vmul.f32 %v1363, 0.5
  %v1421 = vsub.f32 %v1420, %v1386
  %v1422 = vmul.f32 %v1364, 0.5
  %v1423 = vsub.f32 %v1422, %v1386
  %v1424 = vmul.f32 %v1365, 0.5
  %v1425 = vsub.f32 %v1424, %v1386
  %1426 = vst [vmem:[%s9] sm:$0xff] %v1391
  %s1427 = scalar_lea.vmem %s9, 72
  %1428 = vst [vmem:[%s1427] sm:$0xff] %v1409
  %s1429 = scalar_lea.vmem %s9, 8
  %1430 = vst [vmem:[%s1429] sm:$0xff] %v1393
  %s1431 = scalar_lea.vmem %s9, 80
  %1432 = vst [vmem:[%s1431] sm:$0xff] %v1411
  %s1433 = scalar_lea.vmem %s9, 16
  %1434 = vst [vmem:[%s1433] sm:$0xff] %v1395
  %s1435 = scalar_lea.vmem %s9, 88
  %1436 = vst [vmem:[%s1435] sm:$0xff] %v1413
  %s1437 = scalar_lea.vmem %s9, 24
  %1438 = vst [vmem:[%s1437] sm:$0xff] %v1397
  %s1439 = scalar_lea.vmem %s9, 96
  %1440 = vst [vmem:[%s1439] sm:$0xff] %v1415
  %s1441 = scalar_lea.vmem %s9, 32
  %1442 = vst [vmem:[%s1441] sm:$0xff] %v1399
  %s1443 = scalar_lea.vmem %s9, 104
  %1444 = vst [vmem:[%s1443] sm:$0xff] %v1417
  %s1445 = scalar_lea.vmem %s9, 40
  %1446 = vst [vmem:[%s1445] sm:$0xff] %v1401
  %s1447 = scalar_lea.vmem %s9, 112
  %1448 = vst [vmem:[%s1447] sm:$0xff] %v1419
  %s1449 = scalar_lea.vmem %s9, 48
  %1450 = vst [vmem:[%s1449] sm:$0xff] %v1403
  %s1451 = scalar_lea.vmem %s9, 120
  %1452 = vst [vmem:[%s1451] sm:$0xff] %v1421
  %s1453 = scalar_lea.vmem %s9, 56
  %1454 = vst [vmem:[%s1453] sm:$0xff] %v1405
  %s1455 = scalar_lea.vmem %s9, 128
  %1456 = vst [vmem:[%s1455] sm:$0xff] %v1423
  %s1457 = scalar_lea.vmem %s9, 64
  %1458 = vst [vmem:[%s1457] sm:$0xff] %v1407
  %s1459 = scalar_lea.vmem %s9, 136
  %1460 = vst [vmem:[%s1459] sm:$0xff] %v1425
  %v1461 = vmul.f32 %v1391, %v1391
  %v1462 = vmul.f32 %v1409, %v1409
  %v1463 = vsub.f32 %v1461, %v1462
  %v1464 = vmul.f32 %v1391, %v1409
  %v1465 = vadd.f32 %v1464, %v1464
  %v1466 = vmul.f32 %v1393, %v1397
  %v1467 = vmul.f32 %v1411, %v1415
  %v1468 = vsub.f32 %v1466, %v1467
  %v1469 = vmul.f32 %v1393, %v1415
  %v1470 = vmul.f32 %v1411, %v1397
  %v1471 = vadd.f32 %v1469, %v1470
  %v1472 = vadd.f32 %v1463, %v1468
  %v1473 = vadd.f32 %v1465, %v1471
  %v1474 = vmul.f32 %v1395, %v1403
  %v1475 = vmul.f32 %v1413, %v1421
  %v1476 = vsub.f32 %v1474, %v1475
  %v1477 = vmul.f32 %v1395, %v1421
  %v1478 = vmul.f32 %v1413, %v1403
  %v1479 = vadd.f32 %v1477, %v1478
  %v1480 = vadd.f32 %v1472, %v1476
  %v1481 = vadd.f32 %v1473, %v1479
  %1482 = vst [vmem:[%s10] sm:$0xff] %v1480
  %s1483 = scalar_lea.vmem %s10, 72
  %1484 = vst [vmem:[%s1483] sm:$0xff] %v1481
  %v1485 = vmul.f32 %v1391, %v1393
  %v1486 = vmul.f32 %v1409, %v1411
  %v1487 = vsub.f32 %v1485, %v1486
  %v1488 = vmul.f32 %v1391, %v1411
  %v1489 = vmul.f32 %v1409, %v1393
  %v1490 = vadd.f32 %v1488, %v1489
  %v1491 = vmul.f32 %v1393, %v1399
  %v1492 = vmul.f32 %v1411, %v1417
  %v1493 = vsub.f32 %v1491, %v1492
  %v1494 = vmul.f32 %v1393, %v1417
  %v1495 = vmul.f32 %v1411, %v1399
  %v1496 = vadd.f32 %v1494, %v1495
  %v1497 = vadd.f32 %v1487, %v1493
  %v1498 = vadd.f32 %v1490, %v1496
  %v1499 = vmul.f32 %v1395, %v1405
  %v1500 = vmul.f32 %v1413, %v1423
  %v1501 = vsub.f32 %v1499, %v1500
  %v1502 = vmul.f32 %v1395, %v1423
  %v1503 = vmul.f32 %v1413, %v1405
  %v1504 = vadd.f32 %v1502, %v1503
  %v1505 = vadd.f32 %v1497, %v1501
  %v1506 = vadd.f32 %v1498, %v1504
  %s1507 = scalar_lea.vmem %s10, 8
  %1508 = vst [vmem:[%s1507] sm:$0xff] %v1505
  %s1509 = scalar_lea.vmem %s10, 80
  %1510 = vst [vmem:[%s1509] sm:$0xff] %v1506
  %v1511 = vmul.f32 %v1391, %v1395
  %v1512 = vmul.f32 %v1409, %v1413
  %v1513 = vsub.f32 %v1511, %v1512
  %v1514 = vmul.f32 %v1391, %v1413
  %v1515 = vmul.f32 %v1409, %v1395
  %v1516 = vadd.f32 %v1514, %v1515
  %v1517 = vmul.f32 %v1393, %v1401
  %v1518 = vmul.f32 %v1411, %v1419
  %v1519 = vsub.f32 %v1517, %v1518
  %v1520 = vmul.f32 %v1393, %v1419
  %v1521 = vmul.f32 %v1411, %v1401
  %v1522 = vadd.f32 %v1520, %v1521
  %v1523 = vadd.f32 %v1513, %v1519
  %v1524 = vadd.f32 %v1516, %v1522
  %v1525 = vmul.f32 %v1395, %v1407
  %v1526 = vmul.f32 %v1413, %v1425
  %v1527 = vsub.f32 %v1525, %v1526
  %v1528 = vmul.f32 %v1395, %v1425
  %v1529 = vmul.f32 %v1413, %v1407
  %v1530 = vadd.f32 %v1528, %v1529
  %v1531 = vadd.f32 %v1523, %v1527
  %v1532 = vadd.f32 %v1524, %v1530
  %s1533 = scalar_lea.vmem %s10, 16
  %1534 = vst [vmem:[%s1533] sm:$0xff] %v1531
  %s1535 = scalar_lea.vmem %s10, 88
  %1536 = vst [vmem:[%s1535] sm:$0xff] %v1532
  %v1537 = vmul.f32 %v1397, %v1391
  %v1538 = vmul.f32 %v1415, %v1409
  %v1539 = vsub.f32 %v1537, %v1538
  %v1540 = vmul.f32 %v1397, %v1409
  %v1541 = vmul.f32 %v1415, %v1391
  %v1542 = vadd.f32 %v1540, %v1541
  %v1543 = vmul.f32 %v1399, %v1397
  %v1544 = vmul.f32 %v1417, %v1415
  %v1545 = vsub.f32 %v1543, %v1544
  %v1546 = vmul.f32 %v1399, %v1415
  %v1547 = vmul.f32 %v1417, %v1397
  %v1548 = vadd.f32 %v1546, %v1547
  %v1549 = vadd.f32 %v1539, %v1545
  %v1550 = vadd.f32 %v1542, %v1548
  %v1551 = vmul.f32 %v1401, %v1403
  %v1552 = vmul.f32 %v1419, %v1421
  %v1553 = vsub.f32 %v1551, %v1552
  %v1554 = vmul.f32 %v1401, %v1421
  %v1555 = vmul.f32 %v1419, %v1403
  %v1556 = vadd.f32 %v1554, %v1555
  %v1557 = vadd.f32 %v1549, %v1553
  %v1558 = vadd.f32 %v1550, %v1556
  %s1559 = scalar_lea.vmem %s10, 24
  %1560 = vst [vmem:[%s1559] sm:$0xff] %v1557
  %s1561 = scalar_lea.vmem %s10, 96
  %1562 = vst [vmem:[%s1561] sm:$0xff] %v1558
  %v1563 = vmul.f32 %v1399, %v1399
  %v1564 = vmul.f32 %v1417, %v1417
  %v1565 = vsub.f32 %v1563, %v1564
  %v1566 = vmul.f32 %v1399, %v1417
  %v1567 = vadd.f32 %v1566, %v1566
  %v1568 = vadd.f32 %v1468, %v1565
  %v1569 = vadd.f32 %v1471, %v1567
  %v1570 = vmul.f32 %v1401, %v1405
  %v1571 = vmul.f32 %v1419, %v1423
  %v1572 = vsub.f32 %v1570, %v1571
  %v1573 = vmul.f32 %v1401, %v1423
  %v1574 = vmul.f32 %v1419, %v1405
  %v1575 = vadd.f32 %v1573, %v1574
  %v1576 = vadd.f32 %v1568, %v1572
  %v1577 = vadd.f32 %v1569, %v1575
  %s1578 = scalar_lea.vmem %s10, 32
  %1579 = vst [vmem:[%s1578] sm:$0xff] %v1576
  %s1580 = scalar_lea.vmem %s10, 104
  %1581 = vst [vmem:[%s1580] sm:$0xff] %v1577
  %v1582 = vmul.f32 %v1397, %v1395
  %v1583 = vmul.f32 %v1415, %v1413
  %v1584 = vsub.f32 %v1582, %v1583
  %v1585 = vmul.f32 %v1397, %v1413
  %v1586 = vmul.f32 %v1415, %v1395
  %v1587 = vadd.f32 %v1585, %v1586
  %v1588 = vmul.f32 %v1399, %v1401
  %v1589 = vmul.f32 %v1417, %v1419
  %v1590 = vsub.f32 %v1588, %v1589
  %v1591 = vmul.f32 %v1399, %v1419
  %v1592 = vmul.f32 %v1417, %v1401
  %v1593 = vadd.f32 %v1591, %v1592
  %v1594 = vadd.f32 %v1584, %v1590
  %v1595 = vadd.f32 %v1587, %v1593
  %v1596 = vmul.f32 %v1401, %v1407
  %v1597 = vmul.f32 %v1419, %v1425
  %v1598 = vsub.f32 %v1596, %v1597
  %v1599 = vmul.f32 %v1401, %v1425
  %v1600 = vmul.f32 %v1419, %v1407
  %v1601 = vadd.f32 %v1599, %v1600
  %v1602 = vadd.f32 %v1594, %v1598
  %v1603 = vadd.f32 %v1595, %v1601
  %s1604 = scalar_lea.vmem %s10, 40
  %1605 = vst [vmem:[%s1604] sm:$0xff] %v1602
  %s1606 = scalar_lea.vmem %s10, 112
  %1607 = vst [vmem:[%s1606] sm:$0xff] %v1603
  %v1608 = vmul.f32 %v1403, %v1391
  %v1609 = vmul.f32 %v1421, %v1409
  %v1610 = vsub.f32 %v1608, %v1609
  %v1611 = vmul.f32 %v1403, %v1409
  %v1612 = vmul.f32 %v1421, %v1391
  %v1613 = vadd.f32 %v1611, %v1612
  %v1614 = vmul.f32 %v1405, %v1397
  %v1615 = vmul.f32 %v1423, %v1415
  %v1616 = vsub.f32 %v1614, %v1615
  %v1617 = vmul.f32 %v1405, %v1415
  %v1618 = vmul.f32 %v1423, %v1397
  %v1619 = vadd.f32 %v1617, %v1618
  %v1620 = vadd.f32 %v1610, %v1616
  %v1621 = vadd.f32 %v1613, %v1619
  %v1622 = vmul.f32 %v1407, %v1403
  %v1623 = vmul.f32 %v1425, %v1421
  %v1624 = vsub.f32 %v1622, %v1623
  %v1625 = vmul.f32 %v1407, %v1421
  %v1626 = vmul.f32 %v1425, %v1403
  %v1627 = vadd.f32 %v1625, %v1626
  %v1628 = vadd.f32 %v1620, %v1624
  %v1629 = vadd.f32 %v1621, %v1627
  %s1630 = scalar_lea.vmem %s10, 48
  %1631 = vst [vmem:[%s1630] sm:$0xff] %v1628
  %s1632 = scalar_lea.vmem %s10, 120
  %1633 = vst [vmem:[%s1632] sm:$0xff] %v1629
  %v1634 = vmul.f32 %v1403, %v1393
  %v1635 = vmul.f32 %v1421, %v1411
  %v1636 = vsub.f32 %v1634, %v1635
  %v1637 = vmul.f32 %v1403, %v1411
  %v1638 = vmul.f32 %v1421, %v1393
  %v1639 = vadd.f32 %v1637, %v1638
  %v1640 = vmul.f32 %v1405, %v1399
  %v1641 = vmul.f32 %v1423, %v1417
  %v1642 = vsub.f32 %v1640, %v1641
  %v1643 = vmul.f32 %v1405, %v1417
  %v1644 = vmul.f32 %v1423, %v1399
  %v1645 = vadd.f32 %v1643, %v1644
  %v1646 = vadd.f32 %v1636, %v1642
  %v1647 = vadd.f32 %v1639, %v1645
  %v1648 = vmul.f32 %v1407, %v1405
  %v1649 = vmul.f32 %v1425, %v1423
  %v1650 = vsub.f32 %v1648, %v1649
  %v1651 = vmul.f32 %v1407, %v1423
  %v1652 = vmul.f32 %v1425, %v1405
  %v1653 = vadd.f32 %v1651, %v1652
  %v1654 = vadd.f32 %v1646, %v1650
  %v1655 = vadd.f32 %v1647, %v1653
  %s1656 = scalar_lea.vmem %s10, 56
  %1657 = vst [vmem:[%s1656] sm:$0xff] %v1654
  %s1658 = scalar_lea.vmem %s10, 128
  %1659 = vst [vmem:[%s1658] sm:$0xff] %v1655
  %v1660 = vadd.f32 %v1476, %v1572
  %v1661 = vadd.f32 %v1479, %v1575
  %v1662 = vmul.f32 %v1407, %v1407
  %v1663 = vmul.f32 %v1425, %v1425
  %v1664 = vsub.f32 %v1662, %v1663
  %v1665 = vmul.f32 %v1407, %v1425
  %v1666 = vadd.f32 %v1665, %v1665
  %v1667 = vadd.f32 %v1660, %v1664
  %v1668 = vadd.f32 %v1661, %v1666
  %s1669 = scalar_lea.vmem %s10, 64
  %1670 = vst [vmem:[%s1669] sm:$0xff] %v1667
  %s1671 = scalar_lea.vmem %s10, 136
  %1672 = vst [vmem:[%s1671] sm:$0xff] %v1668
  // Predicated region
  $region30: #{stout_smearing.2} parent=0 // pred_check
    _
  $region31: #{stout_smearing.2} parent=0 // pred_check_branch
    %1674 = sbr.rel (0) target = $region33
  $region32: #{stout_smearing.2} parent=0 // pred_region
    _
  $region33: #{stout_smearing.2} parent=0 // pred_fallthru
    _
  // Predicated region
  $region34: #{stout_smearing.2} parent=0 // pred_check
    _
  $region35: #{stout_smearing.2} parent=0 // pred_check_branch
    %1676 = sbr.rel (0) target = $region37
  $region36: #{stout_smearing.2} parent=0 // pred_region
    _
  $region37: #{stout_smearing.2} parent=0 // pred_fallthru
    _
  // Predicated region
  $region38: #{stout_smearing.2} parent=0 // pred_check
    _
  $region39: #{stout_smearing.2} parent=0 // pred_check_branch
    %1678 = sbr.rel (0) target = $region41
  $region40: #{stout_smearing.2} parent=0 // pred_region
    _
  $region41: #{stout_smearing.2} parent=0 // pred_fallthru
    _
  // Predicated region
  $region42: #{stout_smearing.2} parent=0 // pred_check
    _
  $region43: #{stout_smearing.2} parent=0 // pred_check_branch
    %1680 = sbr.rel (0) target = $region45
  $region44: #{stout_smearing.2} parent=0 // pred_region
    _
  $region45: #{stout_smearing.2} parent=0 // pred_fallthru
    _
  // Predicated region
  $region46: #{stout_smearing.2} parent=0 // pred_check
    _
  $region47: #{stout_smearing.2} parent=0 // pred_check_branch
    %1682 = sbr.rel (0) target = $region49
  $region48: #{stout_smearing.2} parent=0 // pred_region
    _
  $region49: #{stout_smearing.2} parent=0 // pred_fallthru
    _
  // Predicated region
  $region50: #{stout_smearing.2} parent=0 // pred_check
    _
  $region51: #{stout_smearing.2} parent=0 // pred_check_branch
    %1684 = sbr.rel (0) target = $region53
  $region52: #{stout_smearing.2} parent=0 // pred_region
    _
  $region53: #{stout_smearing.2} parent=0 // pred_fallthru
    _

// kernel: neg.31
$region0: #{neg.31}
  #allocation0 [shape = 's32[1]{0}', space=sflag, size = 0x4, scoped, tag = 'scoped memory for neg.31']
  %s0 = inlined_call_operand.vmem [shape: f32[2,4,4,9,9], index: 0, kind: input, shape index: {}]
  %s1 = inlined_call_operand.vmem [shape: f32[2,4,4,9,9], index: 1, kind: output, shape index: {}]
  %v2 = vld [vmem:[%s0] sm:$0xff]
  %3 = xla_tuple %v2
  %4 = xla_tuple %3
  %v5 = vxor.u32 %v2, 2147483648
  %6 = xla_tuple %v5
  %7 = vst [vmem:[%s1] sm:$0xff] %v5
  %s8 = scalar_lea.vmem %s0, 256
  %v9 = vld [vmem:[%s8] sm:$0xff]
  %10 = xla_tuple %v9
  %11 = xla_tuple %10
  %v12 = vxor.u32 %v9, 2147483648
  %13 = xla_tuple %v12
  %s14 = scalar_lea.vmem %s1, 256
  %15 = vst [vmem:[%s14] sm:$0xff] %v12
  %s16 = scalar_lea.vmem %s0, 64
  %v17 = vld [vmem:[%s16] sm:$0xff]
  %18 = xla_tuple %v17
  %19 = xla_tuple %18
  %v20 = vxor.u32 %v17, 2147483648
  %21 = xla_tuple %v20
  %s22 = scalar_lea.vmem %s1, 64
  %23 = vst [vmem:[%s22] sm:$0xff] %v20
  %s24 = scalar_lea.vmem %s0, 320
  %v25 = vld [vmem:[%s24] sm:$0xff]
  %26 = xla_tuple %v25
  %27 = xla_tuple %26
  %v28 = vxor.u32 %v25, 2147483648
  %29 = xla_tuple %v28
  %s30 = scalar_lea.vmem %s1, 320
  %31 = vst [vmem:[%s30] sm:$0xff] %v28
  %s32 = scalar_lea.vmem %s0, 128
  %v33 = vld [vmem:[%s32] sm:$0xff]
  %34 = xla_tuple %v33
  %35 = xla_tuple %34
  %v36 = vxor.u32 %v33, 2147483648
  %37 = xla_tuple %v36
  %s38 = scalar_lea.vmem %s1, 128
  %39 = vst [vmem:[%s38] sm:$0xff] %v36
  %s40 = scalar_lea.vmem %s0, 384
  %v41 = vld [vmem:[%s40] sm:$0xff]
  %42 = xla_tuple %v41
  %43 = xla_tuple %42
  %v44 = vxor.u32 %v41, 2147483648
  %45 = xla_tuple %v44
  %s46 = scalar_lea.vmem %s1, 384
  %47 = vst [vmem:[%s46] sm:$0xff] %v44
  %s48 = scalar_lea.vmem %s0, 192
  %v49 = vld [vmem:[%s48] sm:$0xff]
  %50 = xla_tuple %v49
  %51 = xla_tuple %50
  %v52 = vxor.u32 %v49, 2147483648
  %53 = xla_tuple %v52
  %s54 = scalar_lea.vmem %s1, 192
  %55 = vst [vmem:[%s54] sm:$0xff] %v52
  %s56 = scalar_lea.vmem %s0, 448
  %v57 = vld [vmem:[%s56] sm:$0xff]
  %58 = xla_tuple %v57
  %59 = xla_tuple %58
  %v60 = vxor.u32 %v57, 2147483648
  %61 = xla_tuple %v60
  %s62 = scalar_lea.vmem %s1, 448
  %63 = vst [vmem:[%s62] sm:$0xff] %v60
  %s64 = scalar_lea.vmem %s0, 16
  %v65 = vld [vmem:[%s64] sm:$0xff]
  %66 = xla_tuple %v65
  %67 = xla_tuple %66
  %v68 = vxor.u32 %v65, 2147483648
  %69 = xla_tuple %v68
  %s70 = scalar_lea.vmem %s1, 16
  %71 = vst [vmem:[%s70] sm:$0xff] %v68
  %s72 = scalar_lea.vmem %s0, 272
  %v73 = vld [vmem:[%s72] sm:$0xff]
  %74 = xla_tuple %v73
  %75 = xla_tuple %74
  %v76 = vxor.u32 %v73, 2147483648
  %77 = xla_tuple %v76
  %s78 = scalar_lea.vmem %s1, 272
  %79 = vst [vmem:[%s78] sm:$0xff] %v76
  %s80 = scalar_lea.vmem %s0, 80
  %v81 = vld [vmem:[%s80] sm:$0xff]
  %82 = xla_tuple %v81
  %83 = xla_tuple %82
  %v84 = vxor.u32 %v81, 2147483648
  %85 = xla_tuple %v84
  %s86 = scalar_lea.vmem %s1, 80
  %87 = vst [vmem:[%s86] sm:$0xff] %v84
  %s88 = scalar_lea.vmem %s0, 336
  %v89 = vld [vmem:[%s88] sm:$0xff]
  %90 = xla_tuple %v89
  %91 = xla_tuple %90
  %v92 = vxor.u32 %v89, 2147483648
  %93 = xla_tuple %v92
  %s94 = scalar_lea.vmem %s1, 336
  %95 = vst [vmem:[%s94] sm:$0xff] %v92
  %s96 = scalar_lea.vmem %s0, 144
  %v97 = vld [vmem:[%s96] sm:$0xff]
  %98 = xla_tuple %v97
  %99 = xla_tuple %98
  %v100 = vxor.u32 %v97, 2147483648
  %101 = xla_tuple %v100
  %s102 = scalar_lea.vmem %s1, 144
  %103 = vst [vmem:[%s102] sm:$0xff] %v100
  %s104 = scalar_lea.vmem %s0, 400
  %v105 = vld [vmem:[%s104] sm:$0xff]
  %106 = xla_tuple %v105
  %107 = xla_tuple %106
  %v108 = vxor.u32 %v105, 2147483648
  %109 = xla_tuple %v108
  %s110 = scalar_lea.vmem %s1, 400
  %111 = vst [vmem:[%s110] sm:$0xff] %v108
  %s112 = scalar_lea.vmem %s0, 208
  %v113 = vld [vmem:[%s112] sm:$0xff]
  %114 = xla_tuple %v113
  %115 = xla_tuple %114
  %v116 = vxor.u32 %v113, 2147483648
  %117 = xla_tuple %v116
  %s118 = scalar_lea.vmem %s1, 208
  %119 = vst [vmem:[%s118] sm:$0xff] %v116
  %s120 = scalar_lea.vmem %s0, 464
  %v121 = vld [vmem:[%s120] sm:$0xff]
  %122 = xla_tuple %v121
  %123 = xla_tuple %122
  %v124 = vxor.u32 %v121, 2147483648
  %125 = xla_tuple %v124
  %s126 = scalar_lea.vmem %s1, 464
  %127 = vst [vmem:[%s126] sm:$0xff] %v124
  %s128 = scalar_lea.vmem %s0, 32
  %v129 = vld [vmem:[%s128] sm:$0xff]
  %130 = xla_tuple %v129
  %131 = xla_tuple %130
  %v132 = vxor.u32 %v129, 2147483648
  %133 = xla_tuple %v132
  %s134 = scalar_lea.vmem %s1, 32
  %135 = vst [vmem:[%s134] sm:$0xff] %v132
  %s136 = scalar_lea.vmem %s0, 288
  %v137 = vld [vmem:[%s136] sm:$0xff]
  %138 = xla_tuple %v137
  %139 = xla_tuple %138
  %v140 = vxor.u32 %v137, 2147483648
  %141 = xla_tuple %v140
  %s142 = scalar_lea.vmem %s1, 288
  %143 = vst [vmem:[%s142] sm:$0xff] %v140
  %s144 = scalar_lea.vmem %s0, 96
  %v145 = vld [vmem:[%s144] sm:$0xff]
  %146 = xla_tuple %v145
  %147 = xla_tuple %146
  %v148 = vxor.u32 %v145, 2147483648
  %149 = xla_tuple %v148
  %s150 = scalar_lea.vmem %s1, 96
  %151 = vst [vmem:[%s150] sm:$0xff] %v148
  %s152 = scalar_lea.vmem %s0, 352
  %v153 = vld [vmem:[%s152] sm:$0xff]
  %154 = xla_tuple %v153
  %155 = xla_tuple %154
  %v156 = vxor.u32 %v153, 2147483648
  %157 = xla_tuple %v156
  %s158 = scalar_lea.vmem %s1, 352
  %159 = vst [vmem:[%s158] sm:$0xff] %v156
  %s160 = scalar_lea.vmem %s0, 160
  %v161 = vld [vmem:[%s160] sm:$0xff]
  %162 = xla_tuple %v161
  %163 = xla_tuple %162
  %v164 = vxor.u32 %v161, 2147483648
  %165 = xla_tuple %v164
  %s166 = scalar_lea.vmem %s1, 160
  %167 = vst [vmem:[%s166] sm:$0xff] %v164
  %s168 = scalar_lea.vmem %s0, 416
  %v169 = vld [vmem:[%s168] sm:$0xff]
  %170 = xla_tuple %v169
  %171 = xla_tuple %170
  %v172 = vxor.u32 %v169, 2147483648
  %173 = xla_tuple %v172
  %s174 = scalar_lea.vmem %s1, 416
  %175 = vst [vmem:[%s174] sm:$0xff] %v172
  %s176 = scalar_lea.vmem %s0, 224
  %v177 = vld [vmem:[%s176] sm:$0xff]
  %178 = xla_tuple %v177
  %179 = xla_tuple %178
  %v180 = vxor.u32 %v177, 2147483648
  %181 = xla_tuple %v180
  %s182 = scalar_lea.vmem %s1, 224
  %183 = vst [vmem:[%s182] sm:$0xff] %v180
  %s184 = scalar_lea.vmem %s0, 480
  %v185 = vld [vmem:[%s184] sm:$0xff]
  %186 = xla_tuple %v185
  %187 = xla_tuple %186
  %v188 = vxor.u32 %v185, 2147483648
  %189 = xla_tuple %v188
  %s190 = scalar_lea.vmem %s1, 480
  %191 = vst [vmem:[%s190] sm:$0xff] %v188
  %s192 = scalar_lea.vmem %s0, 48
  %v193 = vld [vmem:[%s192] sm:$0xff]
  %194 = xla_tuple %v193
  %195 = xla_tuple %194
  %v196 = vxor.u32 %v193, 2147483648
  %197 = xla_tuple %v196
  %s198 = scalar_lea.vmem %s1, 48
  %199 = vst [vmem:[%s198] sm:$0xff] %v196
  %s200 = scalar_lea.vmem %s0, 304
  %v201 = vld [vmem:[%s200] sm:$0xff]
  %202 = xla_tuple %v201
  %203 = xla_tuple %202
  %v204 = vxor.u32 %v201, 2147483648
  %205 = xla_tuple %v204
  %s206 = scalar_lea.vmem %s1, 304
  %207 = vst [vmem:[%s206] sm:$0xff] %v204
  %s208 = scalar_lea.vmem %s0, 112
  %v209 = vld [vmem:[%s208] sm:$0xff]
  %210 = xla_tuple %v209
  %211 = xla_tuple %210
  %v212 = vxor.u32 %v209, 2147483648
  %213 = xla_tuple %v212
  %s214 = scalar_lea.vmem %s1, 112
  %215 = vst [vmem:[%s214] sm:$0xff] %v212
  %s216 = scalar_lea.vmem %s0, 368
  %v217 = vld [vmem:[%s216] sm:$0xff]
  %218 = xla_tuple %v217
  %219 = xla_tuple %218
  %v220 = vxor.u32 %v217, 2147483648
  %221 = xla_tuple %v220
  %s222 = scalar_lea.vmem %s1, 368
  %223 = vst [vmem:[%s222] sm:$0xff] %v220
  %s224 = scalar_lea.vmem %s0, 176
  %v225 = vld [vmem:[%s224] sm:$0xff]
  %226 = xla_tuple %v225
  %227 = xla_tuple %226
  %v228 = vxor.u32 %v225, 2147483648
  %229 = xla_tuple %v228
  %s230 = scalar_lea.vmem %s1, 176
  %231 = vst [vmem:[%s230] sm:$0xff] %v228
  %s232 = scalar_lea.vmem %s0, 432
  %v233 = vld [vmem:[%s232] sm:$0xff]
  %234 = xla_tuple %v233
  %235 = xla_tuple %234
  %v236 = vxor.u32 %v233, 2147483648
  %237 = xla_tuple %v236
  %s238 = scalar_lea.vmem %s1, 432
  %239 = vst [vmem:[%s238] sm:$0xff] %v236
  %s240 = scalar_lea.vmem %s0, 240
  %v241 = vld [vmem:[%s240] sm:$0xff]
  %242 = xla_tuple %v241
  %243 = xla_tuple %242
  %v244 = vxor.u32 %v241, 2147483648
  %245 = xla_tuple %v244
  %s246 = scalar_lea.vmem %s1, 240
  %247 = vst [vmem:[%s246] sm:$0xff] %v244
  %s248 = scalar_lea.vmem %s0, 496
  %v249 = vld [vmem:[%s248] sm:$0xff]
  %250 = xla_tuple %v249
  %251 = xla_tuple %250
  %v252 = vxor.u32 %v249, 2147483648
  %253 = xla_tuple %v252
  %s254 = scalar_lea.vmem %s1, 496
  %255 = vst [vmem:[%s254] sm:$0xff] %v252
  %s256 = scalar_lea.vmem %s0, 8
  %v257 = vld [vmem:[%s256] sm:$0xff]
  %258 = xla_tuple %v257
  %259 = xla_tuple %258
  %v260 = vxor.u32 %v257, 2147483648
  %261 = xla_tuple %v260
  %s262 = scalar_lea.vmem %s1, 8
  %263 = vst [vmem:[%s262] sm:$0xff] %v260
  %s264 = scalar_lea.vmem %s0, 264
  %v265 = vld [vmem:[%s264] sm:$0xff]
  %266 = xla_tuple %v265
  %267 = xla_tuple %266
  %v268 = vxor.u32 %v265, 2147483648
  %269 = xla_tuple %v268
  %s270 = scalar_lea.vmem %s1, 264
  %271 = vst [vmem:[%s270] sm:$0xff] %v268
  %s272 = scalar_lea.vmem %s0, 72
  %v273 = vld [vmem:[%s272] sm:$0xff]
  %274 = xla_tuple %v273
  %275 = xla_tuple %274
  %v276 = vxor.u32 %v273, 2147483648
  %277 = xla_tuple %v276
  %s278 = scalar_lea.vmem %s1, 72
  %279 = vst [vmem:[%s278] sm:$0xff] %v276
  %s280 = scalar_lea.vmem %s0, 328
  %v281 = vld [vmem:[%s280] sm:$0xff]
  %282 = xla_tuple %v281
  %283 = xla_tuple %282
  %v284 = vxor.u32 %v281, 2147483648
  %285 = xla_tuple %v284
  %s286 = scalar_lea.vmem %s1, 328
  %287 = vst [vmem:[%s286] sm:$0xff] %v284
  %s288 = scalar_lea.vmem %s0, 136
  %v289 = vld [vmem:[%s288] sm:$0xff]
  %290 = xla_tuple %v289
  %291 = xla_tuple %290
  %v292 = vxor.u32 %v289, 2147483648
  %293 = xla_tuple %v292
  %s294 = scalar_lea.vmem %s1, 136
  %295 = vst [vmem:[%s294] sm:$0xff] %v292
  %s296 = scalar_lea.vmem %s0, 392
  %v297 = vld [vmem:[%s296] sm:$0xff]
  %298 = xla_tuple %v297
  %299 = xla_tuple %298
  %v300 = vxor.u32 %v297, 2147483648
  %301 = xla_tuple %v300
  %s302 = scalar_lea.vmem %s1, 392
  %303 = vst [vmem:[%s302] sm:$0xff] %v300
  %s304 = scalar_lea.vmem %s0, 200
  %v305 = vld [vmem:[%s304] sm:$0xff]
  %306 = xla_tuple %v305
  %307 = xla_tuple %306
  %v308 = vxor.u32 %v305, 2147483648
  %309 = xla_tuple %v308
  %s310 = scalar_lea.vmem %s1, 200
  %311 = vst [vmem:[%s310] sm:$0xff] %v308
  %s312 = scalar_lea.vmem %s0, 456
  %v313 = vld [vmem:[%s312] sm:$0xff]
  %314 = xla_tuple %v313
  %315 = xla_tuple %314
  %v316 = vxor.u32 %v313, 2147483648
  %317 = xla_tuple %v316
  %s318 = scalar_lea.vmem %s1, 456
  %319 = vst [vmem:[%s318] sm:$0xff] %v316
  %s320 = scalar_lea.vmem %s0, 24
  %v321 = vld [vmem:[%s320] sm:$0xff]
  %322 = xla_tuple %v321
  %323 = xla_tuple %322
  %v324 = vxor.u32 %v321, 2147483648
  %325 = xla_tuple %v324
  %s326 = scalar_lea.vmem %s1, 24
  %327 = vst [vmem:[%s326] sm:$0xff] %v324
  %s328 = scalar_lea.vmem %s0, 280
  %v329 = vld [vmem:[%s328] sm:$0xff]
  %330 = xla_tuple %v329
  %331 = xla_tuple %330
  %v332 = vxor.u32 %v329, 2147483648
  %333 = xla_tuple %v332
  %s334 = scalar_lea.vmem %s1, 280
  %335 = vst [vmem:[%s334] sm:$0xff] %v332
  %s336 = scalar_lea.vmem %s0, 88
  %v337 = vld [vmem:[%s336] sm:$0xff]
  %338 = xla_tuple %v337
  %339 = xla_tuple %338
  %v340 = vxor.u32 %v337, 2147483648
  %341 = xla_tuple %v340
  %s342 = scalar_lea.vmem %s1, 88
  %343 = vst [vmem:[%s342] sm:$0xff] %v340
  %s344 = scalar_lea.vmem %s0, 344
  %v345 = vld [vmem:[%s344] sm:$0xff]
  %346 = xla_tuple %v345
  %347 = xla_tuple %346
  %v348 = vxor.u32 %v345, 2147483648
  %349 = xla_tuple %v348
  %s350 = scalar_lea.vmem %s1, 344
  %351 = vst [vmem:[%s350] sm:$0xff] %v348
  %s352 = scalar_lea.vmem %s0, 152
  %v353 = vld [vmem:[%s352] sm:$0xff]
  %354 = xla_tuple %v353
  %355 = xla_tuple %354
  %v356 = vxor.u32 %v353, 2147483648
  %357 = xla_tuple %v356
  %s358 = scalar_lea.vmem %s1, 152
  %359 = vst [vmem:[%s358] sm:$0xff] %v356
  %s360 = scalar_lea.vmem %s0, 408
  %v361 = vld [vmem:[%s360] sm:$0xff]
  %362 = xla_tuple %v361
  %363 = xla_tuple %362
  %v364 = vxor.u32 %v361, 2147483648
  %365 = xla_tuple %v364
  %s366 = scalar_lea.vmem %s1, 408
  %367 = vst [vmem:[%s366] sm:$0xff] %v364
  %s368 = scalar_lea.vmem %s0, 216
  %v369 = vld [vmem:[%s368] sm:$0xff]
  %370 = xla_tuple %v369
  %371 = xla_tuple %370
  %v372 = vxor.u32 %v369, 2147483648
  %373 = xla_tuple %v372
  %s374 = scalar_lea.vmem %s1, 216
  %375 = vst [vmem:[%s374] sm:$0xff] %v372
  %s376 = scalar_lea.vmem %s0, 472
  %v377 = vld [vmem:[%s376] sm:$0xff]
  %378 = xla_tuple %v377
  %379 = xla_tuple %378
  %v380 = vxor.u32 %v377, 2147483648
  %381 = xla_tuple %v380
  %s382 = scalar_lea.vmem %s1, 472
  %383 = vst [vmem:[%s382] sm:$0xff] %v380
  %s384 = scalar_lea.vmem %s0, 40
  %v385 = vld [vmem:[%s384] sm:$0xff]
  %386 = xla_tuple %v385
  %387 = xla_tuple %386
  %v388 = vxor.u32 %v385, 2147483648
  %389 = xla_tuple %v388
  %s390 = scalar_lea.vmem %s1, 40
  %391 = vst [vmem:[%s390] sm:$0xff] %v388
  %s392 = scalar_lea.vmem %s0, 296
  %v393 = vld [vmem:[%s392] sm:$0xff]
  %394 = xla_tuple %v393
  %395 = xla_tuple %394
  %v396 = vxor.u32 %v393, 2147483648
  %397 = xla_tuple %v396
  %s398 = scalar_lea.vmem %s1, 296
  %399 = vst [vmem:[%s398] sm:$0xff] %v396
  %s400 = scalar_lea.vmem %s0, 104
  %v401 = vld [vmem:[%s400] sm:$0xff]
  %402 = xla_tuple %v401
  %403 = xla_tuple %402
  %v404 = vxor.u32 %v401, 2147483648
  %405 = xla_tuple %v404
  %s406 = scalar_lea.vmem %s1, 104
  %407 = vst [vmem:[%s406] sm:$0xff] %v404
  %s408 = scalar_lea.vmem %s0, 360
  %v409 = vld [vmem:[%s408] sm:$0xff]
  %410 = xla_tuple %v409
  %411 = xla_tuple %410
  %v412 = vxor.u32 %v409, 2147483648
  %413 = xla_tuple %v412
  %s414 = scalar_lea.vmem %s1, 360
  %415 = vst [vmem:[%s414] sm:$0xff] %v412
  %s416 = scalar_lea.vmem %s0, 168
  %v417 = vld [vmem:[%s416] sm:$0xff]
  %418 = xla_tuple %v417
  %419 = xla_tuple %418
  %v420 = vxor.u32 %v417, 2147483648
  %421 = xla_tuple %v420
  %s422 = scalar_lea.vmem %s1, 168
  %423 = vst [vmem:[%s422] sm:$0xff] %v420
  %s424 = scalar_lea.vmem %s0, 424
  %v425 = vld [vmem:[%s424] sm:$0xff]
  %426 = xla_tuple %v425
  %427 = xla_tuple %426
  %v428 = vxor.u32 %v425, 2147483648
  %429 = xla_tuple %v428
  %s430 = scalar_lea.vmem %s1, 424
  %431 = vst [vmem:[%s430] sm:$0xff] %v428
  %s432 = scalar_lea.vmem %s0, 232
  %v433 = vld [vmem:[%s432] sm:$0xff]
  %434 = xla_tuple %v433
  %435 = xla_tuple %434
  %v436 = vxor.u32 %v433, 2147483648
  %437 = xla_tuple %v436
  %s438 = scalar_lea.vmem %s1, 232
  %439 = vst [vmem:[%s438] sm:$0xff] %v436
  %s440 = scalar_lea.vmem %s0, 488
  %v441 = vld [vmem:[%s440] sm:$0xff]
  %442 = xla_tuple %v441
  %443 = xla_tuple %442
  %v444 = vxor.u32 %v441, 2147483648
  %445 = xla_tuple %v444
  %s446 = scalar_lea.vmem %s1, 488
  %447 = vst [vmem:[%s446] sm:$0xff] %v444
  %s448 = scalar_lea.vmem %s0, 56
  %v449 = vld [vmem:[%s448] sm:$0xff]
  %450 = xla_tuple %v449
  %451 = xla_tuple %450
  %v452 = vxor.u32 %v449, 2147483648
  %453 = xla_tuple %v452
  %s454 = scalar_lea.vmem %s1, 56
  %455 = vst [vmem:[%s454] sm:$0xff] %v452
  %s456 = scalar_lea.vmem %s0, 312
  %v457 = vld [vmem:[%s456] sm:$0xff]
  %458 = xla_tuple %v457
  %459 = xla_tuple %458
  %v460 = vxor.u32 %v457, 2147483648
  %461 = xla_tuple %v460
  %s462 = scalar_lea.vmem %s1, 312
  %463 = vst [vmem:[%s462] sm:$0xff] %v460
  %s464 = scalar_lea.vmem %s0, 120
  %v465 = vld [vmem:[%s464] sm:$0xff]
  %466 = xla_tuple %v465
  %467 = xla_tuple %466
  %v468 = vxor.u32 %v465, 2147483648
  %469 = xla_tuple %v468
  %s470 = scalar_lea.vmem %s1, 120
  %471 = vst [vmem:[%s470] sm:$0xff] %v468
  %s472 = scalar_lea.vmem %s0, 376
  %v473 = vld [vmem:[%s472] sm:$0xff]
  %474 = xla_tuple %v473
  %475 = xla_tuple %474
  %v476 = vxor.u32 %v473, 2147483648
  %477 = xla_tuple %v476
  %s478 = scalar_lea.vmem %s1, 376
  %479 = vst [vmem:[%s478] sm:$0xff] %v476
  %s480 = scalar_lea.vmem %s0, 184
  %v481 = vld [vmem:[%s480] sm:$0xff]
  %482 = xla_tuple %v481
  %483 = xla_tuple %482
  %v484 = vxor.u32 %v481, 2147483648
  %485 = xla_tuple %v484
  %s486 = scalar_lea.vmem %s1, 184
  %487 = vst [vmem:[%s486] sm:$0xff] %v484
  %s488 = scalar_lea.vmem %s0, 440
  %v489 = vld [vmem:[%s488] sm:$0xff]
  %490 = xla_tuple %v489
  %491 = xla_tuple %490
  %v492 = vxor.u32 %v489, 2147483648
  %493 = xla_tuple %v492
  %s494 = scalar_lea.vmem %s1, 440
  %495 = vst [vmem:[%s494] sm:$0xff] %v492
  %s496 = scalar_lea.vmem %s0, 248
  %v497 = vld [vmem:[%s496] sm:$0xff]
  %498 = xla_tuple %v497
  %499 = xla_tuple %498
  %v500 = vxor.u32 %v497, 2147483648
  %501 = xla_tuple %v500
  %s502 = scalar_lea.vmem %s1, 248
  %503 = vst [vmem:[%s502] sm:$0xff] %v500
  %s504 = scalar_lea.vmem %s0, 504
  %v505 = vld [vmem:[%s504] sm:$0xff]
  %506 = xla_tuple %v505
  %507 = xla_tuple %506
  %v508 = vxor.u32 %v505, 2147483648
  %509 = xla_tuple %v508
  %s510 = scalar_lea.vmem %s1, 504
  %511 = vst [vmem:[%s510] sm:$0xff] %v508

// kernel: custom-call.2
$region0: #{custom-call.2}
  %s0 = inlined_call_operand.vmem [shape: f32[2,4,4,18,18], index: 0, kind: input, shape index: {}]
  %s1 = inlined_call_operand.vmem [shape: f32[2,4,4,18,18], index: 1, kind: output, shape index: {0}]
  %s2 = inlined_call_operand.hbm [shape: s32[2,4,4,18], index: 2, kind: output, shape index: {1}]
  %s3 = inlined_call_operand.hbm [shape: s32[2,4,4,18], index: 3, kind: output, shape index: {2}]
  %4 = xla_tuple %s1, %s2, %s3
  $region1: #{custom-call.2} parent=0
    #allocation0 [shape = 'u8[24576]{0}', space=vmem, size = 0x6000, scoped, tag = 'operand span for operand 0']
    #allocation1 [shape = 'u8[24576]{0}', space=vmem, size = 0x6000, scoped, tag = 'operand span for operand 1']
    #allocation2 [shape = 'u8[4096]{0}', space=vmem, size = 0x1000, scoped, tag = 'operand span for operand 2']
    #allocation3 [shape = 'u8[4096]{0}', space=vmem, size = 0x1000, scoped, tag = 'packed  for operand 2']
    #allocation4 [shape = 's32[2]{0}', space=sflag, size = 0x8, scoped, tag = 'scoped memory for custom-call.2']
    #allocation5 [shape = 'u8[4096]{0}', space=vmem, size = 0x1000, scoped, tag = 'operand span for operand 3']
    #allocation6 [shape = 'u8[4096]{0}', space=vmem, size = 0x1000, scoped, tag = 'packed  for operand 3']
    #allocation7 [shape = 's32[2]{0}', space=sflag, size = 0x8, scoped, tag = 'scoped memory for custom-call.2']
    %5 = vsyncpa [#allocation4], 0
    %s6 = scalar_lea.sflag [#allocation4], 1
    %7 = vsyncpa %s6, 0
    %8 = vsyncpa [#allocation7], 0
    %s9 = scalar_lea.sflag [#allocation7], 1
    %10 = vsyncpa %s9, 0
    loop: start=0, step=1, limit=34
    $region2: #{custom-call.2} parent=1 // loop_pre_header
      _
    $region3: #{custom-call.2} parent=1 // loop_header
      %s12 = sphi 0, %s16
      %p13 = scmp.ge.s32.totalorder %s12, 34
      %s19 = sphi 0, %s38
      %s20 = sphi 0, %s34
      %s21 = sphi 0, %s30
      %s22 = sphi 0, %s19
      %s23 = sphi 0, %s20
      %s24 = sphi 0, %s21
      %s25 = sphi 0, %s22
      %s26 = sphi 0, %s23
      %s27 = sphi 0, %s24
      %s47 = sphi 0, %s49
      %s50 = sphi 0, %s47
      %s51 = sphi 0, %s50
      %s67 = sphi 0, %s51
      %s79 = sphi 0, %s81
      %s82 = sphi 0, %s79
      %s83 = sphi 0, %s82
      %s99 = sphi 0, %s83
    $region4: #{custom-call.2} parent=1 // loop_header_branch
      %15 = sbr.rel (%p13) target = $region8
    $region5: #{custom-call.2} parent=1 // loop_body
      %s17 = ssub.s32 %s12, 1
      %s18 = ssub.s32 %s12, 2
      %s28 = sadd.s32 1, %s21
      %p29 = scmp.ge.s32.totalorder %s28, 4
      %s30 = scalar_select %p29, 0, %s28
      %s31 = sadd.s32 1, %s20
      %s32 = scalar_select %p29, %s31, %s20
      %p33 = scmp.ge.s32.totalorder %s32, 4
      %s34 = scalar_select %p33, 0, %s32
      %s35 = sadd.s32 1, %s19
      %s36 = scalar_select %p33, %s35, %s19
      %p37 = scmp.ge.s32.totalorder %s36, 2
      %s38 = scalar_select %p37, 0, %s36
      %s39 = sshrl.u32 %s21, 3
      %s40 = sshrl.u32 %s30, 3
      %s41 = ssub.s32 %s19, %s38
      %s42 = ssub.s32 %s20, %s34
      %s43 = sor.u32 %s41, %s42
      %s44 = ssub.s32 %s39, %s40
      %s45 = sor.u32 %s43, %s44
      %p46 = scmp.eq.s32.totalorder %s45, 0
      %s48 = sadd.s32 %s47, 1
      %s49 = scalar_select %p46, %s47, %s48
      %p52 = pneg %p46
      %p53 = scmp.eq.s32.totalorder %s12, 31
      %p54 = por %p52, %p53
      %p55 = scmp.ne.s32.totalorder %s47, %s50
      %p56 = scmp.eq.s32.totalorder %s12, 0
      %p57 = por %p55, %p56
      %p58 = scmp.ne.s32.totalorder %s47, %s50
      %p59 = scmp.eq.s32.totalorder %s17, 31
      %p60 = por %p58, %p59
      %p61 = scmp.ne.s32.totalorder %s50, %s51
      %p62 = scmp.eq.s32.totalorder %s17, 0
      %p63 = por %p61, %p62
      %p64 = scmp.ne.s32.totalorder %s50, %s51
      %p65 = scmp.eq.s32.totalorder %s18, 31
      %p66 = por %p64, %p65
      %p68 = scmp.ne.s32.totalorder %s51, %s67
      %p69 = scmp.eq.s32.totalorder %s18, 0
      %p70 = por %p68, %p69
      %s71 = sshrl.u32 %s21, 3
      %s72 = sshrl.u32 %s30, 3
      %s73 = ssub.s32 %s19, %s38
      %s74 = ssub.s32 %s20, %s34
      %s75 = sor.u32 %s73, %s74
      %s76 = ssub.s32 %s71, %s72
      %s77 = sor.u32 %s75, %s76
      %p78 = scmp.eq.s32.totalorder %s77, 0
      %s80 = sadd.s32 %s79, 1
      %s81 = scalar_select %p78, %s79, %s80
      %p84 = pneg %p78
      %p85 = scmp.eq.s32.totalorder %s12, 31
      %p86 = por %p84, %p85
      %p87 = scmp.ne.s32.totalorder %s79, %s82
      %p88 = scmp.eq.s32.totalorder %s12, 0
      %p89 = por %p87, %p88
      %p90 = scmp.ne.s32.totalorder %s79, %s82
      %p91 = scmp.eq.s32.totalorder %s17, 31
      %p92 = por %p90, %p91
      %p93 = scmp.ne.s32.totalorder %s82, %s83
      %p94 = scmp.eq.s32.totalorder %s17, 0
      %p95 = por %p93, %p94
      %p96 = scmp.ne.s32.totalorder %s82, %s83
      %p97 = scmp.eq.s32.totalorder %s18, 31
      %p98 = por %p96, %p97
      %p100 = scmp.ne.s32.totalorder %s83, %s99
      %p101 = scmp.eq.s32.totalorder %s18, 0
      %p102 = por %p100, %p101
      %p103 = scmp.le.s32.totalorder 1, %s12
      %p104 = scmp.lt.s32.totalorder %s12, 33
      %p105 = pnand %p103, %p104
      %p106 = pneg %p105
      // Predicated region
      $region9: #{custom-call.2} parent=5 // pred_check
        _
      $region10: #{custom-call.2} parent=5 // pred_check_branch
        %108 = sbr.rel (%p105) target = $region12
      $region11: #{custom-call.2} parent=5 // pred_region
        %s109 = ssub.s32 %s12, 1
      $region12: #{custom-call.2} parent=5 // pred_fallthru
        _
      %p110 = scmp.lt.s32.totalorder %s12, 32
      // Predicated region
      $region13: #{custom-call.2} parent=5 // pred_check
        %p111 = pneg %p110
      $region14: #{custom-call.2} parent=5 // pred_check_branch
        %113 = sbr.rel (%p111) target = $region16
      $region15: #{custom-call.2} parent=5 // pred_region
        %s114 = sand.u32 %s12, 1
        %s115 = sand.u32 %s12, 1
        %s116 = smul.addr %s115, 24
        %s117 = scalar_lea.vmem [#allocation0], %s116
        %s118 = smul.addr %s20, 4
        %s119 = sadd.s32 %s21, %s118
        %s120 = smul.addr %s19, 16
        %s121 = sadd.s32 %s119, %s120
        %s122 = smul.addr %s121, 24
        %s123 = scalar_lea.vmem %s0, %s122
        // Predicated region
        $region17: #{custom-call.2} parent=15 // pred_check
          _
        $region18: #{custom-call.2} parent=15 // pred_check_branch
          %125 = sbr.rel (0) target = $region20
        $region19: #{custom-call.2} parent=15 // pred_region
          // Predicated region
          $region21: #{custom-call.2} parent=19 // pred_check
            _
          $region22: #{custom-call.2} parent=19 // pred_check_branch
            %127 = sbr.rel (0) target = $region24
          $region23: #{custom-call.2} parent=19 // pred_region
            loop: start=0, step=1, limit=1
            $region25: #{custom-call.2} parent=23 // loop_pre_header
              _
            $region26: #{custom-call.2} parent=23 // loop_header
              %s129 = sphi 0, %s133
              %p130 = scmp.ge.s32.totalorder %s129, 1
              %s134 = sphi %s123, %s123
              %s135 = sphi %s117, %s117
            $region27: #{custom-call.2} parent=23 // loop_header_branch
              %132 = sbr.rel (%p130) target = $region31
            $region28: #{custom-call.2} parent=23 // loop_body
              %v136 = vld [vmem:[%s134] sm:$0xff]
              %137 = vst [vmem:[%s135] sm:$0xff] %v136
              %v138 = vld [vmem:[%s134 + $0x8] sm:$0xff]
              %139 = vst [vmem:[%s135 + $0x8] sm:$0xff] %v138
              %v140 = vld [vmem:[%s134 + $0x10] sm:$0xff]
              %141 = vst [vmem:[%s135 + $0x10] sm:$0xff] %v140
            $region29: #{custom-call.2} parent=23 // loop_footer
              %s133 = sadd.s32 1, %s129
            $region30: #{custom-call.2} parent=23 // loop_footer_branch
              %128 = sbr.rel target = $region26
            $region31: #{custom-call.2} parent=23 // loop_exit
              _
          $region24: #{custom-call.2} parent=19 // pred_fallthru
            _
          // Predicated region
          $region32: #{custom-call.2} parent=19 // pred_check
            _
          $region33: #{custom-call.2} parent=19 // pred_check_branch
            %143 = sbr.rel target = $region35
          $region34: #{custom-call.2} parent=19 // pred_region
            _
          $region35: #{custom-call.2} parent=19 // pred_fallthru
            _
        $region20: #{custom-call.2} parent=15 // pred_fallthru
          _
        %144 = vnop
      $region16: #{custom-call.2} parent=5 // pred_fallthru
        _
      %p145 = scmp.le.s32.totalorder 1, %s12
      %p146 = scmp.lt.s32.totalorder %s12, 33
      %p147 = pnand %p145, %p146
      %p148 = pneg %p147
      // Predicated region
      $region36: #{custom-call.2} parent=5 // pred_check
        _
      $region37: #{custom-call.2} parent=5 // pred_check_branch
        %150 = sbr.rel (%p147) target = $region39
      $region38: #{custom-call.2} parent=5 // pred_region
        #allocation8 [shape = 's32[18,128]{1,0}', space=vmem, size = 0x3000, scoped, tag = 'scratch for permutations']
        %s151 = ssub.s32 %s12, 1
        %s152 = sand.u32 %s17, 1
        %s153 = sand.u32 %s17, 1
        %s154 = smul.addr %s153, 24
        %s155 = scalar_lea.vmem [#allocation0], %s154
        %s156 = sand.u32 %s17, 1
        %s157 = sand.u32 %s17, 1
        %s158 = smul.addr %s157, 24
        %s159 = scalar_lea.vmem [#allocation0], %s158
        %s160 = sand.u32 %s17, 1
        %s161 = sand.u32 %s17, 1
        %s162 = smul.addr %s161, 24
        %s163 = scalar_lea.vmem [#allocation1], %s162
        %p164 = pneg %p63
        %p165 = pneg %p60
        %s166 = sand.u32 %s50, 1
        %s167 = scalar_lea.sflag [#allocation4], %s166
        %s168 = sand.u32 %s50, 1
        %s169 = smul.addr %s168, 4
        %s170 = scalar_lea.vmem [#allocation3], %s169
        %p171 = pneg %p95
        %p172 = pneg %p92
        %s173 = sand.u32 %s82, 1
        %s174 = scalar_lea.sflag [#allocation7], %s173
        %s175 = sand.u32 %s82, 1
        %s176 = smul.addr %s175, 4
        %s177 = scalar_lea.vmem [#allocation6], %s176
        %s178 = sshrl.u32 %s24, 3
        %s179 = sshrl.u32 %s24, 3
        %v180 = vld [vmem:[%s155] sm:$0xff]
        %181 = vst [vmem:[%s163] sm:$0xff] %v180
        %s182 = scalar_lea.vmem %s163, 8 [#allocation1]
        %s183 = scalar_lea.vmem %s155, 8 [#allocation0]
        %v184 = vld [vmem:[%s183] sm:$0xff]
        %185 = vst [vmem:[%s182] sm:$0xff] %v184
        %s186 = scalar_lea.vmem %s163, 16 [#allocation1]
        %s187 = scalar_lea.vmem %s155, 16 [#allocation0]
        %v188 = vld [vmem:[%s187] sm:$0xff]
        %189 = vst [vmem:[%s186] sm:$0xff] %v188
        %s190 = sand.u32 %s24, 7
        %s191 = scalar_lea.vmem [#allocation2], %s190
        %s192 = sand.u32 %s24, 7
        %s193 = scalar_lea.vmem [#allocation5], %s192
        %194 = vst [vmem:[%s191] sm:$0x1] 0
        %v195 = vlaneseq
        %v196 = vshrl.u32 %v195, 7
        %v197 = vmov %v196
        loop: start=0, step=1, limit=3
        $region40: #{custom-call.2} parent=38 // loop_pre_header
          _
        $region41: #{custom-call.2} parent=38 // loop_header
          %s199 = sphi 0, %s203
          %p200 = scmp.ge.s32.totalorder %s199, 3
        $region42: #{custom-call.2} parent=38 // loop_header_branch
          %202 = sbr.rel (%p200) target = $region46
        $region43: #{custom-call.2} parent=38 // loop_body
          %s204 = smul.addr %s199, 8
          %s205 = scalar_lea.vmem [#allocation8], %s204
          %s206 = smul.u32 %s199, 8
          %v207 = vstv %s206
          %v208 = vadd.s32 %v197, %v207
          %209 = vst [vmem:[%s205] sm:$0xff] %v208
        $region44: #{custom-call.2} parent=38 // loop_footer
          %s203 = sadd.s32 1, %s199
        $region45: #{custom-call.2} parent=38 // loop_footer_branch
          %198 = sbr.rel target = $region41
        $region46: #{custom-call.2} parent=38 // loop_exit
          _
        loop: start=0, step=1, limit=18
        $region47: #{custom-call.2} parent=38 // loop_pre_header
          _
        $region48: #{custom-call.2} parent=38 // loop_header
          %s211 = sphi 0, %s215
          %p212 = scmp.ge.s32.totalorder %s211, 18
        $region49: #{custom-call.2} parent=38 // loop_header_branch
          %214 = sbr.rel (%p212) target = $region53
        $region50: #{custom-call.2} parent=38 // loop_body
          %v216 = vstv %s211
          %v217 = vlaneseq
          %v218 = vshrl.u32 %v217, 7
          %v219 = vmov %v218
          %v220 = vld [vmem:[%s163] sm:$0xff]
          %v221 = vand.u32 2147483647, %v220
          %v223 = vstv %s211
          %vm224 = vcmp.ge.s32.totalorder %v219, %v223
          %vm225 = vcmp.lt.s32.totalorder %v219, 18
          %vm226 = vmand %vm224, %vm225
          %vm227 = vcmp.lt.f32.partialorder -inf, %v221
          %vm228 = vmand %vm226, %vm227
          %v229 = vsel %vm228, %v219, %v216
          %v230 = vsel %vm228, %v221, -inf
          %s231 = scalar_lea.vmem %s163, 8 [#allocation1]
          %v232 = vld [vmem:[%s231] sm:$0xff]
          %v233 = vand.u32 2147483647, %v232
          %v234 = vadd.s32 %v219, 8
          %v235 = vstv %s211
          %vm236 = vcmp.ge.s32.totalorder %v234, %v235
          %vm237 = vcmp.lt.s32.totalorder %v234, 18
          %vm238 = vmand %vm236, %vm237
          %vm239 = vcmp.lt.f32.partialorder %v230, %v233
          %vm240 = vmand %vm238, %vm239
          %v241 = vsel %vm240, %v234, %v229
          %v242 = vsel %vm240, %v233, %v230
          %s243 = scalar_lea.vmem %s163, 16 [#allocation1]
          %v244 = vld [vmem:[%s243] sm:$0xff]
          %v245 = vand.u32 2147483647, %v244
          %v246 = vadd.s32 %v219, 16
          %v247 = vstv %s211
          %vm248 = vcmp.ge.s32.totalorder %v246, %v247
          %vm249 = vcmp.lt.s32.totalorder %v246, 18
          %vm250 = vmand %vm248, %vm249
          %vm251 = vcmp.lt.f32.partialorder %v242, %v245
          %vm252 = vmand %vm250, %vm251
          %v253 = vsel %vm252, %v246, %v241
          %v254 = vsel %vm252, %v245, %v242
          %v255 = vrot.slane %v254, 1
          %v256 = vrot.slane %v253, 1
          %vm257 = vcmp.ge.f32.partialorder %v255, %v254
          %v258 = vsel %vm257, %v255, %v254
          %v259 = vsel %vm257, %v256, %v253
          %v260 = vrot.slane %v255, 1
          %v261 = vrot.slane %v256, 1
          %vm262 = vcmp.ge.f32.partialorder %v260, %v258
          %v263 = vsel %vm262, %v260, %v258
          %v264 = vsel %vm262, %v261, %v259
          %v265 = vrot.slane %v260, 1
          %v266 = vrot.slane %v261, 1
          %vm267 = vcmp.ge.f32.partialorder %v265, %v263
          %v268 = vsel %vm267, %v265, %v263
          %v269 = vsel %vm267, %v266, %v264
          %v270 = vrot.slane %v265, 1
          %v271 = vrot.slane %v266, 1
          %vm272 = vcmp.ge.f32.partialorder %v270, %v268
          %v273 = vsel %vm272, %v270, %v268
          %v274 = vsel %vm272, %v271, %v269
          %v275 = vrot.slane %v270, 1
          %v276 = vrot.slane %v271, 1
          %vm277 = vcmp.ge.f32.partialorder %v275, %v273
          %v278 = vsel %vm277, %v275, %v273
          %v279 = vsel %vm277, %v276, %v274
          %v280 = vrot.slane %v275, 1
          %v281 = vrot.slane %v276, 1
          %vm282 = vcmp.ge.f32.partialorder %v280, %v278
          %v283 = vsel %vm282, %v280, %v278
          %v284 = vsel %vm282, %v281, %v279
          %v285 = vrot.slane %v280, 1
          %v286 = vrot.slane %v281, 1
          %vm287 = vcmp.ge.f32.partialorder %v285, %v283
          %v288 = vsel %vm287, %v285, %v283
          %v289 = vsel %vm287, %v286, %v284
          %s290 = ssub.s32 128, %s211
          %291 = vrot.lane.b32.xlu0 %v289, %s290
          %v292 = vpop.permute.xlu0 %291
          %s293 = vtos %v292
          %v294 = vstv %s211
          %v295 = vlaneseq
          %v296 = vand.u32 %v295, 127
          %vm297 = vcmp.eq.s32.totalorder %v296, %v294
          %v298 = vstv %s293
          %v299 = vld [vmem:[%s191] ss:$0 sm:$0xff]
          %v300 = vsel %vm297, %v298, %v299
          %301 = vst [vmem:[%s191] sm:$0x1] %v300
          %s302 = scalar_lea.vmem %s163, %s211 [#allocation1]
          %s303 = scalar_lea.vmem %s163, %s293 [#allocation1]
          %v304 = vld [vmem:[%s302] ss:$0 sm:$0xff]
          %v305 = vld [vmem:[%s303] ss:$0 sm:$0xff]
          %306 = vst [vmem:[%s303] sm:$0x1] %v304
          %307 = vst [vmem:[%s302] sm:$0x1] %v305
          %s308 = scalar_lea.vmem [#allocation8], %s211
          %s309 = scalar_lea.vmem [#allocation8], %s293
          %v310 = vld [vmem:[%s308] ss:$0 sm:$0xff]
          %v311 = vld [vmem:[%s309] ss:$0 sm:$0xff]
          %312 = vst [vmem:[%s309] sm:$0x1] %v310
          %313 = vst [vmem:[%s308] sm:$0x1] %v311
          %vm314 = vcmp.ne.f32.partialorder %v305, 0.0
          %vm315 = vmand %vm297, %vm314
          %v316 = vsel %vm315, %v305, 1.0
          %v317 = vlaneseq
          %v318 = vand.u32 %v317, 127
          %v319 = vstv %s211
          %vm320 = vcmp.gt.s32.totalorder %v318, %v319
          %v321 = vsel %vm320, %v305, 0.0
          %v322 = vlaneseq
          %v323 = vshrl.u32 %v322, 7
          %v324 = vmov %v323
          %v325 = vld [vmem:[%s163] sm:$0xff]
          %v327 = vstv %s211
          %vm328 = vcmp.gt.s32.totalorder %v324, %v327
          %v329 = vsel %vm328, %v316, 1.0
          %v330 = vrcp.pop %v329
          %v331 = vmul.f32 %v329, %v330
          %v332 = vsub.f32 1.0, %v331
          %v333 = vmul.f32 %v330, %v332
          %v334 = vadd.f32 %v330, %v333
          %vm335 = vweird.f32 %v329
          %vm336 = vweird.f32 %v330
          %vm337 = vmor %vm335, %vm336
          %v338 = vsel %vm337, %v330, %v334
          %v339 = vand.u32 2147483647, %v329
          %vm340 = vcmp.eq.f32.partialorder %v339, 8.507059e+37
          %v341 = vand.u32 %v329, 2147483648
          %v342 = vor.u32 1.1754944e-38, %v341
          %v343 = vsel %vm340, %v342, %v338
          %v344 = vmul.f32 %v325, %v343
          %vm345 = vmand %vm328, %vm297
          %v346 = vsel %vm345, %v344, 0.0
          %347 = vadd.xlane.f32.xlu0 %v346
          %v348 = vpop.xlane.xlu0 %347
          %v349 = vmul.f32 %v348, %v321
          %v350 = vsub.f32 %v344, %v349
          %351 = vst [vmem:[%s163] sm:$0xff] %v350
          %s352 = scalar_lea.vmem %s163, 8 [#allocation1]
          %v353 = vld [vmem:[%s352] sm:$0xff]
          %v354 = vadd.s32 %v324, 8
          %v355 = vstv %s211
          %vm356 = vcmp.gt.s32.totalorder %v354, %v355
          %v357 = vsel %vm356, %v316, 1.0
          %v358 = vrcp.pop %v357
          %v359 = vmul.f32 %v357, %v358
          %v360 = vsub.f32 1.0, %v359
          %v361 = vmul.f32 %v358, %v360
          %v362 = vadd.f32 %v358, %v361
          %vm363 = vweird.f32 %v357
          %vm364 = vweird.f32 %v358
          %vm365 = vmor %vm363, %vm364
          %v366 = vsel %vm365, %v358, %v362
          %v367 = vand.u32 2147483647, %v357
          %vm368 = vcmp.eq.f32.partialorder %v367, 8.507059e+37
          %v369 = vand.u32 %v357, 2147483648
          %v370 = vor.u32 1.1754944e-38, %v369
          %v371 = vsel %vm368, %v370, %v366
          %v372 = vmul.f32 %v353, %v371
          %vm373 = vmand %vm356, %vm297
          %v374 = vsel %vm373, %v372, 0.0
          %375 = vadd.xlane.f32.xlu0 %v374
          %v376 = vpop.xlane.xlu0 %375
          %v377 = vmul.f32 %v376, %v321
          %v378 = vsub.f32 %v372, %v377
          %379 = vst [vmem:[%s352] sm:$0xff] %v378
          %s380 = scalar_lea.vmem %s163, 16 [#allocation1]
          %v381 = vld [vmem:[%s380] sm:$0xff]
          %v382 = vadd.s32 %v324, 16
          %v383 = vstv %s211
          %vm384 = vcmp.gt.s32.totalorder %v382, %v383
          %v385 = vsel %vm384, %v316, 1.0
          %v386 = vrcp.pop %v385
          %v387 = vmul.f32 %v385, %v386
          %v388 = vsub.f32 1.0, %v387
          %v389 = vmul.f32 %v386, %v388
          %v390 = vadd.f32 %v386, %v389
          %vm391 = vweird.f32 %v385
          %vm392 = vweird.f32 %v386
          %vm393 = vmor %vm391, %vm392
          %v394 = vsel %vm393, %v386, %v390
          %v395 = vand.u32 2147483647, %v385
          %vm396 = vcmp.eq.f32.partialorder %v395, 8.507059e+37
          %v397 = vand.u32 %v385, 2147483648
          %v398 = vor.u32 1.1754944e-38, %v397
          %v399 = vsel %vm396, %v398, %v394
          %v400 = vmul.f32 %v381, %v399
          %vm401 = vmand %vm384, %vm297
          %v402 = vsel %vm401, %v400, 0.0
          %403 = vadd.xlane.f32.xlu0 %v402
          %v404 = vpop.xlane.xlu0 %403
          %v405 = vmul.f32 %v404, %v321
          %v406 = vsub.f32 %v400, %v405
          %407 = vst [vmem:[%s380] sm:$0xff] %v406
        $region51: #{custom-call.2} parent=38 // loop_footer
          %s215 = sadd.s32 1, %s211
        $region52: #{custom-call.2} parent=38 // loop_footer_branch
          %210 = sbr.rel target = $region48
        $region53: #{custom-call.2} parent=38 // loop_exit
          _
        %v408 = vld [vmem:[#allocation8] sm:$0xff]
        %s409 = scalar_lea.vmem [#allocation8], 8
        %v410 = vld [vmem:[%s409] sm:$0xff]
        %s411 = scalar_lea.vmem [#allocation8], 16
        %v412 = vld [vmem:[%s411] sm:$0xff]
        %s413 = scalar_lea.vmem [#allocation8], 24
        %s414 = scalar_lea.vmem [#allocation8], 32
        %s415 = scalar_lea.vmem [#allocation8], 40
        %s416 = scalar_lea.vmem [#allocation8], 48
        %s417 = scalar_lea.vmem [#allocation8], 56
        %s418 = scalar_lea.vmem [#allocation8], 64
        %s419 = scalar_lea.vmem [#allocation8], 72
        %s420 = scalar_lea.vmem [#allocation8], 80
        %s421 = scalar_lea.vmem [#allocation8], 88
        %s422 = scalar_lea.vmem [#allocation8], 96
        %s423 = scalar_lea.vmem [#allocation8], 104
        %s424 = scalar_lea.vmem [#allocation8], 112
        %s425 = scalar_lea.vmem [#allocation8], 120
        %426 = vxpose.xlu0.b32.start [1/16] %v408, 128
        %427 = vxpose.xlu0.b32.cont [2/16] %v410, 128
        %428 = vxpose.xlu0.b32.cont [3/16] %v412, 128
        %429 = vxpose.xlu0.b32.cont [4/16] 0, 128
        %430 = vxpose.xlu0.b32.cont [5/16] 0, 128
        %431 = vxpose.xlu0.b32.cont [6/16] 0, 128
        %432 = vxpose.xlu0.b32.cont [7/16] 0, 128
        %433 = vxpose.xlu0.b32.cont [8/16] 0, 128
        %434 = vxpose.xlu0.b32.cont [9/16] 0, 128
        %435 = vxpose.xlu0.b32.cont [10/16] 0, 128
        %436 = vxpose.xlu0.b32.cont [11/16] 0, 128
        %437 = vxpose.xlu0.b32.cont [12/16] 0, 128
        %438 = vxpose.xlu0.b32.cont [13/16] 0, 128
        %439 = vxpose.xlu0.b32.cont [14/16] 0, 128
        %440 = vxpose.xlu0.b32.cont [15/16] 0, 128
        %441 = vxpose.xlu0.b32.end [16/16] 0, 128
        %v442 = vpop.trf.xlu0
        %v443 = vpop.trf.xlu0
        %v444 = vpop.trf.xlu0
        %v445 = vpop.trf.xlu0
        %v446 = vpop.trf.xlu0
        %v447 = vpop.trf.xlu0
        %v448 = vpop.trf.xlu0
        %v449 = vpop.trf.xlu0
        %v450 = vpop.trf.xlu0
        %v451 = vpop.trf.xlu0
        %v452 = vpop.trf.xlu0
        %v453 = vpop.trf.xlu0
        %v454 = vpop.trf.xlu0
        %v455 = vpop.trf.xlu0
        %v456 = vpop.trf.xlu0
        %v457 = vpop.trf.xlu0
        %458 = vst [vmem:[%s193] sm:$0x1] %v442
        %s460 = ssub.s32 16, 1
        %v461 = vld [vmem:[#allocation2] sm:%s460]
        %s463 = ssub.s32 16, 1
        %464 = vst [vmem:[%s170] sm:%s463] %v461
        %s466 = ssub.s32 16, 1
        %v467 = vld [vmem:[#allocation5] sm:%s466]
        %s469 = ssub.s32 16, 1
        %470 = vst [vmem:[%s177] sm:%s469] %v467
        %s471 = sand.u32 %s17, 1
        %s472 = sand.u32 %s17, 1
        %s473 = smul.addr %s472, 24
        %s474 = scalar_lea.vmem [#allocation1], %s473
        %s475 = sand.u32 %s50, 1
        %s476 = scalar_lea.sflag [#allocation4], %s475
        %s477 = sand.u32 %s50, 1
        %s478 = smul.addr %s477, 4
        %s479 = scalar_lea.vmem [#allocation3], %s478
        %s480 = sand.u32 %s82, 1
        %s481 = scalar_lea.sflag [#allocation7], %s480
        %s482 = sand.u32 %s82, 1
        %s483 = smul.addr %s482, 4
        %s484 = scalar_lea.vmem [#allocation6], %s483
        %s485 = smul.addr %s23, 4
        %s486 = sadd.s32 %s24, %s485
        %s487 = smul.addr %s22, 16
        %s488 = sadd.s32 %s486, %s487
        %s489 = smul.addr %s488, 24
        %s490 = scalar_lea.vmem %s1, %s489
        // Predicated region
        $region54: #{custom-call.2} parent=38 // pred_check
          _
        $region55: #{custom-call.2} parent=38 // pred_check_branch
          %492 = sbr.rel (0) target = $region57
        $region56: #{custom-call.2} parent=38 // pred_region
          // Predicated region
          $region58: #{custom-call.2} parent=56 // pred_check
            _
          $region59: #{custom-call.2} parent=56 // pred_check_branch
            %494 = sbr.rel (0) target = $region61
          $region60: #{custom-call.2} parent=56 // pred_region
            loop: start=0, step=1, limit=1
            $region62: #{custom-call.2} parent=60 // loop_pre_header
              _
            $region63: #{custom-call.2} parent=60 // loop_header
              %s496 = sphi 0, %s500
              %p497 = scmp.ge.s32.totalorder %s496, 1
              %s501 = sphi %s474, %s474
              %s502 = sphi %s490, %s490
            $region64: #{custom-call.2} parent=60 // loop_header_branch
              %499 = sbr.rel (%p497) target = $region68
            $region65: #{custom-call.2} parent=60 // loop_body
              %v503 = vld [vmem:[%s501] sm:$0xff]
              %504 = vst [vmem:[%s502] sm:$0xff] %v503
              %v505 = vld [vmem:[%s501 + $0x8] sm:$0xff]
              %506 = vst [vmem:[%s502 + $0x8] sm:$0xff] %v505
              %v507 = vld [vmem:[%s501 + $0x10] sm:$0xff]
              %508 = vst [vmem:[%s502 + $0x10] sm:$0xff] %v507
            $region66: #{custom-call.2} parent=60 // loop_footer
              %s500 = sadd.s32 1, %s496
            $region67: #{custom-call.2} parent=60 // loop_footer_branch
              %495 = sbr.rel target = $region63
            $region68: #{custom-call.2} parent=60 // loop_exit
              _
          $region61: #{custom-call.2} parent=56 // pred_fallthru
            _
          // Predicated region
          $region69: #{custom-call.2} parent=56 // pred_check
            _
          $region70: #{custom-call.2} parent=56 // pred_check_branch
            %510 = sbr.rel target = $region72
          $region71: #{custom-call.2} parent=56 // pred_region
            _
          $region72: #{custom-call.2} parent=56 // pred_fallthru
            _
        $region57: #{custom-call.2} parent=38 // pred_fallthru
          _
        %511 = vnop
        // Predicated region
        $region73: #{custom-call.2} parent=38 // pred_check
          %p512 = pneg %p60
        $region74: #{custom-call.2} parent=38 // pred_check_branch
          %514 = sbr.rel (%p512) target = $region76
        $region75: #{custom-call.2} parent=38 // pred_region
          %s515 = sshrl.u32 %s24, 3
          %517 = vsyncadd %s476, 0
          %s518 = sadd.s32 %s515, %s23
          %s519 = smul.addr %s22, 4
          %s520 = sadd.s32 %s518, %s519
          %s521 = smul.addr %s520, 4
          %s522 = scalar_lea.hbm %s2, %s521
          %s524 = sshll.u32 %s479, 4
          %s525 = int_to_ptr.vmem [resolvable:$true] %s524
          %s526 = sshll.u32 %s522, 4
          %s527 = int_to_ptr.hbm [resolvable:$true] %s526
          %529 = dma.vmem_to_hbm [thread:$0]  %s525, 64, %s527, %s476
        $region76: #{custom-call.2} parent=38 // pred_fallthru
          _
        // Predicated region
        $region77: #{custom-call.2} parent=38 // pred_check
          %p530 = pneg %p92
        $region78: #{custom-call.2} parent=38 // pred_check_branch
          %532 = sbr.rel (%p530) target = $region80
        $region79: #{custom-call.2} parent=38 // pred_region
          %s533 = sshrl.u32 %s24, 3
          %535 = vsyncadd %s481, 0
          %s536 = sadd.s32 %s533, %s23
          %s537 = smul.addr %s22, 4
          %s538 = sadd.s32 %s536, %s537
          %s539 = smul.addr %s538, 4
          %s540 = scalar_lea.hbm %s3, %s539
          %s542 = sshll.u32 %s484, 4
          %s543 = int_to_ptr.vmem [resolvable:$true] %s542
          %s544 = sshll.u32 %s540, 4
          %s545 = int_to_ptr.hbm [resolvable:$true] %s544
          %547 = dma.vmem_to_hbm [thread:$0]  %s543, 64, %s545, %s481
        $region80: #{custom-call.2} parent=38 // pred_fallthru
          _
      $region39: #{custom-call.2} parent=5 // pred_fallthru
        _
      %p548 = scmp.le.s32.totalorder 2, %s12
      // Predicated region
      $region81: #{custom-call.2} parent=5 // pred_check
        %p549 = pneg %p548
      $region82: #{custom-call.2} parent=5 // pred_check_branch
        %551 = sbr.rel (%p549) target = $region84
      $region83: #{custom-call.2} parent=5 // pred_region
        %s552 = ssub.s32 %s12, 2
        %s553 = sand.u32 %s18, 1
        %s554 = sand.u32 %s18, 1
        %s555 = smul.addr %s554, 24
        %s556 = scalar_lea.vmem [#allocation1], %s555
        // Predicated region
        $region85: #{custom-call.2} parent=83 // pred_check
          %p557 = pneg %p66
        $region86: #{custom-call.2} parent=83 // pred_check_branch
          %559 = sbr.rel (%p557) target = $region88
        $region87: #{custom-call.2} parent=83 // pred_region
          %s560 = sand.u32 %s51, 1
          %s561 = scalar_lea.sflag [#allocation4], %s560
          %s562 = sand.u32 %s51, 1
          %s563 = smul.addr %s562, 4
          %s564 = scalar_lea.vmem [#allocation3], %s563
          %566 = dma.done %s561, 64
        $region88: #{custom-call.2} parent=83 // pred_fallthru
          _
        // Predicated region
        $region89: #{custom-call.2} parent=83 // pred_check
          %p567 = pneg %p98
        $region90: #{custom-call.2} parent=83 // pred_check_branch
          %569 = sbr.rel (%p567) target = $region92
        $region91: #{custom-call.2} parent=83 // pred_region
          %s570 = sand.u32 %s83, 1
          %s571 = scalar_lea.sflag [#allocation7], %s570
          %s572 = sand.u32 %s83, 1
          %s573 = smul.addr %s572, 4
          %s574 = scalar_lea.vmem [#allocation6], %s573
          %576 = dma.done %s571, 64
        $region92: #{custom-call.2} parent=83 // pred_fallthru
          _
      $region84: #{custom-call.2} parent=5 // pred_fallthru
        _
    $region6: #{custom-call.2} parent=1 // loop_footer
      %s16 = sadd.s32 1, %s12
    $region7: #{custom-call.2} parent=1 // loop_footer_branch
      %11 = sbr.rel target = $region3
    $region8: #{custom-call.2} parent=1 // loop_exit
      _
    %577 = vsyncpa [#allocation4], 1
    %s578 = scalar_lea.sflag [#allocation4], 1
    %579 = vsyncpa %s578, 1
    %580 = vsyncpa [#allocation7], 1
    %s581 = scalar_lea.sflag [#allocation7], 1
    %582 = vsyncpa %s581, 1

</llo_original>
